<compile_context>
chip_gen: v7x
topology: tpu7x:2x2x1
jax: 0.10.0
libtpu: 0.0.40
codegen_flags: <defaults>
</compile_context>

<pallas_src>
import functools

import jax
import jax.numpy as jnp
import numpy as np
from jax.experimental import pallas as pl
from jax.experimental.pallas import tpu as pltpu

KW = 4            # Conv3d kernel size
PAD = 1           # Conv3d padding
LRELU_SLOPE = 0.2
BN_EPS = 1e-5


# ----------------------------------------------------------------------------
# Static helpers (weight packing, tap offsets)
# ----------------------------------------------------------------------------
def _tap_offsets(hq, wq):
    """Flat-column offsets of the 8 coarse taps (a, b, c), a major."""
    return tuple((a * hq + b) * wq + c
                 for a in (0, 1) for b in (0, 1) for c in (0, 1))


def _pack_slabs(w):
    """(4,4,4,Cin,Cout) -> (8, Cout, 8*Cin): tap r=(a,b,c), col=((pd,ph,pw),ci)."""
    _, _, _, cin, cout = w.shape
    wr = w.reshape(2, 2, 2, 2, 2, 2, cin, cout)        # (a,pd,b,ph,c,pw,ci,co)
    wr = wr.transpose(0, 2, 4, 7, 1, 3, 5, 6)          # (a,b,c,co,pd,ph,pw,ci)
    return wr.reshape(8, cout, 8 * cin)


def _slab_weight(w, scale):
    """Per-tap slabs with BN scale folded in, bf16."""
    w = w * scale.reshape(1, 1, 1, 1, -1)
    return _pack_slabs(w).astype(jnp.bfloat16)


def _cat_weight(w, scale):
    """Concatenated-K weight (Cout, 64*Cin) with BN scale folded in, bf16."""
    s = _pack_slabs(w * scale.reshape(1, 1, 1, 1, -1))
    cout = s.shape[1]
    return s.transpose(1, 0, 2).reshape(cout, -1).astype(jnp.bfloat16)


# ----------------------------------------------------------------------------
# JAX-side glue (pure layout work, fused by XLA under jit)
# ----------------------------------------------------------------------------
def _space_to_depth(xpad):
    """(N,C,Dp,Hp,Wp) -> (N, 2,2,2, C, Dq,Hq,Wq); leading phases are (pd,ph,pw)."""
    n, c, dp, hp, wp = xpad.shape
    z = xpad.reshape(n, c, dp // 2, 2, hp // 2, 2, wp // 2, 2)
    return z.transpose(0, 3, 5, 7, 1, 2, 4, 6)


def _im2col_stride2(x):
    """Full k=4/s=2/p=1 im2col: (N,C,D,H,W) -> (N, 64*C, Do,Ho,Wo).

    Row order (tap=(a,b,c), phase=(pd,ph,pw), ci) matches _cat_weight/_slab_weight.
    """
    n, c, d, h, w = x.shape
    do, ho, wo = d // 2, h // 2, w // 2
    xp = jnp.pad(x, ((0, 0), (0, 0), (PAD, PAD), (PAD, PAD), (PAD, PAD)))
    z = _space_to_depth(xp)                          # (N,2,2,2,C,Do+1,Ho+1,Wo+1)
    blocks = [z[..., a:a + do, b:b + ho, cc:cc + wo]
              for a in (0, 1) for b in (0, 1) for cc in (0, 1)]
    p = jnp.stack(blocks, axis=1)                    # (N,8,2,2,2,C,Do,Ho,Wo)
    return p.reshape(n, 64 * c, do, ho, wo)


def _layer2_operand(y1):
    """Layer-2 im2col with columns pre-ordered as layer-3's s2d grid.

    y1: (N, C1, 16,16,16) dense layer-1 output (f32).
    Returns (N, 64*C1, 8*128) bf16.  Column (r, j): r = layer-3 phase (pd,ph,pw),
    j = flat (5,5,5) coarse position (125 used + 3 zero pad lanes per slab).
    Columns at layer-3 zero-padding positions are all-zero patches (the kernel
    masks the corresponding outputs back to zero after the biased epilogue).
    """
    n = y1.shape[0]
    so = y1.shape[2] // 2                            # 8  (layer-2 output size)
    g = so // 2 + 1                                  # 5  (layer-3 s2d grid)
    p = _im2col_stride2(y1)                          # (N, 512, 8, 8, 8)
    k = p.shape[1]
    pp = jnp.pad(p, ((0, 0), (0, 0), (1, 1), (1, 1), (1, 1)))   # (N,K,10,10,10)
    pp = pp.reshape(n, k, g, 2, g, 2, g, 2)
    pp = pp.transpose(0, 1, 3, 5, 7, 2, 4, 6)        # (N,K, pd,ph,pw, g,g,g)
    pp = pp.reshape(n, k, 8, g ** 3)
    pp = jnp.pad(pp, ((0, 0), (0, 0), (0, 0), (0, 128 - g ** 3)))
    return pp.reshape(n, k, 8 * 128).astype(jnp.bfloat16)


# ----------------------------------------------------------------------------
# Prepare-time constants (masks / selection matrices / final-conv taps)
# ----------------------------------------------------------------------------
def _make_mask2(s_out2):
    """(1, 8*128) f32: 1 at columns holding real layer-2 outputs, 0 at padding."""
    g = s_out2 // 2 + 1
    m = np.zeros((8, 128), np.float32)
    for r in range(8):
        pd, ph, pw = (r >> 2) & 1, (r >> 1) & 1, r & 1
        for dq in range(g):
            for hq in range(g):
                for wq in range(g):
                    d, h, w = 2 * dq + pd - 1, 2 * hq + ph - 1, 2 * wq + pw - 1
                    if 0 <= d < s_out2 and 0 <= h < s_out2 and 0 <= w < s_out2:
                        m[r, (dq * g + hq) * g + wq] = 1.0
    return jnp.asarray(m.reshape(1, 8 * 128))


def _make_select34(s3, m3):
    """(8, m3, 27) 0/1 bf16: gather-as-matmul from layer-3 output columns to the
    layer-4 s2d slabs (zero columns at layer-4's zero-padding positions)."""
    g3 = s3 + 1            # flat grid of the layer-3 output columns (5)
    g4 = s3 // 2 + 1       # layer-4 s2d grid (3)
    sel = np.zeros((8, m3, g4 ** 3), np.float32)
    for r in range(8):
        pd, ph, pw = (r >> 2) & 1, (r >> 1) & 1, r & 1
        for dq in range(g4):
            for hq in range(g4):
                for wq in range(g4):
                    d, h, w = 2 * dq + pd - 1, 2 * hq + ph - 1, 2 * wq + pw - 1
                    if 0 <= d < s3 and 0 <= h < s3 and 0 <= w < s3:
                        sel[r, (d * g3 + h) * g3 + w,
                            (dq * g4 + hq) * g4 + wq] = 1.0
    return jnp.asarray(sel, dtype=jnp.bfloat16)


def _make_w5f(w5, m4):
    """Final Conv3d(8ndf, 1, k=4, s=1, p=1) on the 2x2x2 activation reduces to its
    centre 2x2x2 taps laid over the layer-4 flat output columns (zeros elsewhere,
    so garbage columns of the layer-4 accumulator are multiplied by exact 0)."""
    w5c = w5[1:3, 1:3, 1:3, :, 0]                       # (2,2,2,Cout4)
    w5p = jnp.pad(w5c, ((0, 1), (0, 1), (0, 1), (0, 0)))  # (3,3,3,Cout4)
    return w5p.reshape(27, -1).T[:, :m4].astype(jnp.float32)


# ----------------------------------------------------------------------------
# Pallas kernels
# ----------------------------------------------------------------------------
def _layer1_kernel(x_ref, w_ref, shift_ref, o_ref):
    """Conv3d #1 as one (Cout, 64*Cin) @ (64*Cin, Do*Ho*Wo) matmul + bias + LReLU."""
    y = jnp.dot(w_ref[...], x_ref[...], preferred_element_type=jnp.float32)
    y = y + shift_ref[...]
    o_ref[...] = jnp.where(y >= 0.0, y, y * LRELU_SLOPE)


def _layers2to5_kernel(x2_ref, w2_ref, sh2_ref, mask2_ref,
                       w3_ref, sh3_ref, sel_ref, w4_ref, sh4_ref,
                       w5_ref, b5_ref, o_ref, a3_ref, a4_ref,
                       *, off3, m3, off4, m4):
    """Fused layers 2..5; all intermediates stay in VMEM (one batch element)."""
    slab_w = x2_ref.shape[1] // 8

    # ---- layer 2: one K=512 matmul over the pre-ordered im2col operand -----
    y2 = jnp.dot(w2_ref[...], x2_ref[...], preferred_element_type=jnp.float32)
    y2 = y2 + sh2_ref[...]
    y2 = jnp.where(y2 >= 0.0, y2, y2 * LRELU_SLOPE)
    y2 = (y2 * mask2_ref[...]).astype(jnp.bfloat16)      # zero the halo columns
    c2 = y2.shape[0]
    # columns are already (phase, coarse) ordered -> 8 aligned slab copies give
    # the layer-3 s2d input with rows (phase, channel).
    for r in range(8):
        a3_ref[r * c2:(r + 1) * c2, :] = y2[:, r * slab_w:(r + 1) * slab_w]

    # ---- layer 3: 8 shifted-tap matmuls on the VMEM-resident s2d input -----
    c3 = w3_ref.shape[1]
    acc3 = jnp.zeros((c3, m3), jnp.float32)
    for r in range(8):
        acc3 = acc3 + jnp.dot(w3_ref[r], a3_ref[:, pl.ds(off3[r], m3)],
                              preferred_element_type=jnp.float32)
    y3 = acc3 + sh3_ref[...]
    y3 = jnp.where(y3 >= 0.0, y3, y3 * LRELU_SLOPE).astype(jnp.bfloat16)

    # ---- 3 -> 4 re-pack: gather-as-matmul against constant 0/1 matrices ----
    # (invalid/garbage columns of y3 hit all-zero rows of sel_ref; they are
    #  always finite since every input to acc3 is either a real activation or
    #  an exact zero, so 0*garbage stays 0.)
    for r in range(8):
        slab = jnp.dot(y3, sel_ref[r], preferred_element_type=jnp.float32)
        a4_ref[r * c3:(r + 1) * c3, :] = slab.astype(jnp.bfloat16)

    # ---- layer 4 + final Conv3d (masked weighted sum) -----------------------
    c4 = w4_ref.shape[1]
    acc4 = jnp.zeros((c4, m4), jnp.float32)
    for r in range(8):
        acc4 = acc4 + jnp.dot(w4_ref[r], a4_ref[:, pl.ds(off4[r], m4)],
                              preferred_element_type=jnp.float32)
    y4 = acc4 + sh4_ref[...]
    y4 = jnp.where(y4 >= 0.0, y4, y4 * LRELU_SLOPE)
    # w5_ref is zero at the invalid flat columns of y4 (finite garbage * 0 = 0).
    t = jnp.sum(y4 * w5_ref[...], axis=1, keepdims=True)
    o_ref[...] = jnp.sum(t, axis=0, keepdims=True) + b5_ref[...]


# ----------------------------------------------------------------------------
# pallas_call wrappers
# ----------------------------------------------------------------------------
def layer1_call(x1, w1, sh1):
    n, k, m = x1.shape
    cout = w1.shape[0]
    return pl.pallas_call(
        _layer1_kernel,
        out_shape=jax.ShapeDtypeStruct((n, cout, m), jnp.float32),
        grid=(n,),
        in_specs=[
            pl.BlockSpec((None, k, m), lambda i: (i, 0, 0)),
            pl.BlockSpec((cout, k), lambda i: (0, 0)),
            pl.BlockSpec((cout, 1), lambda i: (0, 0)),
        ],
        out_specs=pl.BlockSpec((None, cout, m), lambda i: (i, 0, 0)),
        compiler_params=pltpu.CompilerParams(dimension_semantics=("parallel",)),
    )(x1, w1, sh1)


def layers2to5_call(x2, p):
    n, k2, m2 = x2.shape
    off3 = _tap_offsets(5, 5)
    m3 = 5 ** 3 - off3[-1]          # 94
    off4 = _tap_offsets(3, 3)
    p4 = 3 ** 3                     # 27
    m4 = p4 - off4[-1]              # 14
    kernel = functools.partial(_layers2to5_kernel,
                               off3=off3, m3=m3, off4=off4, m4=m4)
    return pl.pallas_call(
        kernel,
        out_shape=jax.ShapeDtypeStruct((n, 1, 1), jnp.float32),
        grid=(n,),
        in_specs=[
            pl.BlockSpec((None, k2, m2), lambda i: (i, 0, 0)),
            pl.BlockSpec(p['w2'].shape, lambda i: (0, 0)),
            pl.BlockSpec(p['shift2'].shape, lambda i: (0, 0)),
            pl.BlockSpec(p['mask2'].shape, lambda i: (0, 0)),
            pl.BlockSpec(p['w3'].shape, lambda i: (0, 0, 0)),
            pl.BlockSpec(p['shift3'].shape, lambda i: (0, 0)),
            pl.BlockSpec(p['sel34'].shape, lambda i: (0, 0, 0)),
            pl.BlockSpec(p['w4'].shape, lambda i: (0, 0, 0)),
            pl.BlockSpec(p['shift4'].shape, lambda i: (0, 0)),
            pl.BlockSpec(p['w5f'].shape, lambda i: (0, 0)),
            pl.BlockSpec(p['b5'].shape, lambda i: (0, 0)),
        ],
        out_specs=pl.BlockSpec((None, 1, 1), lambda i: (i, 0, 0)),
        scratch_shapes=[
            pltpu.VMEM((p['w3'].shape[2], m2 // 8), jnp.bfloat16),   # (128, 128)
            pltpu.VMEM((p['w4'].shape[2], p4), jnp.bfloat16),        # (256, 27)
        ],
        compiler_params=pltpu.CompilerParams(dimension_semantics=("parallel",)),
    )(x2, p['w2'], p['shift2'], p['mask2'], p['w3'], p['shift3'],
      p['sel34'], p['w4'], p['shift4'], p['w5f'], p['b5'])


# ----------------------------------------------------------------------------
# Parameters (deterministic, synthetic) matching the module layout:
#   Conv3d(2, ndf)           + LeakyReLU(0.2)
#   Conv3d(ndf, 2ndf)  + BN  + Dropout + LeakyReLU(0.2)
#   Conv3d(2ndf, 4ndf) + BN  + Dropout + LeakyReLU(0.2)
#   Conv3d(4ndf, 8ndf) + BN  + Dropout + LeakyReLU(0.2)
#   Conv3d(8ndf, 1)
# ----------------------------------------------------------------------------
def init_params(key, ndf):
    cfg = [
        (2,        ndf,     2, False, LRELU_SLOPE),
        (ndf,      2 * ndf, 2, True,  LRELU_SLOPE),
        (2 * ndf,  4 * ndf, 2, True,  LRELU_SLOPE),
        (4 * ndf,  8 * ndf, 2, True,  LRELU_SLOPE),
        (8 * ndf,  1,       1, False, None),
    ]
    params = []
    for cin, cout, stride, use_bn, neg_slope in cfg:
        key, wk, bk = jax.random.split(key, 3)
        fan_in = cin * KW ** 3
        w = jax.random.normal(wk, (KW, KW, KW, cin, cout), jnp.float32) / jnp.sqrt(fan_in)
        b = jax.random.normal(bk, (cout,), jnp.float32) * 0.01
        if use_bn:
            gamma = jnp.ones((cout,), jnp.float32)
            beta = jnp.zeros((cout,), jnp.float32)
            rmean = jnp.zeros((cout,), jnp.float32)
            rvar = jnp.ones((cout,), jnp.float32)
            s = gamma / jnp.sqrt(rvar + BN_EPS)
            scale = s
            shift = beta - rmean * s + b * s       # conv bias folded through BN
        else:
            scale = jnp.ones((cout,), jnp.float32)
            shift = b
        params.append((w, scale, shift, stride, neg_slope))
    return params


def prepare_params(params):
    """Repack canonical parameters into kernel-ready tensors (done once)."""
    (w1, s1, b1, _, _), (w2, s2, b2, _, _), (w3, s3, b3, _, _), \
        (w4, s4, b4, _, _), (w5, _, b5, _, _) = params
    return dict(
        w1=_cat_weight(w1, s1),  shift1=b1.reshape(-1, 1),
        w2=_cat_weight(w2, s2),  shift2=b2.reshape(-1, 1),
        mask2=_make_mask2(8),
        w3=_slab_weight(w3, s3), shift3=b3.reshape(-1, 1),
        sel34=_make_select34(4, 5 ** 3 - _tap_offsets(5, 5)[-1]),
        w4=_slab_weight(w4, s4), shift4=b4.reshape(-1, 1),
        w5f=_make_w5f(w5, 3 ** 3 - _tap_offsets(3, 3)[-1]),
        b5=b5.reshape(1, 1),
    )


# ----------------------------------------------------------------------------
# Forward pass (Pallas) and pure-JAX reference
# ----------------------------------------------------------------------------
@jax.jit
def discriminator_forward(x, prepared):
    n, c, d, h, w = x.shape
    assert (d, h, w) == (32, 32, 32), "fused pipeline is specialized to 32^3 inputs"
    do = d // 2
    # layer 1: glue builds the im2col operand once; kernel is one big-K matmul
    x1 = _im2col_stride2(x).reshape(n, 64 * c, do ** 3).astype(jnp.bfloat16)
    y1 = layer1_call(x1, prepared['w1'], prepared['shift1'])      # (N, ndf, 4096)
    y1 = y1.reshape(n, prepared['w1'].shape[0], do, do, do)
    # layers 2-5: one fused kernel; only this boundary touches HBM in between
    x2 = _layer2_operand(y1)                                      # (N, 512, 1024)
    out = layers2to5_call(x2, prepared)                           # (N, 1, 1)
    return out.reshape(n, 1, 1, 1, 1)


def discriminator_ref(x, params):
    out = x
    for w, scale, shift, stride, neg_slope in params:
        out = jax.lax.conv_general_dilated(
            out, w, window_strides=(stride,) * 3, padding=[(PAD, PAD)] * 3,
            dimension_numbers=("NCDHW", "DHWIO", "NCDHW"),
            precision=jax.lax.Precision.HIGHEST)
        out = out * scale.reshape(1, -1, 1, 1, 1) + shift.reshape(1, -1, 1, 1, 1)
        if neg_slope is not None:
            out = jnp.where(out >= 0.0, out, out * neg_slope)
    return out


if __name__ == "__main__":
    key = jax.random.PRNGKey(0)
    ndf = 8                                   # opt.ndf
    key, xk = jax.random.split(key)
    # 32^3 is the smallest cubic spatial size that keeps the final Conv3d output
    # non-degenerate (k=4 convs: 32 -> 16 -> 8 -> 4 -> 2 -> 1).
    x = jax.random.normal(xk, (2, 2, 32, 32, 32), jnp.float32)  # NCDHW
    params = init_params(key, ndf)
    prepared = prepare_params(params)

    out = jax.block_until_ready(discriminator_forward(x, prepared))
    ref = jax.block_until_ready(discriminator_ref(x, params))

    assert out.shape == (2, 1, 1, 1, 1), out.shape
    # Kernel matmuls run in bf16 (f32 accumulation); reference is f32/HIGHEST.
    assert jnp.allclose(out, ref, rtol=2e-2, atol=2e-2), (out, ref)
    print("KERNEL_OK")
</pallas_src>

<mosaic_0001>
module attributes {stable_mosaic.version = 11 : i64} {
  func.func @_layer1_kernel(%arg0: i32, %arg1: memref<1x128x4096xbf16, #tpu.memory_space<vmem>>, %arg2: memref<8x128xbf16, #tpu.memory_space<vmem>>, %arg3: memref<8x1xf32, #tpu.memory_space<vmem>>, %arg4: memref<1x8x4096xf32, #tpu.memory_space<vmem>>) attributes {dimension_semantics = [#tpu.dimension_semantics<parallel>], iteration_bounds = array<i64: 2>, scalar_prefetch = 0 : i64, scratch_operands = 0 : i64, tpu.core_type = #tpu.core_type<tc>, window_params = [{transform_indices = @transform_0, window_bounds = array<i64: 1, 128, 4096>}, {pipeline_mode = #tpu.pipeline_mode<synchronous>, transform_indices = @transform_1, window_bounds = array<i64: 8, 128>}, {pipeline_mode = #tpu.pipeline_mode<synchronous>, transform_indices = @transform_2, window_bounds = array<i64: 8, 1>}, {transform_indices = @transform_3, window_bounds = array<i64: 1, 8, 4096>}]} {
    %c0 = arith.constant 0 : index
    %c0_0 = arith.constant 0 : index
    %0 = vector.load %arg2[%c0, %c0_0] : memref<8x128xbf16, #tpu.memory_space<vmem>>, vector<8x128xbf16>
    %c0_1 = arith.constant 0 : index
    %c0_2 = arith.constant 0 : index
    %c0_3 = arith.constant 0 : index
    %1 = vector.load %arg1[%c0_1, %c0_2, %c0_3] : memref<1x128x4096xbf16, #tpu.memory_space<vmem>>, vector<1x128x4096xbf16>
    %2 = vector.shape_cast %1 : vector<1x128x4096xbf16> to vector<128x4096xbf16>
    %cst = arith.constant dense<0.000000e+00> : vector<8x4096xf32>
    %3 = tpu.matmul %0, %2, %cst {dimension_numbers = #tpu.dot_dimension_numbers<[1], [0], [0], [1], [0, 0, 1, 1], [], []>} : vector<8x128xbf16>, vector<128x4096xbf16>, vector<8x4096xf32> -> vector<8x4096xf32>
    %c0_4 = arith.constant 0 : index
    %c0_5 = arith.constant 0 : index
    %4 = vector.load %arg3[%c0_4, %c0_5] : memref<8x1xf32, #tpu.memory_space<vmem>>, vector<8x1xf32>
    %5 = vector.broadcast %4 : vector<8x1xf32> to vector<8x4096xf32>
    %6 = arith.addf %3, %5 : vector<8x4096xf32>
    %cst_6 = arith.constant 0.000000e+00 : f32
    %7 = vector.broadcast %cst_6 : f32 to vector<8x4096xf32>
    %8 = arith.cmpf oge, %6, %7 : vector<8x4096xf32>
    %cst_7 = arith.constant 2.000000e-01 : f32
    %9 = vector.broadcast %cst_7 : f32 to vector<8x4096xf32>
    %10 = arith.mulf %6, %9 : vector<8x4096xf32>
    %11 = arith.select %8, %6, %10 : vector<8x4096xi1>, vector<8x4096xf32>
    %c0_8 = arith.constant 0 : index
    %c0_9 = arith.constant 0 : index
    %c0_10 = arith.constant 0 : index
    %12 = vector.load %arg4[%c0_8, %c0_9, %c0_10] : memref<1x8x4096xf32, #tpu.memory_space<vmem>>, vector<1x8x4096xf32>
    %13 = vector.shape_cast %12 : vector<1x8x4096xf32> to vector<8x4096xf32>
    %14 = vector.shape_cast %11 : vector<8x4096xf32> to vector<1x8x4096xf32>
    tpu.vector_store %arg4[%c0_8, %c0_9, %c0_10], %14 {strides = array<i32>} : memref<1x8x4096xf32, #tpu.memory_space<vmem>>, vector<1x8x4096xf32>,
    return
  }
  func.func @transform_0(%arg0: i32) -> (i32, i32, i32) {
    %c0_i32 = arith.constant 0 : i32
    %c0_i32_0 = arith.constant 0 : i32
    %c0_i32_1 = arith.constant 0 : i32
    return %arg0, %c0_i32, %c0_i32_0 : i32, i32, i32
  }
  func.func @transform_1(%arg0: i32) -> (i32, i32) {
    %c0_i32 = arith.constant 0 : i32
    %c0_i32_0 = arith.constant 0 : i32
    %c0_i32_1 = arith.constant 0 : i32
    return %c0_i32, %c0_i32_0 : i32, i32
  }
  func.func @transform_2(%arg0: i32) -> (i32, i32) {
    %c0_i32 = arith.constant 0 : i32
    %c0_i32_0 = arith.constant 0 : i32
    %c0_i32_1 = arith.constant 0 : i32
    return %c0_i32, %c0_i32_0 : i32, i32
  }
  func.func @transform_3(%arg0: i32) -> (i32, i32, i32) {
    %c0_i32 = arith.constant 0 : i32
    %c0_i32_0 = arith.constant 0 : i32
    %c0_i32_1 = arith.constant 0 : i32
    return %arg0, %c0_i32, %c0_i32_0 : i32, i32, i32
  }
}

module attributes {stable_mosaic.version = 11 : i64} {
  func.func @_layers2to5_kernel(%arg0: i32, %arg1: memref<1x512x1024xbf16, #tpu.memory_space<vmem>>, %arg2: memref<16x512xbf16, #tpu.memory_space<vmem>>, %arg3: memref<16x1xf32, #tpu.memory_space<vmem>>, %arg4: memref<1x1024xf32, #tpu.memory_space<vmem>>, %arg5: memref<8x32x128xbf16, #tpu.memory_space<vmem>>, %arg6: memref<32x1xf32, #tpu.memory_space<vmem>>, %arg7: memref<8x94x27xbf16, #tpu.memory_space<vmem>>, %arg8: memref<8x64x256xbf16, #tpu.memory_space<vmem>>, %arg9: memref<64x1xf32, #tpu.memory_space<vmem>>, %arg10: memref<64x14xf32, #tpu.memory_space<vmem>>, %arg11: memref<1x1xf32, #tpu.memory_space<vmem>>, %arg12: memref<1x1x1xf32, #tpu.memory_space<vmem>>, %arg13: memref<128x128xbf16, #tpu.memory_space<vmem>>, %arg14: memref<256x27xbf16, #tpu.memory_space<vmem>>) attributes {dimension_semantics = [#tpu.dimension_semantics<parallel>], iteration_bounds = array<i64: 2>, scalar_prefetch = 0 : i64, scratch_operands = 2 : i64, tpu.core_type = #tpu.core_type<tc>, window_params = [{transform_indices = @transform_0, window_bounds = array<i64: 1, 512, 1024>}, {pipeline_mode = #tpu.pipeline_mode<synchronous>, transform_indices = @transform_1, window_bounds = array<i64: 16, 512>}, {pipeline_mode = #tpu.pipeline_mode<synchronous>, transform_indices = @transform_2, window_bounds = array<i64: 16, 1>}, {pipeline_mode = #tpu.pipeline_mode<synchronous>, transform_indices = @transform_3, window_bounds = array<i64: 1, 1024>}, {pipeline_mode = #tpu.pipeline_mode<synchronous>, transform_indices = @transform_4, window_bounds = array<i64: 8, 32, 128>}, {pipeline_mode = #tpu.pipeline_mode<synchronous>, transform_indices = @transform_5, window_bounds = array<i64: 32, 1>}, {pipeline_mode = #tpu.pipeline_mode<synchronous>, transform_indices = @transform_6, window_bounds = array<i64: 8, 94, 27>}, {pipeline_mode = #tpu.pipeline_mode<synchronous>, transform_indices = @transform_7, window_bounds = array<i64: 8, 64, 256>}, {pipeline_mode = #tpu.pipeline_mode<synchronous>, transform_indices = @transform_8, window_bounds = array<i64: 64, 1>}, {pipeline_mode = #tpu.pipeline_mode<synchronous>, transform_indices = @transform_9, window_bounds = array<i64: 64, 14>}, {pipeline_mode = #tpu.pipeline_mode<synchronous>, transform_indices = @transform_10, window_bounds = array<i64: 1, 1>}, {transform_indices = @transform_11, window_bounds = array<i64: 1, 1, 1>}]} {
    %c0 = arith.constant 0 : index
    %c0_0 = arith.constant 0 : index
    %0 = vector.load %arg2[%c0, %c0_0] : memref<16x512xbf16, #tpu.memory_space<vmem>>, vector<16x512xbf16>
    %c0_1 = arith.constant 0 : index
    %c0_2 = arith.constant 0 : index
    %c0_3 = arith.constant 0 : index
    %1 = vector.load %arg1[%c0_1, %c0_2, %c0_3] : memref<1x512x1024xbf16, #tpu.memory_space<vmem>>, vector<1x512x1024xbf16>
    %2 = vector.shape_cast %1 : vector<1x512x1024xbf16> to vector<512x1024xbf16>
    %cst = arith.constant dense<0.000000e+00> : vector<16x1024xf32>
    %3 = tpu.matmul %0, %2, %cst {dimension_numbers = #tpu.dot_dimension_numbers<[1], [0], [0], [1], [0, 0, 1, 1], [], []>} : vector<16x512xbf16>, vector<512x1024xbf16>, vector<16x1024xf32> -> vector<16x1024xf32>
    %c0_4 = arith.constant 0 : index
    %c0_5 = arith.constant 0 : index
    %4 = vector.load %arg3[%c0_4, %c0_5] : memref<16x1xf32, #tpu.memory_space<vmem>>, vector<16x1xf32>
    %5 = vector.broadcast %4 : vector<16x1xf32> to vector<16x1024xf32>
    %6 = arith.addf %3, %5 : vector<16x1024xf32>
    %cst_6 = arith.constant 0.000000e+00 : f32
    %7 = vector.broadcast %cst_6 : f32 to vector<16x1024xf32>
    %8 = arith.cmpf oge, %6, %7 : vector<16x1024xf32>
    %cst_7 = arith.constant 2.000000e-01 : f32
    %9 = vector.broadcast %cst_7 : f32 to vector<16x1024xf32>
    %10 = arith.mulf %6, %9 : vector<16x1024xf32>
    %11 = arith.select %8, %6, %10 : vector<16x1024xi1>, vector<16x1024xf32>
    %c0_8 = arith.constant 0 : index
    %c0_9 = arith.constant 0 : index
    %12 = vector.load %arg4[%c0_8, %c0_9] : memref<1x1024xf32, #tpu.memory_space<vmem>>, vector<1x1024xf32>
    %13 = vector.broadcast %12 : vector<1x1024xf32> to vector<16x1024xf32>
    %14 = arith.mulf %11, %13 : vector<16x1024xf32>
    %15 = arith.truncf %14 : vector<16x1024xf32> to vector<16x1024xbf16>
    %16 = vector.extract_strided_slice %15 {offsets = [0, 0], sizes = [16, 128], strides = [1, 1]} : vector<16x1024xbf16> to vector<16x128xbf16>
    %c0_10 = arith.constant 0 : index
    %c0_11 = arith.constant 0 : index
    %17 = vector.load %arg13[%c0_10, %c0_11] : memref<128x128xbf16, #tpu.memory_space<vmem>>, vector<16x128xbf16>
    tpu.vector_store %arg13[%c0_10, %c0_11], %16 {strides = array<i32>} : memref<128x128xbf16, #tpu.memory_space<vmem>>, vector<16x128xbf16>,
    %18 = vector.extract_strided_slice %15 {offsets = [0, 128], sizes = [16, 128], strides = [1, 1]} : vector<16x1024xbf16> to vector<16x128xbf16>
    %c16 = arith.constant 16 : index
    %c0_12 = arith.constant 0 : index
    %19 = vector.load %arg13[%c16, %c0_12] : memref<128x128xbf16, #tpu.memory_space<vmem>>, vector<16x128xbf16>
    tpu.vector_store %arg13[%c16, %c0_12], %18 {strides = array<i32>} : memref<128x128xbf16, #tpu.memory_space<vmem>>, vector<16x128xbf16>,
    %20 = vector.extract_strided_slice %15 {offsets = [0, 256], sizes = [16, 128], strides = [1, 1]} : vector<16x1024xbf16> to vector<16x128xbf16>
    %c32 = arith.constant 32 : index
    %c0_13 = arith.constant 0 : index
    %21 = vector.load %arg13[%c32, %c0_13] : memref<128x128xbf16, #tpu.memory_space<vmem>>, vector<16x128xbf16>
    tpu.vector_store %arg13[%c32, %c0_13], %20 {strides = array<i32>} : memref<128x128xbf16, #tpu.memory_space<vmem>>, vector<16x128xbf16>,
    %22 = vector.extract_strided_slice %15 {offsets = [0, 384], sizes = [16, 128], strides = [1, 1]} : vector<16x1024xbf16> to vector<16x128xbf16>
    %c48 = arith.constant 48 : index
    %c0_14 = arith.constant 0 : index
    %23 = vector.load %arg13[%c48, %c0_14] : memref<128x128xbf16, #tpu.memory_space<vmem>>, vector<16x128xbf16>
    tpu.vector_store %arg13[%c48, %c0_14], %22 {strides = array<i32>} : memref<128x128xbf16, #tpu.memory_space<vmem>>, vector<16x128xbf16>,
    %24 = vector.extract_strided_slice %15 {offsets = [0, 512], sizes = [16, 128], strides = [1, 1]} : vector<16x1024xbf16> to vector<16x128xbf16>
    %c64 = arith.constant 64 : index
    %c0_15 = arith.constant 0 : index
    %25 = vector.load %arg13[%c64, %c0_15] : memref<128x128xbf16, #tpu.memory_space<vmem>>, vector<16x128xbf16>
    tpu.vector_store %arg13[%c64, %c0_15], %24 {strides = array<i32>} : memref<128x128xbf16, #tpu.memory_space<vmem>>, vector<16x128xbf16>,
    %26 = vector.extract_strided_slice %15 {offsets = [0, 640], sizes = [16, 128], strides = [1, 1]} : vector<16x1024xbf16> to vector<16x128xbf16>
    %c80 = arith.constant 80 : index
    %c0_16 = arith.constant 0 : index
    %27 = vector.load %arg13[%c80, %c0_16] : memref<128x128xbf16, #tpu.memory_space<vmem>>, vector<16x128xbf16>
    tpu.vector_store %arg13[%c80, %c0_16], %26 {strides = array<i32>} : memref<128x128xbf16, #tpu.memory_space<vmem>>, vector<16x128xbf16>,
    %28 = vector.extract_strided_slice %15 {offsets = [0, 768], sizes = [16, 128], strides = [1, 1]} : vector<16x1024xbf16> to vector<16x128xbf16>
    %c96 = arith.constant 96 : index
    %c0_17 = arith.constant 0 : index
    %29 = vector.load %arg13[%c96, %c0_17] : memref<128x128xbf16, #tpu.memory_space<vmem>>, vector<16x128xbf16>
    tpu.vector_store %arg13[%c96, %c0_17], %28 {strides = array<i32>} : memref<128x128xbf16, #tpu.memory_space<vmem>>, vector<16x128xbf16>,
    %30 = vector.extract_strided_slice %15 {offsets = [0, 896], sizes = [16, 128], strides = [1, 1]} : vector<16x1024xbf16> to vector<16x128xbf16>
    %c112 = arith.constant 112 : index
    %c0_18 = arith.constant 0 : index
    %31 = vector.load %arg13[%c112, %c0_18] : memref<128x128xbf16, #tpu.memory_space<vmem>>, vector<16x128xbf16>
    tpu.vector_store %arg13[%c112, %c0_18], %30 {strides = array<i32>} : memref<128x128xbf16, #tpu.memory_space<vmem>>, vector<16x128xbf16>,
    %cst_19 = arith.constant 0.000000e+00 : f32
    %32 = vector.broadcast %cst_19 : f32 to vector<32x94xf32>
    %c0_20 = arith.constant 0 : index
    %c0_21 = arith.constant 0 : index
    %c0_22 = arith.constant 0 : index
    %33 = vector.load %arg5[%c0_20, %c0_21, %c0_22] : memref<8x32x128xbf16, #tpu.memory_space<vmem>>, vector<1x32x128xbf16>
    %34 = vector.shape_cast %33 : vector<1x32x128xbf16> to vector<32x128xbf16>
    %c0_23 = arith.constant 0 : index
    %c0_24 = arith.constant 0 : index
    %35 = vector.load %arg13[%c0_23, %c0_24] : memref<128x128xbf16, #tpu.memory_space<vmem>>, vector<128x94xbf16>
    %cst_25 = arith.constant dense<0.000000e+00> : vector<32x94xf32>
    %36 = tpu.matmul %34, %35, %cst_25 {dimension_numbers = #tpu.dot_dimension_numbers<[1], [0], [0], [1], [0, 0, 1, 1], [], []>} : vector<32x128xbf16>, vector<128x94xbf16>, vector<32x94xf32> -> vector<32x94xf32>
    %37 = arith.addf %32, %36 : vector<32x94xf32>
    %c1 = arith.constant 1 : index
    %c0_26 = arith.constant 0 : index
    %c0_27 = arith.constant 0 : index
    %38 = vector.load %arg5[%c1, %c0_26, %c0_27] : memref<8x32x128xbf16, #tpu.memory_space<vmem>>, vector<1x32x128xbf16>
    %39 = vector.shape_cast %38 : vector<1x32x128xbf16> to vector<32x128xbf16>
    %c0_28 = arith.constant 0 : index
    %c1_29 = arith.constant 1 : index
    %40 = vector.load %arg13[%c0_28, %c1_29] : memref<128x128xbf16, #tpu.memory_space<vmem>>, vector<128x94xbf16>
    %cst_30 = arith.constant dense<0.000000e+00> : vector<32x94xf32>
    %41 = tpu.matmul %39, %40, %cst_30 {dimension_numbers = #tpu.dot_dimension_numbers<[1], [0], [0], [1], [0, 0, 1, 1], [], []>} : vector<32x128xbf16>, vector<128x94xbf16>, vector<32x94xf32> -> vector<32x94xf32>
    %42 = arith.addf %37, %41 : vector<32x94xf32>
    %c2 = arith.constant 2 : index
    %c0_31 = arith.constant 0 : index
    %c0_32 = arith.constant 0 : index
    %43 = vector.load %arg5[%c2, %c0_31, %c0_32] : memref<8x32x128xbf16, #tpu.memory_space<vmem>>, vector<1x32x128xbf16>
    %44 = vector.shape_cast %43 : vector<1x32x128xbf16> to vector<32x128xbf16>
    %c0_33 = arith.constant 0 : index
    %c5 = arith.constant 5 : index
    %45 = vector.load %arg13[%c0_33, %c5] : memref<128x128xbf16, #tpu.memory_space<vmem>>, vector<128x94xbf16>
    %cst_34 = arith.constant dense<0.000000e+00> : vector<32x94xf32>
    %46 = tpu.matmul %44, %45, %cst_34 {dimension_numbers = #tpu.dot_dimension_numbers<[1], [0], [0], [1], [0, 0, 1, 1], [], []>} : vector<32x128xbf16>, vector<128x94xbf16>, vector<32x94xf32> -> vector<32x94xf32>
    %47 = arith.addf %42, %46 : vector<32x94xf32>
    %c3 = arith.constant 3 : index
    %c0_35 = arith.constant 0 : index
    %c0_36 = arith.constant 0 : index
    %48 = vector.load %arg5[%c3, %c0_35, %c0_36] : memref<8x32x128xbf16, #tpu.memory_space<vmem>>, vector<1x32x128xbf16>
    %49 = vector.shape_cast %48 : vector<1x32x128xbf16> to vector<32x128xbf16>
    %c0_37 = arith.constant 0 : index
    %c6 = arith.constant 6 : index
    %50 = vector.load %arg13[%c0_37, %c6] : memref<128x128xbf16, #tpu.memory_space<vmem>>, vector<128x94xbf16>
    %cst_38 = arith.constant dense<0.000000e+00> : vector<32x94xf32>
    %51 = tpu.matmul %49, %50, %cst_38 {dimension_numbers = #tpu.dot_dimension_numbers<[1], [0], [0], [1], [0, 0, 1, 1], [], []>} : vector<32x128xbf16>, vector<128x94xbf16>, vector<32x94xf32> -> vector<32x94xf32>
    %52 = arith.addf %47, %51 : vector<32x94xf32>
    %c4 = arith.constant 4 : index
    %c0_39 = arith.constant 0 : index
    %c0_40 = arith.constant 0 : index
    %53 = vector.load %arg5[%c4, %c0_39, %c0_40] : memref<8x32x128xbf16, #tpu.memory_space<vmem>>, vector<1x32x128xbf16>
    %54 = vector.shape_cast %53 : vector<1x32x128xbf16> to vector<32x128xbf16>
    %c0_41 = arith.constant 0 : index
    %c25 = arith.constant 25 : index
    %55 = vector.load %arg13[%c0_41, %c25] : memref<128x128xbf16, #tpu.memory_space<vmem>>, vector<128x94xbf16>
    %cst_42 = arith.constant dense<0.000000e+00> : vector<32x94xf32>
    %56 = tpu.matmul %54, %55, %cst_42 {dimension_numbers = #tpu.dot_dimension_numbers<[1], [0], [0], [1], [0, 0, 1, 1], [], []>} : vector<32x128xbf16>, vector<128x94xbf16>, vector<32x94xf32> -> vector<32x94xf32>
    %57 = arith.addf %52, %56 : vector<32x94xf32>
    %c5_43 = arith.constant 5 : index
    %c0_44 = arith.constant 0 : index
    %c0_45 = arith.constant 0 : index
    %58 = vector.load %arg5[%c5_43, %c0_44, %c0_45] : memref<8x32x128xbf16, #tpu.memory_space<vmem>>, vector<1x32x128xbf16>
    %59 = vector.shape_cast %58 : vector<1x32x128xbf16> to vector<32x128xbf16>
    %c0_46 = arith.constant 0 : index
    %c26 = arith.constant 26 : index
    %60 = vector.load %arg13[%c0_46, %c26] : memref<128x128xbf16, #tpu.memory_space<vmem>>, vector<128x94xbf16>
    %cst_47 = arith.constant dense<0.000000e+00> : vector<32x94xf32>
    %61 = tpu.matmul %59, %60, %cst_47 {dimension_numbers = #tpu.dot_dimension_numbers<[1], [0], [0], [1], [0, 0, 1, 1], [], []>} : vector<32x128xbf16>, vector<128x94xbf16>, vector<32x94xf32> -> vector<32x94xf32>
    %62 = arith.addf %57, %61 : vector<32x94xf32>
    %c6_48 = arith.constant 6 : index
    %c0_49 = arith.constant 0 : index
    %c0_50 = arith.constant 0 : index
    %63 = vector.load %arg5[%c6_48, %c0_49, %c0_50] : memref<8x32x128xbf16, #tpu.memory_space<vmem>>, vector<1x32x128xbf16>
    %64 = vector.shape_cast %63 : vector<1x32x128xbf16> to vector<32x128xbf16>
    %c0_51 = arith.constant 0 : index
    %c30 = arith.constant 30 : index
    %65 = vector.load %arg13[%c0_51, %c30] : memref<128x128xbf16, #tpu.memory_space<vmem>>, vector<128x94xbf16>
    %cst_52 = arith.constant dense<0.000000e+00> : vector<32x94xf32>
    %66 = tpu.matmul %64, %65, %cst_52 {dimension_numbers = #tpu.dot_dimension_numbers<[1], [0], [0], [1], [0, 0, 1, 1], [], []>} : vector<32x128xbf16>, vector<128x94xbf16>, vector<32x94xf32> -> vector<32x94xf32>
    %67 = arith.addf %62, %66 : vector<32x94xf32>
    %c7 = arith.constant 7 : index
    %c0_53 = arith.constant 0 : index
    %c0_54 = arith.constant 0 : index
    %68 = vector.load %arg5[%c7, %c0_53, %c0_54] : memref<8x32x128xbf16, #tpu.memory_space<vmem>>, vector<1x32x128xbf16>
    %69 = vector.shape_cast %68 : vector<1x32x128xbf16> to vector<32x128xbf16>
    %c0_55 = arith.constant 0 : index
    %c31 = arith.constant 31 : index
    %70 = vector.load %arg13[%c0_55, %c31] : memref<128x128xbf16, #tpu.memory_space<vmem>>, vector<128x94xbf16>
    %cst_56 = arith.constant dense<0.000000e+00> : vector<32x94xf32>
    %71 = tpu.matmul %69, %70, %cst_56 {dimension_numbers = #tpu.dot_dimension_numbers<[1], [0], [0], [1], [0, 0, 1, 1], [], []>} : vector<32x128xbf16>, vector<128x94xbf16>, vector<32x94xf32> -> vector<32x94xf32>
    %72 = arith.addf %67, %71 : vector<32x94xf32>
    %c0_57 = arith.constant 0 : index
    %c0_58 = arith.constant 0 : index
    %73 = vector.load %arg6[%c0_57, %c0_58] : memref<32x1xf32, #tpu.memory_space<vmem>>, vector<32x1xf32>
    %74 = vector.broadcast %73 : vector<32x1xf32> to vector<32x94xf32>
    %75 = arith.addf %72, %74 : vector<32x94xf32>
    %cst_59 = arith.constant 0.000000e+00 : f32
    %76 = vector.broadcast %cst_59 : f32 to vector<32x94xf32>
    %77 = arith.cmpf oge, %75, %76 : vector<32x94xf32>
    %cst_60 = arith.constant 2.000000e-01 : f32
    %78 = vector.broadcast %cst_60 : f32 to vector<32x94xf32>
    %79 = arith.mulf %75, %78 : vector<32x94xf32>
    %80 = arith.select %77, %75, %79 : vector<32x94xi1>, vector<32x94xf32>
    %81 = arith.truncf %80 : vector<32x94xf32> to vector<32x94xbf16>
    %c0_61 = arith.constant 0 : index
    %c0_62 = arith.constant 0 : index
    %c0_63 = arith.constant 0 : index
    %82 = vector.load %arg7[%c0_61, %c0_62, %c0_63] : memref<8x94x27xbf16, #tpu.memory_space<vmem>>, vector<1x94x27xbf16>
    %83 = vector.shape_cast %82 : vector<1x94x27xbf16> to vector<94x27xbf16>
    %cst_64 = arith.constant dense<0.000000e+00> : vector<32x27xf32>
    %84 = tpu.matmul %81, %83, %cst_64 {dimension_numbers = #tpu.dot_dimension_numbers<[1], [0], [0], [1], [0, 0, 1, 1], [], []>} : vector<32x94xbf16>, vector<94x27xbf16>, vector<32x27xf32> -> vector<32x27xf32>
    %85 = arith.truncf %84 : vector<32x27xf32> to vector<32x27xbf16>
    %c0_65 = arith.constant 0 : index
    %c0_66 = arith.constant 0 : index
    %86 = vector.load %arg14[%c0_65, %c0_66] : memref<256x27xbf16, #tpu.memory_space<vmem>>, vector<32x27xbf16>
    tpu.vector_store %arg14[%c0_65, %c0_66], %85 {strides = array<i32>} : memref<256x27xbf16, #tpu.memory_space<vmem>>, vector<32x27xbf16>,
    %c1_67 = arith.constant 1 : index
    %c0_68 = arith.constant 0 : index
    %c0_69 = arith.constant 0 : index
    %87 = vector.load %arg7[%c1_67, %c0_68, %c0_69] : memref<8x94x27xbf16, #tpu.memory_space<vmem>>, vector<1x94x27xbf16>
    %88 = vector.shape_cast %87 : vector<1x94x27xbf16> to vector<94x27xbf16>
    %cst_70 = arith.constant dense<0.000000e+00> : vector<32x27xf32>
    %89 = tpu.matmul %81, %88, %cst_70 {dimension_numbers = #tpu.dot_dimension_numbers<[1], [0], [0], [1], [0, 0, 1, 1], [], []>} : vector<32x94xbf16>, vector<94x27xbf16>, vector<32x27xf32> -> vector<32x27xf32>
    %90 = arith.truncf %89 : vector<32x27xf32> to vector<32x27xbf16>
    %c32_71 = arith.constant 32 : index
    %c0_72 = arith.constant 0 : index
    %91 = vector.load %arg14[%c32_71, %c0_72] : memref<256x27xbf16, #tpu.memory_space<vmem>>, vector<32x27xbf16>
    tpu.vector_store %arg14[%c32_71, %c0_72], %90 {strides = array<i32>} : memref<256x27xbf16, #tpu.memory_space<vmem>>, vector<32x27xbf16>,
    %c2_73 = arith.constant 2 : index
    %c0_74 = arith.constant 0 : index
    %c0_75 = arith.constant 0 : index
    %92 = vector.load %arg7[%c2_73, %c0_74, %c0_75] : memref<8x94x27xbf16, #tpu.memory_space<vmem>>, vector<1x94x27xbf16>
    %93 = vector.shape_cast %92 : vector<1x94x27xbf16> to vector<94x27xbf16>
    %cst_76 = arith.constant dense<0.000000e+00> : vector<32x27xf32>
    %94 = tpu.matmul %81, %93, %cst_76 {dimension_numbers = #tpu.dot_dimension_numbers<[1], [0], [0], [1], [0, 0, 1, 1], [], []>} : vector<32x94xbf16>, vector<94x27xbf16>, vector<32x27xf32> -> vector<32x27xf32>
    %95 = arith.truncf %94 : vector<32x27xf32> to vector<32x27xbf16>
    %c64_77 = arith.constant 64 : index
    %c0_78 = arith.constant 0 : index
    %96 = vector.load %arg14[%c64_77, %c0_78] : memref<256x27xbf16, #tpu.memory_space<vmem>>, vector<32x27xbf16>
    tpu.vector_store %arg14[%c64_77, %c0_78], %95 {strides = array<i32>} : memref<256x27xbf16, #tpu.memory_space<vmem>>, vector<32x27xbf16>,
    %c3_79 = arith.constant 3 : index
    %c0_80 = arith.constant 0 : index
    %c0_81 = arith.constant 0 : index
    %97 = vector.load %arg7[%c3_79, %c0_80, %c0_81] : memref<8x94x27xbf16, #tpu.memory_space<vmem>>, vector<1x94x27xbf16>
    %98 = vector.shape_cast %97 : vector<1x94x27xbf16> to vector<94x27xbf16>
    %cst_82 = arith.constant dense<0.000000e+00> : vector<32x27xf32>
    %99 = tpu.matmul %81, %98, %cst_82 {dimension_numbers = #tpu.dot_dimension_numbers<[1], [0], [0], [1], [0, 0, 1, 1], [], []>} : vector<32x94xbf16>, vector<94x27xbf16>, vector<32x27xf32> -> vector<32x27xf32>
    %100 = arith.truncf %99 : vector<32x27xf32> to vector<32x27xbf16>
    %c96_83 = arith.constant 96 : index
    %c0_84 = arith.constant 0 : index
    %101 = vector.load %arg14[%c96_83, %c0_84] : memref<256x27xbf16, #tpu.memory_space<vmem>>, vector<32x27xbf16>
    tpu.vector_store %arg14[%c96_83, %c0_84], %100 {strides = array<i32>} : memref<256x27xbf16, #tpu.memory_space<vmem>>, vector<32x27xbf16>,
    %c4_85 = arith.constant 4 : index
    %c0_86 = arith.constant 0 : index
    %c0_87 = arith.constant 0 : index
    %102 = vector.load %arg7[%c4_85, %c0_86, %c0_87] : memref<8x94x27xbf16, #tpu.memory_space<vmem>>, vector<1x94x27xbf16>
    %103 = vector.shape_cast %102 : vector<1x94x27xbf16> to vector<94x27xbf16>
    %cst_88 = arith.constant dense<0.000000e+00> : vector<32x27xf32>
    %104 = tpu.matmul %81, %103, %cst_88 {dimension_numbers = #tpu.dot_dimension_numbers<[1], [0], [0], [1], [0, 0, 1, 1], [], []>} : vector<32x94xbf16>, vector<94x27xbf16>, vector<32x27xf32> -> vector<32x27xf32>
    %105 = arith.truncf %104 : vector<32x27xf32> to vector<32x27xbf16>
    %c128 = arith.constant 128 : index
    %c0_89 = arith.constant 0 : index
    %106 = vector.load %arg14[%c128, %c0_89] : memref<256x27xbf16, #tpu.memory_space<vmem>>, vector<32x27xbf16>
    tpu.vector_store %arg14[%c128, %c0_89], %105 {strides = array<i32>} : memref<256x27xbf16, #tpu.memory_space<vmem>>, vector<32x27xbf16>,
    %c5_90 = arith.constant 5 : index
    %c0_91 = arith.constant 0 : index
    %c0_92 = arith.constant 0 : index
    %107 = vector.load %arg7[%c5_90, %c0_91, %c0_92] : memref<8x94x27xbf16, #tpu.memory_space<vmem>>, vector<1x94x27xbf16>
    %108 = vector.shape_cast %107 : vector<1x94x27xbf16> to vector<94x27xbf16>
    %cst_93 = arith.constant dense<0.000000e+00> : vector<32x27xf32>
    %109 = tpu.matmul %81, %108, %cst_93 {dimension_numbers = #tpu.dot_dimension_numbers<[1], [0], [0], [1], [0, 0, 1, 1], [], []>} : vector<32x94xbf16>, vector<94x27xbf16>, vector<32x27xf32> -> vector<32x27xf32>
    %110 = arith.truncf %109 : vector<32x27xf32> to vector<32x27xbf16>
    %c160 = arith.constant 160 : index
    %c0_94 = arith.constant 0 : index
    %111 = vector.load %arg14[%c160, %c0_94] : memref<256x27xbf16, #tpu.memory_space<vmem>>, vector<32x27xbf16>
    tpu.vector_store %arg14[%c160, %c0_94], %110 {strides = array<i32>} : memref<256x27xbf16, #tpu.memory_space<vmem>>, vector<32x27xbf16>,
    %c6_95 = arith.constant 6 : index
    %c0_96 = arith.constant 0 : index
    %c0_97 = arith.constant 0 : index
    %112 = vector.load %arg7[%c6_95, %c0_96, %c0_97] : memref<8x94x27xbf16, #tpu.memory_space<vmem>>, vector<1x94x27xbf16>
    %113 = vector.shape_cast %112 : vector<1x94x27xbf16> to vector<94x27xbf16>
    %cst_98 = arith.constant dense<0.000000e+00> : vector<32x27xf32>
    %114 = tpu.matmul %81, %113, %cst_98 {dimension_numbers = #tpu.dot_dimension_numbers<[1], [0], [0], [1], [0, 0, 1, 1], [], []>} : vector<32x94xbf16>, vector<94x27xbf16>, vector<32x27xf32> -> vector<32x27xf32>
    %115 = arith.truncf %114 : vector<32x27xf32> to vector<32x27xbf16>
    %c192 = arith.constant 192 : index
    %c0_99 = arith.constant 0 : index
    %116 = vector.load %arg14[%c192, %c0_99] : memref<256x27xbf16, #tpu.memory_space<vmem>>, vector<32x27xbf16>
    tpu.vector_store %arg14[%c192, %c0_99], %115 {strides = array<i32>} : memref<256x27xbf16, #tpu.memory_space<vmem>>, vector<32x27xbf16>,
    %c7_100 = arith.constant 7 : index
    %c0_101 = arith.constant 0 : index
    %c0_102 = arith.constant 0 : index
    %117 = vector.load %arg7[%c7_100, %c0_101, %c0_102] : memref<8x94x27xbf16, #tpu.memory_space<vmem>>, vector<1x94x27xbf16>
    %118 = vector.shape_cast %117 : vector<1x94x27xbf16> to vector<94x27xbf16>
    %cst_103 = arith.constant dense<0.000000e+00> : vector<32x27xf32>
    %119 = tpu.matmul %81, %118, %cst_103 {dimension_numbers = #tpu.dot_dimension_numbers<[1], [0], [0], [1], [0, 0, 1, 1], [], []>} : vector<32x94xbf16>, vector<94x27xbf16>, vector<32x27xf32> -> vector<32x27xf32>
    %120 = arith.truncf %119 : vector<32x27xf32> to vector<32x27xbf16>
    %c224 = arith.constant 224 : index
    %c0_104 = arith.constant 0 : index
    %121 = vector.load %arg14[%c224, %c0_104] : memref<256x27xbf16, #tpu.memory_space<vmem>>, vector<32x27xbf16>
    tpu.vector_store %arg14[%c224, %c0_104], %120 {strides = array<i32>} : memref<256x27xbf16, #tpu.memory_space<vmem>>, vector<32x27xbf16>,
    %cst_105 = arith.constant 0.000000e+00 : f32
    %122 = vector.broadcast %cst_105 : f32 to vector<64x14xf32>
    %c0_106 = arith.constant 0 : index
    %c0_107 = arith.constant 0 : index
    %c0_108 = arith.constant 0 : index
    %123 = vector.load %arg8[%c0_106, %c0_107, %c0_108] : memref<8x64x256xbf16, #tpu.memory_space<vmem>>, vector<1x64x256xbf16>
    %124 = vector.shape_cast %123 : vector<1x64x256xbf16> to vector<64x256xbf16>
    %c0_109 = arith.constant 0 : index
    %c0_110 = arith.constant 0 : index
    %125 = vector.load %arg14[%c0_109, %c0_110] : memref<256x27xbf16, #tpu.memory_space<vmem>>, vector<256x14xbf16>
    %cst_111 = arith.constant dense<0.000000e+00> : vector<64x14xf32>
    %126 = tpu.matmul %124, %125, %cst_111 {dimension_numbers = #tpu.dot_dimension_numbers<[1], [0], [0], [1], [0, 0, 1, 1], [], []>} : vector<64x256xbf16>, vector<256x14xbf16>, vector<64x14xf32> -> vector<64x14xf32>
    %127 = arith.addf %122, %126 : vector<64x14xf32>
    %c1_112 = arith.constant 1 : index
    %c0_113 = arith.constant 0 : index
    %c0_114 = arith.constant 0 : index
    %128 = vector.load %arg8[%c1_112, %c0_113, %c0_114] : memref<8x64x256xbf16, #tpu.memory_space<vmem>>, vector<1x64x256xbf16>
    %129 = vector.shape_cast %128 : vector<1x64x256xbf16> to vector<64x256xbf16>
    %c0_115 = arith.constant 0 : index
    %c1_116 = arith.constant 1 : index
    %130 = vector.load %arg14[%c0_115, %c1_116] : memref<256x27xbf16, #tpu.memory_space<vmem>>, vector<256x14xbf16>
    %cst_117 = arith.constant dense<0.000000e+00> : vector<64x14xf32>
    %131 = tpu.matmul %129, %130, %cst_117 {dimension_numbers = #tpu.dot_dimension_numbers<[1], [0], [0], [1], [0, 0, 1, 1], [], []>} : vector<64x256xbf16>, vector<256x14xbf16>, vector<64x14xf32> -> vector<64x14xf32>
    %132 = arith.addf %127, %131 : vector<64x14xf32>
    %c2_118 = arith.constant 2 : index
    %c0_119 = arith.constant 0 : index
    %c0_120 = arith.constant 0 : index
    %133 = vector.load %arg8[%c2_118, %c0_119, %c0_120] : memref<8x64x256xbf16, #tpu.memory_space<vmem>>, vector<1x64x256xbf16>
    %134 = vector.shape_cast %133 : vector<1x64x256xbf16> to vector<64x256xbf16>
    %c0_121 = arith.constant 0 : index
    %c3_122 = arith.constant 3 : index
    %135 = vector.load %arg14[%c0_121, %c3_122] : memref<256x27xbf16, #tpu.memory_space<vmem>>, vector<256x14xbf16>
    %cst_123 = arith.constant dense<0.000000e+00> : vector<64x14xf32>
    %136 = tpu.matmul %134, %135, %cst_123 {dimension_numbers = #tpu.dot_dimension_numbers<[1], [0], [0], [1], [0, 0, 1, 1], [], []>} : vector<64x256xbf16>, vector<256x14xbf16>, vector<64x14xf32> -> vector<64x14xf32>
    %137 = arith.addf %132, %136 : vector<64x14xf32>
    %c3_124 = arith.constant 3 : index
    %c0_125 = arith.constant 0 : index
    %c0_126 = arith.constant 0 : index
    %138 = vector.load %arg8[%c3_124, %c0_125, %c0_126] : memref<8x64x256xbf16, #tpu.memory_space<vmem>>, vector<1x64x256xbf16>
    %139 = vector.shape_cast %138 : vector<1x64x256xbf16> to vector<64x256xbf16>
    %c0_127 = arith.constant 0 : index
    %c4_128 = arith.constant 4 : index
    %140 = vector.load %arg14[%c0_127, %c4_128] : memref<256x27xbf16, #tpu.memory_space<vmem>>, vector<256x14xbf16>
    %cst_129 = arith.constant dense<0.000000e+00> : vector<64x14xf32>
    %141 = tpu.matmul %139, %140, %cst_129 {dimension_numbers = #tpu.dot_dimension_numbers<[1], [0], [0], [1], [0, 0, 1, 1], [], []>} : vector<64x256xbf16>, vector<256x14xbf16>, vector<64x14xf32> -> vector<64x14xf32>
    %142 = arith.addf %137, %141 : vector<64x14xf32>
    %c4_130 = arith.constant 4 : index
    %c0_131 = arith.constant 0 : index
    %c0_132 = arith.constant 0 : index
    %143 = vector.load %arg8[%c4_130, %c0_131, %c0_132] : memref<8x64x256xbf16, #tpu.memory_space<vmem>>, vector<1x64x256xbf16>
    %144 = vector.shape_cast %143 : vector<1x64x256xbf16> to vector<64x256xbf16>
    %c0_133 = arith.constant 0 : index
    %c9 = arith.constant 9 : index
    %145 = vector.load %arg14[%c0_133, %c9] : memref<256x27xbf16, #tpu.memory_space<vmem>>, vector<256x14xbf16>
    %cst_134 = arith.constant dense<0.000000e+00> : vector<64x14xf32>
    %146 = tpu.matmul %144, %145, %cst_134 {dimension_numbers = #tpu.dot_dimension_numbers<[1], [0], [0], [1], [0, 0, 1, 1], [], []>} : vector<64x256xbf16>, vector<256x14xbf16>, vector<64x14xf32> -> vector<64x14xf32>
    %147 = arith.addf %142, %146 : vector<64x14xf32>
    %c5_135 = arith.constant 5 : index
    %c0_136 = arith.constant 0 : index
    %c0_137 = arith.constant 0 : index
    %148 = vector.load %arg8[%c5_135, %c0_136, %c0_137] : memref<8x64x256xbf16, #tpu.memory_space<vmem>>, vector<1x64x256xbf16>
    %149 = vector.shape_cast %148 : vector<1x64x256xbf16> to vector<64x256xbf16>
    %c0_138 = arith.constant 0 : index
    %c10 = arith.constant 10 : index
    %150 = vector.load %arg14[%c0_138, %c10] : memref<256x27xbf16, #tpu.memory_space<vmem>>, vector<256x14xbf16>
    %cst_139 = arith.constant dense<0.000000e+00> : vector<64x14xf32>
    %151 = tpu.matmul %149, %150, %cst_139 {dimension_numbers = #tpu.dot_dimension_numbers<[1], [0], [0], [1], [0, 0, 1, 1], [], []>} : vector<64x256xbf16>, vector<256x14xbf16>, vector<64x14xf32> -> vector<64x14xf32>
    %152 = arith.addf %147, %151 : vector<64x14xf32>
    %c6_140 = arith.constant 6 : index
    %c0_141 = arith.constant 0 : index
    %c0_142 = arith.constant 0 : index
    %153 = vector.load %arg8[%c6_140, %c0_141, %c0_142] : memref<8x64x256xbf16, #tpu.memory_space<vmem>>, vector<1x64x256xbf16>
    %154 = vector.shape_cast %153 : vector<1x64x256xbf16> to vector<64x256xbf16>
    %c0_143 = arith.constant 0 : index
    %c12 = arith.constant 12 : index
    %155 = vector.load %arg14[%c0_143, %c12] : memref<256x27xbf16, #tpu.memory_space<vmem>>, vector<256x14xbf16>
    %cst_144 = arith.constant dense<0.000000e+00> : vector<64x14xf32>
    %156 = tpu.matmul %154, %155, %cst_144 {dimension_numbers = #tpu.dot_dimension_numbers<[1], [0], [0], [1], [0, 0, 1, 1], [], []>} : vector<64x256xbf16>, vector<256x14xbf16>, vector<64x14xf32> -> vector<64x14xf32>
    %157 = arith.addf %152, %156 : vector<64x14xf32>
    %c7_145 = arith.constant 7 : index
    %c0_146 = arith.constant 0 : index
    %c0_147 = arith.constant 0 : index
    %158 = vector.load %arg8[%c7_145, %c0_146, %c0_147] : memref<8x64x256xbf16, #tpu.memory_space<vmem>>, vector<1x64x256xbf16>
    %159 = vector.shape_cast %158 : vector<1x64x256xbf16> to vector<64x256xbf16>
    %c0_148 = arith.constant 0 : index
    %c13 = arith.constant 13 : index
    %160 = vector.load %arg14[%c0_148, %c13] : memref<256x27xbf16, #tpu.memory_space<vmem>>, vector<256x14xbf16>
    %cst_149 = arith.constant dense<0.000000e+00> : vector<64x14xf32>
    %161 = tpu.matmul %159, %160, %cst_149 {dimension_numbers = #tpu.dot_dimension_numbers<[1], [0], [0], [1], [0, 0, 1, 1], [], []>} : vector<64x256xbf16>, vector<256x14xbf16>, vector<64x14xf32> -> vector<64x14xf32>
    %162 = arith.addf %157, %161 : vector<64x14xf32>
    %c0_150 = arith.constant 0 : index
    %c0_151 = arith.constant 0 : index
    %163 = vector.load %arg9[%c0_150, %c0_151] : memref<64x1xf32, #tpu.memory_space<vmem>>, vector<64x1xf32>
    %164 = vector.broadcast %163 : vector<64x1xf32> to vector<64x14xf32>
    %165 = arith.addf %162, %164 : vector<64x14xf32>
    %cst_152 = arith.constant 0.000000e+00 : f32
    %166 = vector.broadcast %cst_152 : f32 to vector<64x14xf32>
    %167 = arith.cmpf oge, %165, %166 : vector<64x14xf32>
    %cst_153 = arith.constant 2.000000e-01 : f32
    %168 = vector.broadcast %cst_153 : f32 to vector<64x14xf32>
    %169 = arith.mulf %165, %168 : vector<64x14xf32>
    %170 = arith.select %167, %165, %169 : vector<64x14xi1>, vector<64x14xf32>
    %c0_154 = arith.constant 0 : index
    %c0_155 = arith.constant 0 : index
    %171 = vector.load %arg10[%c0_154, %c0_155] : memref<64x14xf32, #tpu.memory_space<vmem>>, vector<64x14xf32>
    %172 = arith.mulf %170, %171 : vector<64x14xf32>
    %cst_156 = arith.constant dense<0.000000e+00> : vector<64xf32>
    %173 = vector.multi_reduction <add>, %172, %cst_156 [1] : vector<64x14xf32> to vector<64xf32>
    %174 = vector.shape_cast %173 : vector<64xf32> to vector<64x1xf32>
    %cst_157 = arith.constant dense<0.000000e+00> : vector<1xf32>
    %175 = vector.multi_reduction <add>, %174, %cst_157 [0] : vector<64x1xf32> to vector<1xf32>
    %176 = vector.shape_cast %175 : vector<1xf32> to vector<1x1xf32>
    %c0_158 = arith.constant 0 : index
    %c0_159 = arith.constant 0 : index
    %177 = vector.load %arg11[%c0_158, %c0_159] : memref<1x1xf32, #tpu.memory_space<vmem>>, vector<1x1xf32>
    %178 = arith.addf %176, %177 : vector<1x1xf32>
    %c0_160 = arith.constant 0 : index
    %c0_161 = arith.constant 0 : index
    %c0_162 = arith.constant 0 : index
    %179 = vector.load %arg12[%c0_160, %c0_161, %c0_162] : memref<1x1x1xf32, #tpu.memory_space<vmem>>, vector<1x1x1xf32>
    %180 = vector.shape_cast %179 : vector<1x1x1xf32> to vector<1x1xf32>
    %181 = vector.shape_cast %178 : vector<1x1xf32> to vector<1x1x1xf32>
    tpu.vector_store %arg12[%c0_160, %c0_161, %c0_162], %181 {strides = array<i32>} : memref<1x1x1xf32, #tpu.memory_space<vmem>>, vector<1x1x1xf32>,
    return
  }
  func.func @transform_0(%arg0: i32) -> (i32, i32, i32) {
    %c0_i32 = arith.constant 0 : i32
    %c0_i32_0 = arith.constant 0 : i32
    %c0_i32_1 = arith.constant 0 : i32
    return %arg0, %c0_i32, %c0_i32_0 : i32, i32, i32
  }
  func.func @transform_1(%arg0: i32) -> (i32, i32) {
    %c0_i32 = arith.constant 0 : i32
    %c0_i32_0 = arith.constant 0 : i32
    %c0_i32_1 = arith.constant 0 : i32
    return %c0_i32, %c0_i32_0 : i32, i32
  }
  func.func @transform_2(%arg0: i32) -> (i32, i32) {
    %c0_i32 = arith.constant 0 : i32
    %c0_i32_0 = arith.constant 0 : i32
    %c0_i32_1 = arith.constant 0 : i32
    return %c0_i32, %c0_i32_0 : i32, i32
  }
  func.func @transform_3(%arg0: i32) -> (i32, i32) {
    %c0_i32 = arith.constant 0 : i32
    %c0_i32_0 = arith.constant 0 : i32
    %c0_i32_1 = arith.constant 0 : i32
    return %c0_i32, %c0_i32_0 : i32, i32
  }
  func.func @transform_4(%arg0: i32) -> (i32, i32, i32) {
    %c0_i32 = arith.constant 0 : i32
    %c0_i32_0 = arith.constant 0 : i32
    %c0_i32_1 = arith.constant 0 : i32
    %c0_i32_2 = arith.constant 0 : i32
    return %c0_i32, %c0_i32_0, %c0_i32_1 : i32, i32, i32
  }
  func.func @transform_5(%arg0: i32) -> (i32, i32) {
    %c0_i32 = arith.constant 0 : i32
    %c0_i32_0 = arith.constant 0 : i32
    %c0_i32_1 = arith.constant 0 : i32
    return %c0_i32, %c0_i32_0 : i32, i32
  }
  func.func @transform_6(%arg0: i32) -> (i32, i32, i32) {
    %c0_i32 = arith.constant 0 : i32
    %c0_i32_0 = arith.constant 0 : i32
    %c0_i32_1 = arith.constant 0 : i32
    %c0_i32_2 = arith.constant 0 : i32
    return %c0_i32, %c0_i32_0, %c0_i32_1 : i32, i32, i32
  }
  func.func @transform_7(%arg0: i32) -> (i32, i32, i32) {
    %c0_i32 = arith.constant 0 : i32
    %c0_i32_0 = arith.constant 0 : i32
    %c0_i32_1 = arith.constant 0 : i32
    %c0_i32_2 = arith.constant 0 : i32
    return %c0_i32, %c0_i32_0, %c0_i32_1 : i32, i32, i32
  }
  func.func @transform_8(%arg0: i32) -> (i32, i32) {
    %c0_i32 = arith.constant 0 : i32
    %c0_i32_0 = arith.constant 0 : i32
    %c0_i32_1 = arith.constant 0 : i32
    return %c0_i32, %c0_i32_0 : i32, i32
  }
  func.func @transform_9(%arg0: i32) -> (i32, i32) {
    %c0_i32 = arith.constant 0 : i32
    %c0_i32_0 = arith.constant 0 : i32
    %c0_i32_1 = arith.constant 0 : i32
    return %c0_i32, %c0_i32_0 : i32, i32
  }
  func.func @transform_10(%arg0: i32) -> (i32, i32) {
    %c0_i32 = arith.constant 0 : i32
    %c0_i32_0 = arith.constant 0 : i32
    %c0_i32_1 = arith.constant 0 : i32
    return %c0_i32, %c0_i32_0 : i32, i32
  }
  func.func @transform_11(%arg0: i32) -> (i32, i32, i32) {
    %c0_i32 = arith.constant 0 : i32
    %c0_i32_0 = arith.constant 0 : i32
    %c0_i32_1 = arith.constant 0 : i32
    return %arg0, %c0_i32, %c0_i32_0 : i32, i32, i32
  }
}

</mosaic_0001>

<llo_original>
// kernel: discriminator_forward.2
$region0: #{discriminator_forward.2}
  #allocation0 [shape = 'u32[]', space=smem, size = 0x4, offset = 0x4, fixed_abs, tag = 'smem constant byte address 0x4 - core index']
  #allocation1 [shape = 'u32[144,128]{1,0:T(1,128)}', space=vmem, size = 0x12000, scoped, tag = 'internal scratch']
  %s0 = inlined_call_operand.vmem [shape: bf16[2,128,4096], index: 0, kind: input, shape index: {}]
  %s1 = inlined_call_operand.vmem [shape: bf16[8,128], index: 1, kind: input, shape index: {}]
  %s2 = inlined_call_operand.vmem [shape: f32[8,1], index: 2, kind: input, shape index: {}]
  %s3 = inlined_call_operand.vmem [shape: f32[2,8,4096], index: 3, kind: output, shape index: {}]
  %s4 = sld [smem:[#allocation0]]
  $region45: #{discriminator_forward.2} parent=0
    _
  %s6 = ssub.s32 1, %s4
  %s7 = scalar_select 0, %s6, %s4
  loop: start=0, step=1, limit=4
  $region2: #{discriminator_forward.2} parent=0 // loop_pre_header
    _
  $region3: #{discriminator_forward.2} parent=0 // loop_header
    %s9 = sphi 0, %s13
    %p10 = scmp.ge.s32.totalorder %s9, 4
    %s19 = sphi 0, %s21
    %s22 = sphi 0, %s19
    %s23 = sphi 0, %s22
    %s39 = sphi 0, %s23
    %s43 = sphi 0, %s43
    %s45 = sphi 0, %s43
    %s46 = sphi 0, %s45
    %s60 = sphi 0, %s46
    %s64 = sphi 0, %s64
    %s66 = sphi 0, %s64
    %s67 = sphi 0, %s66
    %s81 = sphi 0, %s67
    %s87 = sphi 0, %s89
    %s90 = sphi 0, %s87
    %s91 = sphi 0, %s90
    %s107 = sphi 0, %s91
  $region4: #{discriminator_forward.2} parent=0 // loop_header_branch
    %12 = sbr.rel (%p10) target = $region8
  $region5: #{discriminator_forward.2} parent=0 // loop_body
    %s14 = ssub.s32 %s9, 1
    %s15 = ssub.s32 %s9, 2
    %s16 = sadd.s32 %s9, 1
    %s17 = ssub.s32 %s9, %s16
    %p18 = scmp.eq.s32.totalorder %s17, 0
    %s20 = sadd.s32 %s19, 1
    %s21 = scalar_select %p18, %s19, %s20
    %p24 = pneg %p18
    %p25 = scmp.eq.s32.totalorder %s9, 1
    %p26 = por %p24, %p25
    %p27 = scmp.ne.s32.totalorder %s19, %s22
    %p28 = scmp.eq.s32.totalorder %s9, 0
    %p29 = por %p27, %p28
    %p30 = scmp.ne.s32.totalorder %s19, %s22
    %p31 = scmp.eq.s32.totalorder %s14, 1
    %p32 = por %p30, %p31
    %p33 = scmp.ne.s32.totalorder %s22, %s23
    %p34 = scmp.eq.s32.totalorder %s14, 0
    %p35 = por %p33, %p34
    %p36 = scmp.ne.s32.totalorder %s22, %s23
    %p37 = scmp.eq.s32.totalorder %s15, 1
    %p38 = por %p36, %p37
    %p40 = scmp.ne.s32.totalorder %s23, %s39
    %p41 = scmp.eq.s32.totalorder %s15, 0
    %p42 = por %p40, %p41
    %s44 = sadd.s32 %s43, 1
    %p47 = scmp.eq.s32.totalorder %s9, 1
    %p48 = scmp.ne.s32.totalorder %s43, %s45
    %p49 = scmp.eq.s32.totalorder %s9, 0
    %p50 = por %p48, %p49
    %p51 = scmp.ne.s32.totalorder %s43, %s45
    %p52 = scmp.eq.s32.totalorder %s14, 1
    %p53 = por %p51, %p52
    %p54 = scmp.ne.s32.totalorder %s45, %s46
    %p55 = scmp.eq.s32.totalorder %s14, 0
    %p56 = por %p54, %p55
    %p57 = scmp.ne.s32.totalorder %s45, %s46
    %p58 = scmp.eq.s32.totalorder %s15, 1
    %p59 = por %p57, %p58
    %p61 = scmp.ne.s32.totalorder %s46, %s60
    %p62 = scmp.eq.s32.totalorder %s15, 0
    %p63 = por %p61, %p62
    %s65 = sadd.s32 %s64, 1
    %p68 = scmp.eq.s32.totalorder %s9, 1
    %p69 = scmp.ne.s32.totalorder %s64, %s66
    %p70 = scmp.eq.s32.totalorder %s9, 0
    %p71 = por %p69, %p70
    %p72 = scmp.ne.s32.totalorder %s64, %s66
    %p73 = scmp.eq.s32.totalorder %s14, 1
    %p74 = por %p72, %p73
    %p75 = scmp.ne.s32.totalorder %s66, %s67
    %p76 = scmp.eq.s32.totalorder %s14, 0
    %p77 = por %p75, %p76
    %p78 = scmp.ne.s32.totalorder %s66, %s67
    %p79 = scmp.eq.s32.totalorder %s15, 1
    %p80 = por %p78, %p79
    %p82 = scmp.ne.s32.totalorder %s67, %s81
    %p83 = scmp.eq.s32.totalorder %s15, 0
    %p84 = por %p82, %p83
    %s85 = ssub.s32 %s9, %s16
    %p86 = scmp.eq.s32.totalorder %s85, 0
    %s88 = sadd.s32 %s87, 1
    %s89 = scalar_select %p86, %s87, %s88
    %p92 = pneg %p86
    %p93 = scmp.eq.s32.totalorder %s9, 1
    %p94 = por %p92, %p93
    %p95 = scmp.ne.s32.totalorder %s87, %s90
    %p96 = scmp.eq.s32.totalorder %s9, 0
    %p97 = por %p95, %p96
    %p98 = scmp.ne.s32.totalorder %s87, %s90
    %p99 = scmp.eq.s32.totalorder %s14, 1
    %p100 = por %p98, %p99
    %p101 = scmp.ne.s32.totalorder %s90, %s91
    %p102 = scmp.eq.s32.totalorder %s14, 0
    %p103 = por %p101, %p102
    %p104 = scmp.ne.s32.totalorder %s90, %s91
    %p105 = scmp.eq.s32.totalorder %s15, 1
    %p106 = por %p104, %p105
    %p108 = scmp.ne.s32.totalorder %s91, %s107
    %p109 = scmp.eq.s32.totalorder %s15, 0
    %p110 = por %p108, %p109
    %p111 = scmp.le.s32.totalorder 1, %s9
    %p112 = scmp.lt.s32.totalorder %s9, 3
    %p113 = pnand %p111, %p112
    %p114 = pneg %p113
    // Predicated region
    $region9: #{discriminator_forward.2} parent=5 // pred_check
      _
    $region10: #{discriminator_forward.2} parent=5 // pred_check_branch
      %116 = sbr.rel (%p113) target = $region12
    $region11: #{discriminator_forward.2} parent=5 // pred_region
      %s117 = ssub.s32 %s9, 1
      // Predicated region
      $region13: #{discriminator_forward.2} parent=11 // pred_check
        %p118 = pneg %p56
      $region14: #{discriminator_forward.2} parent=11 // pred_check_branch
        %120 = sbr.rel (%p118) target = $region16
      $region15: #{discriminator_forward.2} parent=11 // pred_region
        _
      $region16: #{discriminator_forward.2} parent=11 // pred_fallthru
        _
      // Predicated region
      $region17: #{discriminator_forward.2} parent=11 // pred_check
        %p121 = pneg %p77
      $region18: #{discriminator_forward.2} parent=11 // pred_check_branch
        %123 = sbr.rel (%p121) target = $region20
      $region19: #{discriminator_forward.2} parent=11 // pred_region
        _
      $region20: #{discriminator_forward.2} parent=11 // pred_fallthru
        _
    $region12: #{discriminator_forward.2} parent=5 // pred_fallthru
      _
    %p124 = scmp.lt.s32.totalorder %s9, 2
    // Predicated region
    $region21: #{discriminator_forward.2} parent=5 // pred_check
      %p125 = pneg %p124
    $region22: #{discriminator_forward.2} parent=5 // pred_check_branch
      %127 = sbr.rel (%p125) target = $region24
    $region23: #{discriminator_forward.2} parent=5 // pred_region
      // Predicated region
      $region25: #{discriminator_forward.2} parent=23 // pred_check
        %p128 = pneg %p29
      $region26: #{discriminator_forward.2} parent=23 // pred_check_branch
        %130 = sbr.rel (%p128) target = $region28
      $region27: #{discriminator_forward.2} parent=23 // pred_region
        %p131 = scmp.lt.s32.totalorder %s9, 1
        %s132 = scalar_select %p131, %s9, 1
        %s133 = smul.addr %s132, 512
        %s134 = smul.addr %s133, 4
        %s135 = scalar_lea.vmem %s0, %s134
      $region28: #{discriminator_forward.2} parent=23 // pred_fallthru
        _
    $region24: #{discriminator_forward.2} parent=5 // pred_fallthru
      _
    %p136 = scmp.le.s32.totalorder 1, %s9
    %p137 = scmp.lt.s32.totalorder %s9, 3
    %p138 = pnand %p136, %p137
    %p139 = pneg %p138
    // Predicated region
    $region29: #{discriminator_forward.2} parent=5 // pred_check
      _
    $region30: #{discriminator_forward.2} parent=5 // pred_check_branch
      %141 = sbr.rel (%p138) target = $region32
    $region31: #{discriminator_forward.2} parent=5 // pred_region
      %s142 = ssub.s32 %s9, 1
      %p143 = scmp.lt.s32.totalorder %s14, 1
      %s144 = scalar_select %p143, %s14, 1
      %s145 = smul.addr %s144, 512
      %s146 = smul.addr %s145, 4
      %s147 = scalar_lea.vmem %s0, %s146
      %p148 = pneg %p35
      %p149 = pneg %p32
      %p150 = pneg %p56
      %p151 = pneg %p53
      %p152 = pneg %p77
      %p153 = pneg %p74
      %p154 = pneg %p103
      %p155 = pneg %p100
      %p156 = scmp.lt.s32.totalorder %s14, 1
      %s157 = scalar_select %p156, %s14, 1
      %s158 = smul.addr %s157, 32
      %s159 = smul.addr %s158, 8
      %s160 = scalar_lea.vmem %s3, %s159
      %p161 = scmp.lt.s32.totalorder %s14, 1
      %s162 = scalar_select %p161, %s14, 1
      %s163 = smul.addr %s162, 512
      %s164 = smul.addr %s163, 4
      %s165 = scalar_lea.vmem %s0, %s164
      %p166 = scmp.lt.s32.totalorder %s14, 1
      %s167 = scalar_select %p166, %s14, 1
      %s168 = smul.addr %s167, 32
      %s169 = smul.addr %s168, 8
      %s170 = scalar_lea.vmem %s3, %s169
      %v172 = vld [vmem:[%s1] sm:$0xf]
      %v173 = vld [vmem:[%s165] sm:$0xff]
      %v174 = vld [vmem:[%s165 + $0x8] sm:$0xff]
      %v175 = vld [vmem:[%s165 + $0x10] sm:$0xff]
      %v176 = vld [vmem:[%s165 + $0x18] sm:$0xff]
      %v177 = vld [vmem:[%s165 + $0x20] sm:$0xff]
      %v178 = vld [vmem:[%s165 + $0x28] sm:$0xff]
      %v179 = vld [vmem:[%s165 + $0x30] sm:$0xff]
      %v180 = vld [vmem:[%s165 + $0x38] sm:$0xff]
      %v181 = vld [vmem:[%s165 + $0x40] sm:$0xff]
      %v182 = vld [vmem:[%s165 + $0x48] sm:$0xff]
      %v183 = vld [vmem:[%s165 + $0x50] sm:$0xff]
      %v184 = vld [vmem:[%s165 + $0x58] sm:$0xff]
      %v185 = vld [vmem:[%s165 + $0x60] sm:$0xff]
      %v186 = vld [vmem:[%s165 + $0x68] sm:$0xff]
      %v187 = vld [vmem:[%s165 + $0x70] sm:$0xff]
      %v188 = vld [vmem:[%s165 + $0x78] sm:$0xff]
      %v189 = vld [vmem:[%s165 + $0x80] sm:$0xff]
      %v190 = vld [vmem:[%s165 + $0x88] sm:$0xff]
      %v191 = vld [vmem:[%s165 + $0x90] sm:$0xff]
      %v192 = vld [vmem:[%s165 + $0x98] sm:$0xff]
      %v193 = vld [vmem:[%s165 + $0xa0] sm:$0xff]
      %v194 = vld [vmem:[%s165 + $0xa8] sm:$0xff]
      %v195 = vld [vmem:[%s165 + $0xb0] sm:$0xff]
      %v196 = vld [vmem:[%s165 + $0xb8] sm:$0xff]
      %v197 = vld [vmem:[%s165 + $0xc0] sm:$0xff]
      %v198 = vld [vmem:[%s165 + $0xc8] sm:$0xff]
      %v199 = vld [vmem:[%s165 + $0xd0] sm:$0xff]
      %v200 = vld [vmem:[%s165 + $0xd8] sm:$0xff]
      %v201 = vld [vmem:[%s165 + $0xe0] sm:$0xff]
      %v202 = vld [vmem:[%s165 + $0xe8] sm:$0xff]
      %v203 = vld [vmem:[%s165 + $0xf0] sm:$0xff]
      %v204 = vld [vmem:[%s165 + $0xf8] sm:$0xff]
      %v205 = vld [vmem:[%s165 + $0x100] sm:$0xff]
      %v206 = vld [vmem:[%s165 + $0x108] sm:$0xff]
      %v207 = vld [vmem:[%s165 + $0x110] sm:$0xff]
      %v208 = vld [vmem:[%s165 + $0x118] sm:$0xff]
      %v209 = vld [vmem:[%s165 + $0x120] sm:$0xff]
      %v210 = vld [vmem:[%s165 + $0x128] sm:$0xff]
      %v211 = vld [vmem:[%s165 + $0x130] sm:$0xff]
      %v212 = vld [vmem:[%s165 + $0x138] sm:$0xff]
      %v213 = vld [vmem:[%s165 + $0x140] sm:$0xff]
      %v214 = vld [vmem:[%s165 + $0x148] sm:$0xff]
      %v215 = vld [vmem:[%s165 + $0x150] sm:$0xff]
      %v216 = vld [vmem:[%s165 + $0x158] sm:$0xff]
      %v217 = vld [vmem:[%s165 + $0x160] sm:$0xff]
      %v218 = vld [vmem:[%s165 + $0x168] sm:$0xff]
      %v219 = vld [vmem:[%s165 + $0x170] sm:$0xff]
      %v220 = vld [vmem:[%s165 + $0x178] sm:$0xff]
      %v221 = vld [vmem:[%s165 + $0x180] sm:$0xff]
      %v222 = vld [vmem:[%s165 + $0x188] sm:$0xff]
      %v223 = vld [vmem:[%s165 + $0x190] sm:$0xff]
      %v224 = vld [vmem:[%s165 + $0x198] sm:$0xff]
      %v225 = vld [vmem:[%s165 + $0x1a0] sm:$0xff]
      %v226 = vld [vmem:[%s165 + $0x1a8] sm:$0xff]
      %v227 = vld [vmem:[%s165 + $0x1b0] sm:$0xff]
      %v228 = vld [vmem:[%s165 + $0x1b8] sm:$0xff]
      %v229 = vld [vmem:[%s165 + $0x1c0] sm:$0xff]
      %v230 = vld [vmem:[%s165 + $0x1c8] sm:$0xff]
      %v231 = vld [vmem:[%s165 + $0x1d0] sm:$0xff]
      %v232 = vld [vmem:[%s165 + $0x1d8] sm:$0xff]
      %v233 = vld [vmem:[%s165 + $0x1e0] sm:$0xff]
      %v234 = vld [vmem:[%s165 + $0x1e8] sm:$0xff]
      %v235 = vld [vmem:[%s165 + $0x1f0] sm:$0xff]
      %v236 = vld [vmem:[%s165 + $0x1f8] sm:$0xff]
      %v237 = vld [vmem:[%s165 + $0x200] sm:$0xff]
      %v238 = vld [vmem:[%s165 + $0x208] sm:$0xff]
      %v239 = vld [vmem:[%s165 + $0x210] sm:$0xff]
      %v240 = vld [vmem:[%s165 + $0x218] sm:$0xff]
      %v241 = vld [vmem:[%s165 + $0x220] sm:$0xff]
      %v242 = vld [vmem:[%s165 + $0x228] sm:$0xff]
      %v243 = vld [vmem:[%s165 + $0x230] sm:$0xff]
      %v244 = vld [vmem:[%s165 + $0x238] sm:$0xff]
      %v245 = vld [vmem:[%s165 + $0x240] sm:$0xff]
      %v246 = vld [vmem:[%s165 + $0x248] sm:$0xff]
      %v247 = vld [vmem:[%s165 + $0x250] sm:$0xff]
      %v248 = vld [vmem:[%s165 + $0x258] sm:$0xff]
      %v249 = vld [vmem:[%s165 + $0x260] sm:$0xff]
      %v250 = vld [vmem:[%s165 + $0x268] sm:$0xff]
      %v251 = vld [vmem:[%s165 + $0x270] sm:$0xff]
      %v252 = vld [vmem:[%s165 + $0x278] sm:$0xff]
      %v253 = vld [vmem:[%s165 + $0x280] sm:$0xff]
      %v254 = vld [vmem:[%s165 + $0x288] sm:$0xff]
      %v255 = vld [vmem:[%s165 + $0x290] sm:$0xff]
      %v256 = vld [vmem:[%s165 + $0x298] sm:$0xff]
      %v257 = vld [vmem:[%s165 + $0x2a0] sm:$0xff]
      %v258 = vld [vmem:[%s165 + $0x2a8] sm:$0xff]
      %v259 = vld [vmem:[%s165 + $0x2b0] sm:$0xff]
      %v260 = vld [vmem:[%s165 + $0x2b8] sm:$0xff]
      %v261 = vld [vmem:[%s165 + $0x2c0] sm:$0xff]
      %v262 = vld [vmem:[%s165 + $0x2c8] sm:$0xff]
      %v263 = vld [vmem:[%s165 + $0x2d0] sm:$0xff]
      %v264 = vld [vmem:[%s165 + $0x2d8] sm:$0xff]
      %v265 = vld [vmem:[%s165 + $0x2e0] sm:$0xff]
      %v266 = vld [vmem:[%s165 + $0x2e8] sm:$0xff]
      %v267 = vld [vmem:[%s165 + $0x2f0] sm:$0xff]
      %v268 = vld [vmem:[%s165 + $0x2f8] sm:$0xff]
      %v269 = vld [vmem:[%s165 + $0x300] sm:$0xff]
      %v270 = vld [vmem:[%s165 + $0x308] sm:$0xff]
      %v271 = vld [vmem:[%s165 + $0x310] sm:$0xff]
      %v272 = vld [vmem:[%s165 + $0x318] sm:$0xff]
      %v273 = vld [vmem:[%s165 + $0x320] sm:$0xff]
      %v274 = vld [vmem:[%s165 + $0x328] sm:$0xff]
      %v275 = vld [vmem:[%s165 + $0x330] sm:$0xff]
      %v276 = vld [vmem:[%s165 + $0x338] sm:$0xff]
      %v277 = vld [vmem:[%s165 + $0x340] sm:$0xff]
      %v278 = vld [vmem:[%s165 + $0x348] sm:$0xff]
      %v279 = vld [vmem:[%s165 + $0x350] sm:$0xff]
      %v280 = vld [vmem:[%s165 + $0x358] sm:$0xff]
      %v281 = vld [vmem:[%s165 + $0x360] sm:$0xff]
      %v282 = vld [vmem:[%s165 + $0x368] sm:$0xff]
      %v283 = vld [vmem:[%s165 + $0x370] sm:$0xff]
      %v284 = vld [vmem:[%s165 + $0x378] sm:$0xff]
      %v285 = vld [vmem:[%s165 + $0x380] sm:$0xff]
      %v286 = vld [vmem:[%s165 + $0x388] sm:$0xff]
      %v287 = vld [vmem:[%s165 + $0x390] sm:$0xff]
      %v288 = vld [vmem:[%s165 + $0x398] sm:$0xff]
      %v289 = vld [vmem:[%s165 + $0x3a0] sm:$0xff]
      %v290 = vld [vmem:[%s165 + $0x3a8] sm:$0xff]
      %v291 = vld [vmem:[%s165 + $0x3b0] sm:$0xff]
      %v292 = vld [vmem:[%s165 + $0x3b8] sm:$0xff]
      %v293 = vld [vmem:[%s165 + $0x3c0] sm:$0xff]
      %v294 = vld [vmem:[%s165 + $0x3c8] sm:$0xff]
      %v295 = vld [vmem:[%s165 + $0x3d0] sm:$0xff]
      %v296 = vld [vmem:[%s165 + $0x3d8] sm:$0xff]
      %v297 = vld [vmem:[%s165 + $0x3e0] sm:$0xff]
      %v298 = vld [vmem:[%s165 + $0x3e8] sm:$0xff]
      %v299 = vld [vmem:[%s165 + $0x3f0] sm:$0xff]
      %v300 = vld [vmem:[%s165 + $0x3f8] sm:$0xff]
      %v301 = vld [vmem:[%s165 + $0x400] sm:$0xff]
      %v302 = vld [vmem:[%s165 + $0x408] sm:$0xff]
      %v303 = vld [vmem:[%s165 + $0x410] sm:$0xff]
      %v304 = vld [vmem:[%s165 + $0x418] sm:$0xff]
      %v305 = vld [vmem:[%s165 + $0x420] sm:$0xff]
      %v306 = vld [vmem:[%s165 + $0x428] sm:$0xff]
      %v307 = vld [vmem:[%s165 + $0x430] sm:$0xff]
      %v308 = vld [vmem:[%s165 + $0x438] sm:$0xff]
      %v309 = vld [vmem:[%s165 + $0x440] sm:$0xff]
      %v310 = vld [vmem:[%s165 + $0x448] sm:$0xff]
      %v311 = vld [vmem:[%s165 + $0x450] sm:$0xff]
      %v312 = vld [vmem:[%s165 + $0x458] sm:$0xff]
      %v313 = vld [vmem:[%s165 + $0x460] sm:$0xff]
      %v314 = vld [vmem:[%s165 + $0x468] sm:$0xff]
      %v315 = vld [vmem:[%s165 + $0x470] sm:$0xff]
      %v316 = vld [vmem:[%s165 + $0x478] sm:$0xff]
      %v317 = vld [vmem:[%s165 + $0x480] sm:$0xff]
      %v318 = vld [vmem:[%s165 + $0x488] sm:$0xff]
      %v319 = vld [vmem:[%s165 + $0x490] sm:$0xff]
      %v320 = vld [vmem:[%s165 + $0x498] sm:$0xff]
      %v321 = vld [vmem:[%s165 + $0x4a0] sm:$0xff]
      %v322 = vld [vmem:[%s165 + $0x4a8] sm:$0xff]
      %v323 = vld [vmem:[%s165 + $0x4b0] sm:$0xff]
      %v324 = vld [vmem:[%s165 + $0x4b8] sm:$0xff]
      %v325 = vld [vmem:[%s165 + $0x4c0] sm:$0xff]
      %v326 = vld [vmem:[%s165 + $0x4c8] sm:$0xff]
      %v327 = vld [vmem:[%s165 + $0x4d0] sm:$0xff]
      %v328 = vld [vmem:[%s165 + $0x4d8] sm:$0xff]
      %v329 = vld [vmem:[%s165 + $0x4e0] sm:$0xff]
      %v330 = vld [vmem:[%s165 + $0x4e8] sm:$0xff]
      %v331 = vld [vmem:[%s165 + $0x4f0] sm:$0xff]
      %v332 = vld [vmem:[%s165 + $0x4f8] sm:$0xff]
      %v333 = vld [vmem:[%s165 + $0x500] sm:$0xff]
      %v334 = vld [vmem:[%s165 + $0x508] sm:$0xff]
      %v335 = vld [vmem:[%s165 + $0x510] sm:$0xff]
      %v336 = vld [vmem:[%s165 + $0x518] sm:$0xff]
      %v337 = vld [vmem:[%s165 + $0x520] sm:$0xff]
      %v338 = vld [vmem:[%s165 + $0x528] sm:$0xff]
      %v339 = vld [vmem:[%s165 + $0x530] sm:$0xff]
      %v340 = vld [vmem:[%s165 + $0x538] sm:$0xff]
      %v341 = vld [vmem:[%s165 + $0x540] sm:$0xff]
      %v342 = vld [vmem:[%s165 + $0x548] sm:$0xff]
      %v343 = vld [vmem:[%s165 + $0x550] sm:$0xff]
      %v344 = vld [vmem:[%s165 + $0x558] sm:$0xff]
      %v345 = vld [vmem:[%s165 + $0x560] sm:$0xff]
      %v346 = vld [vmem:[%s165 + $0x568] sm:$0xff]
      %v347 = vld [vmem:[%s165 + $0x570] sm:$0xff]
      %v348 = vld [vmem:[%s165 + $0x578] sm:$0xff]
      %v349 = vld [vmem:[%s165 + $0x580] sm:$0xff]
      %v350 = vld [vmem:[%s165 + $0x588] sm:$0xff]
      %v351 = vld [vmem:[%s165 + $0x590] sm:$0xff]
      %v352 = vld [vmem:[%s165 + $0x598] sm:$0xff]
      %v353 = vld [vmem:[%s165 + $0x5a0] sm:$0xff]
      %v354 = vld [vmem:[%s165 + $0x5a8] sm:$0xff]
      %v355 = vld [vmem:[%s165 + $0x5b0] sm:$0xff]
      %v356 = vld [vmem:[%s165 + $0x5b8] sm:$0xff]
      %v357 = vld [vmem:[%s165 + $0x5c0] sm:$0xff]
      %v358 = vld [vmem:[%s165 + $0x5c8] sm:$0xff]
      %v359 = vld [vmem:[%s165 + $0x5d0] sm:$0xff]
      %v360 = vld [vmem:[%s165 + $0x5d8] sm:$0xff]
      %v361 = vld [vmem:[%s165 + $0x5e0] sm:$0xff]
      %v362 = vld [vmem:[%s165 + $0x5e8] sm:$0xff]
      %v363 = vld [vmem:[%s165 + $0x5f0] sm:$0xff]
      %v364 = vld [vmem:[%s165 + $0x5f8] sm:$0xff]
      %v365 = vld [vmem:[%s165 + $0x600] sm:$0xff]
      %v366 = vld [vmem:[%s165 + $0x608] sm:$0xff]
      %v367 = vld [vmem:[%s165 + $0x610] sm:$0xff]
      %v368 = vld [vmem:[%s165 + $0x618] sm:$0xff]
      %v369 = vld [vmem:[%s165 + $0x620] sm:$0xff]
      %v370 = vld [vmem:[%s165 + $0x628] sm:$0xff]
      %v371 = vld [vmem:[%s165 + $0x630] sm:$0xff]
      %v372 = vld [vmem:[%s165 + $0x638] sm:$0xff]
      %v373 = vld [vmem:[%s165 + $0x640] sm:$0xff]
      %v374 = vld [vmem:[%s165 + $0x648] sm:$0xff]
      %v375 = vld [vmem:[%s165 + $0x650] sm:$0xff]
      %v376 = vld [vmem:[%s165 + $0x658] sm:$0xff]
      %v377 = vld [vmem:[%s165 + $0x660] sm:$0xff]
      %v378 = vld [vmem:[%s165 + $0x668] sm:$0xff]
      %v379 = vld [vmem:[%s165 + $0x670] sm:$0xff]
      %v380 = vld [vmem:[%s165 + $0x678] sm:$0xff]
      %v381 = vld [vmem:[%s165 + $0x680] sm:$0xff]
      %v382 = vld [vmem:[%s165 + $0x688] sm:$0xff]
      %v383 = vld [vmem:[%s165 + $0x690] sm:$0xff]
      %v384 = vld [vmem:[%s165 + $0x698] sm:$0xff]
      %v385 = vld [vmem:[%s165 + $0x6a0] sm:$0xff]
      %v386 = vld [vmem:[%s165 + $0x6a8] sm:$0xff]
      %v387 = vld [vmem:[%s165 + $0x6b0] sm:$0xff]
      %v388 = vld [vmem:[%s165 + $0x6b8] sm:$0xff]
      %v389 = vld [vmem:[%s165 + $0x6c0] sm:$0xff]
      %v390 = vld [vmem:[%s165 + $0x6c8] sm:$0xff]
      %v391 = vld [vmem:[%s165 + $0x6d0] sm:$0xff]
      %v392 = vld [vmem:[%s165 + $0x6d8] sm:$0xff]
      %v393 = vld [vmem:[%s165 + $0x6e0] sm:$0xff]
      %v394 = vld [vmem:[%s165 + $0x6e8] sm:$0xff]
      %v395 = vld [vmem:[%s165 + $0x6f0] sm:$0xff]
      %v396 = vld [vmem:[%s165 + $0x6f8] sm:$0xff]
      %v397 = vld [vmem:[%s165 + $0x700] sm:$0xff]
      %v398 = vld [vmem:[%s165 + $0x708] sm:$0xff]
      %v399 = vld [vmem:[%s165 + $0x710] sm:$0xff]
      %v400 = vld [vmem:[%s165 + $0x718] sm:$0xff]
      %v401 = vld [vmem:[%s165 + $0x720] sm:$0xff]
      %v402 = vld [vmem:[%s165 + $0x728] sm:$0xff]
      %v403 = vld [vmem:[%s165 + $0x730] sm:$0xff]
      %v404 = vld [vmem:[%s165 + $0x738] sm:$0xff]
      %v405 = vld [vmem:[%s165 + $0x740] sm:$0xff]
      %v406 = vld [vmem:[%s165 + $0x748] sm:$0xff]
      %v407 = vld [vmem:[%s165 + $0x750] sm:$0xff]
      %v408 = vld [vmem:[%s165 + $0x758] sm:$0xff]
      %v409 = vld [vmem:[%s165 + $0x760] sm:$0xff]
      %v410 = vld [vmem:[%s165 + $0x768] sm:$0xff]
      %v411 = vld [vmem:[%s165 + $0x770] sm:$0xff]
      %v412 = vld [vmem:[%s165 + $0x778] sm:$0xff]
      %v413 = vld [vmem:[%s165 + $0x780] sm:$0xff]
      %v414 = vld [vmem:[%s165 + $0x788] sm:$0xff]
      %v415 = vld [vmem:[%s165 + $0x790] sm:$0xff]
      %v416 = vld [vmem:[%s165 + $0x798] sm:$0xff]
      %v417 = vld [vmem:[%s165 + $0x7a0] sm:$0xff]
      %v418 = vld [vmem:[%s165 + $0x7a8] sm:$0xff]
      %v419 = vld [vmem:[%s165 + $0x7b0] sm:$0xff]
      %v420 = vld [vmem:[%s165 + $0x7b8] sm:$0xff]
      %v421 = vld [vmem:[%s165 + $0x7c0] sm:$0xff]
      %v422 = vld [vmem:[%s165 + $0x7c8] sm:$0xff]
      %v423 = vld [vmem:[%s165 + $0x7d0] sm:$0xff]
      %v424 = vld [vmem:[%s165 + $0x7d8] sm:$0xff]
      %v425 = vld [vmem:[%s165 + $0x7e0] sm:$0xff]
      %v426 = vld [vmem:[%s165 + $0x7e8] sm:$0xff]
      %v427 = vld [vmem:[%s165 + $0x7f0] sm:$0xff]
      %v428 = vld [vmem:[%s165 + $0x7f8] sm:$0xff]
      %v429 = vld [vmem:[%s2] sm:$0xff]
      %431 = vset.pattern.permute.xlu0 0
      %432 = vperm.xlu0 %431, %v429
      %v433 = vpop.permute.xlu0 %432
      %v691 = vunpack.c.l.b16 %v173
      %v692 = vunpack.c.h.b16 %v173
      %v693 = vunpack.c.l.b16 %v174
      %v694 = vunpack.c.h.b16 %v174
      %v695 = vunpack.c.l.b16 %v175
      %v696 = vunpack.c.h.b16 %v175
      %v697 = vunpack.c.l.b16 %v176
      %v698 = vunpack.c.h.b16 %v176
      %v699 = vunpack.c.l.b16 %v177
      %v700 = vunpack.c.h.b16 %v177
      %v701 = vunpack.c.l.b16 %v178
      %v702 = vunpack.c.h.b16 %v178
      %v703 = vunpack.c.l.b16 %v179
      %v704 = vunpack.c.h.b16 %v179
      %v705 = vunpack.c.l.b16 %v180
      %v706 = vunpack.c.h.b16 %v180
      %v707 = vunpack.c.l.b16 %v181
      %v708 = vunpack.c.h.b16 %v181
      %v709 = vunpack.c.l.b16 %v182
      %v710 = vunpack.c.h.b16 %v182
      %v711 = vunpack.c.l.b16 %v183
      %v712 = vunpack.c.h.b16 %v183
      %v713 = vunpack.c.l.b16 %v184
      %v714 = vunpack.c.h.b16 %v184
      %v715 = vunpack.c.l.b16 %v185
      %v716 = vunpack.c.h.b16 %v185
      %v717 = vunpack.c.l.b16 %v186
      %v718 = vunpack.c.h.b16 %v186
      %v719 = vunpack.c.l.b16 %v187
      %v720 = vunpack.c.h.b16 %v187
      %v721 = vunpack.c.l.b16 %v188
      %v722 = vunpack.c.h.b16 %v188
      %v723 = vunpack.c.l.b16 %v189
      %v724 = vunpack.c.h.b16 %v189
      %v725 = vunpack.c.l.b16 %v190
      %v726 = vunpack.c.h.b16 %v190
      %v727 = vunpack.c.l.b16 %v191
      %v728 = vunpack.c.h.b16 %v191
      %v729 = vunpack.c.l.b16 %v192
      %v730 = vunpack.c.h.b16 %v192
      %v731 = vunpack.c.l.b16 %v193
      %v732 = vunpack.c.h.b16 %v193
      %v733 = vunpack.c.l.b16 %v194
      %v734 = vunpack.c.h.b16 %v194
      %v735 = vunpack.c.l.b16 %v195
      %v736 = vunpack.c.h.b16 %v195
      %v737 = vunpack.c.l.b16 %v196
      %v738 = vunpack.c.h.b16 %v196
      %v739 = vunpack.c.l.b16 %v197
      %v740 = vunpack.c.h.b16 %v197
      %v741 = vunpack.c.l.b16 %v198
      %v742 = vunpack.c.h.b16 %v198
      %v743 = vunpack.c.l.b16 %v199
      %v744 = vunpack.c.h.b16 %v199
      %v745 = vunpack.c.l.b16 %v200
      %v746 = vunpack.c.h.b16 %v200
      %v747 = vunpack.c.l.b16 %v201
      %v748 = vunpack.c.h.b16 %v201
      %v749 = vunpack.c.l.b16 %v202
      %v750 = vunpack.c.h.b16 %v202
      %v751 = vunpack.c.l.b16 %v203
      %v752 = vunpack.c.h.b16 %v203
      %v753 = vunpack.c.l.b16 %v204
      %v754 = vunpack.c.h.b16 %v204
      %v755 = vunpack.c.l.b16 %v205
      %v756 = vunpack.c.h.b16 %v205
      %v757 = vunpack.c.l.b16 %v206
      %v758 = vunpack.c.h.b16 %v206
      %v759 = vunpack.c.l.b16 %v207
      %v760 = vunpack.c.h.b16 %v207
      %v761 = vunpack.c.l.b16 %v208
      %v762 = vunpack.c.h.b16 %v208
      %v763 = vunpack.c.l.b16 %v209
      %v764 = vunpack.c.h.b16 %v209
      %v765 = vunpack.c.l.b16 %v210
      %v766 = vunpack.c.h.b16 %v210
      %v767 = vunpack.c.l.b16 %v211
      %v768 = vunpack.c.h.b16 %v211
      %v769 = vunpack.c.l.b16 %v212
      %v770 = vunpack.c.h.b16 %v212
      %v771 = vunpack.c.l.b16 %v213
      %v772 = vunpack.c.h.b16 %v213
      %v773 = vunpack.c.l.b16 %v214
      %v774 = vunpack.c.h.b16 %v214
      %v775 = vunpack.c.l.b16 %v215
      %v776 = vunpack.c.h.b16 %v215
      %v777 = vunpack.c.l.b16 %v216
      %v778 = vunpack.c.h.b16 %v216
      %v779 = vunpack.c.l.b16 %v217
      %v780 = vunpack.c.h.b16 %v217
      %v781 = vunpack.c.l.b16 %v218
      %v782 = vunpack.c.h.b16 %v218
      %v783 = vunpack.c.l.b16 %v219
      %v784 = vunpack.c.h.b16 %v219
      %v785 = vunpack.c.l.b16 %v220
      %v786 = vunpack.c.h.b16 %v220
      %v787 = vunpack.c.l.b16 %v221
      %v788 = vunpack.c.h.b16 %v221
      %v789 = vunpack.c.l.b16 %v222
      %v790 = vunpack.c.h.b16 %v222
      %v791 = vunpack.c.l.b16 %v223
      %v792 = vunpack.c.h.b16 %v223
      %v793 = vunpack.c.l.b16 %v224
      %v794 = vunpack.c.h.b16 %v224
      %v795 = vunpack.c.l.b16 %v225
      %v796 = vunpack.c.h.b16 %v225
      %v797 = vunpack.c.l.b16 %v226
      %v798 = vunpack.c.h.b16 %v226
      %v799 = vunpack.c.l.b16 %v227
      %v800 = vunpack.c.h.b16 %v227
      %v801 = vunpack.c.l.b16 %v228
      %v802 = vunpack.c.h.b16 %v228
      %v803 = vunpack.c.l.b16 %v229
      %v804 = vunpack.c.h.b16 %v229
      %v805 = vunpack.c.l.b16 %v230
      %v806 = vunpack.c.h.b16 %v230
      %v807 = vunpack.c.l.b16 %v231
      %v808 = vunpack.c.h.b16 %v231
      %v809 = vunpack.c.l.b16 %v232
      %v810 = vunpack.c.h.b16 %v232
      %v811 = vunpack.c.l.b16 %v233
      %v812 = vunpack.c.h.b16 %v233
      %v813 = vunpack.c.l.b16 %v234
      %v814 = vunpack.c.h.b16 %v234
      %v815 = vunpack.c.l.b16 %v235
      %v816 = vunpack.c.h.b16 %v235
      %v817 = vunpack.c.l.b16 %v236
      %v818 = vunpack.c.h.b16 %v236
      %v819 = vunpack.c.l.b16 %v237
      %v820 = vunpack.c.h.b16 %v237
      %v821 = vunpack.c.l.b16 %v238
      %v822 = vunpack.c.h.b16 %v238
      %v823 = vunpack.c.l.b16 %v239
      %v824 = vunpack.c.h.b16 %v239
      %v825 = vunpack.c.l.b16 %v240
      %v826 = vunpack.c.h.b16 %v240
      %v827 = vunpack.c.l.b16 %v241
      %v828 = vunpack.c.h.b16 %v241
      %v829 = vunpack.c.l.b16 %v242
      %v830 = vunpack.c.h.b16 %v242
      %v831 = vunpack.c.l.b16 %v243
      %v832 = vunpack.c.h.b16 %v243
      %v833 = vunpack.c.l.b16 %v244
      %v834 = vunpack.c.h.b16 %v244
      %v835 = vunpack.c.l.b16 %v245
      %v836 = vunpack.c.h.b16 %v245
      %v837 = vunpack.c.l.b16 %v246
      %v838 = vunpack.c.h.b16 %v246
      %v839 = vunpack.c.l.b16 %v247
      %v840 = vunpack.c.h.b16 %v247
      %v841 = vunpack.c.l.b16 %v248
      %v842 = vunpack.c.h.b16 %v248
      %v843 = vunpack.c.l.b16 %v249
      %v844 = vunpack.c.h.b16 %v249
      %v845 = vunpack.c.l.b16 %v250
      %v846 = vunpack.c.h.b16 %v250
      %v847 = vunpack.c.l.b16 %v251
      %v848 = vunpack.c.h.b16 %v251
      %v849 = vunpack.c.l.b16 %v252
      %v850 = vunpack.c.h.b16 %v252
      %v851 = vunpack.c.l.b16 %v253
      %v852 = vunpack.c.h.b16 %v253
      %v853 = vunpack.c.l.b16 %v254
      %v854 = vunpack.c.h.b16 %v254
      %v855 = vunpack.c.l.b16 %v255
      %v856 = vunpack.c.h.b16 %v255
      %v857 = vunpack.c.l.b16 %v256
      %v858 = vunpack.c.h.b16 %v256
      %v859 = vunpack.c.l.b16 %v257
      %v860 = vunpack.c.h.b16 %v257
      %v861 = vunpack.c.l.b16 %v258
      %v862 = vunpack.c.h.b16 %v258
      %v863 = vunpack.c.l.b16 %v259
      %v864 = vunpack.c.h.b16 %v259
      %v865 = vunpack.c.l.b16 %v260
      %v866 = vunpack.c.h.b16 %v260
      %v867 = vunpack.c.l.b16 %v261
      %v868 = vunpack.c.h.b16 %v261
      %v869 = vunpack.c.l.b16 %v262
      %v870 = vunpack.c.h.b16 %v262
      %v871 = vunpack.c.l.b16 %v263
      %v872 = vunpack.c.h.b16 %v263
      %v873 = vunpack.c.l.b16 %v264
      %v874 = vunpack.c.h.b16 %v264
      %v875 = vunpack.c.l.b16 %v265
      %v876 = vunpack.c.h.b16 %v265
      %v877 = vunpack.c.l.b16 %v266
      %v878 = vunpack.c.h.b16 %v266
      %v879 = vunpack.c.l.b16 %v267
      %v880 = vunpack.c.h.b16 %v267
      %v881 = vunpack.c.l.b16 %v268
      %v882 = vunpack.c.h.b16 %v268
      %v883 = vunpack.c.l.b16 %v269
      %v884 = vunpack.c.h.b16 %v269
      %v885 = vunpack.c.l.b16 %v270
      %v886 = vunpack.c.h.b16 %v270
      %v887 = vunpack.c.l.b16 %v271
      %v888 = vunpack.c.h.b16 %v271
      %v889 = vunpack.c.l.b16 %v272
      %v890 = vunpack.c.h.b16 %v272
      %v891 = vunpack.c.l.b16 %v273
      %v892 = vunpack.c.h.b16 %v273
      %v893 = vunpack.c.l.b16 %v274
      %v894 = vunpack.c.h.b16 %v274
      %v895 = vunpack.c.l.b16 %v275
      %v896 = vunpack.c.h.b16 %v275
      %v897 = vunpack.c.l.b16 %v276
      %v898 = vunpack.c.h.b16 %v276
      %v899 = vunpack.c.l.b16 %v277
      %v900 = vunpack.c.h.b16 %v277
      %v901 = vunpack.c.l.b16 %v278
      %v902 = vunpack.c.h.b16 %v278
      %v903 = vunpack.c.l.b16 %v279
      %v904 = vunpack.c.h.b16 %v279
      %v905 = vunpack.c.l.b16 %v280
      %v906 = vunpack.c.h.b16 %v280
      %v907 = vunpack.c.l.b16 %v281
      %v908 = vunpack.c.h.b16 %v281
      %v909 = vunpack.c.l.b16 %v282
      %v910 = vunpack.c.h.b16 %v282
      %v911 = vunpack.c.l.b16 %v283
      %v912 = vunpack.c.h.b16 %v283
      %v913 = vunpack.c.l.b16 %v284
      %v914 = vunpack.c.h.b16 %v284
      %v915 = vunpack.c.l.b16 %v285
      %v916 = vunpack.c.h.b16 %v285
      %v917 = vunpack.c.l.b16 %v286
      %v918 = vunpack.c.h.b16 %v286
      %v919 = vunpack.c.l.b16 %v287
      %v920 = vunpack.c.h.b16 %v287
      %v921 = vunpack.c.l.b16 %v288
      %v922 = vunpack.c.h.b16 %v288
      %v923 = vunpack.c.l.b16 %v289
      %v924 = vunpack.c.h.b16 %v289
      %v925 = vunpack.c.l.b16 %v290
      %v926 = vunpack.c.h.b16 %v290
      %v927 = vunpack.c.l.b16 %v291
      %v928 = vunpack.c.h.b16 %v291
      %v929 = vunpack.c.l.b16 %v292
      %v930 = vunpack.c.h.b16 %v292
      %v931 = vunpack.c.l.b16 %v293
      %v932 = vunpack.c.h.b16 %v293
      %v933 = vunpack.c.l.b16 %v294
      %v934 = vunpack.c.h.b16 %v294
      %v935 = vunpack.c.l.b16 %v295
      %v936 = vunpack.c.h.b16 %v295
      %v937 = vunpack.c.l.b16 %v296
      %v938 = vunpack.c.h.b16 %v296
      %v939 = vunpack.c.l.b16 %v297
      %v940 = vunpack.c.h.b16 %v297
      %v941 = vunpack.c.l.b16 %v298
      %v942 = vunpack.c.h.b16 %v298
      %v943 = vunpack.c.l.b16 %v299
      %v944 = vunpack.c.h.b16 %v299
      %v945 = vunpack.c.l.b16 %v300
      %v946 = vunpack.c.h.b16 %v300
      %v947 = vunpack.c.l.b16 %v301
      %v948 = vunpack.c.h.b16 %v301
      %v949 = vunpack.c.l.b16 %v302
      %v950 = vunpack.c.h.b16 %v302
      %v951 = vunpack.c.l.b16 %v303
      %v952 = vunpack.c.h.b16 %v303
      %v953 = vunpack.c.l.b16 %v304
      %v954 = vunpack.c.h.b16 %v304
      %v955 = vunpack.c.l.b16 %v305
      %v956 = vunpack.c.h.b16 %v305
      %v957 = vunpack.c.l.b16 %v306
      %v958 = vunpack.c.h.b16 %v306
      %v959 = vunpack.c.l.b16 %v307
      %v960 = vunpack.c.h.b16 %v307
      %v961 = vunpack.c.l.b16 %v308
      %v962 = vunpack.c.h.b16 %v308
      %v963 = vunpack.c.l.b16 %v309
      %v964 = vunpack.c.h.b16 %v309
      %v965 = vunpack.c.l.b16 %v310
      %v966 = vunpack.c.h.b16 %v310
      %v967 = vunpack.c.l.b16 %v311
      %v968 = vunpack.c.h.b16 %v311
      %v969 = vunpack.c.l.b16 %v312
      %v970 = vunpack.c.h.b16 %v312
      %v971 = vunpack.c.l.b16 %v313
      %v972 = vunpack.c.h.b16 %v313
      %v973 = vunpack.c.l.b16 %v314
      %v974 = vunpack.c.h.b16 %v314
      %v975 = vunpack.c.l.b16 %v315
      %v976 = vunpack.c.h.b16 %v315
      %v977 = vunpack.c.l.b16 %v316
      %v978 = vunpack.c.h.b16 %v316
      %v979 = vunpack.c.l.b16 %v317
      %v980 = vunpack.c.h.b16 %v317
      %v981 = vunpack.c.l.b16 %v318
      %v982 = vunpack.c.h.b16 %v318
      %v983 = vunpack.c.l.b16 %v319
      %v984 = vunpack.c.h.b16 %v319
      %v985 = vunpack.c.l.b16 %v320
      %v986 = vunpack.c.h.b16 %v320
      %v987 = vunpack.c.l.b16 %v321
      %v988 = vunpack.c.h.b16 %v321
      %v989 = vunpack.c.l.b16 %v322
      %v990 = vunpack.c.h.b16 %v322
      %v991 = vunpack.c.l.b16 %v323
      %v992 = vunpack.c.h.b16 %v323
      %v993 = vunpack.c.l.b16 %v324
      %v994 = vunpack.c.h.b16 %v324
      %v995 = vunpack.c.l.b16 %v325
      %v996 = vunpack.c.h.b16 %v325
      %v997 = vunpack.c.l.b16 %v326
      %v998 = vunpack.c.h.b16 %v326
      %v999 = vunpack.c.l.b16 %v327
      %v1000 = vunpack.c.h.b16 %v327
      %v1001 = vunpack.c.l.b16 %v328
      %v1002 = vunpack.c.h.b16 %v328
      %v1003 = vunpack.c.l.b16 %v329
      %v1004 = vunpack.c.h.b16 %v329
      %v1005 = vunpack.c.l.b16 %v330
      %v1006 = vunpack.c.h.b16 %v330
      %v1007 = vunpack.c.l.b16 %v331
      %v1008 = vunpack.c.h.b16 %v331
      %v1009 = vunpack.c.l.b16 %v332
      %v1010 = vunpack.c.h.b16 %v332
      %v1011 = vunpack.c.l.b16 %v333
      %v1012 = vunpack.c.h.b16 %v333
      %v1013 = vunpack.c.l.b16 %v334
      %v1014 = vunpack.c.h.b16 %v334
      %v1015 = vunpack.c.l.b16 %v335
      %v1016 = vunpack.c.h.b16 %v335
      %v1017 = vunpack.c.l.b16 %v336
      %v1018 = vunpack.c.h.b16 %v336
      %v1019 = vunpack.c.l.b16 %v337
      %v1020 = vunpack.c.h.b16 %v337
      %v1021 = vunpack.c.l.b16 %v338
      %v1022 = vunpack.c.h.b16 %v338
      %v1023 = vunpack.c.l.b16 %v339
      %v1024 = vunpack.c.h.b16 %v339
      %v1025 = vunpack.c.l.b16 %v340
      %v1026 = vunpack.c.h.b16 %v340
      %v1027 = vunpack.c.l.b16 %v341
      %v1028 = vunpack.c.h.b16 %v341
      %v1029 = vunpack.c.l.b16 %v342
      %v1030 = vunpack.c.h.b16 %v342
      %v1031 = vunpack.c.l.b16 %v343
      %v1032 = vunpack.c.h.b16 %v343
      %v1033 = vunpack.c.l.b16 %v344
      %v1034 = vunpack.c.h.b16 %v344
      %v1035 = vunpack.c.l.b16 %v345
      %v1036 = vunpack.c.h.b16 %v345
      %v1037 = vunpack.c.l.b16 %v346
      %v1038 = vunpack.c.h.b16 %v346
      %v1039 = vunpack.c.l.b16 %v347
      %v1040 = vunpack.c.h.b16 %v347
      %v1041 = vunpack.c.l.b16 %v348
      %v1042 = vunpack.c.h.b16 %v348
      %v1043 = vunpack.c.l.b16 %v349
      %v1044 = vunpack.c.h.b16 %v349
      %v1045 = vunpack.c.l.b16 %v350
      %v1046 = vunpack.c.h.b16 %v350
      %v1047 = vunpack.c.l.b16 %v351
      %v1048 = vunpack.c.h.b16 %v351
      %v1049 = vunpack.c.l.b16 %v352
      %v1050 = vunpack.c.h.b16 %v352
      %v1051 = vunpack.c.l.b16 %v353
      %v1052 = vunpack.c.h.b16 %v353
      %v1053 = vunpack.c.l.b16 %v354
      %v1054 = vunpack.c.h.b16 %v354
      %v1055 = vunpack.c.l.b16 %v355
      %v1056 = vunpack.c.h.b16 %v355
      %v1057 = vunpack.c.l.b16 %v356
      %v1058 = vunpack.c.h.b16 %v356
      %v1059 = vunpack.c.l.b16 %v357
      %v1060 = vunpack.c.h.b16 %v357
      %v1061 = vunpack.c.l.b16 %v358
      %v1062 = vunpack.c.h.b16 %v358
      %v1063 = vunpack.c.l.b16 %v359
      %v1064 = vunpack.c.h.b16 %v359
      %v1065 = vunpack.c.l.b16 %v360
      %v1066 = vunpack.c.h.b16 %v360
      %v1067 = vunpack.c.l.b16 %v361
      %v1068 = vunpack.c.h.b16 %v361
      %v1069 = vunpack.c.l.b16 %v362
      %v1070 = vunpack.c.h.b16 %v362
      %v1071 = vunpack.c.l.b16 %v363
      %v1072 = vunpack.c.h.b16 %v363
      %v1073 = vunpack.c.l.b16 %v364
      %v1074 = vunpack.c.h.b16 %v364
      %v1075 = vunpack.c.l.b16 %v365
      %v1076 = vunpack.c.h.b16 %v365
      %v1077 = vunpack.c.l.b16 %v366
      %v1078 = vunpack.c.h.b16 %v366
      %v1079 = vunpack.c.l.b16 %v367
      %v1080 = vunpack.c.h.b16 %v367
      %v1081 = vunpack.c.l.b16 %v368
      %v1082 = vunpack.c.h.b16 %v368
      %v1083 = vunpack.c.l.b16 %v369
      %v1084 = vunpack.c.h.b16 %v369
      %v1085 = vunpack.c.l.b16 %v370
      %v1086 = vunpack.c.h.b16 %v370
      %v1087 = vunpack.c.l.b16 %v371
      %v1088 = vunpack.c.h.b16 %v371
      %v1089 = vunpack.c.l.b16 %v372
      %v1090 = vunpack.c.h.b16 %v372
      %v1091 = vunpack.c.l.b16 %v373
      %v1092 = vunpack.c.h.b16 %v373
      %v1093 = vunpack.c.l.b16 %v374
      %v1094 = vunpack.c.h.b16 %v374
      %v1095 = vunpack.c.l.b16 %v375
      %v1096 = vunpack.c.h.b16 %v375
      %v1097 = vunpack.c.l.b16 %v376
      %v1098 = vunpack.c.h.b16 %v376
      %v1099 = vunpack.c.l.b16 %v377
      %v1100 = vunpack.c.h.b16 %v377
      %v1101 = vunpack.c.l.b16 %v378
      %v1102 = vunpack.c.h.b16 %v378
      %v1103 = vunpack.c.l.b16 %v379
      %v1104 = vunpack.c.h.b16 %v379
      %v1105 = vunpack.c.l.b16 %v380
      %v1106 = vunpack.c.h.b16 %v380
      %v1107 = vunpack.c.l.b16 %v381
      %v1108 = vunpack.c.h.b16 %v381
      %v1109 = vunpack.c.l.b16 %v382
      %v1110 = vunpack.c.h.b16 %v382
      %v1111 = vunpack.c.l.b16 %v383
      %v1112 = vunpack.c.h.b16 %v383
      %v1113 = vunpack.c.l.b16 %v384
      %v1114 = vunpack.c.h.b16 %v384
      %v1115 = vunpack.c.l.b16 %v385
      %v1116 = vunpack.c.h.b16 %v385
      %v1117 = vunpack.c.l.b16 %v386
      %v1118 = vunpack.c.h.b16 %v386
      %v1119 = vunpack.c.l.b16 %v387
      %v1120 = vunpack.c.h.b16 %v387
      %v1121 = vunpack.c.l.b16 %v388
      %v1122 = vunpack.c.h.b16 %v388
      %v1123 = vunpack.c.l.b16 %v389
      %v1124 = vunpack.c.h.b16 %v389
      %v1125 = vunpack.c.l.b16 %v390
      %v1126 = vunpack.c.h.b16 %v390
      %v1127 = vunpack.c.l.b16 %v391
      %v1128 = vunpack.c.h.b16 %v391
      %v1129 = vunpack.c.l.b16 %v392
      %v1130 = vunpack.c.h.b16 %v392
      %v1131 = vunpack.c.l.b16 %v393
      %v1132 = vunpack.c.h.b16 %v393
      %v1133 = vunpack.c.l.b16 %v394
      %v1134 = vunpack.c.h.b16 %v394
      %v1135 = vunpack.c.l.b16 %v395
      %v1136 = vunpack.c.h.b16 %v395
      %v1137 = vunpack.c.l.b16 %v396
      %v1138 = vunpack.c.h.b16 %v396
      %v1139 = vunpack.c.l.b16 %v397
      %v1140 = vunpack.c.h.b16 %v397
      %v1141 = vunpack.c.l.b16 %v398
      %v1142 = vunpack.c.h.b16 %v398
      %v1143 = vunpack.c.l.b16 %v399
      %v1144 = vunpack.c.h.b16 %v399
      %v1145 = vunpack.c.l.b16 %v400
      %v1146 = vunpack.c.h.b16 %v400
      %v1147 = vunpack.c.l.b16 %v401
      %v1148 = vunpack.c.h.b16 %v401
      %v1149 = vunpack.c.l.b16 %v402
      %v1150 = vunpack.c.h.b16 %v402
      %v1151 = vunpack.c.l.b16 %v403
      %v1152 = vunpack.c.h.b16 %v403
      %v1153 = vunpack.c.l.b16 %v404
      %v1154 = vunpack.c.h.b16 %v404
      %v1155 = vunpack.c.l.b16 %v405
      %v1156 = vunpack.c.h.b16 %v405
      %v1157 = vunpack.c.l.b16 %v406
      %v1158 = vunpack.c.h.b16 %v406
      %v1159 = vunpack.c.l.b16 %v407
      %v1160 = vunpack.c.h.b16 %v407
      %v1161 = vunpack.c.l.b16 %v408
      %v1162 = vunpack.c.h.b16 %v408
      %v1163 = vunpack.c.l.b16 %v409
      %v1164 = vunpack.c.h.b16 %v409
      %v1165 = vunpack.c.l.b16 %v410
      %v1166 = vunpack.c.h.b16 %v410
      %v1167 = vunpack.c.l.b16 %v411
      %v1168 = vunpack.c.h.b16 %v411
      %v1169 = vunpack.c.l.b16 %v412
      %v1170 = vunpack.c.h.b16 %v412
      %v1171 = vunpack.c.l.b16 %v413
      %v1172 = vunpack.c.h.b16 %v413
      %v1173 = vunpack.c.l.b16 %v414
      %v1174 = vunpack.c.h.b16 %v414
      %v1175 = vunpack.c.l.b16 %v415
      %v1176 = vunpack.c.h.b16 %v415
      %v1177 = vunpack.c.l.b16 %v416
      %v1178 = vunpack.c.h.b16 %v416
      %v1179 = vunpack.c.l.b16 %v417
      %v1180 = vunpack.c.h.b16 %v417
      %v1181 = vunpack.c.l.b16 %v418
      %v1182 = vunpack.c.h.b16 %v418
      %v1183 = vunpack.c.l.b16 %v419
      %v1184 = vunpack.c.h.b16 %v419
      %v1185 = vunpack.c.l.b16 %v420
      %v1186 = vunpack.c.h.b16 %v420
      %v1187 = vunpack.c.l.b16 %v421
      %v1188 = vunpack.c.h.b16 %v421
      %v1189 = vunpack.c.l.b16 %v422
      %v1190 = vunpack.c.h.b16 %v422
      %v1191 = vunpack.c.l.b16 %v423
      %v1192 = vunpack.c.h.b16 %v423
      %v1193 = vunpack.c.l.b16 %v424
      %v1194 = vunpack.c.h.b16 %v424
      %v1195 = vunpack.c.l.b16 %v425
      %v1196 = vunpack.c.h.b16 %v425
      %v1197 = vunpack.c.l.b16 %v426
      %v1198 = vunpack.c.h.b16 %v426
      %v1199 = vunpack.c.l.b16 %v427
      %v1200 = vunpack.c.h.b16 %v427
      %v1201 = vunpack.c.l.b16 %v428
      %v1202 = vunpack.c.h.b16 %v428
      %v1203 = vpack.c.b16 %v723, %v691
      %v1204 = vpack.c.b16 %v724, %v692
      %v1205 = vpack.c.b16 %v725, %v693
      %v1206 = vpack.c.b16 %v726, %v694
      %v1207 = vpack.c.b16 %v727, %v695
      %v1208 = vpack.c.b16 %v728, %v696
      %v1209 = vpack.c.b16 %v729, %v697
      %v1210 = vpack.c.b16 %v730, %v698
      %v1211 = vpack.c.b16 %v731, %v699
      %v1212 = vpack.c.b16 %v732, %v700
      %v1213 = vpack.c.b16 %v733, %v701
      %v1214 = vpack.c.b16 %v734, %v702
      %v1215 = vpack.c.b16 %v735, %v703
      %v1216 = vpack.c.b16 %v736, %v704
      %v1217 = vpack.c.b16 %v737, %v705
      %v1218 = vpack.c.b16 %v738, %v706
      %v1219 = vpack.c.b16 %v739, %v707
      %v1220 = vpack.c.b16 %v740, %v708
      %v1221 = vpack.c.b16 %v741, %v709
      %v1222 = vpack.c.b16 %v742, %v710
      %v1223 = vpack.c.b16 %v743, %v711
      %v1224 = vpack.c.b16 %v744, %v712
      %v1225 = vpack.c.b16 %v745, %v713
      %v1226 = vpack.c.b16 %v746, %v714
      %v1227 = vpack.c.b16 %v747, %v715
      %v1228 = vpack.c.b16 %v748, %v716
      %v1229 = vpack.c.b16 %v749, %v717
      %v1230 = vpack.c.b16 %v750, %v718
      %v1231 = vpack.c.b16 %v751, %v719
      %v1232 = vpack.c.b16 %v752, %v720
      %v1233 = vpack.c.b16 %v753, %v721
      %v1234 = vpack.c.b16 %v754, %v722
      %v1235 = vpack.c.b16 %v787, %v755
      %v1236 = vpack.c.b16 %v788, %v756
      %v1237 = vpack.c.b16 %v789, %v757
      %v1238 = vpack.c.b16 %v790, %v758
      %v1239 = vpack.c.b16 %v791, %v759
      %v1240 = vpack.c.b16 %v792, %v760
      %v1241 = vpack.c.b16 %v793, %v761
      %v1242 = vpack.c.b16 %v794, %v762
      %v1243 = vpack.c.b16 %v795, %v763
      %v1244 = vpack.c.b16 %v796, %v764
      %v1245 = vpack.c.b16 %v797, %v765
      %v1246 = vpack.c.b16 %v798, %v766
      %v1247 = vpack.c.b16 %v799, %v767
      %v1248 = vpack.c.b16 %v800, %v768
      %v1249 = vpack.c.b16 %v801, %v769
      %v1250 = vpack.c.b16 %v802, %v770
      %v1251 = vpack.c.b16 %v803, %v771
      %v1252 = vpack.c.b16 %v804, %v772
      %v1253 = vpack.c.b16 %v805, %v773
      %v1254 = vpack.c.b16 %v806, %v774
      %v1255 = vpack.c.b16 %v807, %v775
      %v1256 = vpack.c.b16 %v808, %v776
      %v1257 = vpack.c.b16 %v809, %v777
      %v1258 = vpack.c.b16 %v810, %v778
      %v1259 = vpack.c.b16 %v811, %v779
      %v1260 = vpack.c.b16 %v812, %v780
      %v1261 = vpack.c.b16 %v813, %v781
      %v1262 = vpack.c.b16 %v814, %v782
      %v1263 = vpack.c.b16 %v815, %v783
      %v1264 = vpack.c.b16 %v816, %v784
      %v1265 = vpack.c.b16 %v817, %v785
      %v1266 = vpack.c.b16 %v818, %v786
      %v1267 = vpack.c.b16 %v851, %v819
      %v1268 = vpack.c.b16 %v852, %v820
      %v1269 = vpack.c.b16 %v853, %v821
      %v1270 = vpack.c.b16 %v854, %v822
      %v1271 = vpack.c.b16 %v855, %v823
      %v1272 = vpack.c.b16 %v856, %v824
      %v1273 = vpack.c.b16 %v857, %v825
      %v1274 = vpack.c.b16 %v858, %v826
      %v1275 = vpack.c.b16 %v859, %v827
      %v1276 = vpack.c.b16 %v860, %v828
      %v1277 = vpack.c.b16 %v861, %v829
      %v1278 = vpack.c.b16 %v862, %v830
      %v1279 = vpack.c.b16 %v863, %v831
      %v1280 = vpack.c.b16 %v864, %v832
      %v1281 = vpack.c.b16 %v865, %v833
      %v1282 = vpack.c.b16 %v866, %v834
      %v1283 = vpack.c.b16 %v867, %v835
      %v1284 = vpack.c.b16 %v868, %v836
      %v1285 = vpack.c.b16 %v869, %v837
      %v1286 = vpack.c.b16 %v870, %v838
      %v1287 = vpack.c.b16 %v871, %v839
      %v1288 = vpack.c.b16 %v872, %v840
      %v1289 = vpack.c.b16 %v873, %v841
      %v1290 = vpack.c.b16 %v874, %v842
      %v1291 = vpack.c.b16 %v875, %v843
      %v1292 = vpack.c.b16 %v876, %v844
      %v1293 = vpack.c.b16 %v877, %v845
      %v1294 = vpack.c.b16 %v878, %v846
      %v1295 = vpack.c.b16 %v879, %v847
      %v1296 = vpack.c.b16 %v880, %v848
      %v1297 = vpack.c.b16 %v881, %v849
      %v1298 = vpack.c.b16 %v882, %v850
      %v1299 = vpack.c.b16 %v915, %v883
      %v1300 = vpack.c.b16 %v916, %v884
      %v1301 = vpack.c.b16 %v917, %v885
      %v1302 = vpack.c.b16 %v918, %v886
      %v1303 = vpack.c.b16 %v919, %v887
      %v1304 = vpack.c.b16 %v920, %v888
      %v1305 = vpack.c.b16 %v921, %v889
      %v1306 = vpack.c.b16 %v922, %v890
      %v1307 = vpack.c.b16 %v923, %v891
      %v1308 = vpack.c.b16 %v924, %v892
      %v1309 = vpack.c.b16 %v925, %v893
      %v1310 = vpack.c.b16 %v926, %v894
      %v1311 = vpack.c.b16 %v927, %v895
      %v1312 = vpack.c.b16 %v928, %v896
      %v1313 = vpack.c.b16 %v929, %v897
      %v1314 = vpack.c.b16 %v930, %v898
      %v1315 = vpack.c.b16 %v931, %v899
      %v1316 = vpack.c.b16 %v932, %v900
      %v1317 = vpack.c.b16 %v933, %v901
      %v1318 = vpack.c.b16 %v934, %v902
      %v1319 = vpack.c.b16 %v935, %v903
      %v1320 = vpack.c.b16 %v936, %v904
      %v1321 = vpack.c.b16 %v937, %v905
      %v1322 = vpack.c.b16 %v938, %v906
      %v1323 = vpack.c.b16 %v939, %v907
      %v1324 = vpack.c.b16 %v940, %v908
      %v1325 = vpack.c.b16 %v941, %v909
      %v1326 = vpack.c.b16 %v942, %v910
      %v1327 = vpack.c.b16 %v943, %v911
      %v1328 = vpack.c.b16 %v944, %v912
      %v1329 = vpack.c.b16 %v945, %v913
      %v1330 = vpack.c.b16 %v946, %v914
      %v1331 = vpack.c.b16 %v979, %v947
      %v1332 = vpack.c.b16 %v980, %v948
      %v1333 = vpack.c.b16 %v981, %v949
      %v1334 = vpack.c.b16 %v982, %v950
      %v1335 = vpack.c.b16 %v983, %v951
      %v1336 = vpack.c.b16 %v984, %v952
      %v1337 = vpack.c.b16 %v985, %v953
      %v1338 = vpack.c.b16 %v986, %v954
      %v1339 = vpack.c.b16 %v987, %v955
      %v1340 = vpack.c.b16 %v988, %v956
      %v1341 = vpack.c.b16 %v989, %v957
      %v1342 = vpack.c.b16 %v990, %v958
      %v1343 = vpack.c.b16 %v991, %v959
      %v1344 = vpack.c.b16 %v992, %v960
      %v1345 = vpack.c.b16 %v993, %v961
      %v1346 = vpack.c.b16 %v994, %v962
      %v1347 = vpack.c.b16 %v995, %v963
      %v1348 = vpack.c.b16 %v996, %v964
      %v1349 = vpack.c.b16 %v997, %v965
      %v1350 = vpack.c.b16 %v998, %v966
      %v1351 = vpack.c.b16 %v999, %v967
      %v1352 = vpack.c.b16 %v1000, %v968
      %v1353 = vpack.c.b16 %v1001, %v969
      %v1354 = vpack.c.b16 %v1002, %v970
      %v1355 = vpack.c.b16 %v1003, %v971
      %v1356 = vpack.c.b16 %v1004, %v972
      %v1357 = vpack.c.b16 %v1005, %v973
      %v1358 = vpack.c.b16 %v1006, %v974
      %v1359 = vpack.c.b16 %v1007, %v975
      %v1360 = vpack.c.b16 %v1008, %v976
      %v1361 = vpack.c.b16 %v1009, %v977
      %v1362 = vpack.c.b16 %v1010, %v978
      %v1363 = vpack.c.b16 %v1043, %v1011
      %v1364 = vpack.c.b16 %v1044, %v1012
      %v1365 = vpack.c.b16 %v1045, %v1013
      %v1366 = vpack.c.b16 %v1046, %v1014
      %v1367 = vpack.c.b16 %v1047, %v1015
      %v1368 = vpack.c.b16 %v1048, %v1016
      %v1369 = vpack.c.b16 %v1049, %v1017
      %v1370 = vpack.c.b16 %v1050, %v1018
      %v1371 = vpack.c.b16 %v1051, %v1019
      %v1372 = vpack.c.b16 %v1052, %v1020
      %v1373 = vpack.c.b16 %v1053, %v1021
      %v1374 = vpack.c.b16 %v1054, %v1022
      %v1375 = vpack.c.b16 %v1055, %v1023
      %v1376 = vpack.c.b16 %v1056, %v1024
      %v1377 = vpack.c.b16 %v1057, %v1025
      %v1378 = vpack.c.b16 %v1058, %v1026
      %v1379 = vpack.c.b16 %v1059, %v1027
      %v1380 = vpack.c.b16 %v1060, %v1028
      %v1381 = vpack.c.b16 %v1061, %v1029
      %v1382 = vpack.c.b16 %v1062, %v1030
      %v1383 = vpack.c.b16 %v1063, %v1031
      %v1384 = vpack.c.b16 %v1064, %v1032
      %v1385 = vpack.c.b16 %v1065, %v1033
      %v1386 = vpack.c.b16 %v1066, %v1034
      %v1387 = vpack.c.b16 %v1067, %v1035
      %v1388 = vpack.c.b16 %v1068, %v1036
      %v1389 = vpack.c.b16 %v1069, %v1037
      %v1390 = vpack.c.b16 %v1070, %v1038
      %v1391 = vpack.c.b16 %v1071, %v1039
      %v1392 = vpack.c.b16 %v1072, %v1040
      %v1393 = vpack.c.b16 %v1073, %v1041
      %v1394 = vpack.c.b16 %v1074, %v1042
      %v1395 = vpack.c.b16 %v1107, %v1075
      %v1396 = vpack.c.b16 %v1108, %v1076
      %v1397 = vpack.c.b16 %v1109, %v1077
      %v1398 = vpack.c.b16 %v1110, %v1078
      %v1399 = vpack.c.b16 %v1111, %v1079
      %v1400 = vpack.c.b16 %v1112, %v1080
      %v1401 = vpack.c.b16 %v1113, %v1081
      %v1402 = vpack.c.b16 %v1114, %v1082
      %v1403 = vpack.c.b16 %v1115, %v1083
      %v1404 = vpack.c.b16 %v1116, %v1084
      %v1405 = vpack.c.b16 %v1117, %v1085
      %v1406 = vpack.c.b16 %v1118, %v1086
      %v1407 = vpack.c.b16 %v1119, %v1087
      %v1408 = vpack.c.b16 %v1120, %v1088
      %v1409 = vpack.c.b16 %v1121, %v1089
      %v1410 = vpack.c.b16 %v1122, %v1090
      %v1411 = vpack.c.b16 %v1123, %v1091
      %v1412 = vpack.c.b16 %v1124, %v1092
      %v1413 = vpack.c.b16 %v1125, %v1093
      %v1414 = vpack.c.b16 %v1126, %v1094
      %v1415 = vpack.c.b16 %v1127, %v1095
      %v1416 = vpack.c.b16 %v1128, %v1096
      %v1417 = vpack.c.b16 %v1129, %v1097
      %v1418 = vpack.c.b16 %v1130, %v1098
      %v1419 = vpack.c.b16 %v1131, %v1099
      %v1420 = vpack.c.b16 %v1132, %v1100
      %v1421 = vpack.c.b16 %v1133, %v1101
      %v1422 = vpack.c.b16 %v1134, %v1102
      %v1423 = vpack.c.b16 %v1135, %v1103
      %v1424 = vpack.c.b16 %v1136, %v1104
      %v1425 = vpack.c.b16 %v1137, %v1105
      %v1426 = vpack.c.b16 %v1138, %v1106
      %v1427 = vpack.c.b16 %v1171, %v1139
      %v1428 = vpack.c.b16 %v1172, %v1140
      %v1429 = vpack.c.b16 %v1173, %v1141
      %v1430 = vpack.c.b16 %v1174, %v1142
      %v1431 = vpack.c.b16 %v1175, %v1143
      %v1432 = vpack.c.b16 %v1176, %v1144
      %v1433 = vpack.c.b16 %v1177, %v1145
      %v1434 = vpack.c.b16 %v1178, %v1146
      %v1435 = vpack.c.b16 %v1179, %v1147
      %v1436 = vpack.c.b16 %v1180, %v1148
      %v1437 = vpack.c.b16 %v1181, %v1149
      %v1438 = vpack.c.b16 %v1182, %v1150
      %v1439 = vpack.c.b16 %v1183, %v1151
      %v1440 = vpack.c.b16 %v1184, %v1152
      %v1441 = vpack.c.b16 %v1185, %v1153
      %v1442 = vpack.c.b16 %v1186, %v1154
      %v1443 = vpack.c.b16 %v1187, %v1155
      %v1444 = vpack.c.b16 %v1188, %v1156
      %v1445 = vpack.c.b16 %v1189, %v1157
      %v1446 = vpack.c.b16 %v1190, %v1158
      %v1447 = vpack.c.b16 %v1191, %v1159
      %v1448 = vpack.c.b16 %v1192, %v1160
      %v1449 = vpack.c.b16 %v1193, %v1161
      %v1450 = vpack.c.b16 %v1194, %v1162
      %v1451 = vpack.c.b16 %v1195, %v1163
      %v1452 = vpack.c.b16 %v1196, %v1164
      %v1453 = vpack.c.b16 %v1197, %v1165
      %v1454 = vpack.c.b16 %v1198, %v1166
      %v1455 = vpack.c.b16 %v1199, %v1167
      %v1456 = vpack.c.b16 %v1200, %v1168
      %v1457 = vpack.c.b16 %v1201, %v1169
      %v1458 = vpack.c.b16 %v1202, %v1170
      %1715 = vmatprep.subr.bf16.mxu0 %v1204
      %1716 = vmatpush1.bf16.msra.mxu0 %v1203
      %1717 = vmatprep.subr.bf16.mxu0 %v1236
      %1718 = vmatpush1.bf16.msra.mxu0 %v1235
      %1719 = vmatprep.subr.bf16.mxu0 %v1268
      %1720 = vmatpush1.bf16.msra.mxu0 %v1267
      %1721 = vmatprep.subr.bf16.mxu0 %v1300
      %1722 = vmatpush1.bf16.msra.mxu0 %v1299
      %1723 = vmatprep.subr.bf16.mxu0 %v1332
      %1724 = vmatpush1.bf16.msra.mxu0 %v1331
      %1725 = vmatprep.subr.bf16.mxu0 %v1364
      %1726 = vmatpush1.bf16.msra.mxu0 %v1363
      %1727 = vmatprep.subr.bf16.mxu0 %v1396
      %1728 = vmatpush1.bf16.msra.mxu0 %v1395
      %1729 = vmatprep.subr.bf16.mxu0 %v1428
      %1730 = vmatpush1.bf16.msra.mxu0 %v1427
      %1731 = vmatprep.subr.bf16.mxu0 0
      %1732 = vmatpush1.bf16.msra.mxu0 0
      %1733 = vmatprep.subr.bf16.mxu0 0
      %1734 = vmatpush1.bf16.msra.mxu0 0
      %1735 = vmatprep.subr.bf16.mxu0 0
      %1736 = vmatpush1.bf16.msra.mxu0 0
      %1737 = vmatprep.subr.bf16.mxu0 0
      %1738 = vmatpush1.bf16.msra.mxu0 0
      %1739 = vmatprep.subr.bf16.mxu0 0
      %1740 = vmatpush1.bf16.msra.mxu0 0
      %1741 = vmatprep.subr.bf16.mxu0 0
      %1742 = vmatpush1.bf16.msra.mxu0 0
      %1743 = vmatprep.subr.bf16.mxu0 0
      %1744 = vmatpush1.bf16.msra.mxu0 0
      %1745 = vmatprep.subr.bf16.mxu0 0
      %1746 = vmatpush1.bf16.msra.mxu0 0
      %1747 = vmatprep.mubr.bf16.mxu0 0
      %1748 = vmatmul.mubr.bf16.gmra.mrb[0].mxu0 %v172
      %v1749 = vpop.f32.mrb[0].mxu0
      %v1750 = vadd.f32 %v433, %v1749
      %v1751 = vpop.f32.mrb[0].mxu0
      %v1752 = vadd.f32 %v433, %v1751
      %v1753 = vpop.f32.mrb[0].mxu0
      %v1754 = vpop.f32.mrb[0].mxu0
      %1755 = vdwg.mxu0
      %1756 = vmatprep.subr.bf16.mxu0 %v1206
      %1757 = vmatpush1.bf16.msra.mxu0 %v1205
      %1758 = vmatprep.subr.bf16.mxu0 %v1238
      %1759 = vmatpush1.bf16.msra.mxu0 %v1237
      %1760 = vmatprep.subr.bf16.mxu0 %v1270
      %1761 = vmatpush1.bf16.msra.mxu0 %v1269
      %1762 = vmatprep.subr.bf16.mxu0 %v1302
      %1763 = vmatpush1.bf16.msra.mxu0 %v1301
      %1764 = vmatprep.subr.bf16.mxu0 %v1334
      %1765 = vmatpush1.bf16.msra.mxu0 %v1333
      %1766 = vmatprep.subr.bf16.mxu0 %v1366
      %1767 = vmatpush1.bf16.msra.mxu0 %v1365
      %1768 = vmatprep.subr.bf16.mxu0 %v1398
      %1769 = vmatpush1.bf16.msra.mxu0 %v1397
      %1770 = vmatprep.subr.bf16.mxu0 %v1430
      %1771 = vmatpush1.bf16.msra.mxu0 %v1429
      %1772 = vmatprep.subr.bf16.mxu0 0
      %1773 = vmatpush1.bf16.msra.mxu0 0
      %1774 = vmatprep.subr.bf16.mxu0 0
      %1775 = vmatpush1.bf16.msra.mxu0 0
      %1776 = vmatprep.subr.bf16.mxu0 0
      %1777 = vmatpush1.bf16.msra.mxu0 0
      %1778 = vmatprep.subr.bf16.mxu0 0
      %1779 = vmatpush1.bf16.msra.mxu0 0
      %1780 = vmatprep.subr.bf16.mxu0 0
      %1781 = vmatpush1.bf16.msra.mxu0 0
      %1782 = vmatprep.subr.bf16.mxu0 0
      %1783 = vmatpush1.bf16.msra.mxu0 0
      %1784 = vmatprep.subr.bf16.mxu0 0
      %1785 = vmatpush1.bf16.msra.mxu0 0
      %1786 = vmatprep.subr.bf16.mxu0 0
      %1787 = vmatpush1.bf16.msra.mxu0 0
      %1788 = vmatprep.mubr.bf16.mxu0 0
      %1789 = vmatmul.mubr.bf16.gmra.mrb[0].mxu0 %v172
      %v1790 = vpop.f32.mrb[0].mxu0
      %v1791 = vadd.f32 %v433, %v1790
      %v1792 = vpop.f32.mrb[0].mxu0
      %v1793 = vadd.f32 %v433, %v1792
      %v1794 = vpop.f32.mrb[0].mxu0
      %v1795 = vpop.f32.mrb[0].mxu0
      %1796 = vdwg.mxu0
      %1797 = vmatprep.subr.bf16.mxu0 %v1208
      %1798 = vmatpush1.bf16.msra.mxu0 %v1207
      %1799 = vmatprep.subr.bf16.mxu0 %v1240
      %1800 = vmatpush1.bf16.msra.mxu0 %v1239
      %1801 = vmatprep.subr.bf16.mxu0 %v1272
      %1802 = vmatpush1.bf16.msra.mxu0 %v1271
      %1803 = vmatprep.subr.bf16.mxu0 %v1304
      %1804 = vmatpush1.bf16.msra.mxu0 %v1303
      %1805 = vmatprep.subr.bf16.mxu0 %v1336
      %1806 = vmatpush1.bf16.msra.mxu0 %v1335
      %1807 = vmatprep.subr.bf16.mxu0 %v1368
      %1808 = vmatpush1.bf16.msra.mxu0 %v1367
      %1809 = vmatprep.subr.bf16.mxu0 %v1400
      %1810 = vmatpush1.bf16.msra.mxu0 %v1399
      %1811 = vmatprep.subr.bf16.mxu0 %v1432
      %1812 = vmatpush1.bf16.msra.mxu0 %v1431
      %1813 = vmatprep.subr.bf16.mxu0 0
      %1814 = vmatpush1.bf16.msra.mxu0 0
      %1815 = vmatprep.subr.bf16.mxu0 0
      %1816 = vmatpush1.bf16.msra.mxu0 0
      %1817 = vmatprep.subr.bf16.mxu0 0
      %1818 = vmatpush1.bf16.msra.mxu0 0
      %1819 = vmatprep.subr.bf16.mxu0 0
      %1820 = vmatpush1.bf16.msra.mxu0 0
      %1821 = vmatprep.subr.bf16.mxu0 0
      %1822 = vmatpush1.bf16.msra.mxu0 0
      %1823 = vmatprep.subr.bf16.mxu0 0
      %1824 = vmatpush1.bf16.msra.mxu0 0
      %1825 = vmatprep.subr.bf16.mxu0 0
      %1826 = vmatpush1.bf16.msra.mxu0 0
      %1827 = vmatprep.subr.bf16.mxu0 0
      %1828 = vmatpush1.bf16.msra.mxu0 0
      %1829 = vmatprep.mubr.bf16.mxu0 0
      %1830 = vmatmul.mubr.bf16.gmra.mrb[0].mxu0 %v172
      %v1831 = vpop.f32.mrb[0].mxu0
      %v1832 = vadd.f32 %v433, %v1831
      %v1833 = vpop.f32.mrb[0].mxu0
      %v1834 = vadd.f32 %v433, %v1833
      %v1835 = vpop.f32.mrb[0].mxu0
      %v1836 = vpop.f32.mrb[0].mxu0
      %1837 = vdwg.mxu0
      %1838 = vmatprep.subr.bf16.mxu0 %v1210
      %1839 = vmatpush1.bf16.msra.mxu0 %v1209
      %1840 = vmatprep.subr.bf16.mxu0 %v1242
      %1841 = vmatpush1.bf16.msra.mxu0 %v1241
      %1842 = vmatprep.subr.bf16.mxu0 %v1274
      %1843 = vmatpush1.bf16.msra.mxu0 %v1273
      %1844 = vmatprep.subr.bf16.mxu0 %v1306
      %1845 = vmatpush1.bf16.msra.mxu0 %v1305
      %1846 = vmatprep.subr.bf16.mxu0 %v1338
      %1847 = vmatpush1.bf16.msra.mxu0 %v1337
      %1848 = vmatprep.subr.bf16.mxu0 %v1370
      %1849 = vmatpush1.bf16.msra.mxu0 %v1369
      %1850 = vmatprep.subr.bf16.mxu0 %v1402
      %1851 = vmatpush1.bf16.msra.mxu0 %v1401
      %1852 = vmatprep.subr.bf16.mxu0 %v1434
      %1853 = vmatpush1.bf16.msra.mxu0 %v1433
      %1854 = vmatprep.subr.bf16.mxu0 0
      %1855 = vmatpush1.bf16.msra.mxu0 0
      %1856 = vmatprep.subr.bf16.mxu0 0
      %1857 = vmatpush1.bf16.msra.mxu0 0
      %1858 = vmatprep.subr.bf16.mxu0 0
      %1859 = vmatpush1.bf16.msra.mxu0 0
      %1860 = vmatprep.subr.bf16.mxu0 0
      %1861 = vmatpush1.bf16.msra.mxu0 0
      %1862 = vmatprep.subr.bf16.mxu0 0
      %1863 = vmatpush1.bf16.msra.mxu0 0
      %1864 = vmatprep.subr.bf16.mxu0 0
      %1865 = vmatpush1.bf16.msra.mxu0 0
      %1866 = vmatprep.subr.bf16.mxu0 0
      %1867 = vmatpush1.bf16.msra.mxu0 0
      %1868 = vmatprep.subr.bf16.mxu0 0
      %1869 = vmatpush1.bf16.msra.mxu0 0
      %1870 = vmatprep.mubr.bf16.mxu0 0
      %1871 = vmatmul.mubr.bf16.gmra.mrb[0].mxu0 %v172
      %v1872 = vpop.f32.mrb[0].mxu0
      %v1873 = vadd.f32 %v433, %v1872
      %v1874 = vpop.f32.mrb[0].mxu0
      %v1875 = vadd.f32 %v433, %v1874
      %v1876 = vpop.f32.mrb[0].mxu0
      %v1877 = vpop.f32.mrb[0].mxu0
      %1878 = vdwg.mxu0
      %1879 = vmatprep.subr.bf16.mxu0 %v1212
      %1880 = vmatpush1.bf16.msra.mxu0 %v1211
      %1881 = vmatprep.subr.bf16.mxu0 %v1244
      %1882 = vmatpush1.bf16.msra.mxu0 %v1243
      %1883 = vmatprep.subr.bf16.mxu0 %v1276
      %1884 = vmatpush1.bf16.msra.mxu0 %v1275
      %1885 = vmatprep.subr.bf16.mxu0 %v1308
      %1886 = vmatpush1.bf16.msra.mxu0 %v1307
      %1887 = vmatprep.subr.bf16.mxu0 %v1340
      %1888 = vmatpush1.bf16.msra.mxu0 %v1339
      %1889 = vmatprep.subr.bf16.mxu0 %v1372
      %1890 = vmatpush1.bf16.msra.mxu0 %v1371
      %1891 = vmatprep.subr.bf16.mxu0 %v1404
      %1892 = vmatpush1.bf16.msra.mxu0 %v1403
      %1893 = vmatprep.subr.bf16.mxu0 %v1436
      %1894 = vmatpush1.bf16.msra.mxu0 %v1435
      %1895 = vmatprep.subr.bf16.mxu0 0
      %1896 = vmatpush1.bf16.msra.mxu0 0
      %1897 = vmatprep.subr.bf16.mxu0 0
      %1898 = vmatpush1.bf16.msra.mxu0 0
      %1899 = vmatprep.subr.bf16.mxu0 0
      %1900 = vmatpush1.bf16.msra.mxu0 0
      %1901 = vmatprep.subr.bf16.mxu0 0
      %1902 = vmatpush1.bf16.msra.mxu0 0
      %1903 = vmatprep.subr.bf16.mxu0 0
      %1904 = vmatpush1.bf16.msra.mxu0 0
      %1905 = vmatprep.subr.bf16.mxu0 0
      %1906 = vmatpush1.bf16.msra.mxu0 0
      %1907 = vmatprep.subr.bf16.mxu0 0
      %1908 = vmatpush1.bf16.msra.mxu0 0
      %1909 = vmatprep.subr.bf16.mxu0 0
      %1910 = vmatpush1.bf16.msra.mxu0 0
      %1911 = vmatprep.mubr.bf16.mxu0 0
      %1912 = vmatmul.mubr.bf16.gmra.mrb[0].mxu0 %v172
      %v1913 = vpop.f32.mrb[0].mxu0
      %v1914 = vadd.f32 %v433, %v1913
      %v1915 = vpop.f32.mrb[0].mxu0
      %v1916 = vadd.f32 %v433, %v1915
      %v1917 = vpop.f32.mrb[0].mxu0
      %v1918 = vpop.f32.mrb[0].mxu0
      %1919 = vdwg.mxu0
      %1920 = vmatprep.subr.bf16.mxu0 %v1214
      %1921 = vmatpush1.bf16.msra.mxu0 %v1213
      %1922 = vmatprep.subr.bf16.mxu0 %v1246
      %1923 = vmatpush1.bf16.msra.mxu0 %v1245
      %1924 = vmatprep.subr.bf16.mxu0 %v1278
      %1925 = vmatpush1.bf16.msra.mxu0 %v1277
      %1926 = vmatprep.subr.bf16.mxu0 %v1310
      %1927 = vmatpush1.bf16.msra.mxu0 %v1309
      %1928 = vmatprep.subr.bf16.mxu0 %v1342
      %1929 = vmatpush1.bf16.msra.mxu0 %v1341
      %1930 = vmatprep.subr.bf16.mxu0 %v1374
      %1931 = vmatpush1.bf16.msra.mxu0 %v1373
      %1932 = vmatprep.subr.bf16.mxu0 %v1406
      %1933 = vmatpush1.bf16.msra.mxu0 %v1405
      %1934 = vmatprep.subr.bf16.mxu0 %v1438
      %1935 = vmatpush1.bf16.msra.mxu0 %v1437
      %1936 = vmatprep.subr.bf16.mxu0 0
      %1937 = vmatpush1.bf16.msra.mxu0 0
      %1938 = vmatprep.subr.bf16.mxu0 0
      %1939 = vmatpush1.bf16.msra.mxu0 0
      %1940 = vmatprep.subr.bf16.mxu0 0
      %1941 = vmatpush1.bf16.msra.mxu0 0
      %1942 = vmatprep.subr.bf16.mxu0 0
      %1943 = vmatpush1.bf16.msra.mxu0 0
      %1944 = vmatprep.subr.bf16.mxu0 0
      %1945 = vmatpush1.bf16.msra.mxu0 0
      %1946 = vmatprep.subr.bf16.mxu0 0
      %1947 = vmatpush1.bf16.msra.mxu0 0
      %1948 = vmatprep.subr.bf16.mxu0 0
      %1949 = vmatpush1.bf16.msra.mxu0 0
      %1950 = vmatprep.subr.bf16.mxu0 0
      %1951 = vmatpush1.bf16.msra.mxu0 0
      %1952 = vmatprep.mubr.bf16.mxu0 0
      %1953 = vmatmul.mubr.bf16.gmra.mrb[0].mxu0 %v172
      %v1954 = vpop.f32.mrb[0].mxu0
      %v1955 = vadd.f32 %v433, %v1954
      %v1956 = vpop.f32.mrb[0].mxu0
      %v1957 = vadd.f32 %v433, %v1956
      %v1958 = vpop.f32.mrb[0].mxu0
      %v1959 = vpop.f32.mrb[0].mxu0
      %1960 = vdwg.mxu0
      %1961 = vmatprep.subr.bf16.mxu0 %v1216
      %1962 = vmatpush1.bf16.msra.mxu0 %v1215
      %1963 = vmatprep.subr.bf16.mxu0 %v1248
      %1964 = vmatpush1.bf16.msra.mxu0 %v1247
      %1965 = vmatprep.subr.bf16.mxu0 %v1280
      %1966 = vmatpush1.bf16.msra.mxu0 %v1279
      %1967 = vmatprep.subr.bf16.mxu0 %v1312
      %1968 = vmatpush1.bf16.msra.mxu0 %v1311
      %1969 = vmatprep.subr.bf16.mxu0 %v1344
      %1970 = vmatpush1.bf16.msra.mxu0 %v1343
      %1971 = vmatprep.subr.bf16.mxu0 %v1376
      %1972 = vmatpush1.bf16.msra.mxu0 %v1375
      %1973 = vmatprep.subr.bf16.mxu0 %v1408
      %1974 = vmatpush1.bf16.msra.mxu0 %v1407
      %1975 = vmatprep.subr.bf16.mxu0 %v1440
      %1976 = vmatpush1.bf16.msra.mxu0 %v1439
      %1977 = vmatprep.subr.bf16.mxu0 0
      %1978 = vmatpush1.bf16.msra.mxu0 0
      %1979 = vmatprep.subr.bf16.mxu0 0
      %1980 = vmatpush1.bf16.msra.mxu0 0
      %1981 = vmatprep.subr.bf16.mxu0 0
      %1982 = vmatpush1.bf16.msra.mxu0 0
      %1983 = vmatprep.subr.bf16.mxu0 0
      %1984 = vmatpush1.bf16.msra.mxu0 0
      %1985 = vmatprep.subr.bf16.mxu0 0
      %1986 = vmatpush1.bf16.msra.mxu0 0
      %1987 = vmatprep.subr.bf16.mxu0 0
      %1988 = vmatpush1.bf16.msra.mxu0 0
      %1989 = vmatprep.subr.bf16.mxu0 0
      %1990 = vmatpush1.bf16.msra.mxu0 0
      %1991 = vmatprep.subr.bf16.mxu0 0
      %1992 = vmatpush1.bf16.msra.mxu0 0
      %1993 = vmatprep.mubr.bf16.mxu0 0
      %1994 = vmatmul.mubr.bf16.gmra.mrb[0].mxu0 %v172
      %v1995 = vpop.f32.mrb[0].mxu0
      %v1996 = vadd.f32 %v433, %v1995
      %v1997 = vpop.f32.mrb[0].mxu0
      %v1998 = vadd.f32 %v433, %v1997
      %v1999 = vpop.f32.mrb[0].mxu0
      %v2000 = vpop.f32.mrb[0].mxu0
      %2001 = vdwg.mxu0
      %2002 = vmatprep.subr.bf16.mxu0 %v1218
      %2003 = vmatpush1.bf16.msra.mxu0 %v1217
      %2004 = vmatprep.subr.bf16.mxu0 %v1250
      %2005 = vmatpush1.bf16.msra.mxu0 %v1249
      %2006 = vmatprep.subr.bf16.mxu0 %v1282
      %2007 = vmatpush1.bf16.msra.mxu0 %v1281
      %2008 = vmatprep.subr.bf16.mxu0 %v1314
      %2009 = vmatpush1.bf16.msra.mxu0 %v1313
      %2010 = vmatprep.subr.bf16.mxu0 %v1346
      %2011 = vmatpush1.bf16.msra.mxu0 %v1345
      %2012 = vmatprep.subr.bf16.mxu0 %v1378
      %2013 = vmatpush1.bf16.msra.mxu0 %v1377
      %2014 = vmatprep.subr.bf16.mxu0 %v1410
      %2015 = vmatpush1.bf16.msra.mxu0 %v1409
      %2016 = vmatprep.subr.bf16.mxu0 %v1442
      %2017 = vmatpush1.bf16.msra.mxu0 %v1441
      %2018 = vmatprep.subr.bf16.mxu0 0
      %2019 = vmatpush1.bf16.msra.mxu0 0
      %2020 = vmatprep.subr.bf16.mxu0 0
      %2021 = vmatpush1.bf16.msra.mxu0 0
      %2022 = vmatprep.subr.bf16.mxu0 0
      %2023 = vmatpush1.bf16.msra.mxu0 0
      %2024 = vmatprep.subr.bf16.mxu0 0
      %2025 = vmatpush1.bf16.msra.mxu0 0
      %2026 = vmatprep.subr.bf16.mxu0 0
      %2027 = vmatpush1.bf16.msra.mxu0 0
      %2028 = vmatprep.subr.bf16.mxu0 0
      %2029 = vmatpush1.bf16.msra.mxu0 0
      %2030 = vmatprep.subr.bf16.mxu0 0
      %2031 = vmatpush1.bf16.msra.mxu0 0
      %2032 = vmatprep.subr.bf16.mxu0 0
      %2033 = vmatpush1.bf16.msra.mxu0 0
      %2034 = vmatprep.mubr.bf16.mxu0 0
      %2035 = vmatmul.mubr.bf16.gmra.mrb[0].mxu0 %v172
      %v2036 = vpop.f32.mrb[0].mxu0
      %v2037 = vadd.f32 %v433, %v2036
      %v2038 = vpop.f32.mrb[0].mxu0
      %v2039 = vadd.f32 %v433, %v2038
      %v2040 = vpop.f32.mrb[0].mxu0
      %v2041 = vpop.f32.mrb[0].mxu0
      %2042 = vdwg.mxu0
      %2043 = vmatprep.subr.bf16.mxu0 %v1220
      %2044 = vmatpush1.bf16.msra.mxu0 %v1219
      %2045 = vmatprep.subr.bf16.mxu0 %v1252
      %2046 = vmatpush1.bf16.msra.mxu0 %v1251
      %2047 = vmatprep.subr.bf16.mxu0 %v1284
      %2048 = vmatpush1.bf16.msra.mxu0 %v1283
      %2049 = vmatprep.subr.bf16.mxu0 %v1316
      %2050 = vmatpush1.bf16.msra.mxu0 %v1315
      %2051 = vmatprep.subr.bf16.mxu0 %v1348
      %2052 = vmatpush1.bf16.msra.mxu0 %v1347
      %2053 = vmatprep.subr.bf16.mxu0 %v1380
      %2054 = vmatpush1.bf16.msra.mxu0 %v1379
      %2055 = vmatprep.subr.bf16.mxu0 %v1412
      %2056 = vmatpush1.bf16.msra.mxu0 %v1411
      %2057 = vmatprep.subr.bf16.mxu0 %v1444
      %2058 = vmatpush1.bf16.msra.mxu0 %v1443
      %2059 = vmatprep.subr.bf16.mxu0 0
      %2060 = vmatpush1.bf16.msra.mxu0 0
      %2061 = vmatprep.subr.bf16.mxu0 0
      %2062 = vmatpush1.bf16.msra.mxu0 0
      %2063 = vmatprep.subr.bf16.mxu0 0
      %2064 = vmatpush1.bf16.msra.mxu0 0
      %2065 = vmatprep.subr.bf16.mxu0 0
      %2066 = vmatpush1.bf16.msra.mxu0 0
      %2067 = vmatprep.subr.bf16.mxu0 0
      %2068 = vmatpush1.bf16.msra.mxu0 0
      %2069 = vmatprep.subr.bf16.mxu0 0
      %2070 = vmatpush1.bf16.msra.mxu0 0
      %2071 = vmatprep.subr.bf16.mxu0 0
      %2072 = vmatpush1.bf16.msra.mxu0 0
      %2073 = vmatprep.subr.bf16.mxu0 0
      %2074 = vmatpush1.bf16.msra.mxu0 0
      %2075 = vmatprep.mubr.bf16.mxu0 0
      %2076 = vmatmul.mubr.bf16.gmra.mrb[0].mxu0 %v172
      %v2077 = vpop.f32.mrb[0].mxu0
      %v2078 = vadd.f32 %v433, %v2077
      %v2079 = vpop.f32.mrb[0].mxu0
      %v2080 = vadd.f32 %v433, %v2079
      %v2081 = vpop.f32.mrb[0].mxu0
      %v2082 = vpop.f32.mrb[0].mxu0
      %2083 = vdwg.mxu0
      %2084 = vmatprep.subr.bf16.mxu0 %v1222
      %2085 = vmatpush1.bf16.msra.mxu0 %v1221
      %2086 = vmatprep.subr.bf16.mxu0 %v1254
      %2087 = vmatpush1.bf16.msra.mxu0 %v1253
      %2088 = vmatprep.subr.bf16.mxu0 %v1286
      %2089 = vmatpush1.bf16.msra.mxu0 %v1285
      %2090 = vmatprep.subr.bf16.mxu0 %v1318
      %2091 = vmatpush1.bf16.msra.mxu0 %v1317
      %2092 = vmatprep.subr.bf16.mxu0 %v1350
      %2093 = vmatpush1.bf16.msra.mxu0 %v1349
      %2094 = vmatprep.subr.bf16.mxu0 %v1382
      %2095 = vmatpush1.bf16.msra.mxu0 %v1381
      %2096 = vmatprep.subr.bf16.mxu0 %v1414
      %2097 = vmatpush1.bf16.msra.mxu0 %v1413
      %2098 = vmatprep.subr.bf16.mxu0 %v1446
      %2099 = vmatpush1.bf16.msra.mxu0 %v1445
      %2100 = vmatprep.subr.bf16.mxu0 0
      %2101 = vmatpush1.bf16.msra.mxu0 0
      %2102 = vmatprep.subr.bf16.mxu0 0
      %2103 = vmatpush1.bf16.msra.mxu0 0
      %2104 = vmatprep.subr.bf16.mxu0 0
      %2105 = vmatpush1.bf16.msra.mxu0 0
      %2106 = vmatprep.subr.bf16.mxu0 0
      %2107 = vmatpush1.bf16.msra.mxu0 0
      %2108 = vmatprep.subr.bf16.mxu0 0
      %2109 = vmatpush1.bf16.msra.mxu0 0
      %2110 = vmatprep.subr.bf16.mxu0 0
      %2111 = vmatpush1.bf16.msra.mxu0 0
      %2112 = vmatprep.subr.bf16.mxu0 0
      %2113 = vmatpush1.bf16.msra.mxu0 0
      %2114 = vmatprep.subr.bf16.mxu0 0
      %2115 = vmatpush1.bf16.msra.mxu0 0
      %2116 = vmatprep.mubr.bf16.mxu0 0
      %2117 = vmatmul.mubr.bf16.gmra.mrb[0].mxu0 %v172
      %v2118 = vpop.f32.mrb[0].mxu0
      %v2119 = vadd.f32 %v433, %v2118
      %v2120 = vpop.f32.mrb[0].mxu0
      %v2121 = vadd.f32 %v433, %v2120
      %v2122 = vpop.f32.mrb[0].mxu0
      %v2123 = vpop.f32.mrb[0].mxu0
      %2124 = vdwg.mxu0
      %2125 = vmatprep.subr.bf16.mxu0 %v1224
      %2126 = vmatpush1.bf16.msra.mxu0 %v1223
      %2127 = vmatprep.subr.bf16.mxu0 %v1256
      %2128 = vmatpush1.bf16.msra.mxu0 %v1255
      %2129 = vmatprep.subr.bf16.mxu0 %v1288
      %2130 = vmatpush1.bf16.msra.mxu0 %v1287
      %2131 = vmatprep.subr.bf16.mxu0 %v1320
      %2132 = vmatpush1.bf16.msra.mxu0 %v1319
      %2133 = vmatprep.subr.bf16.mxu0 %v1352
      %2134 = vmatpush1.bf16.msra.mxu0 %v1351
      %2135 = vmatprep.subr.bf16.mxu0 %v1384
      %2136 = vmatpush1.bf16.msra.mxu0 %v1383
      %2137 = vmatprep.subr.bf16.mxu0 %v1416
      %2138 = vmatpush1.bf16.msra.mxu0 %v1415
      %2139 = vmatprep.subr.bf16.mxu0 %v1448
      %2140 = vmatpush1.bf16.msra.mxu0 %v1447
      %2141 = vmatprep.subr.bf16.mxu0 0
      %2142 = vmatpush1.bf16.msra.mxu0 0
      %2143 = vmatprep.subr.bf16.mxu0 0
      %2144 = vmatpush1.bf16.msra.mxu0 0
      %2145 = vmatprep.subr.bf16.mxu0 0
      %2146 = vmatpush1.bf16.msra.mxu0 0
      %2147 = vmatprep.subr.bf16.mxu0 0
      %2148 = vmatpush1.bf16.msra.mxu0 0
      %2149 = vmatprep.subr.bf16.mxu0 0
      %2150 = vmatpush1.bf16.msra.mxu0 0
      %2151 = vmatprep.subr.bf16.mxu0 0
      %2152 = vmatpush1.bf16.msra.mxu0 0
      %2153 = vmatprep.subr.bf16.mxu0 0
      %2154 = vmatpush1.bf16.msra.mxu0 0
      %2155 = vmatprep.subr.bf16.mxu0 0
      %2156 = vmatpush1.bf16.msra.mxu0 0
      %2157 = vmatprep.mubr.bf16.mxu0 0
      %2158 = vmatmul.mubr.bf16.gmra.mrb[0].mxu0 %v172
      %v2159 = vpop.f32.mrb[0].mxu0
      %v2160 = vadd.f32 %v433, %v2159
      %v2161 = vpop.f32.mrb[0].mxu0
      %v2162 = vadd.f32 %v433, %v2161
      %v2163 = vpop.f32.mrb[0].mxu0
      %v2164 = vpop.f32.mrb[0].mxu0
      %2165 = vdwg.mxu0
      %2166 = vmatprep.subr.bf16.mxu0 %v1226
      %2167 = vmatpush1.bf16.msra.mxu0 %v1225
      %2168 = vmatprep.subr.bf16.mxu0 %v1258
      %2169 = vmatpush1.bf16.msra.mxu0 %v1257
      %2170 = vmatprep.subr.bf16.mxu0 %v1290
      %2171 = vmatpush1.bf16.msra.mxu0 %v1289
      %2172 = vmatprep.subr.bf16.mxu0 %v1322
      %2173 = vmatpush1.bf16.msra.mxu0 %v1321
      %2174 = vmatprep.subr.bf16.mxu0 %v1354
      %2175 = vmatpush1.bf16.msra.mxu0 %v1353
      %2176 = vmatprep.subr.bf16.mxu0 %v1386
      %2177 = vmatpush1.bf16.msra.mxu0 %v1385
      %2178 = vmatprep.subr.bf16.mxu0 %v1418
      %2179 = vmatpush1.bf16.msra.mxu0 %v1417
      %2180 = vmatprep.subr.bf16.mxu0 %v1450
      %2181 = vmatpush1.bf16.msra.mxu0 %v1449
      %2182 = vmatprep.subr.bf16.mxu0 0
      %2183 = vmatpush1.bf16.msra.mxu0 0
      %2184 = vmatprep.subr.bf16.mxu0 0
      %2185 = vmatpush1.bf16.msra.mxu0 0
      %2186 = vmatprep.subr.bf16.mxu0 0
      %2187 = vmatpush1.bf16.msra.mxu0 0
      %2188 = vmatprep.subr.bf16.mxu0 0
      %2189 = vmatpush1.bf16.msra.mxu0 0
      %2190 = vmatprep.subr.bf16.mxu0 0
      %2191 = vmatpush1.bf16.msra.mxu0 0
      %2192 = vmatprep.subr.bf16.mxu0 0
      %2193 = vmatpush1.bf16.msra.mxu0 0
      %2194 = vmatprep.subr.bf16.mxu0 0
      %2195 = vmatpush1.bf16.msra.mxu0 0
      %2196 = vmatprep.subr.bf16.mxu0 0
      %2197 = vmatpush1.bf16.msra.mxu0 0
      %2198 = vmatprep.mubr.bf16.mxu0 0
      %2199 = vmatmul.mubr.bf16.gmra.mrb[0].mxu0 %v172
      %v2200 = vpop.f32.mrb[0].mxu0
      %v2201 = vadd.f32 %v433, %v2200
      %v2202 = vpop.f32.mrb[0].mxu0
      %v2203 = vadd.f32 %v433, %v2202
      %v2204 = vpop.f32.mrb[0].mxu0
      %v2205 = vpop.f32.mrb[0].mxu0
      %2206 = vdwg.mxu0
      %2207 = vmatprep.subr.bf16.mxu0 %v1228
      %2208 = vmatpush1.bf16.msra.mxu0 %v1227
      %2209 = vmatprep.subr.bf16.mxu0 %v1260
      %2210 = vmatpush1.bf16.msra.mxu0 %v1259
      %2211 = vmatprep.subr.bf16.mxu0 %v1292
      %2212 = vmatpush1.bf16.msra.mxu0 %v1291
      %2213 = vmatprep.subr.bf16.mxu0 %v1324
      %2214 = vmatpush1.bf16.msra.mxu0 %v1323
      %2215 = vmatprep.subr.bf16.mxu0 %v1356
      %2216 = vmatpush1.bf16.msra.mxu0 %v1355
      %2217 = vmatprep.subr.bf16.mxu0 %v1388
      %2218 = vmatpush1.bf16.msra.mxu0 %v1387
      %2219 = vmatprep.subr.bf16.mxu0 %v1420
      %2220 = vmatpush1.bf16.msra.mxu0 %v1419
      %2221 = vmatprep.subr.bf16.mxu0 %v1452
      %2222 = vmatpush1.bf16.msra.mxu0 %v1451
      %2223 = vmatprep.subr.bf16.mxu0 0
      %2224 = vmatpush1.bf16.msra.mxu0 0
      %2225 = vmatprep.subr.bf16.mxu0 0
      %2226 = vmatpush1.bf16.msra.mxu0 0
      %2227 = vmatprep.subr.bf16.mxu0 0
      %2228 = vmatpush1.bf16.msra.mxu0 0
      %2229 = vmatprep.subr.bf16.mxu0 0
      %2230 = vmatpush1.bf16.msra.mxu0 0
      %2231 = vmatprep.subr.bf16.mxu0 0
      %2232 = vmatpush1.bf16.msra.mxu0 0
      %2233 = vmatprep.subr.bf16.mxu0 0
      %2234 = vmatpush1.bf16.msra.mxu0 0
      %2235 = vmatprep.subr.bf16.mxu0 0
      %2236 = vmatpush1.bf16.msra.mxu0 0
      %2237 = vmatprep.subr.bf16.mxu0 0
      %2238 = vmatpush1.bf16.msra.mxu0 0
      %2239 = vmatprep.mubr.bf16.mxu0 0
      %2240 = vmatmul.mubr.bf16.gmra.mrb[0].mxu0 %v172
      %v2241 = vpop.f32.mrb[0].mxu0
      %v2242 = vadd.f32 %v433, %v2241
      %v2243 = vpop.f32.mrb[0].mxu0
      %v2244 = vadd.f32 %v433, %v2243
      %v2245 = vpop.f32.mrb[0].mxu0
      %v2246 = vpop.f32.mrb[0].mxu0
      %2247 = vdwg.mxu0
      %2248 = vmatprep.subr.bf16.mxu0 %v1230
      %2249 = vmatpush1.bf16.msra.mxu0 %v1229
      %2250 = vmatprep.subr.bf16.mxu0 %v1262
      %2251 = vmatpush1.bf16.msra.mxu0 %v1261
      %2252 = vmatprep.subr.bf16.mxu0 %v1294
      %2253 = vmatpush1.bf16.msra.mxu0 %v1293
      %2254 = vmatprep.subr.bf16.mxu0 %v1326
      %2255 = vmatpush1.bf16.msra.mxu0 %v1325
      %2256 = vmatprep.subr.bf16.mxu0 %v1358
      %2257 = vmatpush1.bf16.msra.mxu0 %v1357
      %2258 = vmatprep.subr.bf16.mxu0 %v1390
      %2259 = vmatpush1.bf16.msra.mxu0 %v1389
      %2260 = vmatprep.subr.bf16.mxu0 %v1422
      %2261 = vmatpush1.bf16.msra.mxu0 %v1421
      %2262 = vmatprep.subr.bf16.mxu0 %v1454
      %2263 = vmatpush1.bf16.msra.mxu0 %v1453
      %2264 = vmatprep.subr.bf16.mxu0 0
      %2265 = vmatpush1.bf16.msra.mxu0 0
      %2266 = vmatprep.subr.bf16.mxu0 0
      %2267 = vmatpush1.bf16.msra.mxu0 0
      %2268 = vmatprep.subr.bf16.mxu0 0
      %2269 = vmatpush1.bf16.msra.mxu0 0
      %2270 = vmatprep.subr.bf16.mxu0 0
      %2271 = vmatpush1.bf16.msra.mxu0 0
      %2272 = vmatprep.subr.bf16.mxu0 0
      %2273 = vmatpush1.bf16.msra.mxu0 0
      %2274 = vmatprep.subr.bf16.mxu0 0
      %2275 = vmatpush1.bf16.msra.mxu0 0
      %2276 = vmatprep.subr.bf16.mxu0 0
      %2277 = vmatpush1.bf16.msra.mxu0 0
      %2278 = vmatprep.subr.bf16.mxu0 0
      %2279 = vmatpush1.bf16.msra.mxu0 0
      %2280 = vmatprep.mubr.bf16.mxu0 0
      %2281 = vmatmul.mubr.bf16.gmra.mrb[0].mxu0 %v172
      %v2282 = vpop.f32.mrb[0].mxu0
      %v2283 = vadd.f32 %v433, %v2282
      %v2284 = vpop.f32.mrb[0].mxu0
      %v2285 = vadd.f32 %v433, %v2284
      %v2286 = vpop.f32.mrb[0].mxu0
      %v2287 = vpop.f32.mrb[0].mxu0
      %2288 = vdwg.mxu0
      %2289 = vmatprep.subr.bf16.mxu0 %v1232
      %2290 = vmatpush1.bf16.msra.mxu0 %v1231
      %2291 = vmatprep.subr.bf16.mxu0 %v1264
      %2292 = vmatpush1.bf16.msra.mxu0 %v1263
      %2293 = vmatprep.subr.bf16.mxu0 %v1296
      %2294 = vmatpush1.bf16.msra.mxu0 %v1295
      %2295 = vmatprep.subr.bf16.mxu0 %v1328
      %2296 = vmatpush1.bf16.msra.mxu0 %v1327
      %2297 = vmatprep.subr.bf16.mxu0 %v1360
      %2298 = vmatpush1.bf16.msra.mxu0 %v1359
      %2299 = vmatprep.subr.bf16.mxu0 %v1392
      %2300 = vmatpush1.bf16.msra.mxu0 %v1391
      %2301 = vmatprep.subr.bf16.mxu0 %v1424
      %2302 = vmatpush1.bf16.msra.mxu0 %v1423
      %2303 = vmatprep.subr.bf16.mxu0 %v1456
      %2304 = vmatpush1.bf16.msra.mxu0 %v1455
      %2305 = vmatprep.subr.bf16.mxu0 0
      %2306 = vmatpush1.bf16.msra.mxu0 0
      %2307 = vmatprep.subr.bf16.mxu0 0
      %2308 = vmatpush1.bf16.msra.mxu0 0
      %2309 = vmatprep.subr.bf16.mxu0 0
      %2310 = vmatpush1.bf16.msra.mxu0 0
      %2311 = vmatprep.subr.bf16.mxu0 0
      %2312 = vmatpush1.bf16.msra.mxu0 0
      %2313 = vmatprep.subr.bf16.mxu0 0
      %2314 = vmatpush1.bf16.msra.mxu0 0
      %2315 = vmatprep.subr.bf16.mxu0 0
      %2316 = vmatpush1.bf16.msra.mxu0 0
      %2317 = vmatprep.subr.bf16.mxu0 0
      %2318 = vmatpush1.bf16.msra.mxu0 0
      %2319 = vmatprep.subr.bf16.mxu0 0
      %2320 = vmatpush1.bf16.msra.mxu0 0
      %2321 = vmatprep.mubr.bf16.mxu0 0
      %2322 = vmatmul.mubr.bf16.gmra.mrb[0].mxu0 %v172
      %v2323 = vpop.f32.mrb[0].mxu0
      %v2324 = vadd.f32 %v433, %v2323
      %v2325 = vpop.f32.mrb[0].mxu0
      %v2326 = vadd.f32 %v433, %v2325
      %v2327 = vpop.f32.mrb[0].mxu0
      %v2328 = vpop.f32.mrb[0].mxu0
      %2329 = vdwg.mxu0
      %2330 = vmatprep.subr.bf16.mxu0 %v1234
      %2331 = vmatpush1.bf16.msra.mxu0 %v1233
      %2332 = vmatprep.subr.bf16.mxu0 %v1266
      %2333 = vmatpush1.bf16.msra.mxu0 %v1265
      %2334 = vmatprep.subr.bf16.mxu0 %v1298
      %2335 = vmatpush1.bf16.msra.mxu0 %v1297
      %2336 = vmatprep.subr.bf16.mxu0 %v1330
      %2337 = vmatpush1.bf16.msra.mxu0 %v1329
      %2338 = vmatprep.subr.bf16.mxu0 %v1362
      %2339 = vmatpush1.bf16.msra.mxu0 %v1361
      %2340 = vmatprep.subr.bf16.mxu0 %v1394
      %2341 = vmatpush1.bf16.msra.mxu0 %v1393
      %2342 = vmatprep.subr.bf16.mxu0 %v1426
      %2343 = vmatpush1.bf16.msra.mxu0 %v1425
      %2344 = vmatprep.subr.bf16.mxu0 %v1458
      %2345 = vmatpush1.bf16.msra.mxu0 %v1457
      %2346 = vmatprep.subr.bf16.mxu0 0
      %2347 = vmatpush1.bf16.msra.mxu0 0
      %2348 = vmatprep.subr.bf16.mxu0 0
      %2349 = vmatpush1.bf16.msra.mxu0 0
      %2350 = vmatprep.subr.bf16.mxu0 0
      %2351 = vmatpush1.bf16.msra.mxu0 0
      %2352 = vmatprep.subr.bf16.mxu0 0
      %2353 = vmatpush1.bf16.msra.mxu0 0
      %2354 = vmatprep.subr.bf16.mxu0 0
      %2355 = vmatpush1.bf16.msra.mxu0 0
      %2356 = vmatprep.subr.bf16.mxu0 0
      %2357 = vmatpush1.bf16.msra.mxu0 0
      %2358 = vmatprep.subr.bf16.mxu0 0
      %2359 = vmatpush1.bf16.msra.mxu0 0
      %2360 = vmatprep.subr.bf16.mxu0 0
      %2361 = vmatpush1.bf16.msra.mxu0 0
      %2362 = vmatprep.mubr.bf16.mxu0 0
      %2363 = vmatmul.mubr.bf16.gmra.mrb[0].mxu0 %v172
      %v2364 = vpop.f32.mrb[0].mxu0
      %v2365 = vadd.f32 %v433, %v2364
      %v2366 = vpop.f32.mrb[0].mxu0
      %v2367 = vadd.f32 %v433, %v2366
      %v2368 = vpop.f32.mrb[0].mxu0
      %v2369 = vpop.f32.mrb[0].mxu0
      %2370 = vdwg.mxu0
      %vm2371 = vcmp.ge.f32.partialorder %v1750, 0.0
      %vm2372 = vcmp.ge.f32.partialorder %v1752, 0.0
      %vm2373 = vcmp.ge.f32.partialorder %v1791, 0.0
      %vm2374 = vcmp.ge.f32.partialorder %v1793, 0.0
      %vm2375 = vcmp.ge.f32.partialorder %v1832, 0.0
      %vm2376 = vcmp.ge.f32.partialorder %v1834, 0.0
      %vm2377 = vcmp.ge.f32.partialorder %v1873, 0.0
      %vm2378 = vcmp.ge.f32.partialorder %v1875, 0.0
      %vm2379 = vcmp.ge.f32.partialorder %v1914, 0.0
      %vm2380 = vcmp.ge.f32.partialorder %v1916, 0.0
      %vm2381 = vcmp.ge.f32.partialorder %v1955, 0.0
      %vm2382 = vcmp.ge.f32.partialorder %v1957, 0.0
      %vm2383 = vcmp.ge.f32.partialorder %v1996, 0.0
      %vm2384 = vcmp.ge.f32.partialorder %v1998, 0.0
      %vm2385 = vcmp.ge.f32.partialorder %v2037, 0.0
      %vm2386 = vcmp.ge.f32.partialorder %v2039, 0.0
      %vm2387 = vcmp.ge.f32.partialorder %v2078, 0.0
      %vm2388 = vcmp.ge.f32.partialorder %v2080, 0.0
      %vm2389 = vcmp.ge.f32.partialorder %v2119, 0.0
      %vm2390 = vcmp.ge.f32.partialorder %v2121, 0.0
      %vm2391 = vcmp.ge.f32.partialorder %v2160, 0.0
      %vm2392 = vcmp.ge.f32.partialorder %v2162, 0.0
      %vm2393 = vcmp.ge.f32.partialorder %v2201, 0.0
      %vm2394 = vcmp.ge.f32.partialorder %v2203, 0.0
      %vm2395 = vcmp.ge.f32.partialorder %v2242, 0.0
      %vm2396 = vcmp.ge.f32.partialorder %v2244, 0.0
      %vm2397 = vcmp.ge.f32.partialorder %v2283, 0.0
      %vm2398 = vcmp.ge.f32.partialorder %v2285, 0.0
      %vm2399 = vcmp.ge.f32.partialorder %v2324, 0.0
      %vm2400 = vcmp.ge.f32.partialorder %v2326, 0.0
      %vm2401 = vcmp.ge.f32.partialorder %v2365, 0.0
      %vm2402 = vcmp.ge.f32.partialorder %v2367, 0.0
      %v2403 = vmul.f32 %v1750, 0.2
      %v2404 = vmul.f32 %v1752, 0.2
      %v2405 = vmul.f32 %v1791, 0.2
      %v2406 = vmul.f32 %v1793, 0.2
      %v2407 = vmul.f32 %v1832, 0.2
      %v2408 = vmul.f32 %v1834, 0.2
      %v2409 = vmul.f32 %v1873, 0.2
      %v2410 = vmul.f32 %v1875, 0.2
      %v2411 = vmul.f32 %v1914, 0.2
      %v2412 = vmul.f32 %v1916, 0.2
      %v2413 = vmul.f32 %v1955, 0.2
      %v2414 = vmul.f32 %v1957, 0.2
      %v2415 = vmul.f32 %v1996, 0.2
      %v2416 = vmul.f32 %v1998, 0.2
      %v2417 = vmul.f32 %v2037, 0.2
      %v2418 = vmul.f32 %v2039, 0.2
      %v2419 = vmul.f32 %v2078, 0.2
      %v2420 = vmul.f32 %v2080, 0.2
      %v2421 = vmul.f32 %v2119, 0.2
      %v2422 = vmul.f32 %v2121, 0.2
      %v2423 = vmul.f32 %v2160, 0.2
      %v2424 = vmul.f32 %v2162, 0.2
      %v2425 = vmul.f32 %v2201, 0.2
      %v2426 = vmul.f32 %v2203, 0.2
      %v2427 = vmul.f32 %v2242, 0.2
      %v2428 = vmul.f32 %v2244, 0.2
      %v2429 = vmul.f32 %v2283, 0.2
      %v2430 = vmul.f32 %v2285, 0.2
      %v2431 = vmul.f32 %v2324, 0.2
      %v2432 = vmul.f32 %v2326, 0.2
      %v2433 = vmul.f32 %v2365, 0.2
      %v2434 = vmul.f32 %v2367, 0.2
      %v2435 = vsel %vm2371, %v1750, %v2403
      %v2436 = vsel %vm2372, %v1752, %v2404
      %v2437 = vsel %vm2373, %v1791, %v2405
      %v2438 = vsel %vm2374, %v1793, %v2406
      %v2439 = vsel %vm2375, %v1832, %v2407
      %v2440 = vsel %vm2376, %v1834, %v2408
      %v2441 = vsel %vm2377, %v1873, %v2409
      %v2442 = vsel %vm2378, %v1875, %v2410
      %v2443 = vsel %vm2379, %v1914, %v2411
      %v2444 = vsel %vm2380, %v1916, %v2412
      %v2445 = vsel %vm2381, %v1955, %v2413
      %v2446 = vsel %vm2382, %v1957, %v2414
      %v2447 = vsel %vm2383, %v1996, %v2415
      %v2448 = vsel %vm2384, %v1998, %v2416
      %v2449 = vsel %vm2385, %v2037, %v2417
      %v2450 = vsel %vm2386, %v2039, %v2418
      %v2451 = vsel %vm2387, %v2078, %v2419
      %v2452 = vsel %vm2388, %v2080, %v2420
      %v2453 = vsel %vm2389, %v2119, %v2421
      %v2454 = vsel %vm2390, %v2121, %v2422
      %v2455 = vsel %vm2391, %v2160, %v2423
      %v2456 = vsel %vm2392, %v2162, %v2424
      %v2457 = vsel %vm2393, %v2201, %v2425
      %v2458 = vsel %vm2394, %v2203, %v2426
      %v2459 = vsel %vm2395, %v2242, %v2427
      %v2460 = vsel %vm2396, %v2244, %v2428
      %v2461 = vsel %vm2397, %v2283, %v2429
      %v2462 = vsel %vm2398, %v2285, %v2430
      %v2463 = vsel %vm2399, %v2324, %v2431
      %v2464 = vsel %vm2400, %v2326, %v2432
      %v2465 = vsel %vm2401, %v2365, %v2433
      %v2466 = vsel %vm2402, %v2367, %v2434
      %2467 = vst [vmem:[%s170] sm:$0xff] %v2435
      %2468 = vst [vmem:[%s170 + $0x8] sm:$0xff] %v2436
      %2469 = vst [vmem:[%s170 + $0x10] sm:$0xff] %v2437
      %2470 = vst [vmem:[%s170 + $0x18] sm:$0xff] %v2438
      %2471 = vst [vmem:[%s170 + $0x20] sm:$0xff] %v2439
      %2472 = vst [vmem:[%s170 + $0x28] sm:$0xff] %v2440
      %2473 = vst [vmem:[%s170 + $0x30] sm:$0xff] %v2441
      %2474 = vst [vmem:[%s170 + $0x38] sm:$0xff] %v2442
      %2475 = vst [vmem:[%s170 + $0x40] sm:$0xff] %v2443
      %2476 = vst [vmem:[%s170 + $0x48] sm:$0xff] %v2444
      %2477 = vst [vmem:[%s170 + $0x50] sm:$0xff] %v2445
      %2478 = vst [vmem:[%s170 + $0x58] sm:$0xff] %v2446
      %2479 = vst [vmem:[%s170 + $0x60] sm:$0xff] %v2447
      %2480 = vst [vmem:[%s170 + $0x68] sm:$0xff] %v2448
      %2481 = vst [vmem:[%s170 + $0x70] sm:$0xff] %v2449
      %2482 = vst [vmem:[%s170 + $0x78] sm:$0xff] %v2450
      %2483 = vst [vmem:[%s170 + $0x80] sm:$0xff] %v2451
      %2484 = vst [vmem:[%s170 + $0x88] sm:$0xff] %v2452
      %2485 = vst [vmem:[%s170 + $0x90] sm:$0xff] %v2453
      %2486 = vst [vmem:[%s170 + $0x98] sm:$0xff] %v2454
      %2487 = vst [vmem:[%s170 + $0xa0] sm:$0xff] %v2455
      %2488 = vst [vmem:[%s170 + $0xa8] sm:$0xff] %v2456
      %2489 = vst [vmem:[%s170 + $0xb0] sm:$0xff] %v2457
      %2490 = vst [vmem:[%s170 + $0xb8] sm:$0xff] %v2458
      %2491 = vst [vmem:[%s170 + $0xc0] sm:$0xff] %v2459
      %2492 = vst [vmem:[%s170 + $0xc8] sm:$0xff] %v2460
      %2493 = vst [vmem:[%s170 + $0xd0] sm:$0xff] %v2461
      %2494 = vst [vmem:[%s170 + $0xd8] sm:$0xff] %v2462
      %2495 = vst [vmem:[%s170 + $0xe0] sm:$0xff] %v2463
      %2496 = vst [vmem:[%s170 + $0xe8] sm:$0xff] %v2464
      %2497 = vst [vmem:[%s170 + $0xf0] sm:$0xff] %v2465
      %2498 = vst [vmem:[%s170 + $0xf8] sm:$0xff] %v2466
      %p2499 = scmp.lt.s32.totalorder %s14, 1
      %s2500 = scalar_select %p2499, %s14, 1
      %s2501 = smul.addr %s2500, 32
      %s2502 = smul.addr %s2501, 8
      %s2503 = scalar_lea.vmem %s3, %s2502
      // Predicated region
      $region33: #{discriminator_forward.2} parent=31 // pred_check
        %p2504 = pneg %p100
      $region34: #{discriminator_forward.2} parent=31 // pred_check_branch
        %2506 = sbr.rel (%p2504) target = $region36
      $region35: #{discriminator_forward.2} parent=31 // pred_region
        _
      $region36: #{discriminator_forward.2} parent=31 // pred_fallthru
        _
    $region32: #{discriminator_forward.2} parent=5 // pred_fallthru
      _
    %p2507 = scmp.le.s32.totalorder 2, %s9
    // Predicated region
    $region37: #{discriminator_forward.2} parent=5 // pred_check
      %p2508 = pneg %p2507
    $region38: #{discriminator_forward.2} parent=5 // pred_check_branch
      %2510 = sbr.rel (%p2508) target = $region40
    $region39: #{discriminator_forward.2} parent=5 // pred_region
      %s2511 = ssub.s32 %s9, 2
      // Predicated region
      $region41: #{discriminator_forward.2} parent=39 // pred_check
        %p2512 = pneg %p106
      $region42: #{discriminator_forward.2} parent=39 // pred_check_branch
        %2514 = sbr.rel (%p2512) target = $region44
      $region43: #{discriminator_forward.2} parent=39 // pred_region
        %p2515 = scmp.lt.s32.totalorder %s15, 1
        %s2516 = scalar_select %p2515, %s15, 1
        %s2517 = smul.addr %s2516, 32
        %s2518 = smul.addr %s2517, 8
        %s2519 = scalar_lea.vmem %s3, %s2518
      $region44: #{discriminator_forward.2} parent=39 // pred_fallthru
        _
    $region40: #{discriminator_forward.2} parent=5 // pred_fallthru
      _
  $region6: #{discriminator_forward.2} parent=0 // loop_footer
    %s13 = sadd.s32 1, %s9
  $region7: #{discriminator_forward.2} parent=0 // loop_footer_branch
    %8 = sbr.rel target = $region3
  $region8: #{discriminator_forward.2} parent=0 // loop_exit
    _

// kernel: discriminator_forward.3
$region0: #{discriminator_forward.3}
  #allocation0 [shape = 'u32[]', space=smem, size = 0x4, offset = 0x4, fixed_abs, tag = 'smem constant byte address 0x4 - core index']
  #allocation1 [shape = 'u32[144,128]{1,0:T(1,128)}', space=vmem, size = 0x12000, scoped, tag = 'internal scratch']
  #allocation2 [shape = 'bf16[128,128]{1,0:T(16,128)(2,1)}', space=vmem, size = 0x8000, scoped, tag = 'scratch operand']
  #allocation3 [shape = 'bf16[256,27]{1,0:T(16,128)(2,1)}', space=vmem, size = 0x10000, scoped, tag = 'scratch operand']
  #allocation4 [shape = 'f32[1,1]{1,0:T(1,128)S(1)}', space=vmem, size = 0x200, scoped, tag = 'scoped memory for discriminator_forward.3']
  %s0 = inlined_call_operand.vmem [shape: bf16[2,512,1024], index: 0, kind: input, shape index: {}]
  %s1 = inlined_call_operand.vmem [shape: bf16[16,512], index: 1, kind: input, shape index: {}]
  %s2 = inlined_call_operand.vmem [shape: f32[16,1], index: 2, kind: input, shape index: {}]
  %s3 = inlined_call_operand.vmem [shape: f32[1,1024], index: 3, kind: input, shape index: {}]
  %s4 = inlined_call_operand.vmem [shape: bf16[8,32,128], index: 4, kind: input, shape index: {}]
  %s5 = inlined_call_operand.vmem [shape: f32[32,1], index: 5, kind: input, shape index: {}]
  %s6 = inlined_call_operand.vmem [shape: bf16[8,94,27], index: 6, kind: input, shape index: {}]
  %s7 = inlined_call_operand.vmem [shape: bf16[8,64,256], index: 7, kind: input, shape index: {}]
  %s8 = inlined_call_operand.vmem [shape: f32[64,1], index: 8, kind: input, shape index: {}]
  %s9 = inlined_call_operand.vmem [shape: f32[64,14], index: 9, kind: input, shape index: {}]
  %s10 = inlined_call_operand.<no memory space> [shape: f32[1,1], index: 10, kind: input, shape index: {}]
  %s11 = inlined_call_operand.vmem [shape: f32[2,1,1], index: 11, kind: output, shape index: {}]
  %s12 = sld [smem:[#allocation0]]
  $region77: #{discriminator_forward.3} parent=0
    _
  %s14 = ssub.s32 1, %s12
  %s15 = scalar_select 0, %s14, %s12
  %v16 = vstv %s10
  %17 = vst [vmem:[#allocation4] sm:$0x1] %v16
  loop: start=0, step=1, limit=4
  $region2: #{discriminator_forward.3} parent=0 // loop_pre_header
    _
  $region3: #{discriminator_forward.3} parent=0 // loop_header
    %s19 = sphi 0, %s23
    %p20 = scmp.ge.s32.totalorder %s19, 4
    %s29 = sphi 0, %s31
    %s32 = sphi 0, %s29
    %s33 = sphi 0, %s32
    %s49 = sphi 0, %s33
    %s53 = sphi 0, %s53
    %s55 = sphi 0, %s53
    %s56 = sphi 0, %s55
    %s70 = sphi 0, %s56
    %s74 = sphi 0, %s74
    %s76 = sphi 0, %s74
    %s77 = sphi 0, %s76
    %s91 = sphi 0, %s77
    %s95 = sphi 0, %s95
    %s97 = sphi 0, %s95
    %s98 = sphi 0, %s97
    %s112 = sphi 0, %s98
    %s116 = sphi 0, %s116
    %s118 = sphi 0, %s116
    %s119 = sphi 0, %s118
    %s133 = sphi 0, %s119
    %s137 = sphi 0, %s137
    %s139 = sphi 0, %s137
    %s140 = sphi 0, %s139
    %s154 = sphi 0, %s140
    %s158 = sphi 0, %s158
    %s160 = sphi 0, %s158
    %s161 = sphi 0, %s160
    %s175 = sphi 0, %s161
    %s179 = sphi 0, %s179
    %s181 = sphi 0, %s179
    %s182 = sphi 0, %s181
    %s196 = sphi 0, %s182
    %s200 = sphi 0, %s200
    %s202 = sphi 0, %s200
    %s203 = sphi 0, %s202
    %s217 = sphi 0, %s203
    %s221 = sphi 0, %s221
    %s223 = sphi 0, %s221
    %s224 = sphi 0, %s223
    %s238 = sphi 0, %s224
    %s242 = sphi 0, %s242
    %s244 = sphi 0, %s242
    %s245 = sphi 0, %s244
    %s259 = sphi 0, %s245
    %s265 = sphi 0, %s267
    %s268 = sphi 0, %s265
    %s269 = sphi 0, %s268
    %s285 = sphi 0, %s269
  $region4: #{discriminator_forward.3} parent=0 // loop_header_branch
    %22 = sbr.rel (%p20) target = $region8
  $region5: #{discriminator_forward.3} parent=0 // loop_body
    %s24 = ssub.s32 %s19, 1
    %s25 = ssub.s32 %s19, 2
    %s26 = sadd.s32 %s19, 1
    %s27 = ssub.s32 %s19, %s26
    %p28 = scmp.eq.s32.totalorder %s27, 0
    %s30 = sadd.s32 %s29, 1
    %s31 = scalar_select %p28, %s29, %s30
    %p34 = pneg %p28
    %p35 = scmp.eq.s32.totalorder %s19, 1
    %p36 = por %p34, %p35
    %p37 = scmp.ne.s32.totalorder %s29, %s32
    %p38 = scmp.eq.s32.totalorder %s19, 0
    %p39 = por %p37, %p38
    %p40 = scmp.ne.s32.totalorder %s29, %s32
    %p41 = scmp.eq.s32.totalorder %s24, 1
    %p42 = por %p40, %p41
    %p43 = scmp.ne.s32.totalorder %s32, %s33
    %p44 = scmp.eq.s32.totalorder %s24, 0
    %p45 = por %p43, %p44
    %p46 = scmp.ne.s32.totalorder %s32, %s33
    %p47 = scmp.eq.s32.totalorder %s25, 1
    %p48 = por %p46, %p47
    %p50 = scmp.ne.s32.totalorder %s33, %s49
    %p51 = scmp.eq.s32.totalorder %s25, 0
    %p52 = por %p50, %p51
    %s54 = sadd.s32 %s53, 1
    %p57 = scmp.eq.s32.totalorder %s19, 1
    %p58 = scmp.ne.s32.totalorder %s53, %s55
    %p59 = scmp.eq.s32.totalorder %s19, 0
    %p60 = por %p58, %p59
    %p61 = scmp.ne.s32.totalorder %s53, %s55
    %p62 = scmp.eq.s32.totalorder %s24, 1
    %p63 = por %p61, %p62
    %p64 = scmp.ne.s32.totalorder %s55, %s56
    %p65 = scmp.eq.s32.totalorder %s24, 0
    %p66 = por %p64, %p65
    %p67 = scmp.ne.s32.totalorder %s55, %s56
    %p68 = scmp.eq.s32.totalorder %s25, 1
    %p69 = por %p67, %p68
    %p71 = scmp.ne.s32.totalorder %s56, %s70
    %p72 = scmp.eq.s32.totalorder %s25, 0
    %p73 = por %p71, %p72
    %s75 = sadd.s32 %s74, 1
    %p78 = scmp.eq.s32.totalorder %s19, 1
    %p79 = scmp.ne.s32.totalorder %s74, %s76
    %p80 = scmp.eq.s32.totalorder %s19, 0
    %p81 = por %p79, %p80
    %p82 = scmp.ne.s32.totalorder %s74, %s76
    %p83 = scmp.eq.s32.totalorder %s24, 1
    %p84 = por %p82, %p83
    %p85 = scmp.ne.s32.totalorder %s76, %s77
    %p86 = scmp.eq.s32.totalorder %s24, 0
    %p87 = por %p85, %p86
    %p88 = scmp.ne.s32.totalorder %s76, %s77
    %p89 = scmp.eq.s32.totalorder %s25, 1
    %p90 = por %p88, %p89
    %p92 = scmp.ne.s32.totalorder %s77, %s91
    %p93 = scmp.eq.s32.totalorder %s25, 0
    %p94 = por %p92, %p93
    %s96 = sadd.s32 %s95, 1
    %p99 = scmp.eq.s32.totalorder %s19, 1
    %p100 = scmp.ne.s32.totalorder %s95, %s97
    %p101 = scmp.eq.s32.totalorder %s19, 0
    %p102 = por %p100, %p101
    %p103 = scmp.ne.s32.totalorder %s95, %s97
    %p104 = scmp.eq.s32.totalorder %s24, 1
    %p105 = por %p103, %p104
    %p106 = scmp.ne.s32.totalorder %s97, %s98
    %p107 = scmp.eq.s32.totalorder %s24, 0
    %p108 = por %p106, %p107
    %p109 = scmp.ne.s32.totalorder %s97, %s98
    %p110 = scmp.eq.s32.totalorder %s25, 1
    %p111 = por %p109, %p110
    %p113 = scmp.ne.s32.totalorder %s98, %s112
    %p114 = scmp.eq.s32.totalorder %s25, 0
    %p115 = por %p113, %p114
    %s117 = sadd.s32 %s116, 1
    %p120 = scmp.eq.s32.totalorder %s19, 1
    %p121 = scmp.ne.s32.totalorder %s116, %s118
    %p122 = scmp.eq.s32.totalorder %s19, 0
    %p123 = por %p121, %p122
    %p124 = scmp.ne.s32.totalorder %s116, %s118
    %p125 = scmp.eq.s32.totalorder %s24, 1
    %p126 = por %p124, %p125
    %p127 = scmp.ne.s32.totalorder %s118, %s119
    %p128 = scmp.eq.s32.totalorder %s24, 0
    %p129 = por %p127, %p128
    %p130 = scmp.ne.s32.totalorder %s118, %s119
    %p131 = scmp.eq.s32.totalorder %s25, 1
    %p132 = por %p130, %p131
    %p134 = scmp.ne.s32.totalorder %s119, %s133
    %p135 = scmp.eq.s32.totalorder %s25, 0
    %p136 = por %p134, %p135
    %s138 = sadd.s32 %s137, 1
    %p141 = scmp.eq.s32.totalorder %s19, 1
    %p142 = scmp.ne.s32.totalorder %s137, %s139
    %p143 = scmp.eq.s32.totalorder %s19, 0
    %p144 = por %p142, %p143
    %p145 = scmp.ne.s32.totalorder %s137, %s139
    %p146 = scmp.eq.s32.totalorder %s24, 1
    %p147 = por %p145, %p146
    %p148 = scmp.ne.s32.totalorder %s139, %s140
    %p149 = scmp.eq.s32.totalorder %s24, 0
    %p150 = por %p148, %p149
    %p151 = scmp.ne.s32.totalorder %s139, %s140
    %p152 = scmp.eq.s32.totalorder %s25, 1
    %p153 = por %p151, %p152
    %p155 = scmp.ne.s32.totalorder %s140, %s154
    %p156 = scmp.eq.s32.totalorder %s25, 0
    %p157 = por %p155, %p156
    %s159 = sadd.s32 %s158, 1
    %p162 = scmp.eq.s32.totalorder %s19, 1
    %p163 = scmp.ne.s32.totalorder %s158, %s160
    %p164 = scmp.eq.s32.totalorder %s19, 0
    %p165 = por %p163, %p164
    %p166 = scmp.ne.s32.totalorder %s158, %s160
    %p167 = scmp.eq.s32.totalorder %s24, 1
    %p168 = por %p166, %p167
    %p169 = scmp.ne.s32.totalorder %s160, %s161
    %p170 = scmp.eq.s32.totalorder %s24, 0
    %p171 = por %p169, %p170
    %p172 = scmp.ne.s32.totalorder %s160, %s161
    %p173 = scmp.eq.s32.totalorder %s25, 1
    %p174 = por %p172, %p173
    %p176 = scmp.ne.s32.totalorder %s161, %s175
    %p177 = scmp.eq.s32.totalorder %s25, 0
    %p178 = por %p176, %p177
    %s180 = sadd.s32 %s179, 1
    %p183 = scmp.eq.s32.totalorder %s19, 1
    %p184 = scmp.ne.s32.totalorder %s179, %s181
    %p185 = scmp.eq.s32.totalorder %s19, 0
    %p186 = por %p184, %p185
    %p187 = scmp.ne.s32.totalorder %s179, %s181
    %p188 = scmp.eq.s32.totalorder %s24, 1
    %p189 = por %p187, %p188
    %p190 = scmp.ne.s32.totalorder %s181, %s182
    %p191 = scmp.eq.s32.totalorder %s24, 0
    %p192 = por %p190, %p191
    %p193 = scmp.ne.s32.totalorder %s181, %s182
    %p194 = scmp.eq.s32.totalorder %s25, 1
    %p195 = por %p193, %p194
    %p197 = scmp.ne.s32.totalorder %s182, %s196
    %p198 = scmp.eq.s32.totalorder %s25, 0
    %p199 = por %p197, %p198
    %s201 = sadd.s32 %s200, 1
    %p204 = scmp.eq.s32.totalorder %s19, 1
    %p205 = scmp.ne.s32.totalorder %s200, %s202
    %p206 = scmp.eq.s32.totalorder %s19, 0
    %p207 = por %p205, %p206
    %p208 = scmp.ne.s32.totalorder %s200, %s202
    %p209 = scmp.eq.s32.totalorder %s24, 1
    %p210 = por %p208, %p209
    %p211 = scmp.ne.s32.totalorder %s202, %s203
    %p212 = scmp.eq.s32.totalorder %s24, 0
    %p213 = por %p211, %p212
    %p214 = scmp.ne.s32.totalorder %s202, %s203
    %p215 = scmp.eq.s32.totalorder %s25, 1
    %p216 = por %p214, %p215
    %p218 = scmp.ne.s32.totalorder %s203, %s217
    %p219 = scmp.eq.s32.totalorder %s25, 0
    %p220 = por %p218, %p219
    %s222 = sadd.s32 %s221, 1
    %p225 = scmp.eq.s32.totalorder %s19, 1
    %p226 = scmp.ne.s32.totalorder %s221, %s223
    %p227 = scmp.eq.s32.totalorder %s19, 0
    %p228 = por %p226, %p227
    %p229 = scmp.ne.s32.totalorder %s221, %s223
    %p230 = scmp.eq.s32.totalorder %s24, 1
    %p231 = por %p229, %p230
    %p232 = scmp.ne.s32.totalorder %s223, %s224
    %p233 = scmp.eq.s32.totalorder %s24, 0
    %p234 = por %p232, %p233
    %p235 = scmp.ne.s32.totalorder %s223, %s224
    %p236 = scmp.eq.s32.totalorder %s25, 1
    %p237 = por %p235, %p236
    %p239 = scmp.ne.s32.totalorder %s224, %s238
    %p240 = scmp.eq.s32.totalorder %s25, 0
    %p241 = por %p239, %p240
    %s243 = sadd.s32 %s242, 1
    %p246 = scmp.eq.s32.totalorder %s19, 1
    %p247 = scmp.ne.s32.totalorder %s242, %s244
    %p248 = scmp.eq.s32.totalorder %s19, 0
    %p249 = por %p247, %p248
    %p250 = scmp.ne.s32.totalorder %s242, %s244
    %p251 = scmp.eq.s32.totalorder %s24, 1
    %p252 = por %p250, %p251
    %p253 = scmp.ne.s32.totalorder %s244, %s245
    %p254 = scmp.eq.s32.totalorder %s24, 0
    %p255 = por %p253, %p254
    %p256 = scmp.ne.s32.totalorder %s244, %s245
    %p257 = scmp.eq.s32.totalorder %s25, 1
    %p258 = por %p256, %p257
    %p260 = scmp.ne.s32.totalorder %s245, %s259
    %p261 = scmp.eq.s32.totalorder %s25, 0
    %p262 = por %p260, %p261
    %s263 = ssub.s32 %s19, %s26
    %p264 = scmp.eq.s32.totalorder %s263, 0
    %s266 = sadd.s32 %s265, 1
    %s267 = scalar_select %p264, %s265, %s266
    %p270 = pneg %p264
    %p271 = scmp.eq.s32.totalorder %s19, 1
    %p272 = por %p270, %p271
    %p273 = scmp.ne.s32.totalorder %s265, %s268
    %p274 = scmp.eq.s32.totalorder %s19, 0
    %p275 = por %p273, %p274
    %p276 = scmp.ne.s32.totalorder %s265, %s268
    %p277 = scmp.eq.s32.totalorder %s24, 1
    %p278 = por %p276, %p277
    %p279 = scmp.ne.s32.totalorder %s268, %s269
    %p280 = scmp.eq.s32.totalorder %s24, 0
    %p281 = por %p279, %p280
    %p282 = scmp.ne.s32.totalorder %s268, %s269
    %p283 = scmp.eq.s32.totalorder %s25, 1
    %p284 = por %p282, %p283
    %p286 = scmp.ne.s32.totalorder %s269, %s285
    %p287 = scmp.eq.s32.totalorder %s25, 0
    %p288 = por %p286, %p287
    %p289 = scmp.le.s32.totalorder 1, %s19
    %p290 = scmp.lt.s32.totalorder %s19, 3
    %p291 = pnand %p289, %p290
    %p292 = pneg %p291
    // Predicated region
    $region9: #{discriminator_forward.3} parent=5 // pred_check
      _
    $region10: #{discriminator_forward.3} parent=5 // pred_check_branch
      %294 = sbr.rel (%p291) target = $region12
    $region11: #{discriminator_forward.3} parent=5 // pred_region
      %s295 = ssub.s32 %s19, 1
      // Predicated region
      $region13: #{discriminator_forward.3} parent=11 // pred_check
        %p296 = pneg %p66
      $region14: #{discriminator_forward.3} parent=11 // pred_check_branch
        %298 = sbr.rel (%p296) target = $region16
      $region15: #{discriminator_forward.3} parent=11 // pred_region
        _
      $region16: #{discriminator_forward.3} parent=11 // pred_fallthru
        _
      // Predicated region
      $region17: #{discriminator_forward.3} parent=11 // pred_check
        %p299 = pneg %p87
      $region18: #{discriminator_forward.3} parent=11 // pred_check_branch
        %301 = sbr.rel (%p299) target = $region20
      $region19: #{discriminator_forward.3} parent=11 // pred_region
        _
      $region20: #{discriminator_forward.3} parent=11 // pred_fallthru
        _
      // Predicated region
      $region21: #{discriminator_forward.3} parent=11 // pred_check
        %p302 = pneg %p108
      $region22: #{discriminator_forward.3} parent=11 // pred_check_branch
        %304 = sbr.rel (%p302) target = $region24
      $region23: #{discriminator_forward.3} parent=11 // pred_region
        _
      $region24: #{discriminator_forward.3} parent=11 // pred_fallthru
        _
      // Predicated region
      $region25: #{discriminator_forward.3} parent=11 // pred_check
        %p305 = pneg %p129
      $region26: #{discriminator_forward.3} parent=11 // pred_check_branch
        %307 = sbr.rel (%p305) target = $region28
      $region27: #{discriminator_forward.3} parent=11 // pred_region
        _
      $region28: #{discriminator_forward.3} parent=11 // pred_fallthru
        _
      // Predicated region
      $region29: #{discriminator_forward.3} parent=11 // pred_check
        %p308 = pneg %p150
      $region30: #{discriminator_forward.3} parent=11 // pred_check_branch
        %310 = sbr.rel (%p308) target = $region32
      $region31: #{discriminator_forward.3} parent=11 // pred_region
        _
      $region32: #{discriminator_forward.3} parent=11 // pred_fallthru
        _
      // Predicated region
      $region33: #{discriminator_forward.3} parent=11 // pred_check
        %p311 = pneg %p171
      $region34: #{discriminator_forward.3} parent=11 // pred_check_branch
        %313 = sbr.rel (%p311) target = $region36
      $region35: #{discriminator_forward.3} parent=11 // pred_region
        _
      $region36: #{discriminator_forward.3} parent=11 // pred_fallthru
        _
      // Predicated region
      $region37: #{discriminator_forward.3} parent=11 // pred_check
        %p314 = pneg %p192
      $region38: #{discriminator_forward.3} parent=11 // pred_check_branch
        %316 = sbr.rel (%p314) target = $region40
      $region39: #{discriminator_forward.3} parent=11 // pred_region
        _
      $region40: #{discriminator_forward.3} parent=11 // pred_fallthru
        _
      // Predicated region
      $region41: #{discriminator_forward.3} parent=11 // pred_check
        %p317 = pneg %p213
      $region42: #{discriminator_forward.3} parent=11 // pred_check_branch
        %319 = sbr.rel (%p317) target = $region44
      $region43: #{discriminator_forward.3} parent=11 // pred_region
        _
      $region44: #{discriminator_forward.3} parent=11 // pred_fallthru
        _
      // Predicated region
      $region45: #{discriminator_forward.3} parent=11 // pred_check
        %p320 = pneg %p234
      $region46: #{discriminator_forward.3} parent=11 // pred_check_branch
        %322 = sbr.rel (%p320) target = $region48
      $region47: #{discriminator_forward.3} parent=11 // pred_region
        _
      $region48: #{discriminator_forward.3} parent=11 // pred_fallthru
        _
      // Predicated region
      $region49: #{discriminator_forward.3} parent=11 // pred_check
        %p323 = pneg %p255
      $region50: #{discriminator_forward.3} parent=11 // pred_check_branch
        %325 = sbr.rel (%p323) target = $region52
      $region51: #{discriminator_forward.3} parent=11 // pred_region
        _
      $region52: #{discriminator_forward.3} parent=11 // pred_fallthru
        _
    $region12: #{discriminator_forward.3} parent=5 // pred_fallthru
      _
    %p326 = scmp.lt.s32.totalorder %s19, 2
    // Predicated region
    $region53: #{discriminator_forward.3} parent=5 // pred_check
      %p327 = pneg %p326
    $region54: #{discriminator_forward.3} parent=5 // pred_check_branch
      %329 = sbr.rel (%p327) target = $region56
    $region55: #{discriminator_forward.3} parent=5 // pred_region
      // Predicated region
      $region57: #{discriminator_forward.3} parent=55 // pred_check
        %p330 = pneg %p39
      $region58: #{discriminator_forward.3} parent=55 // pred_check_branch
        %332 = sbr.rel (%p330) target = $region60
      $region59: #{discriminator_forward.3} parent=55 // pred_region
        %p333 = scmp.lt.s32.totalorder %s19, 1
        %s334 = scalar_select %p333, %s19, 1
        %s335 = smul.addr %s334, 512
        %s336 = smul.addr %s335, 4
        %s337 = scalar_lea.vmem %s0, %s336
      $region60: #{discriminator_forward.3} parent=55 // pred_fallthru
        _
    $region56: #{discriminator_forward.3} parent=5 // pred_fallthru
      _
    %p338 = scmp.le.s32.totalorder 1, %s19
    %p339 = scmp.lt.s32.totalorder %s19, 3
    %p340 = pnand %p338, %p339
    %p341 = pneg %p340
    // Predicated region
    $region61: #{discriminator_forward.3} parent=5 // pred_check
      _
    $region62: #{discriminator_forward.3} parent=5 // pred_check_branch
      %343 = sbr.rel (%p340) target = $region64
    $region63: #{discriminator_forward.3} parent=5 // pred_region
      %s344 = ssub.s32 %s19, 1
      %p345 = scmp.lt.s32.totalorder %s24, 1
      %s346 = scalar_select %p345, %s24, 1
      %s347 = smul.addr %s346, 512
      %s348 = smul.addr %s347, 4
      %s349 = scalar_lea.vmem %s0, %s348
      %p350 = pneg %p45
      %p351 = pneg %p42
      %p352 = pneg %p66
      %p353 = pneg %p63
      %p354 = pneg %p87
      %p355 = pneg %p84
      %p356 = pneg %p108
      %p357 = pneg %p105
      %p358 = pneg %p129
      %p359 = pneg %p126
      %p360 = pneg %p150
      %p361 = pneg %p147
      %p362 = pneg %p171
      %p363 = pneg %p168
      %p364 = pneg %p192
      %p365 = pneg %p189
      %p366 = pneg %p213
      %p367 = pneg %p210
      %p368 = pneg %p234
      %p369 = pneg %p231
      %p370 = pneg %p255
      %p371 = pneg %p252
      %p372 = pneg %p281
      %p373 = pneg %p278
      %p374 = scmp.lt.s32.totalorder %s24, 1
      %s375 = scalar_select %p374, %s24, 1
      %s376 = scalar_lea.vmem %s11, %s375
      %p377 = scmp.lt.s32.totalorder %s24, 1
      %s378 = scalar_select %p377, %s24, 1
      %s379 = smul.addr %s378, 512
      %s380 = smul.addr %s379, 4
      %s381 = scalar_lea.vmem %s0, %s380
      %p382 = scmp.lt.s32.totalorder %s24, 1
      %s383 = scalar_select %p382, %s24, 1
      %s384 = scalar_lea.vmem %s11, %s383
      %v386 = vld [vmem:[%s1] sm:$0xff]
      %v387 = vld [vmem:[%s1 + $0x8] sm:$0xff]
      %v388 = vld [vmem:[%s1 + $0x10] sm:$0xff]
      %v389 = vld [vmem:[%s1 + $0x18] sm:$0xff]
      %v390 = vld [vmem:[%s381] sm:$0xff]
      %v391 = vld [vmem:[%s381 + $0x8] sm:$0xff]
      %v392 = vld [vmem:[%s381 + $0x10] sm:$0xff]
      %v393 = vld [vmem:[%s381 + $0x18] sm:$0xff]
      %v394 = vld [vmem:[%s381 + $0x20] sm:$0xff]
      %v395 = vld [vmem:[%s381 + $0x28] sm:$0xff]
      %v396 = vld [vmem:[%s381 + $0x30] sm:$0xff]
      %v397 = vld [vmem:[%s381 + $0x38] sm:$0xff]
      %v398 = vld [vmem:[%s381 + $0x40] sm:$0xff]
      %v399 = vld [vmem:[%s381 + $0x48] sm:$0xff]
      %v400 = vld [vmem:[%s381 + $0x50] sm:$0xff]
      %v401 = vld [vmem:[%s381 + $0x58] sm:$0xff]
      %v402 = vld [vmem:[%s381 + $0x60] sm:$0xff]
      %v403 = vld [vmem:[%s381 + $0x68] sm:$0xff]
      %v404 = vld [vmem:[%s381 + $0x70] sm:$0xff]
      %v405 = vld [vmem:[%s381 + $0x78] sm:$0xff]
      %v406 = vld [vmem:[%s381 + $0x80] sm:$0xff]
      %v407 = vld [vmem:[%s381 + $0x88] sm:$0xff]
      %v408 = vld [vmem:[%s381 + $0x90] sm:$0xff]
      %v409 = vld [vmem:[%s381 + $0x98] sm:$0xff]
      %v410 = vld [vmem:[%s381 + $0xa0] sm:$0xff]
      %v411 = vld [vmem:[%s381 + $0xa8] sm:$0xff]
      %v412 = vld [vmem:[%s381 + $0xb0] sm:$0xff]
      %v413 = vld [vmem:[%s381 + $0xb8] sm:$0xff]
      %v414 = vld [vmem:[%s381 + $0xc0] sm:$0xff]
      %v415 = vld [vmem:[%s381 + $0xc8] sm:$0xff]
      %v416 = vld [vmem:[%s381 + $0xd0] sm:$0xff]
      %v417 = vld [vmem:[%s381 + $0xd8] sm:$0xff]
      %v418 = vld [vmem:[%s381 + $0xe0] sm:$0xff]
      %v419 = vld [vmem:[%s381 + $0xe8] sm:$0xff]
      %v420 = vld [vmem:[%s381 + $0xf0] sm:$0xff]
      %v421 = vld [vmem:[%s381 + $0xf8] sm:$0xff]
      %v422 = vld [vmem:[%s381 + $0x100] sm:$0xff]
      %v423 = vld [vmem:[%s381 + $0x108] sm:$0xff]
      %v424 = vld [vmem:[%s381 + $0x110] sm:$0xff]
      %v425 = vld [vmem:[%s381 + $0x118] sm:$0xff]
      %v426 = vld [vmem:[%s381 + $0x120] sm:$0xff]
      %v427 = vld [vmem:[%s381 + $0x128] sm:$0xff]
      %v428 = vld [vmem:[%s381 + $0x130] sm:$0xff]
      %v429 = vld [vmem:[%s381 + $0x138] sm:$0xff]
      %v430 = vld [vmem:[%s381 + $0x140] sm:$0xff]
      %v431 = vld [vmem:[%s381 + $0x148] sm:$0xff]
      %v432 = vld [vmem:[%s381 + $0x150] sm:$0xff]
      %v433 = vld [vmem:[%s381 + $0x158] sm:$0xff]
      %v434 = vld [vmem:[%s381 + $0x160] sm:$0xff]
      %v435 = vld [vmem:[%s381 + $0x168] sm:$0xff]
      %v436 = vld [vmem:[%s381 + $0x170] sm:$0xff]
      %v437 = vld [vmem:[%s381 + $0x178] sm:$0xff]
      %v438 = vld [vmem:[%s381 + $0x180] sm:$0xff]
      %v439 = vld [vmem:[%s381 + $0x188] sm:$0xff]
      %v440 = vld [vmem:[%s381 + $0x190] sm:$0xff]
      %v441 = vld [vmem:[%s381 + $0x198] sm:$0xff]
      %v442 = vld [vmem:[%s381 + $0x1a0] sm:$0xff]
      %v443 = vld [vmem:[%s381 + $0x1a8] sm:$0xff]
      %v444 = vld [vmem:[%s381 + $0x1b0] sm:$0xff]
      %v445 = vld [vmem:[%s381 + $0x1b8] sm:$0xff]
      %v446 = vld [vmem:[%s381 + $0x1c0] sm:$0xff]
      %v447 = vld [vmem:[%s381 + $0x1c8] sm:$0xff]
      %v448 = vld [vmem:[%s381 + $0x1d0] sm:$0xff]
      %v449 = vld [vmem:[%s381 + $0x1d8] sm:$0xff]
      %v450 = vld [vmem:[%s381 + $0x1e0] sm:$0xff]
      %v451 = vld [vmem:[%s381 + $0x1e8] sm:$0xff]
      %v452 = vld [vmem:[%s381 + $0x1f0] sm:$0xff]
      %v453 = vld [vmem:[%s381 + $0x1f8] sm:$0xff]
      %v454 = vld [vmem:[%s381 + $0x200] sm:$0xff]
      %v455 = vld [vmem:[%s381 + $0x208] sm:$0xff]
      %v456 = vld [vmem:[%s381 + $0x210] sm:$0xff]
      %v457 = vld [vmem:[%s381 + $0x218] sm:$0xff]
      %v458 = vld [vmem:[%s381 + $0x220] sm:$0xff]
      %v459 = vld [vmem:[%s381 + $0x228] sm:$0xff]
      %v460 = vld [vmem:[%s381 + $0x230] sm:$0xff]
      %v461 = vld [vmem:[%s381 + $0x238] sm:$0xff]
      %v462 = vld [vmem:[%s381 + $0x240] sm:$0xff]
      %v463 = vld [vmem:[%s381 + $0x248] sm:$0xff]
      %v464 = vld [vmem:[%s381 + $0x250] sm:$0xff]
      %v465 = vld [vmem:[%s381 + $0x258] sm:$0xff]
      %v466 = vld [vmem:[%s381 + $0x260] sm:$0xff]
      %v467 = vld [vmem:[%s381 + $0x268] sm:$0xff]
      %v468 = vld [vmem:[%s381 + $0x270] sm:$0xff]
      %v469 = vld [vmem:[%s381 + $0x278] sm:$0xff]
      %v470 = vld [vmem:[%s381 + $0x280] sm:$0xff]
      %v471 = vld [vmem:[%s381 + $0x288] sm:$0xff]
      %v472 = vld [vmem:[%s381 + $0x290] sm:$0xff]
      %v473 = vld [vmem:[%s381 + $0x298] sm:$0xff]
      %v474 = vld [vmem:[%s381 + $0x2a0] sm:$0xff]
      %v475 = vld [vmem:[%s381 + $0x2a8] sm:$0xff]
      %v476 = vld [vmem:[%s381 + $0x2b0] sm:$0xff]
      %v477 = vld [vmem:[%s381 + $0x2b8] sm:$0xff]
      %v478 = vld [vmem:[%s381 + $0x2c0] sm:$0xff]
      %v479 = vld [vmem:[%s381 + $0x2c8] sm:$0xff]
      %v480 = vld [vmem:[%s381 + $0x2d0] sm:$0xff]
      %v481 = vld [vmem:[%s381 + $0x2d8] sm:$0xff]
      %v482 = vld [vmem:[%s381 + $0x2e0] sm:$0xff]
      %v483 = vld [vmem:[%s381 + $0x2e8] sm:$0xff]
      %v484 = vld [vmem:[%s381 + $0x2f0] sm:$0xff]
      %v485 = vld [vmem:[%s381 + $0x2f8] sm:$0xff]
      %v486 = vld [vmem:[%s381 + $0x300] sm:$0xff]
      %v487 = vld [vmem:[%s381 + $0x308] sm:$0xff]
      %v488 = vld [vmem:[%s381 + $0x310] sm:$0xff]
      %v489 = vld [vmem:[%s381 + $0x318] sm:$0xff]
      %v490 = vld [vmem:[%s381 + $0x320] sm:$0xff]
      %v491 = vld [vmem:[%s381 + $0x328] sm:$0xff]
      %v492 = vld [vmem:[%s381 + $0x330] sm:$0xff]
      %v493 = vld [vmem:[%s381 + $0x338] sm:$0xff]
      %v494 = vld [vmem:[%s381 + $0x340] sm:$0xff]
      %v495 = vld [vmem:[%s381 + $0x348] sm:$0xff]
      %v496 = vld [vmem:[%s381 + $0x350] sm:$0xff]
      %v497 = vld [vmem:[%s381 + $0x358] sm:$0xff]
      %v498 = vld [vmem:[%s381 + $0x360] sm:$0xff]
      %v499 = vld [vmem:[%s381 + $0x368] sm:$0xff]
      %v500 = vld [vmem:[%s381 + $0x370] sm:$0xff]
      %v501 = vld [vmem:[%s381 + $0x378] sm:$0xff]
      %v502 = vld [vmem:[%s381 + $0x380] sm:$0xff]
      %v503 = vld [vmem:[%s381 + $0x388] sm:$0xff]
      %v504 = vld [vmem:[%s381 + $0x390] sm:$0xff]
      %v505 = vld [vmem:[%s381 + $0x398] sm:$0xff]
      %v506 = vld [vmem:[%s381 + $0x3a0] sm:$0xff]
      %v507 = vld [vmem:[%s381 + $0x3a8] sm:$0xff]
      %v508 = vld [vmem:[%s381 + $0x3b0] sm:$0xff]
      %v509 = vld [vmem:[%s381 + $0x3b8] sm:$0xff]
      %v510 = vld [vmem:[%s381 + $0x3c0] sm:$0xff]
      %v511 = vld [vmem:[%s381 + $0x3c8] sm:$0xff]
      %v512 = vld [vmem:[%s381 + $0x3d0] sm:$0xff]
      %v513 = vld [vmem:[%s381 + $0x3d8] sm:$0xff]
      %v514 = vld [vmem:[%s381 + $0x3e0] sm:$0xff]
      %v515 = vld [vmem:[%s381 + $0x3e8] sm:$0xff]
      %v516 = vld [vmem:[%s381 + $0x3f0] sm:$0xff]
      %v517 = vld [vmem:[%s381 + $0x3f8] sm:$0xff]
      %v518 = vld [vmem:[%s381 + $0x400] sm:$0xff]
      %v519 = vld [vmem:[%s381 + $0x408] sm:$0xff]
      %v520 = vld [vmem:[%s381 + $0x410] sm:$0xff]
      %v521 = vld [vmem:[%s381 + $0x418] sm:$0xff]
      %v522 = vld [vmem:[%s381 + $0x420] sm:$0xff]
      %v523 = vld [vmem:[%s381 + $0x428] sm:$0xff]
      %v524 = vld [vmem:[%s381 + $0x430] sm:$0xff]
      %v525 = vld [vmem:[%s381 + $0x438] sm:$0xff]
      %v526 = vld [vmem:[%s381 + $0x440] sm:$0xff]
      %v527 = vld [vmem:[%s381 + $0x448] sm:$0xff]
      %v528 = vld [vmem:[%s381 + $0x450] sm:$0xff]
      %v529 = vld [vmem:[%s381 + $0x458] sm:$0xff]
      %v530 = vld [vmem:[%s381 + $0x460] sm:$0xff]
      %v531 = vld [vmem:[%s381 + $0x468] sm:$0xff]
      %v532 = vld [vmem:[%s381 + $0x470] sm:$0xff]
      %v533 = vld [vmem:[%s381 + $0x478] sm:$0xff]
      %v534 = vld [vmem:[%s381 + $0x480] sm:$0xff]
      %v535 = vld [vmem:[%s381 + $0x488] sm:$0xff]
      %v536 = vld [vmem:[%s381 + $0x490] sm:$0xff]
      %v537 = vld [vmem:[%s381 + $0x498] sm:$0xff]
      %v538 = vld [vmem:[%s381 + $0x4a0] sm:$0xff]
      %v539 = vld [vmem:[%s381 + $0x4a8] sm:$0xff]
      %v540 = vld [vmem:[%s381 + $0x4b0] sm:$0xff]
      %v541 = vld [vmem:[%s381 + $0x4b8] sm:$0xff]
      %v542 = vld [vmem:[%s381 + $0x4c0] sm:$0xff]
      %v543 = vld [vmem:[%s381 + $0x4c8] sm:$0xff]
      %v544 = vld [vmem:[%s381 + $0x4d0] sm:$0xff]
      %v545 = vld [vmem:[%s381 + $0x4d8] sm:$0xff]
      %v546 = vld [vmem:[%s381 + $0x4e0] sm:$0xff]
      %v547 = vld [vmem:[%s381 + $0x4e8] sm:$0xff]
      %v548 = vld [vmem:[%s381 + $0x4f0] sm:$0xff]
      %v549 = vld [vmem:[%s381 + $0x4f8] sm:$0xff]
      %v550 = vld [vmem:[%s381 + $0x500] sm:$0xff]
      %v551 = vld [vmem:[%s381 + $0x508] sm:$0xff]
      %v552 = vld [vmem:[%s381 + $0x510] sm:$0xff]
      %v553 = vld [vmem:[%s381 + $0x518] sm:$0xff]
      %v554 = vld [vmem:[%s381 + $0x520] sm:$0xff]
      %v555 = vld [vmem:[%s381 + $0x528] sm:$0xff]
      %v556 = vld [vmem:[%s381 + $0x530] sm:$0xff]
      %v557 = vld [vmem:[%s381 + $0x538] sm:$0xff]
      %v558 = vld [vmem:[%s381 + $0x540] sm:$0xff]
      %v559 = vld [vmem:[%s381 + $0x548] sm:$0xff]
      %v560 = vld [vmem:[%s381 + $0x550] sm:$0xff]
      %v561 = vld [vmem:[%s381 + $0x558] sm:$0xff]
      %v562 = vld [vmem:[%s381 + $0x560] sm:$0xff]
      %v563 = vld [vmem:[%s381 + $0x568] sm:$0xff]
      %v564 = vld [vmem:[%s381 + $0x570] sm:$0xff]
      %v565 = vld [vmem:[%s381 + $0x578] sm:$0xff]
      %v566 = vld [vmem:[%s381 + $0x580] sm:$0xff]
      %v567 = vld [vmem:[%s381 + $0x588] sm:$0xff]
      %v568 = vld [vmem:[%s381 + $0x590] sm:$0xff]
      %v569 = vld [vmem:[%s381 + $0x598] sm:$0xff]
      %v570 = vld [vmem:[%s381 + $0x5a0] sm:$0xff]
      %v571 = vld [vmem:[%s381 + $0x5a8] sm:$0xff]
      %v572 = vld [vmem:[%s381 + $0x5b0] sm:$0xff]
      %v573 = vld [vmem:[%s381 + $0x5b8] sm:$0xff]
      %v574 = vld [vmem:[%s381 + $0x5c0] sm:$0xff]
      %v575 = vld [vmem:[%s381 + $0x5c8] sm:$0xff]
      %v576 = vld [vmem:[%s381 + $0x5d0] sm:$0xff]
      %v577 = vld [vmem:[%s381 + $0x5d8] sm:$0xff]
      %v578 = vld [vmem:[%s381 + $0x5e0] sm:$0xff]
      %v579 = vld [vmem:[%s381 + $0x5e8] sm:$0xff]
      %v580 = vld [vmem:[%s381 + $0x5f0] sm:$0xff]
      %v581 = vld [vmem:[%s381 + $0x5f8] sm:$0xff]
      %v582 = vld [vmem:[%s381 + $0x600] sm:$0xff]
      %v583 = vld [vmem:[%s381 + $0x608] sm:$0xff]
      %v584 = vld [vmem:[%s381 + $0x610] sm:$0xff]
      %v585 = vld [vmem:[%s381 + $0x618] sm:$0xff]
      %v586 = vld [vmem:[%s381 + $0x620] sm:$0xff]
      %v587 = vld [vmem:[%s381 + $0x628] sm:$0xff]
      %v588 = vld [vmem:[%s381 + $0x630] sm:$0xff]
      %v589 = vld [vmem:[%s381 + $0x638] sm:$0xff]
      %v590 = vld [vmem:[%s381 + $0x640] sm:$0xff]
      %v591 = vld [vmem:[%s381 + $0x648] sm:$0xff]
      %v592 = vld [vmem:[%s381 + $0x650] sm:$0xff]
      %v593 = vld [vmem:[%s381 + $0x658] sm:$0xff]
      %v594 = vld [vmem:[%s381 + $0x660] sm:$0xff]
      %v595 = vld [vmem:[%s381 + $0x668] sm:$0xff]
      %v596 = vld [vmem:[%s381 + $0x670] sm:$0xff]
      %v597 = vld [vmem:[%s381 + $0x678] sm:$0xff]
      %v598 = vld [vmem:[%s381 + $0x680] sm:$0xff]
      %v599 = vld [vmem:[%s381 + $0x688] sm:$0xff]
      %v600 = vld [vmem:[%s381 + $0x690] sm:$0xff]
      %v601 = vld [vmem:[%s381 + $0x698] sm:$0xff]
      %v602 = vld [vmem:[%s381 + $0x6a0] sm:$0xff]
      %v603 = vld [vmem:[%s381 + $0x6a8] sm:$0xff]
      %v604 = vld [vmem:[%s381 + $0x6b0] sm:$0xff]
      %v605 = vld [vmem:[%s381 + $0x6b8] sm:$0xff]
      %v606 = vld [vmem:[%s381 + $0x6c0] sm:$0xff]
      %v607 = vld [vmem:[%s381 + $0x6c8] sm:$0xff]
      %v608 = vld [vmem:[%s381 + $0x6d0] sm:$0xff]
      %v609 = vld [vmem:[%s381 + $0x6d8] sm:$0xff]
      %v610 = vld [vmem:[%s381 + $0x6e0] sm:$0xff]
      %v611 = vld [vmem:[%s381 + $0x6e8] sm:$0xff]
      %v612 = vld [vmem:[%s381 + $0x6f0] sm:$0xff]
      %v613 = vld [vmem:[%s381 + $0x6f8] sm:$0xff]
      %v614 = vld [vmem:[%s381 + $0x700] sm:$0xff]
      %v615 = vld [vmem:[%s381 + $0x708] sm:$0xff]
      %v616 = vld [vmem:[%s381 + $0x710] sm:$0xff]
      %v617 = vld [vmem:[%s381 + $0x718] sm:$0xff]
      %v618 = vld [vmem:[%s381 + $0x720] sm:$0xff]
      %v619 = vld [vmem:[%s381 + $0x728] sm:$0xff]
      %v620 = vld [vmem:[%s381 + $0x730] sm:$0xff]
      %v621 = vld [vmem:[%s381 + $0x738] sm:$0xff]
      %v622 = vld [vmem:[%s381 + $0x740] sm:$0xff]
      %v623 = vld [vmem:[%s381 + $0x748] sm:$0xff]
      %v624 = vld [vmem:[%s381 + $0x750] sm:$0xff]
      %v625 = vld [vmem:[%s381 + $0x758] sm:$0xff]
      %v626 = vld [vmem:[%s381 + $0x760] sm:$0xff]
      %v627 = vld [vmem:[%s381 + $0x768] sm:$0xff]
      %v628 = vld [vmem:[%s381 + $0x770] sm:$0xff]
      %v629 = vld [vmem:[%s381 + $0x778] sm:$0xff]
      %v630 = vld [vmem:[%s381 + $0x780] sm:$0xff]
      %v631 = vld [vmem:[%s381 + $0x788] sm:$0xff]
      %v632 = vld [vmem:[%s381 + $0x790] sm:$0xff]
      %v633 = vld [vmem:[%s381 + $0x798] sm:$0xff]
      %v634 = vld [vmem:[%s381 + $0x7a0] sm:$0xff]
      %v635 = vld [vmem:[%s381 + $0x7a8] sm:$0xff]
      %v636 = vld [vmem:[%s381 + $0x7b0] sm:$0xff]
      %v637 = vld [vmem:[%s381 + $0x7b8] sm:$0xff]
      %v638 = vld [vmem:[%s381 + $0x7c0] sm:$0xff]
      %v639 = vld [vmem:[%s381 + $0x7c8] sm:$0xff]
      %v640 = vld [vmem:[%s381 + $0x7d0] sm:$0xff]
      %v641 = vld [vmem:[%s381 + $0x7d8] sm:$0xff]
      %v642 = vld [vmem:[%s381 + $0x7e0] sm:$0xff]
      %v643 = vld [vmem:[%s381 + $0x7e8] sm:$0xff]
      %v644 = vld [vmem:[%s381 + $0x7f0] sm:$0xff]
      %v645 = vld [vmem:[%s381 + $0x7f8] sm:$0xff]
      %v646 = vld [vmem:[%s2] sm:$0xff]
      %v647 = vld [vmem:[%s2 + $0x8] sm:$0xff]
      %649 = vset.pattern.permute.xlu0 0
      %650 = vperm.xlu0 %649, %v646
      %v651 = vpop.permute.xlu0 %650
      %654 = vset.pattern.permute.xlu0 0
      %655 = vperm.xlu0 %654, %v647
      %v656 = vpop.permute.xlu0 %655
      %v662 = vunpack.c.l.b16 %v386
      %v663 = vunpack.c.h.b16 %v386
      %v664 = vunpack.c.l.b16 %v387
      %v665 = vunpack.c.h.b16 %v387
      %v666 = vunpack.c.l.b16 %v388
      %v667 = vunpack.c.h.b16 %v388
      %v668 = vunpack.c.l.b16 %v389
      %v669 = vunpack.c.h.b16 %v389
      %v670 = vpack.c.b16 %v666, %v662
      %v671 = vpack.c.b16 %v667, %v663
      %v672 = vpack.c.b16 %v668, %v664
      %v673 = vpack.c.b16 %v669, %v665
      %v934 = vunpack.c.l.b16 %v390
      %v935 = vunpack.c.h.b16 %v390
      %v936 = vunpack.c.l.b16 %v391
      %v937 = vunpack.c.h.b16 %v391
      %v938 = vunpack.c.l.b16 %v392
      %v939 = vunpack.c.h.b16 %v392
      %v940 = vunpack.c.l.b16 %v393
      %v941 = vunpack.c.h.b16 %v393
      %v942 = vunpack.c.l.b16 %v394
      %v943 = vunpack.c.h.b16 %v394
      %v944 = vunpack.c.l.b16 %v395
      %v945 = vunpack.c.h.b16 %v395
      %v946 = vunpack.c.l.b16 %v396
      %v947 = vunpack.c.h.b16 %v396
      %v948 = vunpack.c.l.b16 %v397
      %v949 = vunpack.c.h.b16 %v397
      %v950 = vunpack.c.l.b16 %v398
      %v951 = vunpack.c.h.b16 %v398
      %v952 = vunpack.c.l.b16 %v399
      %v953 = vunpack.c.h.b16 %v399
      %v954 = vunpack.c.l.b16 %v400
      %v955 = vunpack.c.h.b16 %v400
      %v956 = vunpack.c.l.b16 %v401
      %v957 = vunpack.c.h.b16 %v401
      %v958 = vunpack.c.l.b16 %v402
      %v959 = vunpack.c.h.b16 %v402
      %v960 = vunpack.c.l.b16 %v403
      %v961 = vunpack.c.h.b16 %v403
      %v962 = vunpack.c.l.b16 %v404
      %v963 = vunpack.c.h.b16 %v404
      %v964 = vunpack.c.l.b16 %v405
      %v965 = vunpack.c.h.b16 %v405
      %v966 = vunpack.c.l.b16 %v406
      %v967 = vunpack.c.h.b16 %v406
      %v968 = vunpack.c.l.b16 %v407
      %v969 = vunpack.c.h.b16 %v407
      %v970 = vunpack.c.l.b16 %v408
      %v971 = vunpack.c.h.b16 %v408
      %v972 = vunpack.c.l.b16 %v409
      %v973 = vunpack.c.h.b16 %v409
      %v974 = vunpack.c.l.b16 %v410
      %v975 = vunpack.c.h.b16 %v410
      %v976 = vunpack.c.l.b16 %v411
      %v977 = vunpack.c.h.b16 %v411
      %v978 = vunpack.c.l.b16 %v412
      %v979 = vunpack.c.h.b16 %v412
      %v980 = vunpack.c.l.b16 %v413
      %v981 = vunpack.c.h.b16 %v413
      %v982 = vunpack.c.l.b16 %v414
      %v983 = vunpack.c.h.b16 %v414
      %v984 = vunpack.c.l.b16 %v415
      %v985 = vunpack.c.h.b16 %v415
      %v986 = vunpack.c.l.b16 %v416
      %v987 = vunpack.c.h.b16 %v416
      %v988 = vunpack.c.l.b16 %v417
      %v989 = vunpack.c.h.b16 %v417
      %v990 = vunpack.c.l.b16 %v418
      %v991 = vunpack.c.h.b16 %v418
      %v992 = vunpack.c.l.b16 %v419
      %v993 = vunpack.c.h.b16 %v419
      %v994 = vunpack.c.l.b16 %v420
      %v995 = vunpack.c.h.b16 %v420
      %v996 = vunpack.c.l.b16 %v421
      %v997 = vunpack.c.h.b16 %v421
      %v998 = vunpack.c.l.b16 %v422
      %v999 = vunpack.c.h.b16 %v422
      %v1000 = vunpack.c.l.b16 %v423
      %v1001 = vunpack.c.h.b16 %v423
      %v1002 = vunpack.c.l.b16 %v424
      %v1003 = vunpack.c.h.b16 %v424
      %v1004 = vunpack.c.l.b16 %v425
      %v1005 = vunpack.c.h.b16 %v425
      %v1006 = vunpack.c.l.b16 %v426
      %v1007 = vunpack.c.h.b16 %v426
      %v1008 = vunpack.c.l.b16 %v427
      %v1009 = vunpack.c.h.b16 %v427
      %v1010 = vunpack.c.l.b16 %v428
      %v1011 = vunpack.c.h.b16 %v428
      %v1012 = vunpack.c.l.b16 %v429
      %v1013 = vunpack.c.h.b16 %v429
      %v1014 = vunpack.c.l.b16 %v430
      %v1015 = vunpack.c.h.b16 %v430
      %v1016 = vunpack.c.l.b16 %v431
      %v1017 = vunpack.c.h.b16 %v431
      %v1018 = vunpack.c.l.b16 %v432
      %v1019 = vunpack.c.h.b16 %v432
      %v1020 = vunpack.c.l.b16 %v433
      %v1021 = vunpack.c.h.b16 %v433
      %v1022 = vunpack.c.l.b16 %v434
      %v1023 = vunpack.c.h.b16 %v434
      %v1024 = vunpack.c.l.b16 %v435
      %v1025 = vunpack.c.h.b16 %v435
      %v1026 = vunpack.c.l.b16 %v436
      %v1027 = vunpack.c.h.b16 %v436
      %v1028 = vunpack.c.l.b16 %v437
      %v1029 = vunpack.c.h.b16 %v437
      %v1030 = vunpack.c.l.b16 %v438
      %v1031 = vunpack.c.h.b16 %v438
      %v1032 = vunpack.c.l.b16 %v439
      %v1033 = vunpack.c.h.b16 %v439
      %v1034 = vunpack.c.l.b16 %v440
      %v1035 = vunpack.c.h.b16 %v440
      %v1036 = vunpack.c.l.b16 %v441
      %v1037 = vunpack.c.h.b16 %v441
      %v1038 = vunpack.c.l.b16 %v442
      %v1039 = vunpack.c.h.b16 %v442
      %v1040 = vunpack.c.l.b16 %v443
      %v1041 = vunpack.c.h.b16 %v443
      %v1042 = vunpack.c.l.b16 %v444
      %v1043 = vunpack.c.h.b16 %v444
      %v1044 = vunpack.c.l.b16 %v445
      %v1045 = vunpack.c.h.b16 %v445
      %v1046 = vunpack.c.l.b16 %v446
      %v1047 = vunpack.c.h.b16 %v446
      %v1048 = vunpack.c.l.b16 %v447
      %v1049 = vunpack.c.h.b16 %v447
      %v1050 = vunpack.c.l.b16 %v448
      %v1051 = vunpack.c.h.b16 %v448
      %v1052 = vunpack.c.l.b16 %v449
      %v1053 = vunpack.c.h.b16 %v449
      %v1054 = vunpack.c.l.b16 %v450
      %v1055 = vunpack.c.h.b16 %v450
      %v1056 = vunpack.c.l.b16 %v451
      %v1057 = vunpack.c.h.b16 %v451
      %v1058 = vunpack.c.l.b16 %v452
      %v1059 = vunpack.c.h.b16 %v452
      %v1060 = vunpack.c.l.b16 %v453
      %v1061 = vunpack.c.h.b16 %v453
      %v1062 = vunpack.c.l.b16 %v454
      %v1063 = vunpack.c.h.b16 %v454
      %v1064 = vunpack.c.l.b16 %v455
      %v1065 = vunpack.c.h.b16 %v455
      %v1066 = vunpack.c.l.b16 %v456
      %v1067 = vunpack.c.h.b16 %v456
      %v1068 = vunpack.c.l.b16 %v457
      %v1069 = vunpack.c.h.b16 %v457
      %v1070 = vunpack.c.l.b16 %v458
      %v1071 = vunpack.c.h.b16 %v458
      %v1072 = vunpack.c.l.b16 %v459
      %v1073 = vunpack.c.h.b16 %v459
      %v1074 = vunpack.c.l.b16 %v460
      %v1075 = vunpack.c.h.b16 %v460
      %v1076 = vunpack.c.l.b16 %v461
      %v1077 = vunpack.c.h.b16 %v461
      %v1078 = vunpack.c.l.b16 %v462
      %v1079 = vunpack.c.h.b16 %v462
      %v1080 = vunpack.c.l.b16 %v463
      %v1081 = vunpack.c.h.b16 %v463
      %v1082 = vunpack.c.l.b16 %v464
      %v1083 = vunpack.c.h.b16 %v464
      %v1084 = vunpack.c.l.b16 %v465
      %v1085 = vunpack.c.h.b16 %v465
      %v1086 = vunpack.c.l.b16 %v466
      %v1087 = vunpack.c.h.b16 %v466
      %v1088 = vunpack.c.l.b16 %v467
      %v1089 = vunpack.c.h.b16 %v467
      %v1090 = vunpack.c.l.b16 %v468
      %v1091 = vunpack.c.h.b16 %v468
      %v1092 = vunpack.c.l.b16 %v469
      %v1093 = vunpack.c.h.b16 %v469
      %v1094 = vunpack.c.l.b16 %v470
      %v1095 = vunpack.c.h.b16 %v470
      %v1096 = vunpack.c.l.b16 %v471
      %v1097 = vunpack.c.h.b16 %v471
      %v1098 = vunpack.c.l.b16 %v472
      %v1099 = vunpack.c.h.b16 %v472
      %v1100 = vunpack.c.l.b16 %v473
      %v1101 = vunpack.c.h.b16 %v473
      %v1102 = vunpack.c.l.b16 %v474
      %v1103 = vunpack.c.h.b16 %v474
      %v1104 = vunpack.c.l.b16 %v475
      %v1105 = vunpack.c.h.b16 %v475
      %v1106 = vunpack.c.l.b16 %v476
      %v1107 = vunpack.c.h.b16 %v476
      %v1108 = vunpack.c.l.b16 %v477
      %v1109 = vunpack.c.h.b16 %v477
      %v1110 = vunpack.c.l.b16 %v478
      %v1111 = vunpack.c.h.b16 %v478
      %v1112 = vunpack.c.l.b16 %v479
      %v1113 = vunpack.c.h.b16 %v479
      %v1114 = vunpack.c.l.b16 %v480
      %v1115 = vunpack.c.h.b16 %v480
      %v1116 = vunpack.c.l.b16 %v481
      %v1117 = vunpack.c.h.b16 %v481
      %v1118 = vunpack.c.l.b16 %v482
      %v1119 = vunpack.c.h.b16 %v482
      %v1120 = vunpack.c.l.b16 %v483
      %v1121 = vunpack.c.h.b16 %v483
      %v1122 = vunpack.c.l.b16 %v484
      %v1123 = vunpack.c.h.b16 %v484
      %v1124 = vunpack.c.l.b16 %v485
      %v1125 = vunpack.c.h.b16 %v485
      %v1126 = vunpack.c.l.b16 %v486
      %v1127 = vunpack.c.h.b16 %v486
      %v1128 = vunpack.c.l.b16 %v487
      %v1129 = vunpack.c.h.b16 %v487
      %v1130 = vunpack.c.l.b16 %v488
      %v1131 = vunpack.c.h.b16 %v488
      %v1132 = vunpack.c.l.b16 %v489
      %v1133 = vunpack.c.h.b16 %v489
      %v1134 = vunpack.c.l.b16 %v490
      %v1135 = vunpack.c.h.b16 %v490
      %v1136 = vunpack.c.l.b16 %v491
      %v1137 = vunpack.c.h.b16 %v491
      %v1138 = vunpack.c.l.b16 %v492
      %v1139 = vunpack.c.h.b16 %v492
      %v1140 = vunpack.c.l.b16 %v493
      %v1141 = vunpack.c.h.b16 %v493
      %v1142 = vunpack.c.l.b16 %v494
      %v1143 = vunpack.c.h.b16 %v494
      %v1144 = vunpack.c.l.b16 %v495
      %v1145 = vunpack.c.h.b16 %v495
      %v1146 = vunpack.c.l.b16 %v496
      %v1147 = vunpack.c.h.b16 %v496
      %v1148 = vunpack.c.l.b16 %v497
      %v1149 = vunpack.c.h.b16 %v497
      %v1150 = vunpack.c.l.b16 %v498
      %v1151 = vunpack.c.h.b16 %v498
      %v1152 = vunpack.c.l.b16 %v499
      %v1153 = vunpack.c.h.b16 %v499
      %v1154 = vunpack.c.l.b16 %v500
      %v1155 = vunpack.c.h.b16 %v500
      %v1156 = vunpack.c.l.b16 %v501
      %v1157 = vunpack.c.h.b16 %v501
      %v1158 = vunpack.c.l.b16 %v502
      %v1159 = vunpack.c.h.b16 %v502
      %v1160 = vunpack.c.l.b16 %v503
      %v1161 = vunpack.c.h.b16 %v503
      %v1162 = vunpack.c.l.b16 %v504
      %v1163 = vunpack.c.h.b16 %v504
      %v1164 = vunpack.c.l.b16 %v505
      %v1165 = vunpack.c.h.b16 %v505
      %v1166 = vunpack.c.l.b16 %v506
      %v1167 = vunpack.c.h.b16 %v506
      %v1168 = vunpack.c.l.b16 %v507
      %v1169 = vunpack.c.h.b16 %v507
      %v1170 = vunpack.c.l.b16 %v508
      %v1171 = vunpack.c.h.b16 %v508
      %v1172 = vunpack.c.l.b16 %v509
      %v1173 = vunpack.c.h.b16 %v509
      %v1174 = vunpack.c.l.b16 %v510
      %v1175 = vunpack.c.h.b16 %v510
      %v1176 = vunpack.c.l.b16 %v511
      %v1177 = vunpack.c.h.b16 %v511
      %v1178 = vunpack.c.l.b16 %v512
      %v1179 = vunpack.c.h.b16 %v512
      %v1180 = vunpack.c.l.b16 %v513
      %v1181 = vunpack.c.h.b16 %v513
      %v1182 = vunpack.c.l.b16 %v514
      %v1183 = vunpack.c.h.b16 %v514
      %v1184 = vunpack.c.l.b16 %v515
      %v1185 = vunpack.c.h.b16 %v515
      %v1186 = vunpack.c.l.b16 %v516
      %v1187 = vunpack.c.h.b16 %v516
      %v1188 = vunpack.c.l.b16 %v517
      %v1189 = vunpack.c.h.b16 %v517
      %v1190 = vunpack.c.l.b16 %v518
      %v1191 = vunpack.c.h.b16 %v518
      %v1192 = vunpack.c.l.b16 %v519
      %v1193 = vunpack.c.h.b16 %v519
      %v1194 = vunpack.c.l.b16 %v520
      %v1195 = vunpack.c.h.b16 %v520
      %v1196 = vunpack.c.l.b16 %v521
      %v1197 = vunpack.c.h.b16 %v521
      %v1198 = vunpack.c.l.b16 %v522
      %v1199 = vunpack.c.h.b16 %v522
      %v1200 = vunpack.c.l.b16 %v523
      %v1201 = vunpack.c.h.b16 %v523
      %v1202 = vunpack.c.l.b16 %v524
      %v1203 = vunpack.c.h.b16 %v524
      %v1204 = vunpack.c.l.b16 %v525
      %v1205 = vunpack.c.h.b16 %v525
      %v1206 = vunpack.c.l.b16 %v526
      %v1207 = vunpack.c.h.b16 %v526
      %v1208 = vunpack.c.l.b16 %v527
      %v1209 = vunpack.c.h.b16 %v527
      %v1210 = vunpack.c.l.b16 %v528
      %v1211 = vunpack.c.h.b16 %v528
      %v1212 = vunpack.c.l.b16 %v529
      %v1213 = vunpack.c.h.b16 %v529
      %v1214 = vunpack.c.l.b16 %v530
      %v1215 = vunpack.c.h.b16 %v530
      %v1216 = vunpack.c.l.b16 %v531
      %v1217 = vunpack.c.h.b16 %v531
      %v1218 = vunpack.c.l.b16 %v532
      %v1219 = vunpack.c.h.b16 %v532
      %v1220 = vunpack.c.l.b16 %v533
      %v1221 = vunpack.c.h.b16 %v533
      %v1222 = vunpack.c.l.b16 %v534
      %v1223 = vunpack.c.h.b16 %v534
      %v1224 = vunpack.c.l.b16 %v535
      %v1225 = vunpack.c.h.b16 %v535
      %v1226 = vunpack.c.l.b16 %v536
      %v1227 = vunpack.c.h.b16 %v536
      %v1228 = vunpack.c.l.b16 %v537
      %v1229 = vunpack.c.h.b16 %v537
      %v1230 = vunpack.c.l.b16 %v538
      %v1231 = vunpack.c.h.b16 %v538
      %v1232 = vunpack.c.l.b16 %v539
      %v1233 = vunpack.c.h.b16 %v539
      %v1234 = vunpack.c.l.b16 %v540
      %v1235 = vunpack.c.h.b16 %v540
      %v1236 = vunpack.c.l.b16 %v541
      %v1237 = vunpack.c.h.b16 %v541
      %v1238 = vunpack.c.l.b16 %v542
      %v1239 = vunpack.c.h.b16 %v542
      %v1240 = vunpack.c.l.b16 %v543
      %v1241 = vunpack.c.h.b16 %v543
      %v1242 = vunpack.c.l.b16 %v544
      %v1243 = vunpack.c.h.b16 %v544
      %v1244 = vunpack.c.l.b16 %v545
      %v1245 = vunpack.c.h.b16 %v545
      %v1246 = vunpack.c.l.b16 %v546
      %v1247 = vunpack.c.h.b16 %v546
      %v1248 = vunpack.c.l.b16 %v547
      %v1249 = vunpack.c.h.b16 %v547
      %v1250 = vunpack.c.l.b16 %v548
      %v1251 = vunpack.c.h.b16 %v548
      %v1252 = vunpack.c.l.b16 %v549
      %v1253 = vunpack.c.h.b16 %v549
      %v1254 = vunpack.c.l.b16 %v550
      %v1255 = vunpack.c.h.b16 %v550
      %v1256 = vunpack.c.l.b16 %v551
      %v1257 = vunpack.c.h.b16 %v551
      %v1258 = vunpack.c.l.b16 %v552
      %v1259 = vunpack.c.h.b16 %v552
      %v1260 = vunpack.c.l.b16 %v553
      %v1261 = vunpack.c.h.b16 %v553
      %v1262 = vunpack.c.l.b16 %v554
      %v1263 = vunpack.c.h.b16 %v554
      %v1264 = vunpack.c.l.b16 %v555
      %v1265 = vunpack.c.h.b16 %v555
      %v1266 = vunpack.c.l.b16 %v556
      %v1267 = vunpack.c.h.b16 %v556
      %v1268 = vunpack.c.l.b16 %v557
      %v1269 = vunpack.c.h.b16 %v557
      %v1270 = vunpack.c.l.b16 %v558
      %v1271 = vunpack.c.h.b16 %v558
      %v1272 = vunpack.c.l.b16 %v559
      %v1273 = vunpack.c.h.b16 %v559
      %v1274 = vunpack.c.l.b16 %v560
      %v1275 = vunpack.c.h.b16 %v560
      %v1276 = vunpack.c.l.b16 %v561
      %v1277 = vunpack.c.h.b16 %v561
      %v1278 = vunpack.c.l.b16 %v562
      %v1279 = vunpack.c.h.b16 %v562
      %v1280 = vunpack.c.l.b16 %v563
      %v1281 = vunpack.c.h.b16 %v563
      %v1282 = vunpack.c.l.b16 %v564
      %v1283 = vunpack.c.h.b16 %v564
      %v1284 = vunpack.c.l.b16 %v565
      %v1285 = vunpack.c.h.b16 %v565
      %v1286 = vunpack.c.l.b16 %v566
      %v1287 = vunpack.c.h.b16 %v566
      %v1288 = vunpack.c.l.b16 %v567
      %v1289 = vunpack.c.h.b16 %v567
      %v1290 = vunpack.c.l.b16 %v568
      %v1291 = vunpack.c.h.b16 %v568
      %v1292 = vunpack.c.l.b16 %v569
      %v1293 = vunpack.c.h.b16 %v569
      %v1294 = vunpack.c.l.b16 %v570
      %v1295 = vunpack.c.h.b16 %v570
      %v1296 = vunpack.c.l.b16 %v571
      %v1297 = vunpack.c.h.b16 %v571
      %v1298 = vunpack.c.l.b16 %v572
      %v1299 = vunpack.c.h.b16 %v572
      %v1300 = vunpack.c.l.b16 %v573
      %v1301 = vunpack.c.h.b16 %v573
      %v1302 = vunpack.c.l.b16 %v574
      %v1303 = vunpack.c.h.b16 %v574
      %v1304 = vunpack.c.l.b16 %v575
      %v1305 = vunpack.c.h.b16 %v575
      %v1306 = vunpack.c.l.b16 %v576
      %v1307 = vunpack.c.h.b16 %v576
      %v1308 = vunpack.c.l.b16 %v577
      %v1309 = vunpack.c.h.b16 %v577
      %v1310 = vunpack.c.l.b16 %v578
      %v1311 = vunpack.c.h.b16 %v578
      %v1312 = vunpack.c.l.b16 %v579
      %v1313 = vunpack.c.h.b16 %v579
      %v1314 = vunpack.c.l.b16 %v580
      %v1315 = vunpack.c.h.b16 %v580
      %v1316 = vunpack.c.l.b16 %v581
      %v1317 = vunpack.c.h.b16 %v581
      %v1318 = vunpack.c.l.b16 %v582
      %v1319 = vunpack.c.h.b16 %v582
      %v1320 = vunpack.c.l.b16 %v583
      %v1321 = vunpack.c.h.b16 %v583
      %v1322 = vunpack.c.l.b16 %v584
      %v1323 = vunpack.c.h.b16 %v584
      %v1324 = vunpack.c.l.b16 %v585
      %v1325 = vunpack.c.h.b16 %v585
      %v1326 = vunpack.c.l.b16 %v586
      %v1327 = vunpack.c.h.b16 %v586
      %v1328 = vunpack.c.l.b16 %v587
      %v1329 = vunpack.c.h.b16 %v587
      %v1330 = vunpack.c.l.b16 %v588
      %v1331 = vunpack.c.h.b16 %v588
      %v1332 = vunpack.c.l.b16 %v589
      %v1333 = vunpack.c.h.b16 %v589
      %v1334 = vunpack.c.l.b16 %v590
      %v1335 = vunpack.c.h.b16 %v590
      %v1336 = vunpack.c.l.b16 %v591
      %v1337 = vunpack.c.h.b16 %v591
      %v1338 = vunpack.c.l.b16 %v592
      %v1339 = vunpack.c.h.b16 %v592
      %v1340 = vunpack.c.l.b16 %v593
      %v1341 = vunpack.c.h.b16 %v593
      %v1342 = vunpack.c.l.b16 %v594
      %v1343 = vunpack.c.h.b16 %v594
      %v1344 = vunpack.c.l.b16 %v595
      %v1345 = vunpack.c.h.b16 %v595
      %v1346 = vunpack.c.l.b16 %v596
      %v1347 = vunpack.c.h.b16 %v596
      %v1348 = vunpack.c.l.b16 %v597
      %v1349 = vunpack.c.h.b16 %v597
      %v1350 = vunpack.c.l.b16 %v598
      %v1351 = vunpack.c.h.b16 %v598
      %v1352 = vunpack.c.l.b16 %v599
      %v1353 = vunpack.c.h.b16 %v599
      %v1354 = vunpack.c.l.b16 %v600
      %v1355 = vunpack.c.h.b16 %v600
      %v1356 = vunpack.c.l.b16 %v601
      %v1357 = vunpack.c.h.b16 %v601
      %v1358 = vunpack.c.l.b16 %v602
      %v1359 = vunpack.c.h.b16 %v602
      %v1360 = vunpack.c.l.b16 %v603
      %v1361 = vunpack.c.h.b16 %v603
      %v1362 = vunpack.c.l.b16 %v604
      %v1363 = vunpack.c.h.b16 %v604
      %v1364 = vunpack.c.l.b16 %v605
      %v1365 = vunpack.c.h.b16 %v605
      %v1366 = vunpack.c.l.b16 %v606
      %v1367 = vunpack.c.h.b16 %v606
      %v1368 = vunpack.c.l.b16 %v607
      %v1369 = vunpack.c.h.b16 %v607
      %v1370 = vunpack.c.l.b16 %v608
      %v1371 = vunpack.c.h.b16 %v608
      %v1372 = vunpack.c.l.b16 %v609
      %v1373 = vunpack.c.h.b16 %v609
      %v1374 = vunpack.c.l.b16 %v610
      %v1375 = vunpack.c.h.b16 %v610
      %v1376 = vunpack.c.l.b16 %v611
      %v1377 = vunpack.c.h.b16 %v611
      %v1378 = vunpack.c.l.b16 %v612
      %v1379 = vunpack.c.h.b16 %v612
      %v1380 = vunpack.c.l.b16 %v613
      %v1381 = vunpack.c.h.b16 %v613
      %v1382 = vunpack.c.l.b16 %v614
      %v1383 = vunpack.c.h.b16 %v614
      %v1384 = vunpack.c.l.b16 %v615
      %v1385 = vunpack.c.h.b16 %v615
      %v1386 = vunpack.c.l.b16 %v616
      %v1387 = vunpack.c.h.b16 %v616
      %v1388 = vunpack.c.l.b16 %v617
      %v1389 = vunpack.c.h.b16 %v617
      %v1390 = vunpack.c.l.b16 %v618
      %v1391 = vunpack.c.h.b16 %v618
      %v1392 = vunpack.c.l.b16 %v619
      %v1393 = vunpack.c.h.b16 %v619
      %v1394 = vunpack.c.l.b16 %v620
      %v1395 = vunpack.c.h.b16 %v620
      %v1396 = vunpack.c.l.b16 %v621
      %v1397 = vunpack.c.h.b16 %v621
      %v1398 = vunpack.c.l.b16 %v622
      %v1399 = vunpack.c.h.b16 %v622
      %v1400 = vunpack.c.l.b16 %v623
      %v1401 = vunpack.c.h.b16 %v623
      %v1402 = vunpack.c.l.b16 %v624
      %v1403 = vunpack.c.h.b16 %v624
      %v1404 = vunpack.c.l.b16 %v625
      %v1405 = vunpack.c.h.b16 %v625
      %v1406 = vunpack.c.l.b16 %v626
      %v1407 = vunpack.c.h.b16 %v626
      %v1408 = vunpack.c.l.b16 %v627
      %v1409 = vunpack.c.h.b16 %v627
      %v1410 = vunpack.c.l.b16 %v628
      %v1411 = vunpack.c.h.b16 %v628
      %v1412 = vunpack.c.l.b16 %v629
      %v1413 = vunpack.c.h.b16 %v629
      %v1414 = vunpack.c.l.b16 %v630
      %v1415 = vunpack.c.h.b16 %v630
      %v1416 = vunpack.c.l.b16 %v631
      %v1417 = vunpack.c.h.b16 %v631
      %v1418 = vunpack.c.l.b16 %v632
      %v1419 = vunpack.c.h.b16 %v632
      %v1420 = vunpack.c.l.b16 %v633
      %v1421 = vunpack.c.h.b16 %v633
      %v1422 = vunpack.c.l.b16 %v634
      %v1423 = vunpack.c.h.b16 %v634
      %v1424 = vunpack.c.l.b16 %v635
      %v1425 = vunpack.c.h.b16 %v635
      %v1426 = vunpack.c.l.b16 %v636
      %v1427 = vunpack.c.h.b16 %v636
      %v1428 = vunpack.c.l.b16 %v637
      %v1429 = vunpack.c.h.b16 %v637
      %v1430 = vunpack.c.l.b16 %v638
      %v1431 = vunpack.c.h.b16 %v638
      %v1432 = vunpack.c.l.b16 %v639
      %v1433 = vunpack.c.h.b16 %v639
      %v1434 = vunpack.c.l.b16 %v640
      %v1435 = vunpack.c.h.b16 %v640
      %v1436 = vunpack.c.l.b16 %v641
      %v1437 = vunpack.c.h.b16 %v641
      %v1438 = vunpack.c.l.b16 %v642
      %v1439 = vunpack.c.h.b16 %v642
      %v1440 = vunpack.c.l.b16 %v643
      %v1441 = vunpack.c.h.b16 %v643
      %v1442 = vunpack.c.l.b16 %v644
      %v1443 = vunpack.c.h.b16 %v644
      %v1444 = vunpack.c.l.b16 %v645
      %v1445 = vunpack.c.h.b16 %v645
      %v1446 = vpack.c.b16 %v942, %v934
      %v1447 = vpack.c.b16 %v943, %v935
      %v1448 = vpack.c.b16 %v944, %v936
      %v1449 = vpack.c.b16 %v945, %v937
      %v1450 = vpack.c.b16 %v946, %v938
      %v1451 = vpack.c.b16 %v947, %v939
      %v1452 = vpack.c.b16 %v948, %v940
      %v1453 = vpack.c.b16 %v949, %v941
      %v1454 = vpack.c.b16 %v958, %v950
      %v1455 = vpack.c.b16 %v959, %v951
      %v1456 = vpack.c.b16 %v960, %v952
      %v1457 = vpack.c.b16 %v961, %v953
      %v1458 = vpack.c.b16 %v962, %v954
      %v1459 = vpack.c.b16 %v963, %v955
      %v1460 = vpack.c.b16 %v964, %v956
      %v1461 = vpack.c.b16 %v965, %v957
      %v1462 = vpack.c.b16 %v974, %v966
      %v1463 = vpack.c.b16 %v975, %v967
      %v1464 = vpack.c.b16 %v976, %v968
      %v1465 = vpack.c.b16 %v977, %v969
      %v1466 = vpack.c.b16 %v978, %v970
      %v1467 = vpack.c.b16 %v979, %v971
      %v1468 = vpack.c.b16 %v980, %v972
      %v1469 = vpack.c.b16 %v981, %v973
      %v1470 = vpack.c.b16 %v990, %v982
      %v1471 = vpack.c.b16 %v991, %v983
      %v1472 = vpack.c.b16 %v992, %v984
      %v1473 = vpack.c.b16 %v993, %v985
      %v1474 = vpack.c.b16 %v994, %v986
      %v1475 = vpack.c.b16 %v995, %v987
      %v1476 = vpack.c.b16 %v996, %v988
      %v1477 = vpack.c.b16 %v997, %v989
      %v1478 = vpack.c.b16 %v1006, %v998
      %v1479 = vpack.c.b16 %v1007, %v999
      %v1480 = vpack.c.b16 %v1008, %v1000
      %v1481 = vpack.c.b16 %v1009, %v1001
      %v1482 = vpack.c.b16 %v1010, %v1002
      %v1483 = vpack.c.b16 %v1011, %v1003
      %v1484 = vpack.c.b16 %v1012, %v1004
      %v1485 = vpack.c.b16 %v1013, %v1005
      %v1486 = vpack.c.b16 %v1022, %v1014
      %v1487 = vpack.c.b16 %v1023, %v1015
      %v1488 = vpack.c.b16 %v1024, %v1016
      %v1489 = vpack.c.b16 %v1025, %v1017
      %v1490 = vpack.c.b16 %v1026, %v1018
      %v1491 = vpack.c.b16 %v1027, %v1019
      %v1492 = vpack.c.b16 %v1028, %v1020
      %v1493 = vpack.c.b16 %v1029, %v1021
      %v1494 = vpack.c.b16 %v1038, %v1030
      %v1495 = vpack.c.b16 %v1039, %v1031
      %v1496 = vpack.c.b16 %v1040, %v1032
      %v1497 = vpack.c.b16 %v1041, %v1033
      %v1498 = vpack.c.b16 %v1042, %v1034
      %v1499 = vpack.c.b16 %v1043, %v1035
      %v1500 = vpack.c.b16 %v1044, %v1036
      %v1501 = vpack.c.b16 %v1045, %v1037
      %v1502 = vpack.c.b16 %v1054, %v1046
      %v1503 = vpack.c.b16 %v1055, %v1047
      %v1504 = vpack.c.b16 %v1056, %v1048
      %v1505 = vpack.c.b16 %v1057, %v1049
      %v1506 = vpack.c.b16 %v1058, %v1050
      %v1507 = vpack.c.b16 %v1059, %v1051
      %v1508 = vpack.c.b16 %v1060, %v1052
      %v1509 = vpack.c.b16 %v1061, %v1053
      %v1510 = vpack.c.b16 %v1070, %v1062
      %v1511 = vpack.c.b16 %v1071, %v1063
      %v1512 = vpack.c.b16 %v1072, %v1064
      %v1513 = vpack.c.b16 %v1073, %v1065
      %v1514 = vpack.c.b16 %v1074, %v1066
      %v1515 = vpack.c.b16 %v1075, %v1067
      %v1516 = vpack.c.b16 %v1076, %v1068
      %v1517 = vpack.c.b16 %v1077, %v1069
      %v1518 = vpack.c.b16 %v1086, %v1078
      %v1519 = vpack.c.b16 %v1087, %v1079
      %v1520 = vpack.c.b16 %v1088, %v1080
      %v1521 = vpack.c.b16 %v1089, %v1081
      %v1522 = vpack.c.b16 %v1090, %v1082
      %v1523 = vpack.c.b16 %v1091, %v1083
      %v1524 = vpack.c.b16 %v1092, %v1084
      %v1525 = vpack.c.b16 %v1093, %v1085
      %v1526 = vpack.c.b16 %v1102, %v1094
      %v1527 = vpack.c.b16 %v1103, %v1095
      %v1528 = vpack.c.b16 %v1104, %v1096
      %v1529 = vpack.c.b16 %v1105, %v1097
      %v1530 = vpack.c.b16 %v1106, %v1098
      %v1531 = vpack.c.b16 %v1107, %v1099
      %v1532 = vpack.c.b16 %v1108, %v1100
      %v1533 = vpack.c.b16 %v1109, %v1101
      %v1534 = vpack.c.b16 %v1118, %v1110
      %v1535 = vpack.c.b16 %v1119, %v1111
      %v1536 = vpack.c.b16 %v1120, %v1112
      %v1537 = vpack.c.b16 %v1121, %v1113
      %v1538 = vpack.c.b16 %v1122, %v1114
      %v1539 = vpack.c.b16 %v1123, %v1115
      %v1540 = vpack.c.b16 %v1124, %v1116
      %v1541 = vpack.c.b16 %v1125, %v1117
      %v1542 = vpack.c.b16 %v1134, %v1126
      %v1543 = vpack.c.b16 %v1135, %v1127
      %v1544 = vpack.c.b16 %v1136, %v1128
      %v1545 = vpack.c.b16 %v1137, %v1129
      %v1546 = vpack.c.b16 %v1138, %v1130
      %v1547 = vpack.c.b16 %v1139, %v1131
      %v1548 = vpack.c.b16 %v1140, %v1132
      %v1549 = vpack.c.b16 %v1141, %v1133
      %v1550 = vpack.c.b16 %v1150, %v1142
      %v1551 = vpack.c.b16 %v1151, %v1143
      %v1552 = vpack.c.b16 %v1152, %v1144
      %v1553 = vpack.c.b16 %v1153, %v1145
      %v1554 = vpack.c.b16 %v1154, %v1146
      %v1555 = vpack.c.b16 %v1155, %v1147
      %v1556 = vpack.c.b16 %v1156, %v1148
      %v1557 = vpack.c.b16 %v1157, %v1149
      %v1558 = vpack.c.b16 %v1166, %v1158
      %v1559 = vpack.c.b16 %v1167, %v1159
      %v1560 = vpack.c.b16 %v1168, %v1160
      %v1561 = vpack.c.b16 %v1169, %v1161
      %v1562 = vpack.c.b16 %v1170, %v1162
      %v1563 = vpack.c.b16 %v1171, %v1163
      %v1564 = vpack.c.b16 %v1172, %v1164
      %v1565 = vpack.c.b16 %v1173, %v1165
      %v1566 = vpack.c.b16 %v1182, %v1174
      %v1567 = vpack.c.b16 %v1183, %v1175
      %v1568 = vpack.c.b16 %v1184, %v1176
      %v1569 = vpack.c.b16 %v1185, %v1177
      %v1570 = vpack.c.b16 %v1186, %v1178
      %v1571 = vpack.c.b16 %v1187, %v1179
      %v1572 = vpack.c.b16 %v1188, %v1180
      %v1573 = vpack.c.b16 %v1189, %v1181
      %v1574 = vpack.c.b16 %v1198, %v1190
      %v1575 = vpack.c.b16 %v1199, %v1191
      %v1576 = vpack.c.b16 %v1200, %v1192
      %v1577 = vpack.c.b16 %v1201, %v1193
      %v1578 = vpack.c.b16 %v1202, %v1194
      %v1579 = vpack.c.b16 %v1203, %v1195
      %v1580 = vpack.c.b16 %v1204, %v1196
      %v1581 = vpack.c.b16 %v1205, %v1197
      %v1582 = vpack.c.b16 %v1214, %v1206
      %v1583 = vpack.c.b16 %v1215, %v1207
      %v1584 = vpack.c.b16 %v1216, %v1208
      %v1585 = vpack.c.b16 %v1217, %v1209
      %v1586 = vpack.c.b16 %v1218, %v1210
      %v1587 = vpack.c.b16 %v1219, %v1211
      %v1588 = vpack.c.b16 %v1220, %v1212
      %v1589 = vpack.c.b16 %v1221, %v1213
      %v1590 = vpack.c.b16 %v1230, %v1222
      %v1591 = vpack.c.b16 %v1231, %v1223
      %v1592 = vpack.c.b16 %v1232, %v1224
      %v1593 = vpack.c.b16 %v1233, %v1225
      %v1594 = vpack.c.b16 %v1234, %v1226
      %v1595 = vpack.c.b16 %v1235, %v1227
      %v1596 = vpack.c.b16 %v1236, %v1228
      %v1597 = vpack.c.b16 %v1237, %v1229
      %v1598 = vpack.c.b16 %v1246, %v1238
      %v1599 = vpack.c.b16 %v1247, %v1239
      %v1600 = vpack.c.b16 %v1248, %v1240
      %v1601 = vpack.c.b16 %v1249, %v1241
      %v1602 = vpack.c.b16 %v1250, %v1242
      %v1603 = vpack.c.b16 %v1251, %v1243
      %v1604 = vpack.c.b16 %v1252, %v1244
      %v1605 = vpack.c.b16 %v1253, %v1245
      %v1606 = vpack.c.b16 %v1262, %v1254
      %v1607 = vpack.c.b16 %v1263, %v1255
      %v1608 = vpack.c.b16 %v1264, %v1256
      %v1609 = vpack.c.b16 %v1265, %v1257
      %v1610 = vpack.c.b16 %v1266, %v1258
      %v1611 = vpack.c.b16 %v1267, %v1259
      %v1612 = vpack.c.b16 %v1268, %v1260
      %v1613 = vpack.c.b16 %v1269, %v1261
      %v1614 = vpack.c.b16 %v1278, %v1270
      %v1615 = vpack.c.b16 %v1279, %v1271
      %v1616 = vpack.c.b16 %v1280, %v1272
      %v1617 = vpack.c.b16 %v1281, %v1273
      %v1618 = vpack.c.b16 %v1282, %v1274
      %v1619 = vpack.c.b16 %v1283, %v1275
      %v1620 = vpack.c.b16 %v1284, %v1276
      %v1621 = vpack.c.b16 %v1285, %v1277
      %v1622 = vpack.c.b16 %v1294, %v1286
      %v1623 = vpack.c.b16 %v1295, %v1287
      %v1624 = vpack.c.b16 %v1296, %v1288
      %v1625 = vpack.c.b16 %v1297, %v1289
      %v1626 = vpack.c.b16 %v1298, %v1290
      %v1627 = vpack.c.b16 %v1299, %v1291
      %v1628 = vpack.c.b16 %v1300, %v1292
      %v1629 = vpack.c.b16 %v1301, %v1293
      %v1630 = vpack.c.b16 %v1310, %v1302
      %v1631 = vpack.c.b16 %v1311, %v1303
      %v1632 = vpack.c.b16 %v1312, %v1304
      %v1633 = vpack.c.b16 %v1313, %v1305
      %v1634 = vpack.c.b16 %v1314, %v1306
      %v1635 = vpack.c.b16 %v1315, %v1307
      %v1636 = vpack.c.b16 %v1316, %v1308
      %v1637 = vpack.c.b16 %v1317, %v1309
      %v1638 = vpack.c.b16 %v1326, %v1318
      %v1639 = vpack.c.b16 %v1327, %v1319
      %v1640 = vpack.c.b16 %v1328, %v1320
      %v1641 = vpack.c.b16 %v1329, %v1321
      %v1642 = vpack.c.b16 %v1330, %v1322
      %v1643 = vpack.c.b16 %v1331, %v1323
      %v1644 = vpack.c.b16 %v1332, %v1324
      %v1645 = vpack.c.b16 %v1333, %v1325
      %v1646 = vpack.c.b16 %v1342, %v1334
      %v1647 = vpack.c.b16 %v1343, %v1335
      %v1648 = vpack.c.b16 %v1344, %v1336
      %v1649 = vpack.c.b16 %v1345, %v1337
      %v1650 = vpack.c.b16 %v1346, %v1338
      %v1651 = vpack.c.b16 %v1347, %v1339
      %v1652 = vpack.c.b16 %v1348, %v1340
      %v1653 = vpack.c.b16 %v1349, %v1341
      %v1654 = vpack.c.b16 %v1358, %v1350
      %v1655 = vpack.c.b16 %v1359, %v1351
      %v1656 = vpack.c.b16 %v1360, %v1352
      %v1657 = vpack.c.b16 %v1361, %v1353
      %v1658 = vpack.c.b16 %v1362, %v1354
      %v1659 = vpack.c.b16 %v1363, %v1355
      %v1660 = vpack.c.b16 %v1364, %v1356
      %v1661 = vpack.c.b16 %v1365, %v1357
      %v1662 = vpack.c.b16 %v1374, %v1366
      %v1663 = vpack.c.b16 %v1375, %v1367
      %v1664 = vpack.c.b16 %v1376, %v1368
      %v1665 = vpack.c.b16 %v1377, %v1369
      %v1666 = vpack.c.b16 %v1378, %v1370
      %v1667 = vpack.c.b16 %v1379, %v1371
      %v1668 = vpack.c.b16 %v1380, %v1372
      %v1669 = vpack.c.b16 %v1381, %v1373
      %v1670 = vpack.c.b16 %v1390, %v1382
      %v1671 = vpack.c.b16 %v1391, %v1383
      %v1672 = vpack.c.b16 %v1392, %v1384
      %v1673 = vpack.c.b16 %v1393, %v1385
      %v1674 = vpack.c.b16 %v1394, %v1386
      %v1675 = vpack.c.b16 %v1395, %v1387
      %v1676 = vpack.c.b16 %v1396, %v1388
      %v1677 = vpack.c.b16 %v1397, %v1389
      %v1678 = vpack.c.b16 %v1406, %v1398
      %v1679 = vpack.c.b16 %v1407, %v1399
      %v1680 = vpack.c.b16 %v1408, %v1400
      %v1681 = vpack.c.b16 %v1409, %v1401
      %v1682 = vpack.c.b16 %v1410, %v1402
      %v1683 = vpack.c.b16 %v1411, %v1403
      %v1684 = vpack.c.b16 %v1412, %v1404
      %v1685 = vpack.c.b16 %v1413, %v1405
      %v1686 = vpack.c.b16 %v1422, %v1414
      %v1687 = vpack.c.b16 %v1423, %v1415
      %v1688 = vpack.c.b16 %v1424, %v1416
      %v1689 = vpack.c.b16 %v1425, %v1417
      %v1690 = vpack.c.b16 %v1426, %v1418
      %v1691 = vpack.c.b16 %v1427, %v1419
      %v1692 = vpack.c.b16 %v1428, %v1420
      %v1693 = vpack.c.b16 %v1429, %v1421
      %v1694 = vpack.c.b16 %v1438, %v1430
      %v1695 = vpack.c.b16 %v1439, %v1431
      %v1696 = vpack.c.b16 %v1440, %v1432
      %v1697 = vpack.c.b16 %v1441, %v1433
      %v1698 = vpack.c.b16 %v1442, %v1434
      %v1699 = vpack.c.b16 %v1443, %v1435
      %v1700 = vpack.c.b16 %v1444, %v1436
      %v1701 = vpack.c.b16 %v1445, %v1437
      %1958 = vmatprep.subr.bf16.mxu0 %v1447
      %1959 = vmatpush1.bf16.msra.mxu0 %v1446
      %1960 = vmatprep.subr.bf16.mxu0 %v1455
      %1961 = vmatpush1.bf16.msra.mxu0 %v1454
      %1962 = vmatprep.subr.bf16.mxu0 %v1463
      %1963 = vmatpush1.bf16.msra.mxu0 %v1462
      %1964 = vmatprep.subr.bf16.mxu0 %v1471
      %1965 = vmatpush1.bf16.msra.mxu0 %v1470
      %1966 = vmatprep.subr.bf16.mxu0 %v1479
      %1967 = vmatpush1.bf16.msra.mxu0 %v1478
      %1968 = vmatprep.subr.bf16.mxu0 %v1487
      %1969 = vmatpush1.bf16.msra.mxu0 %v1486
      %1970 = vmatprep.subr.bf16.mxu0 %v1495
      %1971 = vmatpush1.bf16.msra.mxu0 %v1494
      %1972 = vmatprep.subr.bf16.mxu0 %v1503
      %1973 = vmatpush1.bf16.msra.mxu0 %v1502
      %1974 = vmatprep.subr.bf16.mxu0 %v1511
      %1975 = vmatpush1.bf16.msra.mxu0 %v1510
      %1976 = vmatprep.subr.bf16.mxu0 %v1519
      %1977 = vmatpush1.bf16.msra.mxu0 %v1518
      %1978 = vmatprep.subr.bf16.mxu0 %v1527
      %1979 = vmatpush1.bf16.msra.mxu0 %v1526
      %1980 = vmatprep.subr.bf16.mxu0 %v1535
      %1981 = vmatpush1.bf16.msra.mxu0 %v1534
      %1982 = vmatprep.subr.bf16.mxu0 %v1543
      %1983 = vmatpush1.bf16.msra.mxu0 %v1542
      %1984 = vmatprep.subr.bf16.mxu0 %v1551
      %1985 = vmatpush1.bf16.msra.mxu0 %v1550
      %1986 = vmatprep.subr.bf16.mxu0 %v1559
      %1987 = vmatpush1.bf16.msra.mxu0 %v1558
      %1988 = vmatprep.subr.bf16.mxu0 %v1567
      %1989 = vmatpush1.bf16.msra.mxu0 %v1566
      %1990 = vmatprep.mubr.bf16.mxu0 %v671
      %1991 = vmatmul.mubr.bf16.gmra.mrb[0].mxu0 %v670
      %v1992 = vpop.f32.mrb[0].mxu0
      %v1993 = vadd.f32 %v651, %v1992
      %v1994 = vpop.f32.mrb[0].mxu0
      %v1995 = vadd.f32 %v651, %v1994
      %v1996 = vpop.f32.mrb[0].mxu0
      %v1997 = vadd.f32 %v656, %v1996
      %v1998 = vpop.f32.mrb[0].mxu0
      %v1999 = vadd.f32 %v656, %v1998
      %2000 = vdwg.mxu0
      %2001 = vmatprep.subr.bf16.mxu0 %v1575
      %2002 = vmatpush1.bf16.msra.mxu0 %v1574
      %2003 = vmatprep.subr.bf16.mxu0 %v1583
      %2004 = vmatpush1.bf16.msra.mxu0 %v1582
      %2005 = vmatprep.subr.bf16.mxu0 %v1591
      %2006 = vmatpush1.bf16.msra.mxu0 %v1590
      %2007 = vmatprep.subr.bf16.mxu0 %v1599
      %2008 = vmatpush1.bf16.msra.mxu0 %v1598
      %2009 = vmatprep.subr.bf16.mxu0 %v1607
      %2010 = vmatpush1.bf16.msra.mxu0 %v1606
      %2011 = vmatprep.subr.bf16.mxu0 %v1615
      %2012 = vmatpush1.bf16.msra.mxu0 %v1614
      %2013 = vmatprep.subr.bf16.mxu0 %v1623
      %2014 = vmatpush1.bf16.msra.mxu0 %v1622
      %2015 = vmatprep.subr.bf16.mxu0 %v1631
      %2016 = vmatpush1.bf16.msra.mxu0 %v1630
      %2017 = vmatprep.subr.bf16.mxu0 %v1639
      %2018 = vmatpush1.bf16.msra.mxu0 %v1638
      %2019 = vmatprep.subr.bf16.mxu0 %v1647
      %2020 = vmatpush1.bf16.msra.mxu0 %v1646
      %2021 = vmatprep.subr.bf16.mxu0 %v1655
      %2022 = vmatpush1.bf16.msra.mxu0 %v1654
      %2023 = vmatprep.subr.bf16.mxu0 %v1663
      %2024 = vmatpush1.bf16.msra.mxu0 %v1662
      %2025 = vmatprep.subr.bf16.mxu0 %v1671
      %2026 = vmatpush1.bf16.msra.mxu0 %v1670
      %2027 = vmatprep.subr.bf16.mxu0 %v1679
      %2028 = vmatpush1.bf16.msra.mxu0 %v1678
      %2029 = vmatprep.subr.bf16.mxu0 %v1687
      %2030 = vmatpush1.bf16.msra.mxu0 %v1686
      %2031 = vmatprep.subr.bf16.mxu0 %v1695
      %2032 = vmatpush1.bf16.msra.mxu0 %v1694
      %2033 = vmatprep.mubr.bf16.mxu0 %v673
      %2034 = vmatmul.mubr.bf16.gmra.mrb[0].mxu0 %v672
      %v2035 = vpop.f32.mrb[0].mxu0
      %v2036 = vadd.f32 %v1993, %v2035
      %v2037 = vpop.f32.mrb[0].mxu0
      %v2038 = vadd.f32 %v1995, %v2037
      %v2039 = vpop.f32.mrb[0].mxu0
      %v2040 = vadd.f32 %v1997, %v2039
      %v2041 = vpop.f32.mrb[0].mxu0
      %v2042 = vadd.f32 %v1999, %v2041
      %2043 = vdwg.mxu0
      %2044 = vmatprep.subr.bf16.mxu0 %v1449
      %2045 = vmatpush1.bf16.msra.mxu0 %v1448
      %2046 = vmatprep.subr.bf16.mxu0 %v1457
      %2047 = vmatpush1.bf16.msra.mxu0 %v1456
      %2048 = vmatprep.subr.bf16.mxu0 %v1465
      %2049 = vmatpush1.bf16.msra.mxu0 %v1464
      %2050 = vmatprep.subr.bf16.mxu0 %v1473
      %2051 = vmatpush1.bf16.msra.mxu0 %v1472
      %2052 = vmatprep.subr.bf16.mxu0 %v1481
      %2053 = vmatpush1.bf16.msra.mxu0 %v1480
      %2054 = vmatprep.subr.bf16.mxu0 %v1489
      %2055 = vmatpush1.bf16.msra.mxu0 %v1488
      %2056 = vmatprep.subr.bf16.mxu0 %v1497
      %2057 = vmatpush1.bf16.msra.mxu0 %v1496
      %2058 = vmatprep.subr.bf16.mxu0 %v1505
      %2059 = vmatpush1.bf16.msra.mxu0 %v1504
      %2060 = vmatprep.subr.bf16.mxu0 %v1513
      %2061 = vmatpush1.bf16.msra.mxu0 %v1512
      %2062 = vmatprep.subr.bf16.mxu0 %v1521
      %2063 = vmatpush1.bf16.msra.mxu0 %v1520
      %2064 = vmatprep.subr.bf16.mxu0 %v1529
      %2065 = vmatpush1.bf16.msra.mxu0 %v1528
      %2066 = vmatprep.subr.bf16.mxu0 %v1537
      %2067 = vmatpush1.bf16.msra.mxu0 %v1536
      %2068 = vmatprep.subr.bf16.mxu0 %v1545
      %2069 = vmatpush1.bf16.msra.mxu0 %v1544
      %2070 = vmatprep.subr.bf16.mxu0 %v1553
      %2071 = vmatpush1.bf16.msra.mxu0 %v1552
      %2072 = vmatprep.subr.bf16.mxu0 %v1561
      %2073 = vmatpush1.bf16.msra.mxu0 %v1560
      %2074 = vmatprep.subr.bf16.mxu0 %v1569
      %2075 = vmatpush1.bf16.msra.mxu0 %v1568
      %2076 = vmatprep.mubr.bf16.mxu0 %v671
      %2077 = vmatmul.mubr.bf16.gmra.mrb[0].mxu0 %v670
      %v2078 = vpop.f32.mrb[0].mxu0
      %v2079 = vadd.f32 %v651, %v2078
      %v2080 = vpop.f32.mrb[0].mxu0
      %v2081 = vadd.f32 %v651, %v2080
      %v2082 = vpop.f32.mrb[0].mxu0
      %v2083 = vadd.f32 %v656, %v2082
      %v2084 = vpop.f32.mrb[0].mxu0
      %v2085 = vadd.f32 %v656, %v2084
      %2086 = vdwg.mxu0
      %2087 = vmatprep.subr.bf16.mxu0 %v1577
      %2088 = vmatpush1.bf16.msra.mxu0 %v1576
      %2089 = vmatprep.subr.bf16.mxu0 %v1585
      %2090 = vmatpush1.bf16.msra.mxu0 %v1584
      %2091 = vmatprep.subr.bf16.mxu0 %v1593
      %2092 = vmatpush1.bf16.msra.mxu0 %v1592
      %2093 = vmatprep.subr.bf16.mxu0 %v1601
      %2094 = vmatpush1.bf16.msra.mxu0 %v1600
      %2095 = vmatprep.subr.bf16.mxu0 %v1609
      %2096 = vmatpush1.bf16.msra.mxu0 %v1608
      %2097 = vmatprep.subr.bf16.mxu0 %v1617
      %2098 = vmatpush1.bf16.msra.mxu0 %v1616
      %2099 = vmatprep.subr.bf16.mxu0 %v1625
      %2100 = vmatpush1.bf16.msra.mxu0 %v1624
      %2101 = vmatprep.subr.bf16.mxu0 %v1633
      %2102 = vmatpush1.bf16.msra.mxu0 %v1632
      %2103 = vmatprep.subr.bf16.mxu0 %v1641
      %2104 = vmatpush1.bf16.msra.mxu0 %v1640
      %2105 = vmatprep.subr.bf16.mxu0 %v1649
      %2106 = vmatpush1.bf16.msra.mxu0 %v1648
      %2107 = vmatprep.subr.bf16.mxu0 %v1657
      %2108 = vmatpush1.bf16.msra.mxu0 %v1656
      %2109 = vmatprep.subr.bf16.mxu0 %v1665
      %2110 = vmatpush1.bf16.msra.mxu0 %v1664
      %2111 = vmatprep.subr.bf16.mxu0 %v1673
      %2112 = vmatpush1.bf16.msra.mxu0 %v1672
      %2113 = vmatprep.subr.bf16.mxu0 %v1681
      %2114 = vmatpush1.bf16.msra.mxu0 %v1680
      %2115 = vmatprep.subr.bf16.mxu0 %v1689
      %2116 = vmatpush1.bf16.msra.mxu0 %v1688
      %2117 = vmatprep.subr.bf16.mxu0 %v1697
      %2118 = vmatpush1.bf16.msra.mxu0 %v1696
      %2119 = vmatprep.mubr.bf16.mxu0 %v673
      %2120 = vmatmul.mubr.bf16.gmra.mrb[0].mxu0 %v672
      %v2121 = vpop.f32.mrb[0].mxu0
      %v2122 = vadd.f32 %v2079, %v2121
      %v2123 = vpop.f32.mrb[0].mxu0
      %v2124 = vadd.f32 %v2081, %v2123
      %v2125 = vpop.f32.mrb[0].mxu0
      %v2126 = vadd.f32 %v2083, %v2125
      %v2127 = vpop.f32.mrb[0].mxu0
      %v2128 = vadd.f32 %v2085, %v2127
      %2129 = vdwg.mxu0
      %2130 = vmatprep.subr.bf16.mxu0 %v1451
      %2131 = vmatpush1.bf16.msra.mxu0 %v1450
      %2132 = vmatprep.subr.bf16.mxu0 %v1459
      %2133 = vmatpush1.bf16.msra.mxu0 %v1458
      %2134 = vmatprep.subr.bf16.mxu0 %v1467
      %2135 = vmatpush1.bf16.msra.mxu0 %v1466
      %2136 = vmatprep.subr.bf16.mxu0 %v1475
      %2137 = vmatpush1.bf16.msra.mxu0 %v1474
      %2138 = vmatprep.subr.bf16.mxu0 %v1483
      %2139 = vmatpush1.bf16.msra.mxu0 %v1482
      %2140 = vmatprep.subr.bf16.mxu0 %v1491
      %2141 = vmatpush1.bf16.msra.mxu0 %v1490
      %2142 = vmatprep.subr.bf16.mxu0 %v1499
      %2143 = vmatpush1.bf16.msra.mxu0 %v1498
      %2144 = vmatprep.subr.bf16.mxu0 %v1507
      %2145 = vmatpush1.bf16.msra.mxu0 %v1506
      %2146 = vmatprep.subr.bf16.mxu0 %v1515
      %2147 = vmatpush1.bf16.msra.mxu0 %v1514
      %2148 = vmatprep.subr.bf16.mxu0 %v1523
      %2149 = vmatpush1.bf16.msra.mxu0 %v1522
      %2150 = vmatprep.subr.bf16.mxu0 %v1531
      %2151 = vmatpush1.bf16.msra.mxu0 %v1530
      %2152 = vmatprep.subr.bf16.mxu0 %v1539
      %2153 = vmatpush1.bf16.msra.mxu0 %v1538
      %2154 = vmatprep.subr.bf16.mxu0 %v1547
      %2155 = vmatpush1.bf16.msra.mxu0 %v1546
      %2156 = vmatprep.subr.bf16.mxu0 %v1555
      %2157 = vmatpush1.bf16.msra.mxu0 %v1554
      %2158 = vmatprep.subr.bf16.mxu0 %v1563
      %2159 = vmatpush1.bf16.msra.mxu0 %v1562
      %2160 = vmatprep.subr.bf16.mxu0 %v1571
      %2161 = vmatpush1.bf16.msra.mxu0 %v1570
      %2162 = vmatprep.mubr.bf16.mxu0 %v671
      %2163 = vmatmul.mubr.bf16.gmra.mrb[0].mxu0 %v670
      %v2164 = vpop.f32.mrb[0].mxu0
      %v2165 = vadd.f32 %v651, %v2164
      %v2166 = vpop.f32.mrb[0].mxu0
      %v2167 = vadd.f32 %v651, %v2166
      %v2168 = vpop.f32.mrb[0].mxu0
      %v2169 = vadd.f32 %v656, %v2168
      %v2170 = vpop.f32.mrb[0].mxu0
      %v2171 = vadd.f32 %v656, %v2170
      %2172 = vdwg.mxu0
      %2173 = vmatprep.subr.bf16.mxu0 %v1579
      %2174 = vmatpush1.bf16.msra.mxu0 %v1578
      %2175 = vmatprep.subr.bf16.mxu0 %v1587
      %2176 = vmatpush1.bf16.msra.mxu0 %v1586
      %2177 = vmatprep.subr.bf16.mxu0 %v1595
      %2178 = vmatpush1.bf16.msra.mxu0 %v1594
      %2179 = vmatprep.subr.bf16.mxu0 %v1603
      %2180 = vmatpush1.bf16.msra.mxu0 %v1602
      %2181 = vmatprep.subr.bf16.mxu0 %v1611
      %2182 = vmatpush1.bf16.msra.mxu0 %v1610
      %2183 = vmatprep.subr.bf16.mxu0 %v1619
      %2184 = vmatpush1.bf16.msra.mxu0 %v1618
      %2185 = vmatprep.subr.bf16.mxu0 %v1627
      %2186 = vmatpush1.bf16.msra.mxu0 %v1626
      %2187 = vmatprep.subr.bf16.mxu0 %v1635
      %2188 = vmatpush1.bf16.msra.mxu0 %v1634
      %2189 = vmatprep.subr.bf16.mxu0 %v1643
      %2190 = vmatpush1.bf16.msra.mxu0 %v1642
      %2191 = vmatprep.subr.bf16.mxu0 %v1651
      %2192 = vmatpush1.bf16.msra.mxu0 %v1650
      %2193 = vmatprep.subr.bf16.mxu0 %v1659
      %2194 = vmatpush1.bf16.msra.mxu0 %v1658
      %2195 = vmatprep.subr.bf16.mxu0 %v1667
      %2196 = vmatpush1.bf16.msra.mxu0 %v1666
      %2197 = vmatprep.subr.bf16.mxu0 %v1675
      %2198 = vmatpush1.bf16.msra.mxu0 %v1674
      %2199 = vmatprep.subr.bf16.mxu0 %v1683
      %2200 = vmatpush1.bf16.msra.mxu0 %v1682
      %2201 = vmatprep.subr.bf16.mxu0 %v1691
      %2202 = vmatpush1.bf16.msra.mxu0 %v1690
      %2203 = vmatprep.subr.bf16.mxu0 %v1699
      %2204 = vmatpush1.bf16.msra.mxu0 %v1698
      %2205 = vmatprep.mubr.bf16.mxu0 %v673
      %2206 = vmatmul.mubr.bf16.gmra.mrb[0].mxu0 %v672
      %v2207 = vpop.f32.mrb[0].mxu0
      %v2208 = vadd.f32 %v2165, %v2207
      %v2209 = vpop.f32.mrb[0].mxu0
      %v2210 = vadd.f32 %v2167, %v2209
      %v2211 = vpop.f32.mrb[0].mxu0
      %v2212 = vadd.f32 %v2169, %v2211
      %v2213 = vpop.f32.mrb[0].mxu0
      %v2214 = vadd.f32 %v2171, %v2213
      %2215 = vdwg.mxu0
      %2216 = vmatprep.subr.bf16.mxu0 %v1453
      %2217 = vmatpush1.bf16.msra.mxu0 %v1452
      %2218 = vmatprep.subr.bf16.mxu0 %v1461
      %2219 = vmatpush1.bf16.msra.mxu0 %v1460
      %2220 = vmatprep.subr.bf16.mxu0 %v1469
      %2221 = vmatpush1.bf16.msra.mxu0 %v1468
      %2222 = vmatprep.subr.bf16.mxu0 %v1477
      %2223 = vmatpush1.bf16.msra.mxu0 %v1476
      %2224 = vmatprep.subr.bf16.mxu0 %v1485
      %2225 = vmatpush1.bf16.msra.mxu0 %v1484
      %2226 = vmatprep.subr.bf16.mxu0 %v1493
      %2227 = vmatpush1.bf16.msra.mxu0 %v1492
      %2228 = vmatprep.subr.bf16.mxu0 %v1501
      %2229 = vmatpush1.bf16.msra.mxu0 %v1500
      %2230 = vmatprep.subr.bf16.mxu0 %v1509
      %2231 = vmatpush1.bf16.msra.mxu0 %v1508
      %2232 = vmatprep.subr.bf16.mxu0 %v1517
      %2233 = vmatpush1.bf16.msra.mxu0 %v1516
      %2234 = vmatprep.subr.bf16.mxu0 %v1525
      %2235 = vmatpush1.bf16.msra.mxu0 %v1524
      %2236 = vmatprep.subr.bf16.mxu0 %v1533
      %2237 = vmatpush1.bf16.msra.mxu0 %v1532
      %2238 = vmatprep.subr.bf16.mxu0 %v1541
      %2239 = vmatpush1.bf16.msra.mxu0 %v1540
      %2240 = vmatprep.subr.bf16.mxu0 %v1549
      %2241 = vmatpush1.bf16.msra.mxu0 %v1548
      %2242 = vmatprep.subr.bf16.mxu0 %v1557
      %2243 = vmatpush1.bf16.msra.mxu0 %v1556
      %2244 = vmatprep.subr.bf16.mxu0 %v1565
      %2245 = vmatpush1.bf16.msra.mxu0 %v1564
      %2246 = vmatprep.subr.bf16.mxu0 %v1573
      %2247 = vmatpush1.bf16.msra.mxu0 %v1572
      %2248 = vmatprep.mubr.bf16.mxu0 %v671
      %2249 = vmatmul.mubr.bf16.gmra.mrb[0].mxu0 %v670
      %v2250 = vpop.f32.mrb[0].mxu0
      %v2251 = vadd.f32 %v651, %v2250
      %v2252 = vpop.f32.mrb[0].mxu0
      %v2253 = vadd.f32 %v651, %v2252
      %v2254 = vpop.f32.mrb[0].mxu0
      %v2255 = vadd.f32 %v656, %v2254
      %v2256 = vpop.f32.mrb[0].mxu0
      %v2257 = vadd.f32 %v656, %v2256
      %2258 = vdwg.mxu0
      %2259 = vmatprep.subr.bf16.mxu0 %v1581
      %2260 = vmatpush1.bf16.msra.mxu0 %v1580
      %2261 = vmatprep.subr.bf16.mxu0 %v1589
      %2262 = vmatpush1.bf16.msra.mxu0 %v1588
      %2263 = vmatprep.subr.bf16.mxu0 %v1597
      %2264 = vmatpush1.bf16.msra.mxu0 %v1596
      %2265 = vmatprep.subr.bf16.mxu0 %v1605
      %2266 = vmatpush1.bf16.msra.mxu0 %v1604
      %2267 = vmatprep.subr.bf16.mxu0 %v1613
      %2268 = vmatpush1.bf16.msra.mxu0 %v1612
      %2269 = vmatprep.subr.bf16.mxu0 %v1621
      %2270 = vmatpush1.bf16.msra.mxu0 %v1620
      %2271 = vmatprep.subr.bf16.mxu0 %v1629
      %2272 = vmatpush1.bf16.msra.mxu0 %v1628
      %2273 = vmatprep.subr.bf16.mxu0 %v1637
      %2274 = vmatpush1.bf16.msra.mxu0 %v1636
      %2275 = vmatprep.subr.bf16.mxu0 %v1645
      %2276 = vmatpush1.bf16.msra.mxu0 %v1644
      %2277 = vmatprep.subr.bf16.mxu0 %v1653
      %2278 = vmatpush1.bf16.msra.mxu0 %v1652
      %2279 = vmatprep.subr.bf16.mxu0 %v1661
      %2280 = vmatpush1.bf16.msra.mxu0 %v1660
      %2281 = vmatprep.subr.bf16.mxu0 %v1669
      %2282 = vmatpush1.bf16.msra.mxu0 %v1668
      %2283 = vmatprep.subr.bf16.mxu0 %v1677
      %2284 = vmatpush1.bf16.msra.mxu0 %v1676
      %2285 = vmatprep.subr.bf16.mxu0 %v1685
      %2286 = vmatpush1.bf16.msra.mxu0 %v1684
      %2287 = vmatprep.subr.bf16.mxu0 %v1693
      %2288 = vmatpush1.bf16.msra.mxu0 %v1692
      %2289 = vmatprep.subr.bf16.mxu0 %v1701
      %2290 = vmatpush1.bf16.msra.mxu0 %v1700
      %2291 = vmatprep.mubr.bf16.mxu0 %v673
      %2292 = vmatmul.mubr.bf16.gmra.mrb[0].mxu0 %v672
      %v2293 = vpop.f32.mrb[0].mxu0
      %v2294 = vadd.f32 %v2251, %v2293
      %v2295 = vpop.f32.mrb[0].mxu0
      %v2296 = vadd.f32 %v2253, %v2295
      %v2297 = vpop.f32.mrb[0].mxu0
      %v2298 = vadd.f32 %v2255, %v2297
      %v2299 = vpop.f32.mrb[0].mxu0
      %v2300 = vadd.f32 %v2257, %v2299
      %2301 = vdwg.mxu0
      %vm2302 = vcmp.ge.f32.partialorder %v2036, 0.0
      %vm2303 = vcmp.ge.f32.partialorder %v2038, 0.0
      %vm2304 = vcmp.ge.f32.partialorder %v2122, 0.0
      %vm2305 = vcmp.ge.f32.partialorder %v2124, 0.0
      %vm2306 = vcmp.ge.f32.partialorder %v2208, 0.0
      %vm2307 = vcmp.ge.f32.partialorder %v2210, 0.0
      %vm2308 = vcmp.ge.f32.partialorder %v2294, 0.0
      %vm2309 = vcmp.ge.f32.partialorder %v2296, 0.0
      %vm2310 = vcmp.ge.f32.partialorder %v2040, 0.0
      %vm2311 = vcmp.ge.f32.partialorder %v2042, 0.0
      %vm2312 = vcmp.ge.f32.partialorder %v2126, 0.0
      %vm2313 = vcmp.ge.f32.partialorder %v2128, 0.0
      %vm2314 = vcmp.ge.f32.partialorder %v2212, 0.0
      %vm2315 = vcmp.ge.f32.partialorder %v2214, 0.0
      %vm2316 = vcmp.ge.f32.partialorder %v2298, 0.0
      %vm2317 = vcmp.ge.f32.partialorder %v2300, 0.0
      %v2318 = vmul.f32 %v2036, 0.2
      %v2319 = vmul.f32 %v2038, 0.2
      %v2320 = vmul.f32 %v2122, 0.2
      %v2321 = vmul.f32 %v2124, 0.2
      %v2322 = vmul.f32 %v2208, 0.2
      %v2323 = vmul.f32 %v2210, 0.2
      %v2324 = vmul.f32 %v2294, 0.2
      %v2325 = vmul.f32 %v2296, 0.2
      %v2326 = vmul.f32 %v2040, 0.2
      %v2327 = vmul.f32 %v2042, 0.2
      %v2328 = vmul.f32 %v2126, 0.2
      %v2329 = vmul.f32 %v2128, 0.2
      %v2330 = vmul.f32 %v2212, 0.2
      %v2331 = vmul.f32 %v2214, 0.2
      %v2332 = vmul.f32 %v2298, 0.2
      %v2333 = vmul.f32 %v2300, 0.2
      %v2334 = vsel %vm2302, %v2036, %v2318
      %v2335 = vsel %vm2303, %v2038, %v2319
      %v2336 = vsel %vm2304, %v2122, %v2320
      %v2337 = vsel %vm2305, %v2124, %v2321
      %v2338 = vsel %vm2306, %v2208, %v2322
      %v2339 = vsel %vm2307, %v2210, %v2323
      %v2340 = vsel %vm2308, %v2294, %v2324
      %v2341 = vsel %vm2309, %v2296, %v2325
      %v2342 = vsel %vm2310, %v2040, %v2326
      %v2343 = vsel %vm2311, %v2042, %v2327
      %v2344 = vsel %vm2312, %v2126, %v2328
      %v2345 = vsel %vm2313, %v2128, %v2329
      %v2346 = vsel %vm2314, %v2212, %v2330
      %v2347 = vsel %vm2315, %v2214, %v2331
      %v2348 = vsel %vm2316, %v2298, %v2332
      %v2349 = vsel %vm2317, %v2300, %v2333
      %v2350 = vld [vmem:[%s3] sm:$0xff]
      %v2352 = vlaneseq
      %v2353 = vshrl.u32 %v2352, 7
      %v2354 = vsub.s32 0, %v2353
      %v2355 = vrot.slane %v2350, %v2354
      %v2356 = vlaneseq
      %v2357 = vshrl.u32 %v2356, 7
      %v2358 = vsub.s32 1, %v2357
      %v2359 = vrot.slane %v2350, %v2358
      %v2360 = vlaneseq
      %v2361 = vshrl.u32 %v2360, 7
      %v2362 = vsub.s32 2, %v2361
      %v2363 = vrot.slane %v2350, %v2362
      %v2364 = vlaneseq
      %v2365 = vshrl.u32 %v2364, 7
      %v2366 = vsub.s32 3, %v2365
      %v2367 = vrot.slane %v2350, %v2366
      %v2368 = vlaneseq
      %v2369 = vshrl.u32 %v2368, 7
      %v2370 = vsub.s32 4, %v2369
      %v2371 = vrot.slane %v2350, %v2370
      %v2372 = vlaneseq
      %v2373 = vshrl.u32 %v2372, 7
      %v2374 = vsub.s32 5, %v2373
      %v2375 = vrot.slane %v2350, %v2374
      %v2376 = vlaneseq
      %v2377 = vshrl.u32 %v2376, 7
      %v2378 = vsub.s32 6, %v2377
      %v2379 = vrot.slane %v2350, %v2378
      %v2380 = vlaneseq
      %v2381 = vshrl.u32 %v2380, 7
      %v2382 = vsub.s32 7, %v2381
      %v2383 = vrot.slane %v2350, %v2382
      %v2392 = vmul.f32 %v2334, %v2355
      %v2393 = vmul.f32 %v2335, %v2359
      %v2394 = vmul.f32 %v2336, %v2363
      %v2395 = vmul.f32 %v2337, %v2367
      %v2396 = vmul.f32 %v2338, %v2371
      %v2397 = vmul.f32 %v2339, %v2375
      %v2398 = vmul.f32 %v2340, %v2379
      %v2399 = vmul.f32 %v2341, %v2383
      %v2400 = vmul.f32 %v2342, %v2355
      %v2401 = vmul.f32 %v2343, %v2359
      %v2402 = vmul.f32 %v2344, %v2363
      %v2403 = vmul.f32 %v2345, %v2367
      %v2404 = vmul.f32 %v2346, %v2371
      %v2405 = vmul.f32 %v2347, %v2375
      %v2406 = vmul.f32 %v2348, %v2379
      %v2407 = vmul.f32 %v2349, %v2383
      %v2408 = vpack.c.bf16 %v2400, %v2392
      %v2409 = vpack.c.bf16 %v2401, %v2393
      %v2410 = vpack.c.bf16 %v2402, %v2394
      %v2411 = vpack.c.bf16 %v2403, %v2395
      %v2412 = vpack.c.bf16 %v2404, %v2396
      %v2413 = vpack.c.bf16 %v2405, %v2397
      %v2414 = vpack.c.bf16 %v2406, %v2398
      %v2415 = vpack.c.bf16 %v2407, %v2399
      %2416 = vst [vmem:[#allocation2] sm:$0xff] %v2408
      %2417 = vst [vmem:[#allocation2 + $0x8] sm:$0xff] %v2409
      %2418 = vst [vmem:[#allocation2 + $0x10] sm:$0xff] %v2410
      %2419 = vst [vmem:[#allocation2 + $0x18] sm:$0xff] %v2411
      %2420 = vst [vmem:[#allocation2 + $0x20] sm:$0xff] %v2412
      %2421 = vst [vmem:[#allocation2 + $0x28] sm:$0xff] %v2413
      %2422 = vst [vmem:[#allocation2 + $0x30] sm:$0xff] %v2414
      %2423 = vst [vmem:[#allocation2 + $0x38] sm:$0xff] %v2415
      %v2424 = vld [vmem:[%s4] sm:$0xf]
      %v2425 = vld [vmem:[%s4 + $0x4] sm:$0xf]
      %v2426 = vld [vmem:[%s4 + $0x8] sm:$0xf]
      %v2427 = vld [vmem:[%s4 + $0xc] sm:$0xf]
      %v2428 = vld [vmem:[#allocation2] sm:$0xff]
      %v2429 = vld [vmem:[#allocation2 + $0x8] sm:$0xff]
      %v2430 = vld [vmem:[#allocation2 + $0x10] sm:$0xff]
      %v2431 = vld [vmem:[#allocation2 + $0x18] sm:$0xff]
      %v2432 = vld [vmem:[#allocation2 + $0x20] sm:$0xff]
      %v2433 = vld [vmem:[#allocation2 + $0x28] sm:$0xff]
      %v2434 = vld [vmem:[#allocation2 + $0x30] sm:$0xff]
      %v2435 = vld [vmem:[#allocation2 + $0x38] sm:$0xff]
      %s2436 = scalar_lea.vmem %s4, 16
      %v2437 = vld [vmem:[%s2436] sm:$0xf]
      %v2438 = vld [vmem:[%s2436 + $0x4] sm:$0xf]
      %v2439 = vld [vmem:[%s2436 + $0x8] sm:$0xf]
      %v2440 = vld [vmem:[%s2436 + $0xc] sm:$0xf]
      %v2445 = vunpack.c.l.b16 %v2437
      %v2446 = vunpack.c.l.b16 %v2438
      %v2447 = vunpack.c.l.b16 %v2439
      %v2448 = vunpack.c.l.b16 %v2440
      %v2449 = vpack.c.b16 %v2446, %v2445
      %v2450 = vpack.c.b16 %v2448, %v2447
      %2461 = vrot.lane.b32.xlu0 %v2428, 127
      %v2462 = vpop.permute.xlu0 %2461
      %2463 = vrot.lane.b32.xlu0 %v2429, 127
      %v2464 = vpop.permute.xlu0 %2463
      %2465 = vrot.lane.b32.xlu0 %v2430, 127
      %v2466 = vpop.permute.xlu0 %2465
      %2467 = vrot.lane.b32.xlu0 %v2431, 127
      %v2468 = vpop.permute.xlu0 %2467
      %2469 = vrot.lane.b32.xlu0 %v2432, 127
      %v2470 = vpop.permute.xlu0 %2469
      %2471 = vrot.lane.b32.xlu0 %v2433, 127
      %v2472 = vpop.permute.xlu0 %2471
      %2473 = vrot.lane.b32.xlu0 %v2434, 127
      %v2474 = vpop.permute.xlu0 %2473
      %2475 = vrot.lane.b32.xlu0 %v2435, 127
      %v2476 = vpop.permute.xlu0 %2475
      %2485 = vmatprep.subr.bf16.mxu0 0
      %2486 = vmatpush1.bf16.msra.mxu0 %v2462
      %2487 = vmatprep.subr.bf16.mxu0 0
      %2488 = vmatpush1.bf16.msra.mxu0 %v2464
      %2489 = vmatprep.subr.bf16.mxu0 0
      %2490 = vmatpush1.bf16.msra.mxu0 %v2466
      %2491 = vmatprep.subr.bf16.mxu0 0
      %2492 = vmatpush1.bf16.msra.mxu0 %v2468
      %2493 = vmatprep.subr.bf16.mxu0 0
      %2494 = vmatpush1.bf16.msra.mxu0 %v2470
      %2495 = vmatprep.subr.bf16.mxu0 0
      %2496 = vmatpush1.bf16.msra.mxu0 %v2472
      %2497 = vmatprep.subr.bf16.mxu0 0
      %2498 = vmatpush1.bf16.msra.mxu0 %v2474
      %2499 = vmatprep.subr.bf16.mxu0 0
      %2500 = vmatpush1.bf16.msra.mxu0 %v2476
      %2501 = vmatprep.subr.bf16.mxu0 0
      %2502 = vmatpush1.bf16.msra.mxu0 0
      %2503 = vmatprep.subr.bf16.mxu0 0
      %2504 = vmatpush1.bf16.msra.mxu0 0
      %2505 = vmatprep.subr.bf16.mxu0 0
      %2506 = vmatpush1.bf16.msra.mxu0 0
      %2507 = vmatprep.subr.bf16.mxu0 0
      %2508 = vmatpush1.bf16.msra.mxu0 0
      %2509 = vmatprep.subr.bf16.mxu0 0
      %2510 = vmatpush1.bf16.msra.mxu0 0
      %2511 = vmatprep.subr.bf16.mxu0 0
      %2512 = vmatpush1.bf16.msra.mxu0 0
      %2513 = vmatprep.subr.bf16.mxu0 0
      %2514 = vmatpush1.bf16.msra.mxu0 0
      %2515 = vmatprep.subr.bf16.mxu0 0
      %2516 = vmatpush1.bf16.msra.mxu0 0
      %2517 = vmatprep.mubr.bf16.mxu0 0
      %2518 = vmatmul.mubr.bf16.gmra.mrb[0].mxu0 %v2449
      %v2519 = vpop.f32.mrb[0].mxu0
      %v2520 = vadd.f32 0.0, %v2519
      %v2521 = vpop.f32.mrb[0].mxu0
      %v2522 = vpop.f32.mrb[0].mxu0
      %v2523 = vadd.f32 0.0, %v2522
      %v2524 = vpop.f32.mrb[0].mxu0
      %2525 = vmatprep.mubr.bf16.mxu0 0
      %2526 = vmatmul.mubr.bf16.gmra.mrb[0].mxu0 %v2450
      %v2527 = vpop.f32.mrb[0].mxu0
      %v2528 = vadd.f32 0.0, %v2527
      %v2529 = vpop.f32.mrb[0].mxu0
      %v2530 = vpop.f32.mrb[0].mxu0
      %v2531 = vadd.f32 0.0, %v2530
      %v2532 = vpop.f32.mrb[0].mxu0
      %2533 = vdwg.mxu0
      %v2538 = vunpack.c.l.b16 %v2424
      %v2539 = vunpack.c.l.b16 %v2425
      %v2540 = vunpack.c.l.b16 %v2426
      %v2541 = vunpack.c.l.b16 %v2427
      %v2542 = vpack.c.b16 %v2539, %v2538
      %v2543 = vpack.c.b16 %v2541, %v2540
      %2546 = vmatprep.subr.bf16.mxu0 0
      %2547 = vmatpush1.bf16.msra.mxu0 %v2428
      %2548 = vmatprep.subr.bf16.mxu0 0
      %2549 = vmatpush1.bf16.msra.mxu0 %v2429
      %2550 = vmatprep.subr.bf16.mxu0 0
      %2551 = vmatpush1.bf16.msra.mxu0 %v2430
      %2552 = vmatprep.subr.bf16.mxu0 0
      %2553 = vmatpush1.bf16.msra.mxu0 %v2431
      %2554 = vmatprep.subr.bf16.mxu0 0
      %2555 = vmatpush1.bf16.msra.mxu0 %v2432
      %2556 = vmatprep.subr.bf16.mxu0 0
      %2557 = vmatpush1.bf16.msra.mxu0 %v2433
      %2558 = vmatprep.subr.bf16.mxu0 0
      %2559 = vmatpush1.bf16.msra.mxu0 %v2434
      %2560 = vmatprep.subr.bf16.mxu0 0
      %2561 = vmatpush1.bf16.msra.mxu0 %v2435
      %2562 = vmatprep.subr.bf16.mxu0 0
      %2563 = vmatpush1.bf16.msra.mxu0 0
      %2564 = vmatprep.subr.bf16.mxu0 0
      %2565 = vmatpush1.bf16.msra.mxu0 0
      %2566 = vmatprep.subr.bf16.mxu0 0
      %2567 = vmatpush1.bf16.msra.mxu0 0
      %2568 = vmatprep.subr.bf16.mxu0 0
      %2569 = vmatpush1.bf16.msra.mxu0 0
      %2570 = vmatprep.subr.bf16.mxu0 0
      %2571 = vmatpush1.bf16.msra.mxu0 0
      %2572 = vmatprep.subr.bf16.mxu0 0
      %2573 = vmatpush1.bf16.msra.mxu0 0
      %2574 = vmatprep.subr.bf16.mxu0 0
      %2575 = vmatpush1.bf16.msra.mxu0 0
      %2576 = vmatprep.subr.bf16.mxu0 0
      %2577 = vmatpush1.bf16.msra.mxu0 0
      %2578 = vmatprep.mubr.bf16.mxu0 0
      %2579 = vmatmul.mubr.bf16.gmra.mrb[0].mxu0 %v2542
      %v2580 = vpop.f32.mrb[0].mxu0
      %v2581 = vadd.f32 %v2520, %v2580
      %v2582 = vpop.f32.mrb[0].mxu0
      %v2583 = vpop.f32.mrb[0].mxu0
      %v2584 = vadd.f32 %v2523, %v2583
      %v2585 = vpop.f32.mrb[0].mxu0
      %2586 = vmatprep.mubr.bf16.mxu0 0
      %2587 = vmatmul.mubr.bf16.gmra.mrb[0].mxu0 %v2543
      %v2588 = vpop.f32.mrb[0].mxu0
      %v2589 = vadd.f32 %v2528, %v2588
      %v2590 = vpop.f32.mrb[0].mxu0
      %v2591 = vpop.f32.mrb[0].mxu0
      %v2592 = vadd.f32 %v2531, %v2591
      %v2593 = vpop.f32.mrb[0].mxu0
      %2594 = vdwg.mxu0
      %s2595 = scalar_lea.vmem %s4, 32
      %v2596 = vld [vmem:[%s2595] sm:$0xf]
      %v2597 = vld [vmem:[%s2595 + $0x4] sm:$0xf]
      %v2598 = vld [vmem:[%s2595 + $0x8] sm:$0xf]
      %v2599 = vld [vmem:[%s2595 + $0xc] sm:$0xf]
      %v2604 = vunpack.c.l.b16 %v2596
      %v2605 = vunpack.c.l.b16 %v2597
      %v2606 = vunpack.c.l.b16 %v2598
      %v2607 = vunpack.c.l.b16 %v2599
      %v2608 = vpack.c.b16 %v2605, %v2604
      %v2609 = vpack.c.b16 %v2607, %v2606
      %2612 = vrot.lane.b32.xlu0 %v2428, 123
      %v2613 = vpop.permute.xlu0 %2612
      %2614 = vrot.lane.b32.xlu0 %v2429, 123
      %v2615 = vpop.permute.xlu0 %2614
      %2616 = vrot.lane.b32.xlu0 %v2430, 123
      %v2617 = vpop.permute.xlu0 %2616
      %2618 = vrot.lane.b32.xlu0 %v2431, 123
      %v2619 = vpop.permute.xlu0 %2618
      %2620 = vrot.lane.b32.xlu0 %v2432, 123
      %v2621 = vpop.permute.xlu0 %2620
      %2622 = vrot.lane.b32.xlu0 %v2433, 123
      %v2623 = vpop.permute.xlu0 %2622
      %2624 = vrot.lane.b32.xlu0 %v2434, 123
      %v2625 = vpop.permute.xlu0 %2624
      %2626 = vrot.lane.b32.xlu0 %v2435, 123
      %v2627 = vpop.permute.xlu0 %2626
      %2636 = vmatprep.subr.bf16.mxu0 0
      %2637 = vmatpush1.bf16.msra.mxu0 %v2613
      %2638 = vmatprep.subr.bf16.mxu0 0
      %2639 = vmatpush1.bf16.msra.mxu0 %v2615
      %2640 = vmatprep.subr.bf16.mxu0 0
      %2641 = vmatpush1.bf16.msra.mxu0 %v2617
      %2642 = vmatprep.subr.bf16.mxu0 0
      %2643 = vmatpush1.bf16.msra.mxu0 %v2619
      %2644 = vmatprep.subr.bf16.mxu0 0
      %2645 = vmatpush1.bf16.msra.mxu0 %v2621
      %2646 = vmatprep.subr.bf16.mxu0 0
      %2647 = vmatpush1.bf16.msra.mxu0 %v2623
      %2648 = vmatprep.subr.bf16.mxu0 0
      %2649 = vmatpush1.bf16.msra.mxu0 %v2625
      %2650 = vmatprep.subr.bf16.mxu0 0
      %2651 = vmatpush1.bf16.msra.mxu0 %v2627
      %2652 = vmatprep.subr.bf16.mxu0 0
      %2653 = vmatpush1.bf16.msra.mxu0 0
      %2654 = vmatprep.subr.bf16.mxu0 0
      %2655 = vmatpush1.bf16.msra.mxu0 0
      %2656 = vmatprep.subr.bf16.mxu0 0
      %2657 = vmatpush1.bf16.msra.mxu0 0
      %2658 = vmatprep.subr.bf16.mxu0 0
      %2659 = vmatpush1.bf16.msra.mxu0 0
      %2660 = vmatprep.subr.bf16.mxu0 0
      %2661 = vmatpush1.bf16.msra.mxu0 0
      %2662 = vmatprep.subr.bf16.mxu0 0
      %2663 = vmatpush1.bf16.msra.mxu0 0
      %2664 = vmatprep.subr.bf16.mxu0 0
      %2665 = vmatpush1.bf16.msra.mxu0 0
      %2666 = vmatprep.subr.bf16.mxu0 0
      %2667 = vmatpush1.bf16.msra.mxu0 0
      %2668 = vmatprep.mubr.bf16.mxu0 0
      %2669 = vmatmul.mubr.bf16.gmra.mrb[0].mxu0 %v2608
      %v2670 = vpop.f32.mrb[0].mxu0
      %v2671 = vadd.f32 0.0, %v2670
      %v2672 = vpop.f32.mrb[0].mxu0
      %v2673 = vpop.f32.mrb[0].mxu0
      %v2674 = vadd.f32 0.0, %v2673
      %v2675 = vpop.f32.mrb[0].mxu0
      %2676 = vmatprep.mubr.bf16.mxu0 0
      %2677 = vmatmul.mubr.bf16.gmra.mrb[0].mxu0 %v2609
      %v2678 = vpop.f32.mrb[0].mxu0
      %v2679 = vadd.f32 0.0, %v2678
      %v2680 = vpop.f32.mrb[0].mxu0
      %v2681 = vpop.f32.mrb[0].mxu0
      %v2682 = vadd.f32 0.0, %v2681
      %v2683 = vpop.f32.mrb[0].mxu0
      %2684 = vdwg.mxu0
      %v2685 = vadd.f32 %v2581, %v2671
      %v2686 = vadd.f32 %v2584, %v2674
      %v2687 = vadd.f32 %v2589, %v2679
      %v2688 = vadd.f32 %v2592, %v2682
      %s2689 = scalar_lea.vmem %s4, 48
      %v2690 = vld [vmem:[%s2689] sm:$0xf]
      %v2691 = vld [vmem:[%s2689 + $0x4] sm:$0xf]
      %v2692 = vld [vmem:[%s2689 + $0x8] sm:$0xf]
      %v2693 = vld [vmem:[%s2689 + $0xc] sm:$0xf]
      %v2698 = vunpack.c.l.b16 %v2690
      %v2699 = vunpack.c.l.b16 %v2691
      %v2700 = vunpack.c.l.b16 %v2692
      %v2701 = vunpack.c.l.b16 %v2693
      %v2702 = vpack.c.b16 %v2699, %v2698
      %v2703 = vpack.c.b16 %v2701, %v2700
      %2706 = vrot.lane.b32.xlu0 %v2428, 122
      %v2707 = vpop.permute.xlu0 %2706
      %2708 = vrot.lane.b32.xlu0 %v2429, 122
      %v2709 = vpop.permute.xlu0 %2708
      %2710 = vrot.lane.b32.xlu0 %v2430, 122
      %v2711 = vpop.permute.xlu0 %2710
      %2712 = vrot.lane.b32.xlu0 %v2431, 122
      %v2713 = vpop.permute.xlu0 %2712
      %2714 = vrot.lane.b32.xlu0 %v2432, 122
      %v2715 = vpop.permute.xlu0 %2714
      %2716 = vrot.lane.b32.xlu0 %v2433, 122
      %v2717 = vpop.permute.xlu0 %2716
      %2718 = vrot.lane.b32.xlu0 %v2434, 122
      %v2719 = vpop.permute.xlu0 %2718
      %2720 = vrot.lane.b32.xlu0 %v2435, 122
      %v2721 = vpop.permute.xlu0 %2720
      %2730 = vmatprep.subr.bf16.mxu0 0
      %2731 = vmatpush1.bf16.msra.mxu0 %v2707
      %2732 = vmatprep.subr.bf16.mxu0 0
      %2733 = vmatpush1.bf16.msra.mxu0 %v2709
      %2734 = vmatprep.subr.bf16.mxu0 0
      %2735 = vmatpush1.bf16.msra.mxu0 %v2711
      %2736 = vmatprep.subr.bf16.mxu0 0
      %2737 = vmatpush1.bf16.msra.mxu0 %v2713
      %2738 = vmatprep.subr.bf16.mxu0 0
      %2739 = vmatpush1.bf16.msra.mxu0 %v2715
      %2740 = vmatprep.subr.bf16.mxu0 0
      %2741 = vmatpush1.bf16.msra.mxu0 %v2717
      %2742 = vmatprep.subr.bf16.mxu0 0
      %2743 = vmatpush1.bf16.msra.mxu0 %v2719
      %2744 = vmatprep.subr.bf16.mxu0 0
      %2745 = vmatpush1.bf16.msra.mxu0 %v2721
      %2746 = vmatprep.subr.bf16.mxu0 0
      %2747 = vmatpush1.bf16.msra.mxu0 0
      %2748 = vmatprep.subr.bf16.mxu0 0
      %2749 = vmatpush1.bf16.msra.mxu0 0
      %2750 = vmatprep.subr.bf16.mxu0 0
      %2751 = vmatpush1.bf16.msra.mxu0 0
      %2752 = vmatprep.subr.bf16.mxu0 0
      %2753 = vmatpush1.bf16.msra.mxu0 0
      %2754 = vmatprep.subr.bf16.mxu0 0
      %2755 = vmatpush1.bf16.msra.mxu0 0
      %2756 = vmatprep.subr.bf16.mxu0 0
      %2757 = vmatpush1.bf16.msra.mxu0 0
      %2758 = vmatprep.subr.bf16.mxu0 0
      %2759 = vmatpush1.bf16.msra.mxu0 0
      %2760 = vmatprep.subr.bf16.mxu0 0
      %2761 = vmatpush1.bf16.msra.mxu0 0
      %2762 = vmatprep.mubr.bf16.mxu0 0
      %2763 = vmatmul.mubr.bf16.gmra.mrb[0].mxu0 %v2702
      %v2764 = vpop.f32.mrb[0].mxu0
      %v2765 = vadd.f32 0.0, %v2764
      %v2766 = vpop.f32.mrb[0].mxu0
      %v2767 = vpop.f32.mrb[0].mxu0
      %v2768 = vadd.f32 0.0, %v2767
      %v2769 = vpop.f32.mrb[0].mxu0
      %2770 = vmatprep.mubr.bf16.mxu0 0
      %2771 = vmatmul.mubr.bf16.gmra.mrb[0].mxu0 %v2703
      %v2772 = vpop.f32.mrb[0].mxu0
      %v2773 = vadd.f32 0.0, %v2772
      %v2774 = vpop.f32.mrb[0].mxu0
      %v2775 = vpop.f32.mrb[0].mxu0
      %v2776 = vadd.f32 0.0, %v2775
      %v2777 = vpop.f32.mrb[0].mxu0
      %2778 = vdwg.mxu0
      %v2779 = vadd.f32 %v2685, %v2765
      %v2780 = vadd.f32 %v2686, %v2768
      %v2781 = vadd.f32 %v2687, %v2773
      %v2782 = vadd.f32 %v2688, %v2776
      %s2783 = scalar_lea.vmem %s4, 64
      %v2784 = vld [vmem:[%s2783] sm:$0xf]
      %v2785 = vld [vmem:[%s2783 + $0x4] sm:$0xf]
      %v2786 = vld [vmem:[%s2783 + $0x8] sm:$0xf]
      %v2787 = vld [vmem:[%s2783 + $0xc] sm:$0xf]
      %v2792 = vunpack.c.l.b16 %v2784
      %v2793 = vunpack.c.l.b16 %v2785
      %v2794 = vunpack.c.l.b16 %v2786
      %v2795 = vunpack.c.l.b16 %v2787
      %v2796 = vpack.c.b16 %v2793, %v2792
      %v2797 = vpack.c.b16 %v2795, %v2794
      %2800 = vrot.lane.b32.xlu0 %v2428, 103
      %v2801 = vpop.permute.xlu0 %2800
      %2802 = vrot.lane.b32.xlu0 %v2429, 103
      %v2803 = vpop.permute.xlu0 %2802
      %2804 = vrot.lane.b32.xlu0 %v2430, 103
      %v2805 = vpop.permute.xlu0 %2804
      %2806 = vrot.lane.b32.xlu0 %v2431, 103
      %v2807 = vpop.permute.xlu0 %2806
      %2808 = vrot.lane.b32.xlu0 %v2432, 103
      %v2809 = vpop.permute.xlu0 %2808
      %2810 = vrot.lane.b32.xlu0 %v2433, 103
      %v2811 = vpop.permute.xlu0 %2810
      %2812 = vrot.lane.b32.xlu0 %v2434, 103
      %v2813 = vpop.permute.xlu0 %2812
      %2814 = vrot.lane.b32.xlu0 %v2435, 103
      %v2815 = vpop.permute.xlu0 %2814
      %2824 = vmatprep.subr.bf16.mxu0 0
      %2825 = vmatpush1.bf16.msra.mxu0 %v2801
      %2826 = vmatprep.subr.bf16.mxu0 0
      %2827 = vmatpush1.bf16.msra.mxu0 %v2803
      %2828 = vmatprep.subr.bf16.mxu0 0
      %2829 = vmatpush1.bf16.msra.mxu0 %v2805
      %2830 = vmatprep.subr.bf16.mxu0 0
      %2831 = vmatpush1.bf16.msra.mxu0 %v2807
      %2832 = vmatprep.subr.bf16.mxu0 0
      %2833 = vmatpush1.bf16.msra.mxu0 %v2809
      %2834 = vmatprep.subr.bf16.mxu0 0
      %2835 = vmatpush1.bf16.msra.mxu0 %v2811
      %2836 = vmatprep.subr.bf16.mxu0 0
      %2837 = vmatpush1.bf16.msra.mxu0 %v2813
      %2838 = vmatprep.subr.bf16.mxu0 0
      %2839 = vmatpush1.bf16.msra.mxu0 %v2815
      %2840 = vmatprep.subr.bf16.mxu0 0
      %2841 = vmatpush1.bf16.msra.mxu0 0
      %2842 = vmatprep.subr.bf16.mxu0 0
      %2843 = vmatpush1.bf16.msra.mxu0 0
      %2844 = vmatprep.subr.bf16.mxu0 0
      %2845 = vmatpush1.bf16.msra.mxu0 0
      %2846 = vmatprep.subr.bf16.mxu0 0
      %2847 = vmatpush1.bf16.msra.mxu0 0
      %2848 = vmatprep.subr.bf16.mxu0 0
      %2849 = vmatpush1.bf16.msra.mxu0 0
      %2850 = vmatprep.subr.bf16.mxu0 0
      %2851 = vmatpush1.bf16.msra.mxu0 0
      %2852 = vmatprep.subr.bf16.mxu0 0
      %2853 = vmatpush1.bf16.msra.mxu0 0
      %2854 = vmatprep.subr.bf16.mxu0 0
      %2855 = vmatpush1.bf16.msra.mxu0 0
      %2856 = vmatprep.mubr.bf16.mxu0 0
      %2857 = vmatmul.mubr.bf16.gmra.mrb[0].mxu0 %v2796
      %v2858 = vpop.f32.mrb[0].mxu0
      %v2859 = vadd.f32 0.0, %v2858
      %v2860 = vpop.f32.mrb[0].mxu0
      %v2861 = vpop.f32.mrb[0].mxu0
      %v2862 = vadd.f32 0.0, %v2861
      %v2863 = vpop.f32.mrb[0].mxu0
      %2864 = vmatprep.mubr.bf16.mxu0 0
      %2865 = vmatmul.mubr.bf16.gmra.mrb[0].mxu0 %v2797
      %v2866 = vpop.f32.mrb[0].mxu0
      %v2867 = vadd.f32 0.0, %v2866
      %v2868 = vpop.f32.mrb[0].mxu0
      %v2869 = vpop.f32.mrb[0].mxu0
      %v2870 = vadd.f32 0.0, %v2869
      %v2871 = vpop.f32.mrb[0].mxu0
      %2872 = vdwg.mxu0
      %v2873 = vadd.f32 %v2779, %v2859
      %v2874 = vadd.f32 %v2780, %v2862
      %v2875 = vadd.f32 %v2781, %v2867
      %v2876 = vadd.f32 %v2782, %v2870
      %s2877 = scalar_lea.vmem %s4, 80
      %v2878 = vld [vmem:[%s2877] sm:$0xf]
      %v2879 = vld [vmem:[%s2877 + $0x4] sm:$0xf]
      %v2880 = vld [vmem:[%s2877 + $0x8] sm:$0xf]
      %v2881 = vld [vmem:[%s2877 + $0xc] sm:$0xf]
      %v2886 = vunpack.c.l.b16 %v2878
      %v2887 = vunpack.c.l.b16 %v2879
      %v2888 = vunpack.c.l.b16 %v2880
      %v2889 = vunpack.c.l.b16 %v2881
      %v2890 = vpack.c.b16 %v2887, %v2886
      %v2891 = vpack.c.b16 %v2889, %v2888
      %2894 = vrot.lane.b32.xlu0 %v2428, 102
      %v2895 = vpop.permute.xlu0 %2894
      %2896 = vrot.lane.b32.xlu0 %v2429, 102
      %v2897 = vpop.permute.xlu0 %2896
      %2898 = vrot.lane.b32.xlu0 %v2430, 102
      %v2899 = vpop.permute.xlu0 %2898
      %2900 = vrot.lane.b32.xlu0 %v2431, 102
      %v2901 = vpop.permute.xlu0 %2900
      %2902 = vrot.lane.b32.xlu0 %v2432, 102
      %v2903 = vpop.permute.xlu0 %2902
      %2904 = vrot.lane.b32.xlu0 %v2433, 102
      %v2905 = vpop.permute.xlu0 %2904
      %2906 = vrot.lane.b32.xlu0 %v2434, 102
      %v2907 = vpop.permute.xlu0 %2906
      %2908 = vrot.lane.b32.xlu0 %v2435, 102
      %v2909 = vpop.permute.xlu0 %2908
      %2918 = vmatprep.subr.bf16.mxu0 0
      %2919 = vmatpush1.bf16.msra.mxu0 %v2895
      %2920 = vmatprep.subr.bf16.mxu0 0
      %2921 = vmatpush1.bf16.msra.mxu0 %v2897
      %2922 = vmatprep.subr.bf16.mxu0 0
      %2923 = vmatpush1.bf16.msra.mxu0 %v2899
      %2924 = vmatprep.subr.bf16.mxu0 0
      %2925 = vmatpush1.bf16.msra.mxu0 %v2901
      %2926 = vmatprep.subr.bf16.mxu0 0
      %2927 = vmatpush1.bf16.msra.mxu0 %v2903
      %2928 = vmatprep.subr.bf16.mxu0 0
      %2929 = vmatpush1.bf16.msra.mxu0 %v2905
      %2930 = vmatprep.subr.bf16.mxu0 0
      %2931 = vmatpush1.bf16.msra.mxu0 %v2907
      %2932 = vmatprep.subr.bf16.mxu0 0
      %2933 = vmatpush1.bf16.msra.mxu0 %v2909
      %2934 = vmatprep.subr.bf16.mxu0 0
      %2935 = vmatpush1.bf16.msra.mxu0 0
      %2936 = vmatprep.subr.bf16.mxu0 0
      %2937 = vmatpush1.bf16.msra.mxu0 0
      %2938 = vmatprep.subr.bf16.mxu0 0
      %2939 = vmatpush1.bf16.msra.mxu0 0
      %2940 = vmatprep.subr.bf16.mxu0 0
      %2941 = vmatpush1.bf16.msra.mxu0 0
      %2942 = vmatprep.subr.bf16.mxu0 0
      %2943 = vmatpush1.bf16.msra.mxu0 0
      %2944 = vmatprep.subr.bf16.mxu0 0
      %2945 = vmatpush1.bf16.msra.mxu0 0
      %2946 = vmatprep.subr.bf16.mxu0 0
      %2947 = vmatpush1.bf16.msra.mxu0 0
      %2948 = vmatprep.subr.bf16.mxu0 0
      %2949 = vmatpush1.bf16.msra.mxu0 0
      %2950 = vmatprep.mubr.bf16.mxu0 0
      %2951 = vmatmul.mubr.bf16.gmra.mrb[0].mxu0 %v2890
      %v2952 = vpop.f32.mrb[0].mxu0
      %v2953 = vadd.f32 0.0, %v2952
      %v2954 = vpop.f32.mrb[0].mxu0
      %v2955 = vpop.f32.mrb[0].mxu0
      %v2956 = vadd.f32 0.0, %v2955
      %v2957 = vpop.f32.mrb[0].mxu0
      %2958 = vmatprep.mubr.bf16.mxu0 0
      %2959 = vmatmul.mubr.bf16.gmra.mrb[0].mxu0 %v2891
      %v2960 = vpop.f32.mrb[0].mxu0
      %v2961 = vadd.f32 0.0, %v2960
      %v2962 = vpop.f32.mrb[0].mxu0
      %v2963 = vpop.f32.mrb[0].mxu0
      %v2964 = vadd.f32 0.0, %v2963
      %v2965 = vpop.f32.mrb[0].mxu0
      %2966 = vdwg.mxu0
      %v2967 = vadd.f32 %v2873, %v2953
      %v2968 = vadd.f32 %v2874, %v2956
      %v2969 = vadd.f32 %v2875, %v2961
      %v2970 = vadd.f32 %v2876, %v2964
      %s2971 = scalar_lea.vmem %s4, 96
      %v2972 = vld [vmem:[%s2971] sm:$0xf]
      %v2973 = vld [vmem:[%s2971 + $0x4] sm:$0xf]
      %v2974 = vld [vmem:[%s2971 + $0x8] sm:$0xf]
      %v2975 = vld [vmem:[%s2971 + $0xc] sm:$0xf]
      %v2980 = vunpack.c.l.b16 %v2972
      %v2981 = vunpack.c.l.b16 %v2973
      %v2982 = vunpack.c.l.b16 %v2974
      %v2983 = vunpack.c.l.b16 %v2975
      %v2984 = vpack.c.b16 %v2981, %v2980
      %v2985 = vpack.c.b16 %v2983, %v2982
      %2988 = vrot.lane.b32.xlu0 %v2428, 98
      %v2989 = vpop.permute.xlu0 %2988
      %2990 = vrot.lane.b32.xlu0 %v2429, 98
      %v2991 = vpop.permute.xlu0 %2990
      %2992 = vrot.lane.b32.xlu0 %v2430, 98
      %v2993 = vpop.permute.xlu0 %2992
      %2994 = vrot.lane.b32.xlu0 %v2431, 98
      %v2995 = vpop.permute.xlu0 %2994
      %2996 = vrot.lane.b32.xlu0 %v2432, 98
      %v2997 = vpop.permute.xlu0 %2996
      %2998 = vrot.lane.b32.xlu0 %v2433, 98
      %v2999 = vpop.permute.xlu0 %2998
      %3000 = vrot.lane.b32.xlu0 %v2434, 98
      %v3001 = vpop.permute.xlu0 %3000
      %3002 = vrot.lane.b32.xlu0 %v2435, 98
      %v3003 = vpop.permute.xlu0 %3002
      %3012 = vmatprep.subr.bf16.mxu0 0
      %3013 = vmatpush1.bf16.msra.mxu0 %v2989
      %3014 = vmatprep.subr.bf16.mxu0 0
      %3015 = vmatpush1.bf16.msra.mxu0 %v2991
      %3016 = vmatprep.subr.bf16.mxu0 0
      %3017 = vmatpush1.bf16.msra.mxu0 %v2993
      %3018 = vmatprep.subr.bf16.mxu0 0
      %3019 = vmatpush1.bf16.msra.mxu0 %v2995
      %3020 = vmatprep.subr.bf16.mxu0 0
      %3021 = vmatpush1.bf16.msra.mxu0 %v2997
      %3022 = vmatprep.subr.bf16.mxu0 0
      %3023 = vmatpush1.bf16.msra.mxu0 %v2999
      %3024 = vmatprep.subr.bf16.mxu0 0
      %3025 = vmatpush1.bf16.msra.mxu0 %v3001
      %3026 = vmatprep.subr.bf16.mxu0 0
      %3027 = vmatpush1.bf16.msra.mxu0 %v3003
      %3028 = vmatprep.subr.bf16.mxu0 0
      %3029 = vmatpush1.bf16.msra.mxu0 0
      %3030 = vmatprep.subr.bf16.mxu0 0
      %3031 = vmatpush1.bf16.msra.mxu0 0
      %3032 = vmatprep.subr.bf16.mxu0 0
      %3033 = vmatpush1.bf16.msra.mxu0 0
      %3034 = vmatprep.subr.bf16.mxu0 0
      %3035 = vmatpush1.bf16.msra.mxu0 0
      %3036 = vmatprep.subr.bf16.mxu0 0
      %3037 = vmatpush1.bf16.msra.mxu0 0
      %3038 = vmatprep.subr.bf16.mxu0 0
      %3039 = vmatpush1.bf16.msra.mxu0 0
      %3040 = vmatprep.subr.bf16.mxu0 0
      %3041 = vmatpush1.bf16.msra.mxu0 0
      %3042 = vmatprep.subr.bf16.mxu0 0
      %3043 = vmatpush1.bf16.msra.mxu0 0
      %3044 = vmatprep.mubr.bf16.mxu0 0
      %3045 = vmatmul.mubr.bf16.gmra.mrb[0].mxu0 %v2984
      %v3046 = vpop.f32.mrb[0].mxu0
      %v3047 = vadd.f32 0.0, %v3046
      %v3048 = vpop.f32.mrb[0].mxu0
      %v3049 = vpop.f32.mrb[0].mxu0
      %v3050 = vadd.f32 0.0, %v3049
      %v3051 = vpop.f32.mrb[0].mxu0
      %3052 = vmatprep.mubr.bf16.mxu0 0
      %3053 = vmatmul.mubr.bf16.gmra.mrb[0].mxu0 %v2985
      %v3054 = vpop.f32.mrb[0].mxu0
      %v3055 = vadd.f32 0.0, %v3054
      %v3056 = vpop.f32.mrb[0].mxu0
      %v3057 = vpop.f32.mrb[0].mxu0
      %v3058 = vadd.f32 0.0, %v3057
      %v3059 = vpop.f32.mrb[0].mxu0
      %3060 = vdwg.mxu0
      %v3061 = vadd.f32 %v2967, %v3047
      %v3062 = vadd.f32 %v2968, %v3050
      %v3063 = vadd.f32 %v2969, %v3055
      %v3064 = vadd.f32 %v2970, %v3058
      %s3065 = scalar_lea.vmem %s4, 112
      %v3066 = vld [vmem:[%s3065] sm:$0xf]
      %v3067 = vld [vmem:[%s3065 + $0x4] sm:$0xf]
      %v3068 = vld [vmem:[%s3065 + $0x8] sm:$0xf]
      %v3069 = vld [vmem:[%s3065 + $0xc] sm:$0xf]
      %v3074 = vunpack.c.l.b16 %v3066
      %v3075 = vunpack.c.l.b16 %v3067
      %v3076 = vunpack.c.l.b16 %v3068
      %v3077 = vunpack.c.l.b16 %v3069
      %v3078 = vpack.c.b16 %v3075, %v3074
      %v3079 = vpack.c.b16 %v3077, %v3076
      %3082 = vrot.lane.b32.xlu0 %v2428, 97
      %v3083 = vpop.permute.xlu0 %3082
      %3084 = vrot.lane.b32.xlu0 %v2429, 97
      %v3085 = vpop.permute.xlu0 %3084
      %3086 = vrot.lane.b32.xlu0 %v2430, 97
      %v3087 = vpop.permute.xlu0 %3086
      %3088 = vrot.lane.b32.xlu0 %v2431, 97
      %v3089 = vpop.permute.xlu0 %3088
      %3090 = vrot.lane.b32.xlu0 %v2432, 97
      %v3091 = vpop.permute.xlu0 %3090
      %3092 = vrot.lane.b32.xlu0 %v2433, 97
      %v3093 = vpop.permute.xlu0 %3092
      %3094 = vrot.lane.b32.xlu0 %v2434, 97
      %v3095 = vpop.permute.xlu0 %3094
      %3096 = vrot.lane.b32.xlu0 %v2435, 97
      %v3097 = vpop.permute.xlu0 %3096
      %3106 = vmatprep.subr.bf16.mxu0 0
      %3107 = vmatpush1.bf16.msra.mxu0 %v3083
      %3108 = vmatprep.subr.bf16.mxu0 0
      %3109 = vmatpush1.bf16.msra.mxu0 %v3085
      %3110 = vmatprep.subr.bf16.mxu0 0
      %3111 = vmatpush1.bf16.msra.mxu0 %v3087
      %3112 = vmatprep.subr.bf16.mxu0 0
      %3113 = vmatpush1.bf16.msra.mxu0 %v3089
      %3114 = vmatprep.subr.bf16.mxu0 0
      %3115 = vmatpush1.bf16.msra.mxu0 %v3091
      %3116 = vmatprep.subr.bf16.mxu0 0
      %3117 = vmatpush1.bf16.msra.mxu0 %v3093
      %3118 = vmatprep.subr.bf16.mxu0 0
      %3119 = vmatpush1.bf16.msra.mxu0 %v3095
      %3120 = vmatprep.subr.bf16.mxu0 0
      %3121 = vmatpush1.bf16.msra.mxu0 %v3097
      %3122 = vmatprep.subr.bf16.mxu0 0
      %3123 = vmatpush1.bf16.msra.mxu0 0
      %3124 = vmatprep.subr.bf16.mxu0 0
      %3125 = vmatpush1.bf16.msra.mxu0 0
      %3126 = vmatprep.subr.bf16.mxu0 0
      %3127 = vmatpush1.bf16.msra.mxu0 0
      %3128 = vmatprep.subr.bf16.mxu0 0
      %3129 = vmatpush1.bf16.msra.mxu0 0
      %3130 = vmatprep.subr.bf16.mxu0 0
      %3131 = vmatpush1.bf16.msra.mxu0 0
      %3132 = vmatprep.subr.bf16.mxu0 0
      %3133 = vmatpush1.bf16.msra.mxu0 0
      %3134 = vmatprep.subr.bf16.mxu0 0
      %3135 = vmatpush1.bf16.msra.mxu0 0
      %3136 = vmatprep.subr.bf16.mxu0 0
      %3137 = vmatpush1.bf16.msra.mxu0 0
      %3138 = vmatprep.mubr.bf16.mxu0 0
      %3139 = vmatmul.mubr.bf16.gmra.mrb[0].mxu0 %v3078
      %v3140 = vpop.f32.mrb[0].mxu0
      %v3141 = vadd.f32 0.0, %v3140
      %v3142 = vpop.f32.mrb[0].mxu0
      %v3143 = vpop.f32.mrb[0].mxu0
      %v3144 = vadd.f32 0.0, %v3143
      %v3145 = vpop.f32.mrb[0].mxu0
      %3146 = vmatprep.mubr.bf16.mxu0 0
      %3147 = vmatmul.mubr.bf16.gmra.mrb[0].mxu0 %v3079
      %v3148 = vpop.f32.mrb[0].mxu0
      %v3149 = vadd.f32 0.0, %v3148
      %v3150 = vpop.f32.mrb[0].mxu0
      %v3151 = vpop.f32.mrb[0].mxu0
      %v3152 = vadd.f32 0.0, %v3151
      %v3153 = vpop.f32.mrb[0].mxu0
      %3154 = vdwg.mxu0
      %v3155 = vadd.f32 %v3061, %v3141
      %v3156 = vadd.f32 %v3062, %v3144
      %v3157 = vadd.f32 %v3063, %v3149
      %v3158 = vadd.f32 %v3064, %v3152
      %v3159 = vld [vmem:[%s5] sm:$0xff]
      %v3160 = vld [vmem:[%s5 + $0x8] sm:$0xff]
      %v3161 = vld [vmem:[%s5 + $0x10] sm:$0xff]
      %v3162 = vld [vmem:[%s5 + $0x18] sm:$0xff]
      %3164 = vset.pattern.permute.xlu0 0
      %3165 = vperm.xlu0 %3164, %v3159
      %v3166 = vpop.permute.xlu0 %3165
      %3169 = vset.pattern.permute.xlu0 0
      %3170 = vperm.xlu0 %3169, %v3160
      %v3171 = vpop.permute.xlu0 %3170
      %3174 = vset.pattern.permute.xlu0 0
      %3175 = vperm.xlu0 %3174, %v3161
      %v3176 = vpop.permute.xlu0 %3175
      %3179 = vset.pattern.permute.xlu0 0
      %3180 = vperm.xlu0 %3179, %v3162
      %v3181 = vpop.permute.xlu0 %3180
      %v3183 = vadd.f32 %v3155, %v3166
      %v3184 = vadd.f32 %v3156, %v3171
      %v3185 = vadd.f32 %v3157, %v3176
      %v3186 = vadd.f32 %v3158, %v3181
      %vm3187 = vcmp.ge.f32.partialorder %v3183, 0.0
      %vm3188 = vcmp.ge.f32.partialorder %v3184, 0.0
      %vm3189 = vcmp.ge.f32.partialorder %v3185, 0.0
      %vm3190 = vcmp.ge.f32.partialorder %v3186, 0.0
      %v3191 = vmul.f32 %v3183, 0.2
      %v3192 = vmul.f32 %v3184, 0.2
      %v3193 = vmul.f32 %v3185, 0.2
      %v3194 = vmul.f32 %v3186, 0.2
      %v3195 = vsel %vm3187, %v3183, %v3191
      %v3196 = vsel %vm3188, %v3184, %v3192
      %v3197 = vsel %vm3189, %v3185, %v3193
      %v3198 = vsel %vm3190, %v3186, %v3194
      %v3199 = vpack.c.bf16 %v3196, %v3195
      %v3200 = vpack.c.bf16 %v3198, %v3197
      %v3201 = vld [vmem:[%s6] sm:$0xf]
      %v3202 = vld [vmem:[%s6 + $0x4] sm:$0xf]
      %v3203 = vld [vmem:[%s6 + $0x8] sm:$0xf]
      %v3204 = vld [vmem:[%s6 + $0xc] sm:$0xf]
      %v3205 = vld [vmem:[%s6 + $0x10] sm:$0xf]
      %v3206 = vld [vmem:[%s6 + $0x14] sm:$0xf]
      %v3207 = vld [vmem:[%s6 + $0x18] sm:$0xf]
      %v3208 = vld [vmem:[%s6 + $0x1c] sm:$0xf]
      %v3209 = vld [vmem:[%s6 + $0x20] sm:$0xf]
      %v3210 = vld [vmem:[%s6 + $0x24] sm:$0xf]
      %v3211 = vld [vmem:[%s6 + $0x28] sm:$0xf]
      %v3212 = vld [vmem:[%s6 + $0x2c] sm:$0x7]
      %v3225 = vunpack.c.l.b16 %v3201
      %v3226 = vunpack.c.l.b16 %v3202
      %v3227 = vunpack.c.l.b16 %v3203
      %v3228 = vunpack.c.l.b16 %v3204
      %v3229 = vunpack.c.l.b16 %v3205
      %v3230 = vunpack.c.l.b16 %v3206
      %v3231 = vunpack.c.l.b16 %v3207
      %v3232 = vunpack.c.l.b16 %v3208
      %v3233 = vunpack.c.l.b16 %v3209
      %v3234 = vunpack.c.l.b16 %v3210
      %v3235 = vunpack.c.l.b16 %v3211
      %v3236 = vunpack.c.l.b16 %v3212
      %v3237 = vpack.c.b16 %v3226, %v3225
      %v3238 = vpack.c.b16 %v3228, %v3227
      %v3239 = vpack.c.b16 %v3230, %v3229
      %v3240 = vpack.c.b16 %v3232, %v3231
      %v3241 = vpack.c.b16 %v3234, %v3233
      %v3242 = vpack.c.b16 %v3236, %v3235
      %vm3248 = vcmask 769024
      %v3250 = vsel %vm3248, %v3199, 0
      %v3253 = vsel %vm3248, %v3200, 0
      %vm3255 = vcmask 1046528
      %v3257 = vsel %vm3255, %v3242, 0
      %3259 = vmatprep.subr.bf16.mxu0 0
      %3260 = vmatpush1.bf16.msra.mxu0 %v3237
      %3261 = vmatprep.subr.bf16.mxu0 0
      %3262 = vmatpush1.bf16.msra.mxu0 %v3238
      %3263 = vmatprep.subr.bf16.mxu0 0
      %3264 = vmatpush1.bf16.msra.mxu0 %v3239
      %3265 = vmatprep.subr.bf16.mxu0 0
      %3266 = vmatpush1.bf16.msra.mxu0 %v3240
      %3267 = vmatprep.subr.bf16.mxu0 0
      %3268 = vmatpush1.bf16.msra.mxu0 %v3241
      %3269 = vmatprep.subr.bf16.mxu0 0
      %3270 = vmatpush1.bf16.msra.mxu0 %v3257
      %3271 = vmatprep.subr.bf16.mxu0 0
      %3272 = vmatpush1.bf16.msra.mxu0 0
      %3273 = vmatprep.subr.bf16.mxu0 0
      %3274 = vmatpush1.bf16.msra.mxu0 0
      %3275 = vmatprep.subr.bf16.mxu0 0
      %3276 = vmatpush1.bf16.msra.mxu0 0
      %3277 = vmatprep.subr.bf16.mxu0 0
      %3278 = vmatpush1.bf16.msra.mxu0 0
      %3279 = vmatprep.subr.bf16.mxu0 0
      %3280 = vmatpush1.bf16.msra.mxu0 0
      %3281 = vmatprep.subr.bf16.mxu0 0
      %3282 = vmatpush1.bf16.msra.mxu0 0
      %3283 = vmatprep.subr.bf16.mxu0 0
      %3284 = vmatpush1.bf16.msra.mxu0 0
      %3285 = vmatprep.subr.bf16.mxu0 0
      %3286 = vmatpush1.bf16.msra.mxu0 0
      %3287 = vmatprep.subr.bf16.mxu0 0
      %3288 = vmatpush1.bf16.msra.mxu0 0
      %3289 = vmatprep.subr.bf16.mxu0 0
      %3290 = vmatpush1.bf16.msra.mxu0 0
      %3291 = vmatprep.mubr.bf16.mxu0 0
      %3292 = vmatmul.mubr.bf16.gmra.mrb[0].mxu0 %v3250
      %v3293 = vpop.f32.mrb[0].mxu0
      %v3294 = vadd.f32 0.0, %v3293
      %v3295 = vpop.f32.mrb[0].mxu0
      %v3296 = vpop.f32.mrb[0].mxu0
      %v3297 = vadd.f32 0.0, %v3296
      %v3298 = vpop.f32.mrb[0].mxu0
      %3299 = vmatprep.mubr.bf16.mxu0 0
      %3300 = vmatmul.mubr.bf16.gmra.mrb[0].mxu0 %v3253
      %v3301 = vpop.f32.mrb[0].mxu0
      %v3302 = vadd.f32 0.0, %v3301
      %v3303 = vpop.f32.mrb[0].mxu0
      %v3304 = vpop.f32.mrb[0].mxu0
      %v3305 = vadd.f32 0.0, %v3304
      %v3306 = vpop.f32.mrb[0].mxu0
      %3307 = vdwg.mxu0
      %v3308 = vpack.c.bf16 %v3297, %v3294
      %v3309 = vpack.c.bf16 %v3305, %v3302
      %vm3310 = vcmask 220160
      %3311 = vst.msk [vmem:[#allocation3] sm:$0xff] %vm3310, %v3308
      %3312 = vst.msk [vmem:[#allocation3 + $0x8] sm:$0xff] %vm3310, %v3309
      %s3313 = scalar_lea.vmem %s6, 48
      %v3314 = vld [vmem:[%s3313] sm:$0xf]
      %v3315 = vld [vmem:[%s3313 + $0x4] sm:$0xf]
      %v3316 = vld [vmem:[%s3313 + $0x8] sm:$0xf]
      %v3317 = vld [vmem:[%s3313 + $0xc] sm:$0xf]
      %v3318 = vld [vmem:[%s3313 + $0x10] sm:$0xf]
      %v3319 = vld [vmem:[%s3313 + $0x14] sm:$0xf]
      %v3320 = vld [vmem:[%s3313 + $0x18] sm:$0xf]
      %v3321 = vld [vmem:[%s3313 + $0x1c] sm:$0xf]
      %v3322 = vld [vmem:[%s3313 + $0x20] sm:$0xf]
      %v3323 = vld [vmem:[%s3313 + $0x24] sm:$0xf]
      %v3324 = vld [vmem:[%s3313 + $0x28] sm:$0xf]
      %v3325 = vld [vmem:[%s3313 + $0x2c] sm:$0x7]
      %v3338 = vunpack.c.l.b16 %v3314
      %v3339 = vunpack.c.l.b16 %v3315
      %v3340 = vunpack.c.l.b16 %v3316
      %v3341 = vunpack.c.l.b16 %v3317
      %v3342 = vunpack.c.l.b16 %v3318
      %v3343 = vunpack.c.l.b16 %v3319
      %v3344 = vunpack.c.l.b16 %v3320
      %v3345 = vunpack.c.l.b16 %v3321
      %v3346 = vunpack.c.l.b16 %v3322
      %v3347 = vunpack.c.l.b16 %v3323
      %v3348 = vunpack.c.l.b16 %v3324
      %v3349 = vunpack.c.l.b16 %v3325
      %v3350 = vpack.c.b16 %v3339, %v3338
      %v3351 = vpack.c.b16 %v3341, %v3340
      %v3352 = vpack.c.b16 %v3343, %v3342
      %v3353 = vpack.c.b16 %v3345, %v3344
      %v3354 = vpack.c.b16 %v3347, %v3346
      %v3355 = vpack.c.b16 %v3349, %v3348
      %v3362 = vsel %vm3255, %v3355, 0
      %3364 = vmatprep.subr.bf16.mxu0 0
      %3365 = vmatpush1.bf16.msra.mxu0 %v3350
      %3366 = vmatprep.subr.bf16.mxu0 0
      %3367 = vmatpush1.bf16.msra.mxu0 %v3351
      %3368 = vmatprep.subr.bf16.mxu0 0
      %3369 = vmatpush1.bf16.msra.mxu0 %v3352
      %3370 = vmatprep.subr.bf16.mxu0 0
      %3371 = vmatpush1.bf16.msra.mxu0 %v3353
      %3372 = vmatprep.subr.bf16.mxu0 0
      %3373 = vmatpush1.bf16.msra.mxu0 %v3354
      %3374 = vmatprep.subr.bf16.mxu0 0
      %3375 = vmatpush1.bf16.msra.mxu0 %v3362
      %3376 = vmatprep.subr.bf16.mxu0 0
      %3377 = vmatpush1.bf16.msra.mxu0 0
      %3378 = vmatprep.subr.bf16.mxu0 0
      %3379 = vmatpush1.bf16.msra.mxu0 0
      %3380 = vmatprep.subr.bf16.mxu0 0
      %3381 = vmatpush1.bf16.msra.mxu0 0
      %3382 = vmatprep.subr.bf16.mxu0 0
      %3383 = vmatpush1.bf16.msra.mxu0 0
      %3384 = vmatprep.subr.bf16.mxu0 0
      %3385 = vmatpush1.bf16.msra.mxu0 0
      %3386 = vmatprep.subr.bf16.mxu0 0
      %3387 = vmatpush1.bf16.msra.mxu0 0
      %3388 = vmatprep.subr.bf16.mxu0 0
      %3389 = vmatpush1.bf16.msra.mxu0 0
      %3390 = vmatprep.subr.bf16.mxu0 0
      %3391 = vmatpush1.bf16.msra.mxu0 0
      %3392 = vmatprep.subr.bf16.mxu0 0
      %3393 = vmatpush1.bf16.msra.mxu0 0
      %3394 = vmatprep.subr.bf16.mxu0 0
      %3395 = vmatpush1.bf16.msra.mxu0 0
      %3396 = vmatprep.mubr.bf16.mxu0 0
      %3397 = vmatmul.mubr.bf16.gmra.mrb[0].mxu0 %v3250
      %v3398 = vpop.f32.mrb[0].mxu0
      %v3399 = vadd.f32 0.0, %v3398
      %v3400 = vpop.f32.mrb[0].mxu0
      %v3401 = vpop.f32.mrb[0].mxu0
      %v3402 = vadd.f32 0.0, %v3401
      %v3403 = vpop.f32.mrb[0].mxu0
      %3404 = vmatprep.mubr.bf16.mxu0 0
      %3405 = vmatmul.mubr.bf16.gmra.mrb[0].mxu0 %v3253
      %v3406 = vpop.f32.mrb[0].mxu0
      %v3407 = vadd.f32 0.0, %v3406
      %v3408 = vpop.f32.mrb[0].mxu0
      %v3409 = vpop.f32.mrb[0].mxu0
      %v3410 = vadd.f32 0.0, %v3409
      %v3411 = vpop.f32.mrb[0].mxu0
      %3412 = vdwg.mxu0
      %v3413 = vpack.c.bf16 %v3402, %v3399
      %v3414 = vpack.c.bf16 %v3410, %v3407
      %3415 = vst.msk [vmem:[#allocation3 + $0x10] sm:$0xff] %vm3310, %v3413
      %3416 = vst.msk [vmem:[#allocation3 + $0x18] sm:$0xff] %vm3310, %v3414
      %s3417 = scalar_lea.vmem %s6, 96
      %v3418 = vld [vmem:[%s3417] sm:$0xf]
      %v3419 = vld [vmem:[%s3417 + $0x4] sm:$0xf]
      %v3420 = vld [vmem:[%s3417 + $0x8] sm:$0xf]
      %v3421 = vld [vmem:[%s3417 + $0xc] sm:$0xf]
      %v3422 = vld [vmem:[%s3417 + $0x10] sm:$0xf]
      %v3423 = vld [vmem:[%s3417 + $0x14] sm:$0xf]
      %v3424 = vld [vmem:[%s3417 + $0x18] sm:$0xf]
      %v3425 = vld [vmem:[%s3417 + $0x1c] sm:$0xf]
      %v3426 = vld [vmem:[%s3417 + $0x20] sm:$0xf]
      %v3427 = vld [vmem:[%s3417 + $0x24] sm:$0xf]
      %v3428 = vld [vmem:[%s3417 + $0x28] sm:$0xf]
      %v3429 = vld [vmem:[%s3417 + $0x2c] sm:$0x7]
      %v3442 = vunpack.c.l.b16 %v3418
      %v3443 = vunpack.c.l.b16 %v3419
      %v3444 = vunpack.c.l.b16 %v3420
      %v3445 = vunpack.c.l.b16 %v3421
      %v3446 = vunpack.c.l.b16 %v3422
      %v3447 = vunpack.c.l.b16 %v3423
      %v3448 = vunpack.c.l.b16 %v3424
      %v3449 = vunpack.c.l.b16 %v3425
      %v3450 = vunpack.c.l.b16 %v3426
      %v3451 = vunpack.c.l.b16 %v3427
      %v3452 = vunpack.c.l.b16 %v3428
      %v3453 = vunpack.c.l.b16 %v3429
      %v3454 = vpack.c.b16 %v3443, %v3442
      %v3455 = vpack.c.b16 %v3445, %v3444
      %v3456 = vpack.c.b16 %v3447, %v3446
      %v3457 = vpack.c.b16 %v3449, %v3448
      %v3458 = vpack.c.b16 %v3451, %v3450
      %v3459 = vpack.c.b16 %v3453, %v3452
      %v3466 = vsel %vm3255, %v3459, 0
      %3468 = vmatprep.subr.bf16.mxu0 0
      %3469 = vmatpush1.bf16.msra.mxu0 %v3454
      %3470 = vmatprep.subr.bf16.mxu0 0
      %3471 = vmatpush1.bf16.msra.mxu0 %v3455
      %3472 = vmatprep.subr.bf16.mxu0 0
      %3473 = vmatpush1.bf16.msra.mxu0 %v3456
      %3474 = vmatprep.subr.bf16.mxu0 0
      %3475 = vmatpush1.bf16.msra.mxu0 %v3457
      %3476 = vmatprep.subr.bf16.mxu0 0
      %3477 = vmatpush1.bf16.msra.mxu0 %v3458
      %3478 = vmatprep.subr.bf16.mxu0 0
      %3479 = vmatpush1.bf16.msra.mxu0 %v3466
      %3480 = vmatprep.subr.bf16.mxu0 0
      %3481 = vmatpush1.bf16.msra.mxu0 0
      %3482 = vmatprep.subr.bf16.mxu0 0
      %3483 = vmatpush1.bf16.msra.mxu0 0
      %3484 = vmatprep.subr.bf16.mxu0 0
      %3485 = vmatpush1.bf16.msra.mxu0 0
      %3486 = vmatprep.subr.bf16.mxu0 0
      %3487 = vmatpush1.bf16.msra.mxu0 0
      %3488 = vmatprep.subr.bf16.mxu0 0
      %3489 = vmatpush1.bf16.msra.mxu0 0
      %3490 = vmatprep.subr.bf16.mxu0 0
      %3491 = vmatpush1.bf16.msra.mxu0 0
      %3492 = vmatprep.subr.bf16.mxu0 0
      %3493 = vmatpush1.bf16.msra.mxu0 0
      %3494 = vmatprep.subr.bf16.mxu0 0
      %3495 = vmatpush1.bf16.msra.mxu0 0
      %3496 = vmatprep.subr.bf16.mxu0 0
      %3497 = vmatpush1.bf16.msra.mxu0 0
      %3498 = vmatprep.subr.bf16.mxu0 0
      %3499 = vmatpush1.bf16.msra.mxu0 0
      %3500 = vmatprep.mubr.bf16.mxu0 0
      %3501 = vmatmul.mubr.bf16.gmra.mrb[0].mxu0 %v3250
      %v3502 = vpop.f32.mrb[0].mxu0
      %v3503 = vadd.f32 0.0, %v3502
      %v3504 = vpop.f32.mrb[0].mxu0
      %v3505 = vpop.f32.mrb[0].mxu0
      %v3506 = vadd.f32 0.0, %v3505
      %v3507 = vpop.f32.mrb[0].mxu0
      %3508 = vmatprep.mubr.bf16.mxu0 0
      %3509 = vmatmul.mubr.bf16.gmra.mrb[0].mxu0 %v3253
      %v3510 = vpop.f32.mrb[0].mxu0
      %v3511 = vadd.f32 0.0, %v3510
      %v3512 = vpop.f32.mrb[0].mxu0
      %v3513 = vpop.f32.mrb[0].mxu0
      %v3514 = vadd.f32 0.0, %v3513
      %v3515 = vpop.f32.mrb[0].mxu0
      %3516 = vdwg.mxu0
      %v3517 = vpack.c.bf16 %v3506, %v3503
      %v3518 = vpack.c.bf16 %v3514, %v3511
      %3519 = vst.msk [vmem:[#allocation3 + $0x20] sm:$0xff] %vm3310, %v3517
      %3520 = vst.msk [vmem:[#allocation3 + $0x28] sm:$0xff] %vm3310, %v3518
      %s3521 = scalar_lea.vmem %s6, 144
      %v3522 = vld [vmem:[%s3521] sm:$0xf]
      %v3523 = vld [vmem:[%s3521 + $0x4] sm:$0xf]
      %v3524 = vld [vmem:[%s3521 + $0x8] sm:$0xf]
      %v3525 = vld [vmem:[%s3521 + $0xc] sm:$0xf]
      %v3526 = vld [vmem:[%s3521 + $0x10] sm:$0xf]
      %v3527 = vld [vmem:[%s3521 + $0x14] sm:$0xf]
      %v3528 = vld [vmem:[%s3521 + $0x18] sm:$0xf]
      %v3529 = vld [vmem:[%s3521 + $0x1c] sm:$0xf]
      %v3530 = vld [vmem:[%s3521 + $0x20] sm:$0xf]
      %v3531 = vld [vmem:[%s3521 + $0x24] sm:$0xf]
      %v3532 = vld [vmem:[%s3521 + $0x28] sm:$0xf]
      %v3533 = vld [vmem:[%s3521 + $0x2c] sm:$0x7]
      %v3546 = vunpack.c.l.b16 %v3522
      %v3547 = vunpack.c.l.b16 %v3523
      %v3548 = vunpack.c.l.b16 %v3524
      %v3549 = vunpack.c.l.b16 %v3525
      %v3550 = vunpack.c.l.b16 %v3526
      %v3551 = vunpack.c.l.b16 %v3527
      %v3552 = vunpack.c.l.b16 %v3528
      %v3553 = vunpack.c.l.b16 %v3529
      %v3554 = vunpack.c.l.b16 %v3530
      %v3555 = vunpack.c.l.b16 %v3531
      %v3556 = vunpack.c.l.b16 %v3532
      %v3557 = vunpack.c.l.b16 %v3533
      %v3558 = vpack.c.b16 %v3547, %v3546
      %v3559 = vpack.c.b16 %v3549, %v3548
      %v3560 = vpack.c.b16 %v3551, %v3550
      %v3561 = vpack.c.b16 %v3553, %v3552
      %v3562 = vpack.c.b16 %v3555, %v3554
      %v3563 = vpack.c.b16 %v3557, %v3556
      %v3570 = vsel %vm3255, %v3563, 0
      %3572 = vmatprep.subr.bf16.mxu0 0
      %3573 = vmatpush1.bf16.msra.mxu0 %v3558
      %3574 = vmatprep.subr.bf16.mxu0 0
      %3575 = vmatpush1.bf16.msra.mxu0 %v3559
      %3576 = vmatprep.subr.bf16.mxu0 0
      %3577 = vmatpush1.bf16.msra.mxu0 %v3560
      %3578 = vmatprep.subr.bf16.mxu0 0
      %3579 = vmatpush1.bf16.msra.mxu0 %v3561
      %3580 = vmatprep.subr.bf16.mxu0 0
      %3581 = vmatpush1.bf16.msra.mxu0 %v3562
      %3582 = vmatprep.subr.bf16.mxu0 0
      %3583 = vmatpush1.bf16.msra.mxu0 %v3570
      %3584 = vmatprep.subr.bf16.mxu0 0
      %3585 = vmatpush1.bf16.msra.mxu0 0
      %3586 = vmatprep.subr.bf16.mxu0 0
      %3587 = vmatpush1.bf16.msra.mxu0 0
      %3588 = vmatprep.subr.bf16.mxu0 0
      %3589 = vmatpush1.bf16.msra.mxu0 0
      %3590 = vmatprep.subr.bf16.mxu0 0
      %3591 = vmatpush1.bf16.msra.mxu0 0
      %3592 = vmatprep.subr.bf16.mxu0 0
      %3593 = vmatpush1.bf16.msra.mxu0 0
      %3594 = vmatprep.subr.bf16.mxu0 0
      %3595 = vmatpush1.bf16.msra.mxu0 0
      %3596 = vmatprep.subr.bf16.mxu0 0
      %3597 = vmatpush1.bf16.msra.mxu0 0
      %3598 = vmatprep.subr.bf16.mxu0 0
      %3599 = vmatpush1.bf16.msra.mxu0 0
      %3600 = vmatprep.subr.bf16.mxu0 0
      %3601 = vmatpush1.bf16.msra.mxu0 0
      %3602 = vmatprep.subr.bf16.mxu0 0
      %3603 = vmatpush1.bf16.msra.mxu0 0
      %3604 = vmatprep.mubr.bf16.mxu0 0
      %3605 = vmatmul.mubr.bf16.gmra.mrb[0].mxu0 %v3250
      %v3606 = vpop.f32.mrb[0].mxu0
      %v3607 = vadd.f32 0.0, %v3606
      %v3608 = vpop.f32.mrb[0].mxu0
      %v3609 = vpop.f32.mrb[0].mxu0
      %v3610 = vadd.f32 0.0, %v3609
      %v3611 = vpop.f32.mrb[0].mxu0
      %3612 = vmatprep.mubr.bf16.mxu0 0
      %3613 = vmatmul.mubr.bf16.gmra.mrb[0].mxu0 %v3253
      %v3614 = vpop.f32.mrb[0].mxu0
      %v3615 = vadd.f32 0.0, %v3614
      %v3616 = vpop.f32.mrb[0].mxu0
      %v3617 = vpop.f32.mrb[0].mxu0
      %v3618 = vadd.f32 0.0, %v3617
      %v3619 = vpop.f32.mrb[0].mxu0
      %3620 = vdwg.mxu0
      %v3621 = vpack.c.bf16 %v3610, %v3607
      %v3622 = vpack.c.bf16 %v3618, %v3615
      %3623 = vst.msk [vmem:[#allocation3 + $0x30] sm:$0xff] %vm3310, %v3621
      %3624 = vst.msk [vmem:[#allocation3 + $0x38] sm:$0xff] %vm3310, %v3622
      %s3625 = scalar_lea.vmem %s6, 192
      %v3626 = vld [vmem:[%s3625] sm:$0xf]
      %v3627 = vld [vmem:[%s3625 + $0x4] sm:$0xf]
      %v3628 = vld [vmem:[%s3625 + $0x8] sm:$0xf]
      %v3629 = vld [vmem:[%s3625 + $0xc] sm:$0xf]
      %v3630 = vld [vmem:[%s3625 + $0x10] sm:$0xf]
      %v3631 = vld [vmem:[%s3625 + $0x14] sm:$0xf]
      %v3632 = vld [vmem:[%s3625 + $0x18] sm:$0xf]
      %v3633 = vld [vmem:[%s3625 + $0x1c] sm:$0xf]
      %v3634 = vld [vmem:[%s3625 + $0x20] sm:$0xf]
      %v3635 = vld [vmem:[%s3625 + $0x24] sm:$0xf]
      %v3636 = vld [vmem:[%s3625 + $0x28] sm:$0xf]
      %v3637 = vld [vmem:[%s3625 + $0x2c] sm:$0x7]
      %v3650 = vunpack.c.l.b16 %v3626
      %v3651 = vunpack.c.l.b16 %v3627
      %v3652 = vunpack.c.l.b16 %v3628
      %v3653 = vunpack.c.l.b16 %v3629
      %v3654 = vunpack.c.l.b16 %v3630
      %v3655 = vunpack.c.l.b16 %v3631
      %v3656 = vunpack.c.l.b16 %v3632
      %v3657 = vunpack.c.l.b16 %v3633
      %v3658 = vunpack.c.l.b16 %v3634
      %v3659 = vunpack.c.l.b16 %v3635
      %v3660 = vunpack.c.l.b16 %v3636
      %v3661 = vunpack.c.l.b16 %v3637
      %v3662 = vpack.c.b16 %v3651, %v3650
      %v3663 = vpack.c.b16 %v3653, %v3652
      %v3664 = vpack.c.b16 %v3655, %v3654
      %v3665 = vpack.c.b16 %v3657, %v3656
      %v3666 = vpack.c.b16 %v3659, %v3658
      %v3667 = vpack.c.b16 %v3661, %v3660
      %v3674 = vsel %vm3255, %v3667, 0
      %3676 = vmatprep.subr.bf16.mxu0 0
      %3677 = vmatpush1.bf16.msra.mxu0 %v3662
      %3678 = vmatprep.subr.bf16.mxu0 0
      %3679 = vmatpush1.bf16.msra.mxu0 %v3663
      %3680 = vmatprep.subr.bf16.mxu0 0
      %3681 = vmatpush1.bf16.msra.mxu0 %v3664
      %3682 = vmatprep.subr.bf16.mxu0 0
      %3683 = vmatpush1.bf16.msra.mxu0 %v3665
      %3684 = vmatprep.subr.bf16.mxu0 0
      %3685 = vmatpush1.bf16.msra.mxu0 %v3666
      %3686 = vmatprep.subr.bf16.mxu0 0
      %3687 = vmatpush1.bf16.msra.mxu0 %v3674
      %3688 = vmatprep.subr.bf16.mxu0 0
      %3689 = vmatpush1.bf16.msra.mxu0 0
      %3690 = vmatprep.subr.bf16.mxu0 0
      %3691 = vmatpush1.bf16.msra.mxu0 0
      %3692 = vmatprep.subr.bf16.mxu0 0
      %3693 = vmatpush1.bf16.msra.mxu0 0
      %3694 = vmatprep.subr.bf16.mxu0 0
      %3695 = vmatpush1.bf16.msra.mxu0 0
      %3696 = vmatprep.subr.bf16.mxu0 0
      %3697 = vmatpush1.bf16.msra.mxu0 0
      %3698 = vmatprep.subr.bf16.mxu0 0
      %3699 = vmatpush1.bf16.msra.mxu0 0
      %3700 = vmatprep.subr.bf16.mxu0 0
      %3701 = vmatpush1.bf16.msra.mxu0 0
      %3702 = vmatprep.subr.bf16.mxu0 0
      %3703 = vmatpush1.bf16.msra.mxu0 0
      %3704 = vmatprep.subr.bf16.mxu0 0
      %3705 = vmatpush1.bf16.msra.mxu0 0
      %3706 = vmatprep.subr.bf16.mxu0 0
      %3707 = vmatpush1.bf16.msra.mxu0 0
      %3708 = vmatprep.mubr.bf16.mxu0 0
      %3709 = vmatmul.mubr.bf16.gmra.mrb[0].mxu0 %v3250
      %v3710 = vpop.f32.mrb[0].mxu0
      %v3711 = vadd.f32 0.0, %v3710
      %v3712 = vpop.f32.mrb[0].mxu0
      %v3713 = vpop.f32.mrb[0].mxu0
      %v3714 = vadd.f32 0.0, %v3713
      %v3715 = vpop.f32.mrb[0].mxu0
      %3716 = vmatprep.mubr.bf16.mxu0 0
      %3717 = vmatmul.mubr.bf16.gmra.mrb[0].mxu0 %v3253
      %v3718 = vpop.f32.mrb[0].mxu0
      %v3719 = vadd.f32 0.0, %v3718
      %v3720 = vpop.f32.mrb[0].mxu0
      %v3721 = vpop.f32.mrb[0].mxu0
      %v3722 = vadd.f32 0.0, %v3721
      %v3723 = vpop.f32.mrb[0].mxu0
      %3724 = vdwg.mxu0
      %v3725 = vpack.c.bf16 %v3714, %v3711
      %v3726 = vpack.c.bf16 %v3722, %v3719
      %3727 = vst.msk [vmem:[#allocation3 + $0x40] sm:$0xff] %vm3310, %v3725
      %3728 = vst.msk [vmem:[#allocation3 + $0x48] sm:$0xff] %vm3310, %v3726
      %s3729 = scalar_lea.vmem %s6, 240
      %v3730 = vld [vmem:[%s3729] sm:$0xf]
      %v3731 = vld [vmem:[%s3729 + $0x4] sm:$0xf]
      %v3732 = vld [vmem:[%s3729 + $0x8] sm:$0xf]
      %v3733 = vld [vmem:[%s3729 + $0xc] sm:$0xf]
      %v3734 = vld [vmem:[%s3729 + $0x10] sm:$0xf]
      %v3735 = vld [vmem:[%s3729 + $0x14] sm:$0xf]
      %v3736 = vld [vmem:[%s3729 + $0x18] sm:$0xf]
      %v3737 = vld [vmem:[%s3729 + $0x1c] sm:$0xf]
      %v3738 = vld [vmem:[%s3729 + $0x20] sm:$0xf]
      %v3739 = vld [vmem:[%s3729 + $0x24] sm:$0xf]
      %v3740 = vld [vmem:[%s3729 + $0x28] sm:$0xf]
      %v3741 = vld [vmem:[%s3729 + $0x2c] sm:$0x7]
      %v3754 = vunpack.c.l.b16 %v3730
      %v3755 = vunpack.c.l.b16 %v3731
      %v3756 = vunpack.c.l.b16 %v3732
      %v3757 = vunpack.c.l.b16 %v3733
      %v3758 = vunpack.c.l.b16 %v3734
      %v3759 = vunpack.c.l.b16 %v3735
      %v3760 = vunpack.c.l.b16 %v3736
      %v3761 = vunpack.c.l.b16 %v3737
      %v3762 = vunpack.c.l.b16 %v3738
      %v3763 = vunpack.c.l.b16 %v3739
      %v3764 = vunpack.c.l.b16 %v3740
      %v3765 = vunpack.c.l.b16 %v3741
      %v3766 = vpack.c.b16 %v3755, %v3754
      %v3767 = vpack.c.b16 %v3757, %v3756
      %v3768 = vpack.c.b16 %v3759, %v3758
      %v3769 = vpack.c.b16 %v3761, %v3760
      %v3770 = vpack.c.b16 %v3763, %v3762
      %v3771 = vpack.c.b16 %v3765, %v3764
      %v3778 = vsel %vm3255, %v3771, 0
      %3780 = vmatprep.subr.bf16.mxu0 0
      %3781 = vmatpush1.bf16.msra.mxu0 %v3766
      %3782 = vmatprep.subr.bf16.mxu0 0
      %3783 = vmatpush1.bf16.msra.mxu0 %v3767
      %3784 = vmatprep.subr.bf16.mxu0 0
      %3785 = vmatpush1.bf16.msra.mxu0 %v3768
      %3786 = vmatprep.subr.bf16.mxu0 0
      %3787 = vmatpush1.bf16.msra.mxu0 %v3769
      %3788 = vmatprep.subr.bf16.mxu0 0
      %3789 = vmatpush1.bf16.msra.mxu0 %v3770
      %3790 = vmatprep.subr.bf16.mxu0 0
      %3791 = vmatpush1.bf16.msra.mxu0 %v3778
      %3792 = vmatprep.subr.bf16.mxu0 0
      %3793 = vmatpush1.bf16.msra.mxu0 0
      %3794 = vmatprep.subr.bf16.mxu0 0
      %3795 = vmatpush1.bf16.msra.mxu0 0
      %3796 = vmatprep.subr.bf16.mxu0 0
      %3797 = vmatpush1.bf16.msra.mxu0 0
      %3798 = vmatprep.subr.bf16.mxu0 0
      %3799 = vmatpush1.bf16.msra.mxu0 0
      %3800 = vmatprep.subr.bf16.mxu0 0
      %3801 = vmatpush1.bf16.msra.mxu0 0
      %3802 = vmatprep.subr.bf16.mxu0 0
      %3803 = vmatpush1.bf16.msra.mxu0 0
      %3804 = vmatprep.subr.bf16.mxu0 0
      %3805 = vmatpush1.bf16.msra.mxu0 0
      %3806 = vmatprep.subr.bf16.mxu0 0
      %3807 = vmatpush1.bf16.msra.mxu0 0
      %3808 = vmatprep.subr.bf16.mxu0 0
      %3809 = vmatpush1.bf16.msra.mxu0 0
      %3810 = vmatprep.subr.bf16.mxu0 0
      %3811 = vmatpush1.bf16.msra.mxu0 0
      %3812 = vmatprep.mubr.bf16.mxu0 0
      %3813 = vmatmul.mubr.bf16.gmra.mrb[0].mxu0 %v3250
      %v3814 = vpop.f32.mrb[0].mxu0
      %v3815 = vadd.f32 0.0, %v3814
      %v3816 = vpop.f32.mrb[0].mxu0
      %v3817 = vpop.f32.mrb[0].mxu0
      %v3818 = vadd.f32 0.0, %v3817
      %v3819 = vpop.f32.mrb[0].mxu0
      %3820 = vmatprep.mubr.bf16.mxu0 0
      %3821 = vmatmul.mubr.bf16.gmra.mrb[0].mxu0 %v3253
      %v3822 = vpop.f32.mrb[0].mxu0
      %v3823 = vadd.f32 0.0, %v3822
      %v3824 = vpop.f32.mrb[0].mxu0
      %v3825 = vpop.f32.mrb[0].mxu0
      %v3826 = vadd.f32 0.0, %v3825
      %v3827 = vpop.f32.mrb[0].mxu0
      %3828 = vdwg.mxu0
      %v3829 = vpack.c.bf16 %v3818, %v3815
      %v3830 = vpack.c.bf16 %v3826, %v3823
      %3831 = vst.msk [vmem:[#allocation3 + $0x50] sm:$0xff] %vm3310, %v3829
      %3832 = vst.msk [vmem:[#allocation3 + $0x58] sm:$0xff] %vm3310, %v3830
      %s3833 = scalar_lea.vmem %s6, 288
      %v3834 = vld [vmem:[%s3833] sm:$0xf]
      %v3835 = vld [vmem:[%s3833 + $0x4] sm:$0xf]
      %v3836 = vld [vmem:[%s3833 + $0x8] sm:$0xf]
      %v3837 = vld [vmem:[%s3833 + $0xc] sm:$0xf]
      %v3838 = vld [vmem:[%s3833 + $0x10] sm:$0xf]
      %v3839 = vld [vmem:[%s3833 + $0x14] sm:$0xf]
      %v3840 = vld [vmem:[%s3833 + $0x18] sm:$0xf]
      %v3841 = vld [vmem:[%s3833 + $0x1c] sm:$0xf]
      %v3842 = vld [vmem:[%s3833 + $0x20] sm:$0xf]
      %v3843 = vld [vmem:[%s3833 + $0x24] sm:$0xf]
      %v3844 = vld [vmem:[%s3833 + $0x28] sm:$0xf]
      %v3845 = vld [vmem:[%s3833 + $0x2c] sm:$0x7]
      %v3858 = vunpack.c.l.b16 %v3834
      %v3859 = vunpack.c.l.b16 %v3835
      %v3860 = vunpack.c.l.b16 %v3836
      %v3861 = vunpack.c.l.b16 %v3837
      %v3862 = vunpack.c.l.b16 %v3838
      %v3863 = vunpack.c.l.b16 %v3839
      %v3864 = vunpack.c.l.b16 %v3840
      %v3865 = vunpack.c.l.b16 %v3841
      %v3866 = vunpack.c.l.b16 %v3842
      %v3867 = vunpack.c.l.b16 %v3843
      %v3868 = vunpack.c.l.b16 %v3844
      %v3869 = vunpack.c.l.b16 %v3845
      %v3870 = vpack.c.b16 %v3859, %v3858
      %v3871 = vpack.c.b16 %v3861, %v3860
      %v3872 = vpack.c.b16 %v3863, %v3862
      %v3873 = vpack.c.b16 %v3865, %v3864
      %v3874 = vpack.c.b16 %v3867, %v3866
      %v3875 = vpack.c.b16 %v3869, %v3868
      %v3882 = vsel %vm3255, %v3875, 0
      %3884 = vmatprep.subr.bf16.mxu0 0
      %3885 = vmatpush1.bf16.msra.mxu0 %v3870
      %3886 = vmatprep.subr.bf16.mxu0 0
      %3887 = vmatpush1.bf16.msra.mxu0 %v3871
      %3888 = vmatprep.subr.bf16.mxu0 0
      %3889 = vmatpush1.bf16.msra.mxu0 %v3872
      %3890 = vmatprep.subr.bf16.mxu0 0
      %3891 = vmatpush1.bf16.msra.mxu0 %v3873
      %3892 = vmatprep.subr.bf16.mxu0 0
      %3893 = vmatpush1.bf16.msra.mxu0 %v3874
      %3894 = vmatprep.subr.bf16.mxu0 0
      %3895 = vmatpush1.bf16.msra.mxu0 %v3882
      %3896 = vmatprep.subr.bf16.mxu0 0
      %3897 = vmatpush1.bf16.msra.mxu0 0
      %3898 = vmatprep.subr.bf16.mxu0 0
      %3899 = vmatpush1.bf16.msra.mxu0 0
      %3900 = vmatprep.subr.bf16.mxu0 0
      %3901 = vmatpush1.bf16.msra.mxu0 0
      %3902 = vmatprep.subr.bf16.mxu0 0
      %3903 = vmatpush1.bf16.msra.mxu0 0
      %3904 = vmatprep.subr.bf16.mxu0 0
      %3905 = vmatpush1.bf16.msra.mxu0 0
      %3906 = vmatprep.subr.bf16.mxu0 0
      %3907 = vmatpush1.bf16.msra.mxu0 0
      %3908 = vmatprep.subr.bf16.mxu0 0
      %3909 = vmatpush1.bf16.msra.mxu0 0
      %3910 = vmatprep.subr.bf16.mxu0 0
      %3911 = vmatpush1.bf16.msra.mxu0 0
      %3912 = vmatprep.subr.bf16.mxu0 0
      %3913 = vmatpush1.bf16.msra.mxu0 0
      %3914 = vmatprep.subr.bf16.mxu0 0
      %3915 = vmatpush1.bf16.msra.mxu0 0
      %3916 = vmatprep.mubr.bf16.mxu0 0
      %3917 = vmatmul.mubr.bf16.gmra.mrb[0].mxu0 %v3250
      %v3918 = vpop.f32.mrb[0].mxu0
      %v3919 = vadd.f32 0.0, %v3918
      %v3920 = vpop.f32.mrb[0].mxu0
      %v3921 = vpop.f32.mrb[0].mxu0
      %v3922 = vadd.f32 0.0, %v3921
      %v3923 = vpop.f32.mrb[0].mxu0
      %3924 = vmatprep.mubr.bf16.mxu0 0
      %3925 = vmatmul.mubr.bf16.gmra.mrb[0].mxu0 %v3253
      %v3926 = vpop.f32.mrb[0].mxu0
      %v3927 = vadd.f32 0.0, %v3926
      %v3928 = vpop.f32.mrb[0].mxu0
      %v3929 = vpop.f32.mrb[0].mxu0
      %v3930 = vadd.f32 0.0, %v3929
      %v3931 = vpop.f32.mrb[0].mxu0
      %3932 = vdwg.mxu0
      %v3933 = vpack.c.bf16 %v3922, %v3919
      %v3934 = vpack.c.bf16 %v3930, %v3927
      %3935 = vst.msk [vmem:[#allocation3 + $0x60] sm:$0xff] %vm3310, %v3933
      %3936 = vst.msk [vmem:[#allocation3 + $0x68] sm:$0xff] %vm3310, %v3934
      %s3937 = scalar_lea.vmem %s6, 336
      %v3938 = vld [vmem:[%s3937] sm:$0xf]
      %v3939 = vld [vmem:[%s3937 + $0x4] sm:$0xf]
      %v3940 = vld [vmem:[%s3937 + $0x8] sm:$0xf]
      %v3941 = vld [vmem:[%s3937 + $0xc] sm:$0xf]
      %v3942 = vld [vmem:[%s3937 + $0x10] sm:$0xf]
      %v3943 = vld [vmem:[%s3937 + $0x14] sm:$0xf]
      %v3944 = vld [vmem:[%s3937 + $0x18] sm:$0xf]
      %v3945 = vld [vmem:[%s3937 + $0x1c] sm:$0xf]
      %v3946 = vld [vmem:[%s3937 + $0x20] sm:$0xf]
      %v3947 = vld [vmem:[%s3937 + $0x24] sm:$0xf]
      %v3948 = vld [vmem:[%s3937 + $0x28] sm:$0xf]
      %v3949 = vld [vmem:[%s3937 + $0x2c] sm:$0x7]
      %v3962 = vunpack.c.l.b16 %v3938
      %v3963 = vunpack.c.l.b16 %v3939
      %v3964 = vunpack.c.l.b16 %v3940
      %v3965 = vunpack.c.l.b16 %v3941
      %v3966 = vunpack.c.l.b16 %v3942
      %v3967 = vunpack.c.l.b16 %v3943
      %v3968 = vunpack.c.l.b16 %v3944
      %v3969 = vunpack.c.l.b16 %v3945
      %v3970 = vunpack.c.l.b16 %v3946
      %v3971 = vunpack.c.l.b16 %v3947
      %v3972 = vunpack.c.l.b16 %v3948
      %v3973 = vunpack.c.l.b16 %v3949
      %v3974 = vpack.c.b16 %v3963, %v3962
      %v3975 = vpack.c.b16 %v3965, %v3964
      %v3976 = vpack.c.b16 %v3967, %v3966
      %v3977 = vpack.c.b16 %v3969, %v3968
      %v3978 = vpack.c.b16 %v3971, %v3970
      %v3979 = vpack.c.b16 %v3973, %v3972
      %v3986 = vsel %vm3255, %v3979, 0
      %3988 = vmatprep.subr.bf16.mxu0 0
      %3989 = vmatpush1.bf16.msra.mxu0 %v3974
      %3990 = vmatprep.subr.bf16.mxu0 0
      %3991 = vmatpush1.bf16.msra.mxu0 %v3975
      %3992 = vmatprep.subr.bf16.mxu0 0
      %3993 = vmatpush1.bf16.msra.mxu0 %v3976
      %3994 = vmatprep.subr.bf16.mxu0 0
      %3995 = vmatpush1.bf16.msra.mxu0 %v3977
      %3996 = vmatprep.subr.bf16.mxu0 0
      %3997 = vmatpush1.bf16.msra.mxu0 %v3978
      %3998 = vmatprep.subr.bf16.mxu0 0
      %3999 = vmatpush1.bf16.msra.mxu0 %v3986
      %4000 = vmatprep.subr.bf16.mxu0 0
      %4001 = vmatpush1.bf16.msra.mxu0 0
      %4002 = vmatprep.subr.bf16.mxu0 0
      %4003 = vmatpush1.bf16.msra.mxu0 0
      %4004 = vmatprep.subr.bf16.mxu0 0
      %4005 = vmatpush1.bf16.msra.mxu0 0
      %4006 = vmatprep.subr.bf16.mxu0 0
      %4007 = vmatpush1.bf16.msra.mxu0 0
      %4008 = vmatprep.subr.bf16.mxu0 0
      %4009 = vmatpush1.bf16.msra.mxu0 0
      %4010 = vmatprep.subr.bf16.mxu0 0
      %4011 = vmatpush1.bf16.msra.mxu0 0
      %4012 = vmatprep.subr.bf16.mxu0 0
      %4013 = vmatpush1.bf16.msra.mxu0 0
      %4014 = vmatprep.subr.bf16.mxu0 0
      %4015 = vmatpush1.bf16.msra.mxu0 0
      %4016 = vmatprep.subr.bf16.mxu0 0
      %4017 = vmatpush1.bf16.msra.mxu0 0
      %4018 = vmatprep.subr.bf16.mxu0 0
      %4019 = vmatpush1.bf16.msra.mxu0 0
      %4020 = vmatprep.mubr.bf16.mxu0 0
      %4021 = vmatmul.mubr.bf16.gmra.mrb[0].mxu0 %v3250
      %v4022 = vpop.f32.mrb[0].mxu0
      %v4023 = vadd.f32 0.0, %v4022
      %v4024 = vpop.f32.mrb[0].mxu0
      %v4025 = vpop.f32.mrb[0].mxu0
      %v4026 = vadd.f32 0.0, %v4025
      %v4027 = vpop.f32.mrb[0].mxu0
      %4028 = vmatprep.mubr.bf16.mxu0 0
      %4029 = vmatmul.mubr.bf16.gmra.mrb[0].mxu0 %v3253
      %v4030 = vpop.f32.mrb[0].mxu0
      %v4031 = vadd.f32 0.0, %v4030
      %v4032 = vpop.f32.mrb[0].mxu0
      %v4033 = vpop.f32.mrb[0].mxu0
      %v4034 = vadd.f32 0.0, %v4033
      %v4035 = vpop.f32.mrb[0].mxu0
      %4036 = vdwg.mxu0
      %v4037 = vpack.c.bf16 %v4026, %v4023
      %v4038 = vpack.c.bf16 %v4034, %v4031
      %4039 = vst.msk [vmem:[#allocation3 + $0x70] sm:$0xff] %vm3310, %v4037
      %4040 = vst.msk [vmem:[#allocation3 + $0x78] sm:$0xff] %vm3310, %v4038
      %v4041 = vld [vmem:[%s7] sm:$0xff]
      %v4042 = vld [vmem:[%s7 + $0x8] sm:$0xff]
      %v4043 = vld [vmem:[%s7 + $0x10] sm:$0xff]
      %v4044 = vld [vmem:[%s7 + $0x18] sm:$0xff]
      %v4045 = vld [vmem:[%s7 + $0x20] sm:$0xff]
      %v4046 = vld [vmem:[%s7 + $0x28] sm:$0xff]
      %v4047 = vld [vmem:[%s7 + $0x30] sm:$0xff]
      %v4048 = vld [vmem:[%s7 + $0x38] sm:$0xff]
      %v4049 = vld [vmem:[#allocation3] sm:$0xff]
      %v4050 = vld [vmem:[#allocation3 + $0x8] sm:$0xff]
      %v4051 = vld [vmem:[#allocation3 + $0x10] sm:$0xff]
      %v4052 = vld [vmem:[#allocation3 + $0x18] sm:$0xff]
      %v4053 = vld [vmem:[#allocation3 + $0x20] sm:$0xff]
      %v4054 = vld [vmem:[#allocation3 + $0x28] sm:$0xff]
      %v4055 = vld [vmem:[#allocation3 + $0x30] sm:$0xff]
      %v4056 = vld [vmem:[#allocation3 + $0x38] sm:$0xff]
      %v4057 = vld [vmem:[#allocation3 + $0x40] sm:$0xff]
      %v4058 = vld [vmem:[#allocation3 + $0x48] sm:$0xff]
      %v4059 = vld [vmem:[#allocation3 + $0x50] sm:$0xff]
      %v4060 = vld [vmem:[#allocation3 + $0x58] sm:$0xff]
      %v4061 = vld [vmem:[#allocation3 + $0x60] sm:$0xff]
      %v4062 = vld [vmem:[#allocation3 + $0x68] sm:$0xff]
      %v4063 = vld [vmem:[#allocation3 + $0x70] sm:$0xff]
      %v4064 = vld [vmem:[#allocation3 + $0x78] sm:$0xff]
      %s4065 = scalar_lea.vmem %s7, 64
      %v4066 = vld [vmem:[%s4065] sm:$0xff]
      %v4067 = vld [vmem:[%s4065 + $0x8] sm:$0xff]
      %v4068 = vld [vmem:[%s4065 + $0x10] sm:$0xff]
      %v4069 = vld [vmem:[%s4065 + $0x18] sm:$0xff]
      %v4070 = vld [vmem:[%s4065 + $0x20] sm:$0xff]
      %v4071 = vld [vmem:[%s4065 + $0x28] sm:$0xff]
      %v4072 = vld [vmem:[%s4065 + $0x30] sm:$0xff]
      %v4073 = vld [vmem:[%s4065 + $0x38] sm:$0xff]
      %v4082 = vunpack.c.l.b16 %v4066
      %v4083 = vunpack.c.h.b16 %v4066
      %v4084 = vunpack.c.l.b16 %v4067
      %v4085 = vunpack.c.h.b16 %v4067
      %v4086 = vunpack.c.l.b16 %v4068
      %v4087 = vunpack.c.h.b16 %v4068
      %v4088 = vunpack.c.l.b16 %v4069
      %v4089 = vunpack.c.h.b16 %v4069
      %v4090 = vunpack.c.l.b16 %v4070
      %v4091 = vunpack.c.h.b16 %v4070
      %v4092 = vunpack.c.l.b16 %v4071
      %v4093 = vunpack.c.h.b16 %v4071
      %v4094 = vunpack.c.l.b16 %v4072
      %v4095 = vunpack.c.h.b16 %v4072
      %v4096 = vunpack.c.l.b16 %v4073
      %v4097 = vunpack.c.h.b16 %v4073
      %v4098 = vpack.c.b16 %v4084, %v4082
      %v4099 = vpack.c.b16 %v4085, %v4083
      %v4100 = vpack.c.b16 %v4088, %v4086
      %v4101 = vpack.c.b16 %v4089, %v4087
      %v4102 = vpack.c.b16 %v4092, %v4090
      %v4103 = vpack.c.b16 %v4093, %v4091
      %v4104 = vpack.c.b16 %v4096, %v4094
      %v4105 = vpack.c.b16 %v4097, %v4095
      %4130 = vrot.lane.b32.xlu0 %v4049, 127
      %v4131 = vpop.permute.xlu0 %4130
      %4132 = vrot.lane.b32.xlu0 %v4050, 127
      %v4133 = vpop.permute.xlu0 %4132
      %4134 = vrot.lane.b32.xlu0 %v4051, 127
      %v4135 = vpop.permute.xlu0 %4134
      %4136 = vrot.lane.b32.xlu0 %v4052, 127
      %v4137 = vpop.permute.xlu0 %4136
      %4138 = vrot.lane.b32.xlu0 %v4053, 127
      %v4139 = vpop.permute.xlu0 %4138
      %4140 = vrot.lane.b32.xlu0 %v4054, 127
      %v4141 = vpop.permute.xlu0 %4140
      %4142 = vrot.lane.b32.xlu0 %v4055, 127
      %v4143 = vpop.permute.xlu0 %4142
      %4144 = vrot.lane.b32.xlu0 %v4056, 127
      %v4145 = vpop.permute.xlu0 %4144
      %4146 = vrot.lane.b32.xlu0 %v4057, 127
      %v4147 = vpop.permute.xlu0 %4146
      %4148 = vrot.lane.b32.xlu0 %v4058, 127
      %v4149 = vpop.permute.xlu0 %4148
      %4150 = vrot.lane.b32.xlu0 %v4059, 127
      %v4151 = vpop.permute.xlu0 %4150
      %4152 = vrot.lane.b32.xlu0 %v4060, 127
      %v4153 = vpop.permute.xlu0 %4152
      %4154 = vrot.lane.b32.xlu0 %v4061, 127
      %v4155 = vpop.permute.xlu0 %4154
      %4156 = vrot.lane.b32.xlu0 %v4062, 127
      %v4157 = vpop.permute.xlu0 %4156
      %4158 = vrot.lane.b32.xlu0 %v4063, 127
      %v4159 = vpop.permute.xlu0 %4158
      %4160 = vrot.lane.b32.xlu0 %v4064, 127
      %v4161 = vpop.permute.xlu0 %4160
      %4178 = vmatprep.subr.bf16.mxu0 0
      %4179 = vmatpush1.bf16.msra.mxu0 %v4131
      %4180 = vmatprep.subr.bf16.mxu0 0
      %4181 = vmatpush1.bf16.msra.mxu0 %v4133
      %4182 = vmatprep.subr.bf16.mxu0 0
      %4183 = vmatpush1.bf16.msra.mxu0 %v4135
      %4184 = vmatprep.subr.bf16.mxu0 0
      %4185 = vmatpush1.bf16.msra.mxu0 %v4137
      %4186 = vmatprep.subr.bf16.mxu0 0
      %4187 = vmatpush1.bf16.msra.mxu0 %v4139
      %4188 = vmatprep.subr.bf16.mxu0 0
      %4189 = vmatpush1.bf16.msra.mxu0 %v4141
      %4190 = vmatprep.subr.bf16.mxu0 0
      %4191 = vmatpush1.bf16.msra.mxu0 %v4143
      %4192 = vmatprep.subr.bf16.mxu0 0
      %4193 = vmatpush1.bf16.msra.mxu0 %v4145
      %4194 = vmatprep.subr.bf16.mxu0 0
      %4195 = vmatpush1.bf16.msra.mxu0 %v4147
      %4196 = vmatprep.subr.bf16.mxu0 0
      %4197 = vmatpush1.bf16.msra.mxu0 %v4149
      %4198 = vmatprep.subr.bf16.mxu0 0
      %4199 = vmatpush1.bf16.msra.mxu0 %v4151
      %4200 = vmatprep.subr.bf16.mxu0 0
      %4201 = vmatpush1.bf16.msra.mxu0 %v4153
      %4202 = vmatprep.subr.bf16.mxu0 0
      %4203 = vmatpush1.bf16.msra.mxu0 %v4155
      %4204 = vmatprep.subr.bf16.mxu0 0
      %4205 = vmatpush1.bf16.msra.mxu0 %v4157
      %4206 = vmatprep.subr.bf16.mxu0 0
      %4207 = vmatpush1.bf16.msra.mxu0 %v4159
      %4208 = vmatprep.subr.bf16.mxu0 0
      %4209 = vmatpush1.bf16.msra.mxu0 %v4161
      %4210 = vmatprep.mubr.bf16.mxu0 %v4099
      %4211 = vmatmul.mubr.bf16.gmra.mrb[0].mxu0 %v4098
      %v4212 = vpop.f32.mrb[0].mxu0
      %v4213 = vadd.f32 0.0, %v4212
      %v4214 = vpop.f32.mrb[0].mxu0
      %v4215 = vpop.f32.mrb[0].mxu0
      %v4216 = vadd.f32 0.0, %v4215
      %v4217 = vpop.f32.mrb[0].mxu0
      %4218 = vmatprep.mubr.bf16.mxu0 %v4101
      %4219 = vmatmul.mubr.bf16.gmra.mrb[0].mxu0 %v4100
      %v4220 = vpop.f32.mrb[0].mxu0
      %v4221 = vadd.f32 0.0, %v4220
      %v4222 = vpop.f32.mrb[0].mxu0
      %v4223 = vpop.f32.mrb[0].mxu0
      %v4224 = vadd.f32 0.0, %v4223
      %v4225 = vpop.f32.mrb[0].mxu0
      %4226 = vmatprep.mubr.bf16.mxu0 %v4103
      %4227 = vmatmul.mubr.bf16.gmra.mrb[0].mxu0 %v4102
      %v4228 = vpop.f32.mrb[0].mxu0
      %v4229 = vadd.f32 0.0, %v4228
      %v4230 = vpop.f32.mrb[0].mxu0
      %v4231 = vpop.f32.mrb[0].mxu0
      %v4232 = vadd.f32 0.0, %v4231
      %v4233 = vpop.f32.mrb[0].mxu0
      %4234 = vmatprep.mubr.bf16.mxu0 %v4105
      %4235 = vmatmul.mubr.bf16.gmra.mrb[0].mxu0 %v4104
      %v4236 = vpop.f32.mrb[0].mxu0
      %v4237 = vadd.f32 0.0, %v4236
      %v4238 = vpop.f32.mrb[0].mxu0
      %v4239 = vpop.f32.mrb[0].mxu0
      %v4240 = vadd.f32 0.0, %v4239
      %v4241 = vpop.f32.mrb[0].mxu0
      %4242 = vdwg.mxu0
      %v4251 = vunpack.c.l.b16 %v4041
      %v4252 = vunpack.c.h.b16 %v4041
      %v4253 = vunpack.c.l.b16 %v4042
      %v4254 = vunpack.c.h.b16 %v4042
      %v4255 = vunpack.c.l.b16 %v4043
      %v4256 = vunpack.c.h.b16 %v4043
      %v4257 = vunpack.c.l.b16 %v4044
      %v4258 = vunpack.c.h.b16 %v4044
      %v4259 = vunpack.c.l.b16 %v4045
      %v4260 = vunpack.c.h.b16 %v4045
      %v4261 = vunpack.c.l.b16 %v4046
      %v4262 = vunpack.c.h.b16 %v4046
      %v4263 = vunpack.c.l.b16 %v4047
      %v4264 = vunpack.c.h.b16 %v4047
      %v4265 = vunpack.c.l.b16 %v4048
      %v4266 = vunpack.c.h.b16 %v4048
      %v4267 = vpack.c.b16 %v4253, %v4251
      %v4268 = vpack.c.b16 %v4254, %v4252
      %v4269 = vpack.c.b16 %v4257, %v4255
      %v4270 = vpack.c.b16 %v4258, %v4256
      %v4271 = vpack.c.b16 %v4261, %v4259
      %v4272 = vpack.c.b16 %v4262, %v4260
      %v4273 = vpack.c.b16 %v4265, %v4263
      %v4274 = vpack.c.b16 %v4266, %v4264
      %4283 = vmatprep.subr.bf16.mxu0 0
      %4284 = vmatpush1.bf16.msra.mxu0 %v4049
      %4285 = vmatprep.subr.bf16.mxu0 0
      %4286 = vmatpush1.bf16.msra.mxu0 %v4050
      %4287 = vmatprep.subr.bf16.mxu0 0
      %4288 = vmatpush1.bf16.msra.mxu0 %v4051
      %4289 = vmatprep.subr.bf16.mxu0 0
      %4290 = vmatpush1.bf16.msra.mxu0 %v4052
      %4291 = vmatprep.subr.bf16.mxu0 0
      %4292 = vmatpush1.bf16.msra.mxu0 %v4053
      %4293 = vmatprep.subr.bf16.mxu0 0
      %4294 = vmatpush1.bf16.msra.mxu0 %v4054
      %4295 = vmatprep.subr.bf16.mxu0 0
      %4296 = vmatpush1.bf16.msra.mxu0 %v4055
      %4297 = vmatprep.subr.bf16.mxu0 0
      %4298 = vmatpush1.bf16.msra.mxu0 %v4056
      %4299 = vmatprep.subr.bf16.mxu0 0
      %4300 = vmatpush1.bf16.msra.mxu0 %v4057
      %4301 = vmatprep.subr.bf16.mxu0 0
      %4302 = vmatpush1.bf16.msra.mxu0 %v4058
      %4303 = vmatprep.subr.bf16.mxu0 0
      %4304 = vmatpush1.bf16.msra.mxu0 %v4059
      %4305 = vmatprep.subr.bf16.mxu0 0
      %4306 = vmatpush1.bf16.msra.mxu0 %v4060
      %4307 = vmatprep.subr.bf16.mxu0 0
      %4308 = vmatpush1.bf16.msra.mxu0 %v4061
      %4309 = vmatprep.subr.bf16.mxu0 0
      %4310 = vmatpush1.bf16.msra.mxu0 %v4062
      %4311 = vmatprep.subr.bf16.mxu0 0
      %4312 = vmatpush1.bf16.msra.mxu0 %v4063
      %4313 = vmatprep.subr.bf16.mxu0 0
      %4314 = vmatpush1.bf16.msra.mxu0 %v4064
      %4315 = vmatprep.mubr.bf16.mxu0 %v4268
      %4316 = vmatmul.mubr.bf16.gmra.mrb[0].mxu0 %v4267
      %v4317 = vpop.f32.mrb[0].mxu0
      %v4318 = vadd.f32 %v4213, %v4317
      %v4319 = vpop.f32.mrb[0].mxu0
      %v4320 = vpop.f32.mrb[0].mxu0
      %v4321 = vadd.f32 %v4216, %v4320
      %v4322 = vpop.f32.mrb[0].mxu0
      %4323 = vmatprep.mubr.bf16.mxu0 %v4270
      %4324 = vmatmul.mubr.bf16.gmra.mrb[0].mxu0 %v4269
      %v4325 = vpop.f32.mrb[0].mxu0
      %v4326 = vadd.f32 %v4221, %v4325
      %v4327 = vpop.f32.mrb[0].mxu0
      %v4328 = vpop.f32.mrb[0].mxu0
      %v4329 = vadd.f32 %v4224, %v4328
      %v4330 = vpop.f32.mrb[0].mxu0
      %4331 = vmatprep.mubr.bf16.mxu0 %v4272
      %4332 = vmatmul.mubr.bf16.gmra.mrb[0].mxu0 %v4271
      %v4333 = vpop.f32.mrb[0].mxu0
      %v4334 = vadd.f32 %v4229, %v4333
      %v4335 = vpop.f32.mrb[0].mxu0
      %v4336 = vpop.f32.mrb[0].mxu0
      %v4337 = vadd.f32 %v4232, %v4336
      %v4338 = vpop.f32.mrb[0].mxu0
      %4339 = vmatprep.mubr.bf16.mxu0 %v4274
      %4340 = vmatmul.mubr.bf16.gmra.mrb[0].mxu0 %v4273
      %v4341 = vpop.f32.mrb[0].mxu0
      %v4342 = vadd.f32 %v4237, %v4341
      %v4343 = vpop.f32.mrb[0].mxu0
      %v4344 = vpop.f32.mrb[0].mxu0
      %v4345 = vadd.f32 %v4240, %v4344
      %v4346 = vpop.f32.mrb[0].mxu0
      %4347 = vdwg.mxu0
      %s4348 = scalar_lea.vmem %s7, 128
      %v4349 = vld [vmem:[%s4348] sm:$0xff]
      %v4350 = vld [vmem:[%s4348 + $0x8] sm:$0xff]
      %v4351 = vld [vmem:[%s4348 + $0x10] sm:$0xff]
      %v4352 = vld [vmem:[%s4348 + $0x18] sm:$0xff]
      %v4353 = vld [vmem:[%s4348 + $0x20] sm:$0xff]
      %v4354 = vld [vmem:[%s4348 + $0x28] sm:$0xff]
      %v4355 = vld [vmem:[%s4348 + $0x30] sm:$0xff]
      %v4356 = vld [vmem:[%s4348 + $0x38] sm:$0xff]
      %v4365 = vunpack.c.l.b16 %v4349
      %v4366 = vunpack.c.h.b16 %v4349
      %v4367 = vunpack.c.l.b16 %v4350
      %v4368 = vunpack.c.h.b16 %v4350
      %v4369 = vunpack.c.l.b16 %v4351
      %v4370 = vunpack.c.h.b16 %v4351
      %v4371 = vunpack.c.l.b16 %v4352
      %v4372 = vunpack.c.h.b16 %v4352
      %v4373 = vunpack.c.l.b16 %v4353
      %v4374 = vunpack.c.h.b16 %v4353
      %v4375 = vunpack.c.l.b16 %v4354
      %v4376 = vunpack.c.h.b16 %v4354
      %v4377 = vunpack.c.l.b16 %v4355
      %v4378 = vunpack.c.h.b16 %v4355
      %v4379 = vunpack.c.l.b16 %v4356
      %v4380 = vunpack.c.h.b16 %v4356
      %v4381 = vpack.c.b16 %v4367, %v4365
      %v4382 = vpack.c.b16 %v4368, %v4366
      %v4383 = vpack.c.b16 %v4371, %v4369
      %v4384 = vpack.c.b16 %v4372, %v4370
      %v4385 = vpack.c.b16 %v4375, %v4373
      %v4386 = vpack.c.b16 %v4376, %v4374
      %v4387 = vpack.c.b16 %v4379, %v4377
      %v4388 = vpack.c.b16 %v4380, %v4378
      %4397 = vrot.lane.b32.xlu0 %v4049, 125
      %v4398 = vpop.permute.xlu0 %4397
      %4399 = vrot.lane.b32.xlu0 %v4050, 125
      %v4400 = vpop.permute.xlu0 %4399
      %4401 = vrot.lane.b32.xlu0 %v4051, 125
      %v4402 = vpop.permute.xlu0 %4401
      %4403 = vrot.lane.b32.xlu0 %v4052, 125
      %v4404 = vpop.permute.xlu0 %4403
      %4405 = vrot.lane.b32.xlu0 %v4053, 125
      %v4406 = vpop.permute.xlu0 %4405
      %4407 = vrot.lane.b32.xlu0 %v4054, 125
      %v4408 = vpop.permute.xlu0 %4407
      %4409 = vrot.lane.b32.xlu0 %v4055, 125
      %v4410 = vpop.permute.xlu0 %4409
      %4411 = vrot.lane.b32.xlu0 %v4056, 125
      %v4412 = vpop.permute.xlu0 %4411
      %4413 = vrot.lane.b32.xlu0 %v4057, 125
      %v4414 = vpop.permute.xlu0 %4413
      %4415 = vrot.lane.b32.xlu0 %v4058, 125
      %v4416 = vpop.permute.xlu0 %4415
      %4417 = vrot.lane.b32.xlu0 %v4059, 125
      %v4418 = vpop.permute.xlu0 %4417
      %4419 = vrot.lane.b32.xlu0 %v4060, 125
      %v4420 = vpop.permute.xlu0 %4419
      %4421 = vrot.lane.b32.xlu0 %v4061, 125
      %v4422 = vpop.permute.xlu0 %4421
      %4423 = vrot.lane.b32.xlu0 %v4062, 125
      %v4424 = vpop.permute.xlu0 %4423
      %4425 = vrot.lane.b32.xlu0 %v4063, 125
      %v4426 = vpop.permute.xlu0 %4425
      %4427 = vrot.lane.b32.xlu0 %v4064, 125
      %v4428 = vpop.permute.xlu0 %4427
      %4445 = vmatprep.subr.bf16.mxu0 0
      %4446 = vmatpush1.bf16.msra.mxu0 %v4398
      %4447 = vmatprep.subr.bf16.mxu0 0
      %4448 = vmatpush1.bf16.msra.mxu0 %v4400
      %4449 = vmatprep.subr.bf16.mxu0 0
      %4450 = vmatpush1.bf16.msra.mxu0 %v4402
      %4451 = vmatprep.subr.bf16.mxu0 0
      %4452 = vmatpush1.bf16.msra.mxu0 %v4404
      %4453 = vmatprep.subr.bf16.mxu0 0
      %4454 = vmatpush1.bf16.msra.mxu0 %v4406
      %4455 = vmatprep.subr.bf16.mxu0 0
      %4456 = vmatpush1.bf16.msra.mxu0 %v4408
      %4457 = vmatprep.subr.bf16.mxu0 0
      %4458 = vmatpush1.bf16.msra.mxu0 %v4410
      %4459 = vmatprep.subr.bf16.mxu0 0
      %4460 = vmatpush1.bf16.msra.mxu0 %v4412
      %4461 = vmatprep.subr.bf16.mxu0 0
      %4462 = vmatpush1.bf16.msra.mxu0 %v4414
      %4463 = vmatprep.subr.bf16.mxu0 0
      %4464 = vmatpush1.bf16.msra.mxu0 %v4416
      %4465 = vmatprep.subr.bf16.mxu0 0
      %4466 = vmatpush1.bf16.msra.mxu0 %v4418
      %4467 = vmatprep.subr.bf16.mxu0 0
      %4468 = vmatpush1.bf16.msra.mxu0 %v4420
      %4469 = vmatprep.subr.bf16.mxu0 0
      %4470 = vmatpush1.bf16.msra.mxu0 %v4422
      %4471 = vmatprep.subr.bf16.mxu0 0
      %4472 = vmatpush1.bf16.msra.mxu0 %v4424
      %4473 = vmatprep.subr.bf16.mxu0 0
      %4474 = vmatpush1.bf16.msra.mxu0 %v4426
      %4475 = vmatprep.subr.bf16.mxu0 0
      %4476 = vmatpush1.bf16.msra.mxu0 %v4428
      %4477 = vmatprep.mubr.bf16.mxu0 %v4382
      %4478 = vmatmul.mubr.bf16.gmra.mrb[0].mxu0 %v4381
      %v4479 = vpop.f32.mrb[0].mxu0
      %v4480 = vadd.f32 0.0, %v4479
      %v4481 = vpop.f32.mrb[0].mxu0
      %v4482 = vpop.f32.mrb[0].mxu0
      %v4483 = vadd.f32 0.0, %v4482
      %v4484 = vpop.f32.mrb[0].mxu0
      %4485 = vmatprep.mubr.bf16.mxu0 %v4384
      %4486 = vmatmul.mubr.bf16.gmra.mrb[0].mxu0 %v4383
      %v4487 = vpop.f32.mrb[0].mxu0
      %v4488 = vadd.f32 0.0, %v4487
      %v4489 = vpop.f32.mrb[0].mxu0
      %v4490 = vpop.f32.mrb[0].mxu0
      %v4491 = vadd.f32 0.0, %v4490
      %v4492 = vpop.f32.mrb[0].mxu0
      %4493 = vmatprep.mubr.bf16.mxu0 %v4386
      %4494 = vmatmul.mubr.bf16.gmra.mrb[0].mxu0 %v4385
      %v4495 = vpop.f32.mrb[0].mxu0
      %v4496 = vadd.f32 0.0, %v4495
      %v4497 = vpop.f32.mrb[0].mxu0
      %v4498 = vpop.f32.mrb[0].mxu0
      %v4499 = vadd.f32 0.0, %v4498
      %v4500 = vpop.f32.mrb[0].mxu0
      %4501 = vmatprep.mubr.bf16.mxu0 %v4388
      %4502 = vmatmul.mubr.bf16.gmra.mrb[0].mxu0 %v4387
      %v4503 = vpop.f32.mrb[0].mxu0
      %v4504 = vadd.f32 0.0, %v4503
      %v4505 = vpop.f32.mrb[0].mxu0
      %v4506 = vpop.f32.mrb[0].mxu0
      %v4507 = vadd.f32 0.0, %v4506
      %v4508 = vpop.f32.mrb[0].mxu0
      %4509 = vdwg.mxu0
      %v4510 = vadd.f32 %v4318, %v4480
      %v4511 = vadd.f32 %v4321, %v4483
      %v4512 = vadd.f32 %v4326, %v4488
      %v4513 = vadd.f32 %v4329, %v4491
      %v4514 = vadd.f32 %v4334, %v4496
      %v4515 = vadd.f32 %v4337, %v4499
      %v4516 = vadd.f32 %v4342, %v4504
      %v4517 = vadd.f32 %v4345, %v4507
      %s4518 = scalar_lea.vmem %s7, 192
      %v4519 = vld [vmem:[%s4518] sm:$0xff]
      %v4520 = vld [vmem:[%s4518 + $0x8] sm:$0xff]
      %v4521 = vld [vmem:[%s4518 + $0x10] sm:$0xff]
      %v4522 = vld [vmem:[%s4518 + $0x18] sm:$0xff]
      %v4523 = vld [vmem:[%s4518 + $0x20] sm:$0xff]
      %v4524 = vld [vmem:[%s4518 + $0x28] sm:$0xff]
      %v4525 = vld [vmem:[%s4518 + $0x30] sm:$0xff]
      %v4526 = vld [vmem:[%s4518 + $0x38] sm:$0xff]
      %v4535 = vunpack.c.l.b16 %v4519
      %v4536 = vunpack.c.h.b16 %v4519
      %v4537 = vunpack.c.l.b16 %v4520
      %v4538 = vunpack.c.h.b16 %v4520
      %v4539 = vunpack.c.l.b16 %v4521
      %v4540 = vunpack.c.h.b16 %v4521
      %v4541 = vunpack.c.l.b16 %v4522
      %v4542 = vunpack.c.h.b16 %v4522
      %v4543 = vunpack.c.l.b16 %v4523
      %v4544 = vunpack.c.h.b16 %v4523
      %v4545 = vunpack.c.l.b16 %v4524
      %v4546 = vunpack.c.h.b16 %v4524
      %v4547 = vunpack.c.l.b16 %v4525
      %v4548 = vunpack.c.h.b16 %v4525
      %v4549 = vunpack.c.l.b16 %v4526
      %v4550 = vunpack.c.h.b16 %v4526
      %v4551 = vpack.c.b16 %v4537, %v4535
      %v4552 = vpack.c.b16 %v4538, %v4536
      %v4553 = vpack.c.b16 %v4541, %v4539
      %v4554 = vpack.c.b16 %v4542, %v4540
      %v4555 = vpack.c.b16 %v4545, %v4543
      %v4556 = vpack.c.b16 %v4546, %v4544
      %v4557 = vpack.c.b16 %v4549, %v4547
      %v4558 = vpack.c.b16 %v4550, %v4548
      %4567 = vrot.lane.b32.xlu0 %v4049, 124
      %v4568 = vpop.permute.xlu0 %4567
      %4569 = vrot.lane.b32.xlu0 %v4050, 124
      %v4570 = vpop.permute.xlu0 %4569
      %4571 = vrot.lane.b32.xlu0 %v4051, 124
      %v4572 = vpop.permute.xlu0 %4571
      %4573 = vrot.lane.b32.xlu0 %v4052, 124
      %v4574 = vpop.permute.xlu0 %4573
      %4575 = vrot.lane.b32.xlu0 %v4053, 124
      %v4576 = vpop.permute.xlu0 %4575
      %4577 = vrot.lane.b32.xlu0 %v4054, 124
      %v4578 = vpop.permute.xlu0 %4577
      %4579 = vrot.lane.b32.xlu0 %v4055, 124
      %v4580 = vpop.permute.xlu0 %4579
      %4581 = vrot.lane.b32.xlu0 %v4056, 124
      %v4582 = vpop.permute.xlu0 %4581
      %4583 = vrot.lane.b32.xlu0 %v4057, 124
      %v4584 = vpop.permute.xlu0 %4583
      %4585 = vrot.lane.b32.xlu0 %v4058, 124
      %v4586 = vpop.permute.xlu0 %4585
      %4587 = vrot.lane.b32.xlu0 %v4059, 124
      %v4588 = vpop.permute.xlu0 %4587
      %4589 = vrot.lane.b32.xlu0 %v4060, 124
      %v4590 = vpop.permute.xlu0 %4589
      %4591 = vrot.lane.b32.xlu0 %v4061, 124
      %v4592 = vpop.permute.xlu0 %4591
      %4593 = vrot.lane.b32.xlu0 %v4062, 124
      %v4594 = vpop.permute.xlu0 %4593
      %4595 = vrot.lane.b32.xlu0 %v4063, 124
      %v4596 = vpop.permute.xlu0 %4595
      %4597 = vrot.lane.b32.xlu0 %v4064, 124
      %v4598 = vpop.permute.xlu0 %4597
      %4615 = vmatprep.subr.bf16.mxu0 0
      %4616 = vmatpush1.bf16.msra.mxu0 %v4568
      %4617 = vmatprep.subr.bf16.mxu0 0
      %4618 = vmatpush1.bf16.msra.mxu0 %v4570
      %4619 = vmatprep.subr.bf16.mxu0 0
      %4620 = vmatpush1.bf16.msra.mxu0 %v4572
      %4621 = vmatprep.subr.bf16.mxu0 0
      %4622 = vmatpush1.bf16.msra.mxu0 %v4574
      %4623 = vmatprep.subr.bf16.mxu0 0
      %4624 = vmatpush1.bf16.msra.mxu0 %v4576
      %4625 = vmatprep.subr.bf16.mxu0 0
      %4626 = vmatpush1.bf16.msra.mxu0 %v4578
      %4627 = vmatprep.subr.bf16.mxu0 0
      %4628 = vmatpush1.bf16.msra.mxu0 %v4580
      %4629 = vmatprep.subr.bf16.mxu0 0
      %4630 = vmatpush1.bf16.msra.mxu0 %v4582
      %4631 = vmatprep.subr.bf16.mxu0 0
      %4632 = vmatpush1.bf16.msra.mxu0 %v4584
      %4633 = vmatprep.subr.bf16.mxu0 0
      %4634 = vmatpush1.bf16.msra.mxu0 %v4586
      %4635 = vmatprep.subr.bf16.mxu0 0
      %4636 = vmatpush1.bf16.msra.mxu0 %v4588
      %4637 = vmatprep.subr.bf16.mxu0 0
      %4638 = vmatpush1.bf16.msra.mxu0 %v4590
      %4639 = vmatprep.subr.bf16.mxu0 0
      %4640 = vmatpush1.bf16.msra.mxu0 %v4592
      %4641 = vmatprep.subr.bf16.mxu0 0
      %4642 = vmatpush1.bf16.msra.mxu0 %v4594
      %4643 = vmatprep.subr.bf16.mxu0 0
      %4644 = vmatpush1.bf16.msra.mxu0 %v4596
      %4645 = vmatprep.subr.bf16.mxu0 0
      %4646 = vmatpush1.bf16.msra.mxu0 %v4598
      %4647 = vmatprep.mubr.bf16.mxu0 %v4552
      %4648 = vmatmul.mubr.bf16.gmra.mrb[0].mxu0 %v4551
      %v4649 = vpop.f32.mrb[0].mxu0
      %v4650 = vadd.f32 0.0, %v4649
      %v4651 = vpop.f32.mrb[0].mxu0
      %v4652 = vpop.f32.mrb[0].mxu0
      %v4653 = vadd.f32 0.0, %v4652
      %v4654 = vpop.f32.mrb[0].mxu0
      %4655 = vmatprep.mubr.bf16.mxu0 %v4554
      %4656 = vmatmul.mubr.bf16.gmra.mrb[0].mxu0 %v4553
      %v4657 = vpop.f32.mrb[0].mxu0
      %v4658 = vadd.f32 0.0, %v4657
      %v4659 = vpop.f32.mrb[0].mxu0
      %v4660 = vpop.f32.mrb[0].mxu0
      %v4661 = vadd.f32 0.0, %v4660
      %v4662 = vpop.f32.mrb[0].mxu0
      %4663 = vmatprep.mubr.bf16.mxu0 %v4556
      %4664 = vmatmul.mubr.bf16.gmra.mrb[0].mxu0 %v4555
      %v4665 = vpop.f32.mrb[0].mxu0
      %v4666 = vadd.f32 0.0, %v4665
      %v4667 = vpop.f32.mrb[0].mxu0
      %v4668 = vpop.f32.mrb[0].mxu0
      %v4669 = vadd.f32 0.0, %v4668
      %v4670 = vpop.f32.mrb[0].mxu0
      %4671 = vmatprep.mubr.bf16.mxu0 %v4558
      %4672 = vmatmul.mubr.bf16.gmra.mrb[0].mxu0 %v4557
      %v4673 = vpop.f32.mrb[0].mxu0
      %v4674 = vadd.f32 0.0, %v4673
      %v4675 = vpop.f32.mrb[0].mxu0
      %v4676 = vpop.f32.mrb[0].mxu0
      %v4677 = vadd.f32 0.0, %v4676
      %v4678 = vpop.f32.mrb[0].mxu0
      %4679 = vdwg.mxu0
      %v4680 = vadd.f32 %v4510, %v4650
      %v4681 = vadd.f32 %v4511, %v4653
      %v4682 = vadd.f32 %v4512, %v4658
      %v4683 = vadd.f32 %v4513, %v4661
      %v4684 = vadd.f32 %v4514, %v4666
      %v4685 = vadd.f32 %v4515, %v4669
      %v4686 = vadd.f32 %v4516, %v4674
      %v4687 = vadd.f32 %v4517, %v4677
      %s4688 = scalar_lea.vmem %s7, 256
      %v4689 = vld [vmem:[%s4688] sm:$0xff]
      %v4690 = vld [vmem:[%s4688 + $0x8] sm:$0xff]
      %v4691 = vld [vmem:[%s4688 + $0x10] sm:$0xff]
      %v4692 = vld [vmem:[%s4688 + $0x18] sm:$0xff]
      %v4693 = vld [vmem:[%s4688 + $0x20] sm:$0xff]
      %v4694 = vld [vmem:[%s4688 + $0x28] sm:$0xff]
      %v4695 = vld [vmem:[%s4688 + $0x30] sm:$0xff]
      %v4696 = vld [vmem:[%s4688 + $0x38] sm:$0xff]
      %v4705 = vunpack.c.l.b16 %v4689
      %v4706 = vunpack.c.h.b16 %v4689
      %v4707 = vunpack.c.l.b16 %v4690
      %v4708 = vunpack.c.h.b16 %v4690
      %v4709 = vunpack.c.l.b16 %v4691
      %v4710 = vunpack.c.h.b16 %v4691
      %v4711 = vunpack.c.l.b16 %v4692
      %v4712 = vunpack.c.h.b16 %v4692
      %v4713 = vunpack.c.l.b16 %v4693
      %v4714 = vunpack.c.h.b16 %v4693
      %v4715 = vunpack.c.l.b16 %v4694
      %v4716 = vunpack.c.h.b16 %v4694
      %v4717 = vunpack.c.l.b16 %v4695
      %v4718 = vunpack.c.h.b16 %v4695
      %v4719 = vunpack.c.l.b16 %v4696
      %v4720 = vunpack.c.h.b16 %v4696
      %v4721 = vpack.c.b16 %v4707, %v4705
      %v4722 = vpack.c.b16 %v4708, %v4706
      %v4723 = vpack.c.b16 %v4711, %v4709
      %v4724 = vpack.c.b16 %v4712, %v4710
      %v4725 = vpack.c.b16 %v4715, %v4713
      %v4726 = vpack.c.b16 %v4716, %v4714
      %v4727 = vpack.c.b16 %v4719, %v4717
      %v4728 = vpack.c.b16 %v4720, %v4718
      %4737 = vrot.lane.b32.xlu0 %v4049, 119
      %v4738 = vpop.permute.xlu0 %4737
      %4739 = vrot.lane.b32.xlu0 %v4050, 119
      %v4740 = vpop.permute.xlu0 %4739
      %4741 = vrot.lane.b32.xlu0 %v4051, 119
      %v4742 = vpop.permute.xlu0 %4741
      %4743 = vrot.lane.b32.xlu0 %v4052, 119
      %v4744 = vpop.permute.xlu0 %4743
      %4745 = vrot.lane.b32.xlu0 %v4053, 119
      %v4746 = vpop.permute.xlu0 %4745
      %4747 = vrot.lane.b32.xlu0 %v4054, 119
      %v4748 = vpop.permute.xlu0 %4747
      %4749 = vrot.lane.b32.xlu0 %v4055, 119
      %v4750 = vpop.permute.xlu0 %4749
      %4751 = vrot.lane.b32.xlu0 %v4056, 119
      %v4752 = vpop.permute.xlu0 %4751
      %4753 = vrot.lane.b32.xlu0 %v4057, 119
      %v4754 = vpop.permute.xlu0 %4753
      %4755 = vrot.lane.b32.xlu0 %v4058, 119
      %v4756 = vpop.permute.xlu0 %4755
      %4757 = vrot.lane.b32.xlu0 %v4059, 119
      %v4758 = vpop.permute.xlu0 %4757
      %4759 = vrot.lane.b32.xlu0 %v4060, 119
      %v4760 = vpop.permute.xlu0 %4759
      %4761 = vrot.lane.b32.xlu0 %v4061, 119
      %v4762 = vpop.permute.xlu0 %4761
      %4763 = vrot.lane.b32.xlu0 %v4062, 119
      %v4764 = vpop.permute.xlu0 %4763
      %4765 = vrot.lane.b32.xlu0 %v4063, 119
      %v4766 = vpop.permute.xlu0 %4765
      %4767 = vrot.lane.b32.xlu0 %v4064, 119
      %v4768 = vpop.permute.xlu0 %4767
      %4785 = vmatprep.subr.bf16.mxu0 0
      %4786 = vmatpush1.bf16.msra.mxu0 %v4738
      %4787 = vmatprep.subr.bf16.mxu0 0
      %4788 = vmatpush1.bf16.msra.mxu0 %v4740
      %4789 = vmatprep.subr.bf16.mxu0 0
      %4790 = vmatpush1.bf16.msra.mxu0 %v4742
      %4791 = vmatprep.subr.bf16.mxu0 0
      %4792 = vmatpush1.bf16.msra.mxu0 %v4744
      %4793 = vmatprep.subr.bf16.mxu0 0
      %4794 = vmatpush1.bf16.msra.mxu0 %v4746
      %4795 = vmatprep.subr.bf16.mxu0 0
      %4796 = vmatpush1.bf16.msra.mxu0 %v4748
      %4797 = vmatprep.subr.bf16.mxu0 0
      %4798 = vmatpush1.bf16.msra.mxu0 %v4750
      %4799 = vmatprep.subr.bf16.mxu0 0
      %4800 = vmatpush1.bf16.msra.mxu0 %v4752
      %4801 = vmatprep.subr.bf16.mxu0 0
      %4802 = vmatpush1.bf16.msra.mxu0 %v4754
      %4803 = vmatprep.subr.bf16.mxu0 0
      %4804 = vmatpush1.bf16.msra.mxu0 %v4756
      %4805 = vmatprep.subr.bf16.mxu0 0
      %4806 = vmatpush1.bf16.msra.mxu0 %v4758
      %4807 = vmatprep.subr.bf16.mxu0 0
      %4808 = vmatpush1.bf16.msra.mxu0 %v4760
      %4809 = vmatprep.subr.bf16.mxu0 0
      %4810 = vmatpush1.bf16.msra.mxu0 %v4762
      %4811 = vmatprep.subr.bf16.mxu0 0
      %4812 = vmatpush1.bf16.msra.mxu0 %v4764
      %4813 = vmatprep.subr.bf16.mxu0 0
      %4814 = vmatpush1.bf16.msra.mxu0 %v4766
      %4815 = vmatprep.subr.bf16.mxu0 0
      %4816 = vmatpush1.bf16.msra.mxu0 %v4768
      %4817 = vmatprep.mubr.bf16.mxu0 %v4722
      %4818 = vmatmul.mubr.bf16.gmra.mrb[0].mxu0 %v4721
      %v4819 = vpop.f32.mrb[0].mxu0
      %v4820 = vadd.f32 0.0, %v4819
      %v4821 = vpop.f32.mrb[0].mxu0
      %v4822 = vpop.f32.mrb[0].mxu0
      %v4823 = vadd.f32 0.0, %v4822
      %v4824 = vpop.f32.mrb[0].mxu0
      %4825 = vmatprep.mubr.bf16.mxu0 %v4724
      %4826 = vmatmul.mubr.bf16.gmra.mrb[0].mxu0 %v4723
      %v4827 = vpop.f32.mrb[0].mxu0
      %v4828 = vadd.f32 0.0, %v4827
      %v4829 = vpop.f32.mrb[0].mxu0
      %v4830 = vpop.f32.mrb[0].mxu0
      %v4831 = vadd.f32 0.0, %v4830
      %v4832 = vpop.f32.mrb[0].mxu0
      %4833 = vmatprep.mubr.bf16.mxu0 %v4726
      %4834 = vmatmul.mubr.bf16.gmra.mrb[0].mxu0 %v4725
      %v4835 = vpop.f32.mrb[0].mxu0
      %v4836 = vadd.f32 0.0, %v4835
      %v4837 = vpop.f32.mrb[0].mxu0
      %v4838 = vpop.f32.mrb[0].mxu0
      %v4839 = vadd.f32 0.0, %v4838
      %v4840 = vpop.f32.mrb[0].mxu0
      %4841 = vmatprep.mubr.bf16.mxu0 %v4728
      %4842 = vmatmul.mubr.bf16.gmra.mrb[0].mxu0 %v4727
      %v4843 = vpop.f32.mrb[0].mxu0
      %v4844 = vadd.f32 0.0, %v4843
      %v4845 = vpop.f32.mrb[0].mxu0
      %v4846 = vpop.f32.mrb[0].mxu0
      %v4847 = vadd.f32 0.0, %v4846
      %v4848 = vpop.f32.mrb[0].mxu0
      %4849 = vdwg.mxu0
      %v4850 = vadd.f32 %v4680, %v4820
      %v4851 = vadd.f32 %v4681, %v4823
      %v4852 = vadd.f32 %v4682, %v4828
      %v4853 = vadd.f32 %v4683, %v4831
      %v4854 = vadd.f32 %v4684, %v4836
      %v4855 = vadd.f32 %v4685, %v4839
      %v4856 = vadd.f32 %v4686, %v4844
      %v4857 = vadd.f32 %v4687, %v4847
      %s4858 = scalar_lea.vmem %s7, 320
      %v4859 = vld [vmem:[%s4858] sm:$0xff]
      %v4860 = vld [vmem:[%s4858 + $0x8] sm:$0xff]
      %v4861 = vld [vmem:[%s4858 + $0x10] sm:$0xff]
      %v4862 = vld [vmem:[%s4858 + $0x18] sm:$0xff]
      %v4863 = vld [vmem:[%s4858 + $0x20] sm:$0xff]
      %v4864 = vld [vmem:[%s4858 + $0x28] sm:$0xff]
      %v4865 = vld [vmem:[%s4858 + $0x30] sm:$0xff]
      %v4866 = vld [vmem:[%s4858 + $0x38] sm:$0xff]
      %v4875 = vunpack.c.l.b16 %v4859
      %v4876 = vunpack.c.h.b16 %v4859
      %v4877 = vunpack.c.l.b16 %v4860
      %v4878 = vunpack.c.h.b16 %v4860
      %v4879 = vunpack.c.l.b16 %v4861
      %v4880 = vunpack.c.h.b16 %v4861
      %v4881 = vunpack.c.l.b16 %v4862
      %v4882 = vunpack.c.h.b16 %v4862
      %v4883 = vunpack.c.l.b16 %v4863
      %v4884 = vunpack.c.h.b16 %v4863
      %v4885 = vunpack.c.l.b16 %v4864
      %v4886 = vunpack.c.h.b16 %v4864
      %v4887 = vunpack.c.l.b16 %v4865
      %v4888 = vunpack.c.h.b16 %v4865
      %v4889 = vunpack.c.l.b16 %v4866
      %v4890 = vunpack.c.h.b16 %v4866
      %v4891 = vpack.c.b16 %v4877, %v4875
      %v4892 = vpack.c.b16 %v4878, %v4876
      %v4893 = vpack.c.b16 %v4881, %v4879
      %v4894 = vpack.c.b16 %v4882, %v4880
      %v4895 = vpack.c.b16 %v4885, %v4883
      %v4896 = vpack.c.b16 %v4886, %v4884
      %v4897 = vpack.c.b16 %v4889, %v4887
      %v4898 = vpack.c.b16 %v4890, %v4888
      %4907 = vrot.lane.b32.xlu0 %v4049, 118
      %v4908 = vpop.permute.xlu0 %4907
      %4909 = vrot.lane.b32.xlu0 %v4050, 118
      %v4910 = vpop.permute.xlu0 %4909
      %4911 = vrot.lane.b32.xlu0 %v4051, 118
      %v4912 = vpop.permute.xlu0 %4911
      %4913 = vrot.lane.b32.xlu0 %v4052, 118
      %v4914 = vpop.permute.xlu0 %4913
      %4915 = vrot.lane.b32.xlu0 %v4053, 118
      %v4916 = vpop.permute.xlu0 %4915
      %4917 = vrot.lane.b32.xlu0 %v4054, 118
      %v4918 = vpop.permute.xlu0 %4917
      %4919 = vrot.lane.b32.xlu0 %v4055, 118
      %v4920 = vpop.permute.xlu0 %4919
      %4921 = vrot.lane.b32.xlu0 %v4056, 118
      %v4922 = vpop.permute.xlu0 %4921
      %4923 = vrot.lane.b32.xlu0 %v4057, 118
      %v4924 = vpop.permute.xlu0 %4923
      %4925 = vrot.lane.b32.xlu0 %v4058, 118
      %v4926 = vpop.permute.xlu0 %4925
      %4927 = vrot.lane.b32.xlu0 %v4059, 118
      %v4928 = vpop.permute.xlu0 %4927
      %4929 = vrot.lane.b32.xlu0 %v4060, 118
      %v4930 = vpop.permute.xlu0 %4929
      %4931 = vrot.lane.b32.xlu0 %v4061, 118
      %v4932 = vpop.permute.xlu0 %4931
      %4933 = vrot.lane.b32.xlu0 %v4062, 118
      %v4934 = vpop.permute.xlu0 %4933
      %4935 = vrot.lane.b32.xlu0 %v4063, 118
      %v4936 = vpop.permute.xlu0 %4935
      %4937 = vrot.lane.b32.xlu0 %v4064, 118
      %v4938 = vpop.permute.xlu0 %4937
      %4955 = vmatprep.subr.bf16.mxu0 0
      %4956 = vmatpush1.bf16.msra.mxu0 %v4908
      %4957 = vmatprep.subr.bf16.mxu0 0
      %4958 = vmatpush1.bf16.msra.mxu0 %v4910
      %4959 = vmatprep.subr.bf16.mxu0 0
      %4960 = vmatpush1.bf16.msra.mxu0 %v4912
      %4961 = vmatprep.subr.bf16.mxu0 0
      %4962 = vmatpush1.bf16.msra.mxu0 %v4914
      %4963 = vmatprep.subr.bf16.mxu0 0
      %4964 = vmatpush1.bf16.msra.mxu0 %v4916
      %4965 = vmatprep.subr.bf16.mxu0 0
      %4966 = vmatpush1.bf16.msra.mxu0 %v4918
      %4967 = vmatprep.subr.bf16.mxu0 0
      %4968 = vmatpush1.bf16.msra.mxu0 %v4920
      %4969 = vmatprep.subr.bf16.mxu0 0
      %4970 = vmatpush1.bf16.msra.mxu0 %v4922
      %4971 = vmatprep.subr.bf16.mxu0 0
      %4972 = vmatpush1.bf16.msra.mxu0 %v4924
      %4973 = vmatprep.subr.bf16.mxu0 0
      %4974 = vmatpush1.bf16.msra.mxu0 %v4926
      %4975 = vmatprep.subr.bf16.mxu0 0
      %4976 = vmatpush1.bf16.msra.mxu0 %v4928
      %4977 = vmatprep.subr.bf16.mxu0 0
      %4978 = vmatpush1.bf16.msra.mxu0 %v4930
      %4979 = vmatprep.subr.bf16.mxu0 0
      %4980 = vmatpush1.bf16.msra.mxu0 %v4932
      %4981 = vmatprep.subr.bf16.mxu0 0
      %4982 = vmatpush1.bf16.msra.mxu0 %v4934
      %4983 = vmatprep.subr.bf16.mxu0 0
      %4984 = vmatpush1.bf16.msra.mxu0 %v4936
      %4985 = vmatprep.subr.bf16.mxu0 0
      %4986 = vmatpush1.bf16.msra.mxu0 %v4938
      %4987 = vmatprep.mubr.bf16.mxu0 %v4892
      %4988 = vmatmul.mubr.bf16.gmra.mrb[0].mxu0 %v4891
      %v4989 = vpop.f32.mrb[0].mxu0
      %v4990 = vadd.f32 0.0, %v4989
      %v4991 = vpop.f32.mrb[0].mxu0
      %v4992 = vpop.f32.mrb[0].mxu0
      %v4993 = vadd.f32 0.0, %v4992
      %v4994 = vpop.f32.mrb[0].mxu0
      %4995 = vmatprep.mubr.bf16.mxu0 %v4894
      %4996 = vmatmul.mubr.bf16.gmra.mrb[0].mxu0 %v4893
      %v4997 = vpop.f32.mrb[0].mxu0
      %v4998 = vadd.f32 0.0, %v4997
      %v4999 = vpop.f32.mrb[0].mxu0
      %v5000 = vpop.f32.mrb[0].mxu0
      %v5001 = vadd.f32 0.0, %v5000
      %v5002 = vpop.f32.mrb[0].mxu0
      %5003 = vmatprep.mubr.bf16.mxu0 %v4896
      %5004 = vmatmul.mubr.bf16.gmra.mrb[0].mxu0 %v4895
      %v5005 = vpop.f32.mrb[0].mxu0
      %v5006 = vadd.f32 0.0, %v5005
      %v5007 = vpop.f32.mrb[0].mxu0
      %v5008 = vpop.f32.mrb[0].mxu0
      %v5009 = vadd.f32 0.0, %v5008
      %v5010 = vpop.f32.mrb[0].mxu0
      %5011 = vmatprep.mubr.bf16.mxu0 %v4898
      %5012 = vmatmul.mubr.bf16.gmra.mrb[0].mxu0 %v4897
      %v5013 = vpop.f32.mrb[0].mxu0
      %v5014 = vadd.f32 0.0, %v5013
      %v5015 = vpop.f32.mrb[0].mxu0
      %v5016 = vpop.f32.mrb[0].mxu0
      %v5017 = vadd.f32 0.0, %v5016
      %v5018 = vpop.f32.mrb[0].mxu0
      %5019 = vdwg.mxu0
      %v5020 = vadd.f32 %v4850, %v4990
      %v5021 = vadd.f32 %v4851, %v4993
      %v5022 = vadd.f32 %v4852, %v4998
      %v5023 = vadd.f32 %v4853, %v5001
      %v5024 = vadd.f32 %v4854, %v5006
      %v5025 = vadd.f32 %v4855, %v5009
      %v5026 = vadd.f32 %v4856, %v5014
      %v5027 = vadd.f32 %v4857, %v5017
      %s5028 = scalar_lea.vmem %s7, 384
      %v5029 = vld [vmem:[%s5028] sm:$0xff]
      %v5030 = vld [vmem:[%s5028 + $0x8] sm:$0xff]
      %v5031 = vld [vmem:[%s5028 + $0x10] sm:$0xff]
      %v5032 = vld [vmem:[%s5028 + $0x18] sm:$0xff]
      %v5033 = vld [vmem:[%s5028 + $0x20] sm:$0xff]
      %v5034 = vld [vmem:[%s5028 + $0x28] sm:$0xff]
      %v5035 = vld [vmem:[%s5028 + $0x30] sm:$0xff]
      %v5036 = vld [vmem:[%s5028 + $0x38] sm:$0xff]
      %v5045 = vunpack.c.l.b16 %v5029
      %v5046 = vunpack.c.h.b16 %v5029
      %v5047 = vunpack.c.l.b16 %v5030
      %v5048 = vunpack.c.h.b16 %v5030
      %v5049 = vunpack.c.l.b16 %v5031
      %v5050 = vunpack.c.h.b16 %v5031
      %v5051 = vunpack.c.l.b16 %v5032
      %v5052 = vunpack.c.h.b16 %v5032
      %v5053 = vunpack.c.l.b16 %v5033
      %v5054 = vunpack.c.h.b16 %v5033
      %v5055 = vunpack.c.l.b16 %v5034
      %v5056 = vunpack.c.h.b16 %v5034
      %v5057 = vunpack.c.l.b16 %v5035
      %v5058 = vunpack.c.h.b16 %v5035
      %v5059 = vunpack.c.l.b16 %v5036
      %v5060 = vunpack.c.h.b16 %v5036
      %v5061 = vpack.c.b16 %v5047, %v5045
      %v5062 = vpack.c.b16 %v5048, %v5046
      %v5063 = vpack.c.b16 %v5051, %v5049
      %v5064 = vpack.c.b16 %v5052, %v5050
      %v5065 = vpack.c.b16 %v5055, %v5053
      %v5066 = vpack.c.b16 %v5056, %v5054
      %v5067 = vpack.c.b16 %v5059, %v5057
      %v5068 = vpack.c.b16 %v5060, %v5058
      %5077 = vrot.lane.b32.xlu0 %v4049, 116
      %v5078 = vpop.permute.xlu0 %5077
      %5079 = vrot.lane.b32.xlu0 %v4050, 116
      %v5080 = vpop.permute.xlu0 %5079
      %5081 = vrot.lane.b32.xlu0 %v4051, 116
      %v5082 = vpop.permute.xlu0 %5081
      %5083 = vrot.lane.b32.xlu0 %v4052, 116
      %v5084 = vpop.permute.xlu0 %5083
      %5085 = vrot.lane.b32.xlu0 %v4053, 116
      %v5086 = vpop.permute.xlu0 %5085
      %5087 = vrot.lane.b32.xlu0 %v4054, 116
      %v5088 = vpop.permute.xlu0 %5087
      %5089 = vrot.lane.b32.xlu0 %v4055, 116
      %v5090 = vpop.permute.xlu0 %5089
      %5091 = vrot.lane.b32.xlu0 %v4056, 116
      %v5092 = vpop.permute.xlu0 %5091
      %5093 = vrot.lane.b32.xlu0 %v4057, 116
      %v5094 = vpop.permute.xlu0 %5093
      %5095 = vrot.lane.b32.xlu0 %v4058, 116
      %v5096 = vpop.permute.xlu0 %5095
      %5097 = vrot.lane.b32.xlu0 %v4059, 116
      %v5098 = vpop.permute.xlu0 %5097
      %5099 = vrot.lane.b32.xlu0 %v4060, 116
      %v5100 = vpop.permute.xlu0 %5099
      %5101 = vrot.lane.b32.xlu0 %v4061, 116
      %v5102 = vpop.permute.xlu0 %5101
      %5103 = vrot.lane.b32.xlu0 %v4062, 116
      %v5104 = vpop.permute.xlu0 %5103
      %5105 = vrot.lane.b32.xlu0 %v4063, 116
      %v5106 = vpop.permute.xlu0 %5105
      %5107 = vrot.lane.b32.xlu0 %v4064, 116
      %v5108 = vpop.permute.xlu0 %5107
      %5125 = vmatprep.subr.bf16.mxu0 0
      %5126 = vmatpush1.bf16.msra.mxu0 %v5078
      %5127 = vmatprep.subr.bf16.mxu0 0
      %5128 = vmatpush1.bf16.msra.mxu0 %v5080
      %5129 = vmatprep.subr.bf16.mxu0 0
      %5130 = vmatpush1.bf16.msra.mxu0 %v5082
      %5131 = vmatprep.subr.bf16.mxu0 0
      %5132 = vmatpush1.bf16.msra.mxu0 %v5084
      %5133 = vmatprep.subr.bf16.mxu0 0
      %5134 = vmatpush1.bf16.msra.mxu0 %v5086
      %5135 = vmatprep.subr.bf16.mxu0 0
      %5136 = vmatpush1.bf16.msra.mxu0 %v5088
      %5137 = vmatprep.subr.bf16.mxu0 0
      %5138 = vmatpush1.bf16.msra.mxu0 %v5090
      %5139 = vmatprep.subr.bf16.mxu0 0
      %5140 = vmatpush1.bf16.msra.mxu0 %v5092
      %5141 = vmatprep.subr.bf16.mxu0 0
      %5142 = vmatpush1.bf16.msra.mxu0 %v5094
      %5143 = vmatprep.subr.bf16.mxu0 0
      %5144 = vmatpush1.bf16.msra.mxu0 %v5096
      %5145 = vmatprep.subr.bf16.mxu0 0
      %5146 = vmatpush1.bf16.msra.mxu0 %v5098
      %5147 = vmatprep.subr.bf16.mxu0 0
      %5148 = vmatpush1.bf16.msra.mxu0 %v5100
      %5149 = vmatprep.subr.bf16.mxu0 0
      %5150 = vmatpush1.bf16.msra.mxu0 %v5102
      %5151 = vmatprep.subr.bf16.mxu0 0
      %5152 = vmatpush1.bf16.msra.mxu0 %v5104
      %5153 = vmatprep.subr.bf16.mxu0 0
      %5154 = vmatpush1.bf16.msra.mxu0 %v5106
      %5155 = vmatprep.subr.bf16.mxu0 0
      %5156 = vmatpush1.bf16.msra.mxu0 %v5108
      %5157 = vmatprep.mubr.bf16.mxu0 %v5062
      %5158 = vmatmul.mubr.bf16.gmra.mrb[0].mxu0 %v5061
      %v5159 = vpop.f32.mrb[0].mxu0
      %v5160 = vadd.f32 0.0, %v5159
      %v5161 = vpop.f32.mrb[0].mxu0
      %v5162 = vpop.f32.mrb[0].mxu0
      %v5163 = vadd.f32 0.0, %v5162
      %v5164 = vpop.f32.mrb[0].mxu0
      %5165 = vmatprep.mubr.bf16.mxu0 %v5064
      %5166 = vmatmul.mubr.bf16.gmra.mrb[0].mxu0 %v5063
      %v5167 = vpop.f32.mrb[0].mxu0
      %v5168 = vadd.f32 0.0, %v5167
      %v5169 = vpop.f32.mrb[0].mxu0
      %v5170 = vpop.f32.mrb[0].mxu0
      %v5171 = vadd.f32 0.0, %v5170
      %v5172 = vpop.f32.mrb[0].mxu0
      %5173 = vmatprep.mubr.bf16.mxu0 %v5066
      %5174 = vmatmul.mubr.bf16.gmra.mrb[0].mxu0 %v5065
      %v5175 = vpop.f32.mrb[0].mxu0
      %v5176 = vadd.f32 0.0, %v5175
      %v5177 = vpop.f32.mrb[0].mxu0
      %v5178 = vpop.f32.mrb[0].mxu0
      %v5179 = vadd.f32 0.0, %v5178
      %v5180 = vpop.f32.mrb[0].mxu0
      %5181 = vmatprep.mubr.bf16.mxu0 %v5068
      %5182 = vmatmul.mubr.bf16.gmra.mrb[0].mxu0 %v5067
      %v5183 = vpop.f32.mrb[0].mxu0
      %v5184 = vadd.f32 0.0, %v5183
      %v5185 = vpop.f32.mrb[0].mxu0
      %v5186 = vpop.f32.mrb[0].mxu0
      %v5187 = vadd.f32 0.0, %v5186
      %v5188 = vpop.f32.mrb[0].mxu0
      %5189 = vdwg.mxu0
      %v5190 = vadd.f32 %v5020, %v5160
      %v5191 = vadd.f32 %v5021, %v5163
      %v5192 = vadd.f32 %v5022, %v5168
      %v5193 = vadd.f32 %v5023, %v5171
      %v5194 = vadd.f32 %v5024, %v5176
      %v5195 = vadd.f32 %v5025, %v5179
      %v5196 = vadd.f32 %v5026, %v5184
      %v5197 = vadd.f32 %v5027, %v5187
      %s5198 = scalar_lea.vmem %s7, 448
      %v5199 = vld [vmem:[%s5198] sm:$0xff]
      %v5200 = vld [vmem:[%s5198 + $0x8] sm:$0xff]
      %v5201 = vld [vmem:[%s5198 + $0x10] sm:$0xff]
      %v5202 = vld [vmem:[%s5198 + $0x18] sm:$0xff]
      %v5203 = vld [vmem:[%s5198 + $0x20] sm:$0xff]
      %v5204 = vld [vmem:[%s5198 + $0x28] sm:$0xff]
      %v5205 = vld [vmem:[%s5198 + $0x30] sm:$0xff]
      %v5206 = vld [vmem:[%s5198 + $0x38] sm:$0xff]
      %v5215 = vunpack.c.l.b16 %v5199
      %v5216 = vunpack.c.h.b16 %v5199
      %v5217 = vunpack.c.l.b16 %v5200
      %v5218 = vunpack.c.h.b16 %v5200
      %v5219 = vunpack.c.l.b16 %v5201
      %v5220 = vunpack.c.h.b16 %v5201
      %v5221 = vunpack.c.l.b16 %v5202
      %v5222 = vunpack.c.h.b16 %v5202
      %v5223 = vunpack.c.l.b16 %v5203
      %v5224 = vunpack.c.h.b16 %v5203
      %v5225 = vunpack.c.l.b16 %v5204
      %v5226 = vunpack.c.h.b16 %v5204
      %v5227 = vunpack.c.l.b16 %v5205
      %v5228 = vunpack.c.h.b16 %v5205
      %v5229 = vunpack.c.l.b16 %v5206
      %v5230 = vunpack.c.h.b16 %v5206
      %v5231 = vpack.c.b16 %v5217, %v5215
      %v5232 = vpack.c.b16 %v5218, %v5216
      %v5233 = vpack.c.b16 %v5221, %v5219
      %v5234 = vpack.c.b16 %v5222, %v5220
      %v5235 = vpack.c.b16 %v5225, %v5223
      %v5236 = vpack.c.b16 %v5226, %v5224
      %v5237 = vpack.c.b16 %v5229, %v5227
      %v5238 = vpack.c.b16 %v5230, %v5228
      %5247 = vrot.lane.b32.xlu0 %v4049, 115
      %v5248 = vpop.permute.xlu0 %5247
      %5249 = vrot.lane.b32.xlu0 %v4050, 115
      %v5250 = vpop.permute.xlu0 %5249
      %5251 = vrot.lane.b32.xlu0 %v4051, 115
      %v5252 = vpop.permute.xlu0 %5251
      %5253 = vrot.lane.b32.xlu0 %v4052, 115
      %v5254 = vpop.permute.xlu0 %5253
      %5255 = vrot.lane.b32.xlu0 %v4053, 115
      %v5256 = vpop.permute.xlu0 %5255
      %5257 = vrot.lane.b32.xlu0 %v4054, 115
      %v5258 = vpop.permute.xlu0 %5257
      %5259 = vrot.lane.b32.xlu0 %v4055, 115
      %v5260 = vpop.permute.xlu0 %5259
      %5261 = vrot.lane.b32.xlu0 %v4056, 115
      %v5262 = vpop.permute.xlu0 %5261
      %5263 = vrot.lane.b32.xlu0 %v4057, 115
      %v5264 = vpop.permute.xlu0 %5263
      %5265 = vrot.lane.b32.xlu0 %v4058, 115
      %v5266 = vpop.permute.xlu0 %5265
      %5267 = vrot.lane.b32.xlu0 %v4059, 115
      %v5268 = vpop.permute.xlu0 %5267
      %5269 = vrot.lane.b32.xlu0 %v4060, 115
      %v5270 = vpop.permute.xlu0 %5269
      %5271 = vrot.lane.b32.xlu0 %v4061, 115
      %v5272 = vpop.permute.xlu0 %5271
      %5273 = vrot.lane.b32.xlu0 %v4062, 115
      %v5274 = vpop.permute.xlu0 %5273
      %5275 = vrot.lane.b32.xlu0 %v4063, 115
      %v5276 = vpop.permute.xlu0 %5275
      %5277 = vrot.lane.b32.xlu0 %v4064, 115
      %v5278 = vpop.permute.xlu0 %5277
      %5295 = vmatprep.subr.bf16.mxu0 0
      %5296 = vmatpush1.bf16.msra.mxu0 %v5248
      %5297 = vmatprep.subr.bf16.mxu0 0
      %5298 = vmatpush1.bf16.msra.mxu0 %v5250
      %5299 = vmatprep.subr.bf16.mxu0 0
      %5300 = vmatpush1.bf16.msra.mxu0 %v5252
      %5301 = vmatprep.subr.bf16.mxu0 0
      %5302 = vmatpush1.bf16.msra.mxu0 %v5254
      %5303 = vmatprep.subr.bf16.mxu0 0
      %5304 = vmatpush1.bf16.msra.mxu0 %v5256
      %5305 = vmatprep.subr.bf16.mxu0 0
      %5306 = vmatpush1.bf16.msra.mxu0 %v5258
      %5307 = vmatprep.subr.bf16.mxu0 0
      %5308 = vmatpush1.bf16.msra.mxu0 %v5260
      %5309 = vmatprep.subr.bf16.mxu0 0
      %5310 = vmatpush1.bf16.msra.mxu0 %v5262
      %5311 = vmatprep.subr.bf16.mxu0 0
      %5312 = vmatpush1.bf16.msra.mxu0 %v5264
      %5313 = vmatprep.subr.bf16.mxu0 0
      %5314 = vmatpush1.bf16.msra.mxu0 %v5266
      %5315 = vmatprep.subr.bf16.mxu0 0
      %5316 = vmatpush1.bf16.msra.mxu0 %v5268
      %5317 = vmatprep.subr.bf16.mxu0 0
      %5318 = vmatpush1.bf16.msra.mxu0 %v5270
      %5319 = vmatprep.subr.bf16.mxu0 0
      %5320 = vmatpush1.bf16.msra.mxu0 %v5272
      %5321 = vmatprep.subr.bf16.mxu0 0
      %5322 = vmatpush1.bf16.msra.mxu0 %v5274
      %5323 = vmatprep.subr.bf16.mxu0 0
      %5324 = vmatpush1.bf16.msra.mxu0 %v5276
      %5325 = vmatprep.subr.bf16.mxu0 0
      %5326 = vmatpush1.bf16.msra.mxu0 %v5278
      %5327 = vmatprep.mubr.bf16.mxu0 %v5232
      %5328 = vmatmul.mubr.bf16.gmra.mrb[0].mxu0 %v5231
      %v5329 = vpop.f32.mrb[0].mxu0
      %v5330 = vadd.f32 0.0, %v5329
      %v5331 = vpop.f32.mrb[0].mxu0
      %v5332 = vpop.f32.mrb[0].mxu0
      %v5333 = vadd.f32 0.0, %v5332
      %v5334 = vpop.f32.mrb[0].mxu0
      %5335 = vmatprep.mubr.bf16.mxu0 %v5234
      %5336 = vmatmul.mubr.bf16.gmra.mrb[0].mxu0 %v5233
      %v5337 = vpop.f32.mrb[0].mxu0
      %v5338 = vadd.f32 0.0, %v5337
      %v5339 = vpop.f32.mrb[0].mxu0
      %v5340 = vpop.f32.mrb[0].mxu0
      %v5341 = vadd.f32 0.0, %v5340
      %v5342 = vpop.f32.mrb[0].mxu0
      %5343 = vmatprep.mubr.bf16.mxu0 %v5236
      %5344 = vmatmul.mubr.bf16.gmra.mrb[0].mxu0 %v5235
      %v5345 = vpop.f32.mrb[0].mxu0
      %v5346 = vadd.f32 0.0, %v5345
      %v5347 = vpop.f32.mrb[0].mxu0
      %v5348 = vpop.f32.mrb[0].mxu0
      %v5349 = vadd.f32 0.0, %v5348
      %v5350 = vpop.f32.mrb[0].mxu0
      %5351 = vmatprep.mubr.bf16.mxu0 %v5238
      %5352 = vmatmul.mubr.bf16.gmra.mrb[0].mxu0 %v5237
      %v5353 = vpop.f32.mrb[0].mxu0
      %v5354 = vadd.f32 0.0, %v5353
      %v5355 = vpop.f32.mrb[0].mxu0
      %v5356 = vpop.f32.mrb[0].mxu0
      %v5357 = vadd.f32 0.0, %v5356
      %v5358 = vpop.f32.mrb[0].mxu0
      %5359 = vdwg.mxu0
      %v5360 = vadd.f32 %v5190, %v5330
      %v5361 = vadd.f32 %v5191, %v5333
      %v5362 = vadd.f32 %v5192, %v5338
      %v5363 = vadd.f32 %v5193, %v5341
      %v5364 = vadd.f32 %v5194, %v5346
      %v5365 = vadd.f32 %v5195, %v5349
      %v5366 = vadd.f32 %v5196, %v5354
      %v5367 = vadd.f32 %v5197, %v5357
      %v5368 = vld [vmem:[%s8] sm:$0xff]
      %v5369 = vld [vmem:[%s8 + $0x8] sm:$0xff]
      %v5370 = vld [vmem:[%s8 + $0x10] sm:$0xff]
      %v5371 = vld [vmem:[%s8 + $0x18] sm:$0xff]
      %v5372 = vld [vmem:[%s8 + $0x20] sm:$0xff]
      %v5373 = vld [vmem:[%s8 + $0x28] sm:$0xff]
      %v5374 = vld [vmem:[%s8 + $0x30] sm:$0xff]
      %v5375 = vld [vmem:[%s8 + $0x38] sm:$0xff]
      %5377 = vset.pattern.permute.xlu0 0
      %5378 = vperm.xlu0 %5377, %v5368
      %v5379 = vpop.permute.xlu0 %5378
      %5382 = vset.pattern.permute.xlu0 0
      %5383 = vperm.xlu0 %5382, %v5369
      %v5384 = vpop.permute.xlu0 %5383
      %5387 = vset.pattern.permute.xlu0 0
      %5388 = vperm.xlu0 %5387, %v5370
      %v5389 = vpop.permute.xlu0 %5388
      %5392 = vset.pattern.permute.xlu0 0
      %5393 = vperm.xlu0 %5392, %v5371
      %v5394 = vpop.permute.xlu0 %5393
      %5397 = vset.pattern.permute.xlu0 0
      %5398 = vperm.xlu0 %5397, %v5372
      %v5399 = vpop.permute.xlu0 %5398
      %5402 = vset.pattern.permute.xlu0 0
      %5403 = vperm.xlu0 %5402, %v5373
      %v5404 = vpop.permute.xlu0 %5403
      %5407 = vset.pattern.permute.xlu0 0
      %5408 = vperm.xlu0 %5407, %v5374
      %v5409 = vpop.permute.xlu0 %5408
      %5412 = vset.pattern.permute.xlu0 0
      %5413 = vperm.xlu0 %5412, %v5375
      %v5414 = vpop.permute.xlu0 %5413
      %v5416 = vadd.f32 %v5360, %v5379
      %v5417 = vadd.f32 %v5361, %v5384
      %v5418 = vadd.f32 %v5362, %v5389
      %v5419 = vadd.f32 %v5363, %v5394
      %v5420 = vadd.f32 %v5364, %v5399
      %v5421 = vadd.f32 %v5365, %v5404
      %v5422 = vadd.f32 %v5366, %v5409
      %v5423 = vadd.f32 %v5367, %v5414
      %vm5424 = vcmp.ge.f32.partialorder %v5416, 0.0
      %vm5425 = vcmp.ge.f32.partialorder %v5417, 0.0
      %vm5426 = vcmp.ge.f32.partialorder %v5418, 0.0
      %vm5427 = vcmp.ge.f32.partialorder %v5419, 0.0
      %vm5428 = vcmp.ge.f32.partialorder %v5420, 0.0
      %vm5429 = vcmp.ge.f32.partialorder %v5421, 0.0
      %vm5430 = vcmp.ge.f32.partialorder %v5422, 0.0
      %vm5431 = vcmp.ge.f32.partialorder %v5423, 0.0
      %v5432 = vmul.f32 %v5416, 0.2
      %v5433 = vmul.f32 %v5417, 0.2
      %v5434 = vmul.f32 %v5418, 0.2
      %v5435 = vmul.f32 %v5419, 0.2
      %v5436 = vmul.f32 %v5420, 0.2
      %v5437 = vmul.f32 %v5421, 0.2
      %v5438 = vmul.f32 %v5422, 0.2
      %v5439 = vmul.f32 %v5423, 0.2
      %v5440 = vsel %vm5424, %v5416, %v5432
      %v5441 = vsel %vm5425, %v5417, %v5433
      %v5442 = vsel %vm5426, %v5418, %v5434
      %v5443 = vsel %vm5427, %v5419, %v5435
      %v5444 = vsel %vm5428, %v5420, %v5436
      %v5445 = vsel %vm5429, %v5421, %v5437
      %v5446 = vsel %vm5430, %v5422, %v5438
      %v5447 = vsel %vm5431, %v5423, %v5439
      %v5448 = vld [vmem:[%s9] sm:$0xff]
      %v5449 = vld [vmem:[%s9 + $0x8] sm:$0xff]
      %v5450 = vld [vmem:[%s9 + $0x10] sm:$0xff]
      %v5451 = vld [vmem:[%s9 + $0x18] sm:$0xff]
      %v5452 = vld [vmem:[%s9 + $0x20] sm:$0xff]
      %v5453 = vld [vmem:[%s9 + $0x28] sm:$0xff]
      %v5454 = vld [vmem:[%s9 + $0x30] sm:$0xff]
      %v5455 = vld [vmem:[%s9 + $0x38] sm:$0xff]
      %v5456 = vmul.f32 %v5440, %v5448
      %v5457 = vmul.f32 %v5441, %v5449
      %v5458 = vmul.f32 %v5442, %v5450
      %v5459 = vmul.f32 %v5443, %v5451
      %v5460 = vmul.f32 %v5444, %v5452
      %v5461 = vmul.f32 %v5445, %v5453
      %v5462 = vmul.f32 %v5446, %v5454
      %v5463 = vmul.f32 %v5447, %v5455
      %vm5464 = vcmask 113664
      %v5465 = vsel %vm5464, %v5456, 0.0
      %5466 = vadd.xlane.f32.xlu0 %v5465
      %v5467 = vpop.xlane.xlu0 %5466
      %v5468 = vsel %vm5464, %v5457, 0.0
      %5469 = vadd.xlane.f32.xlu0 %v5468
      %v5470 = vpop.xlane.xlu0 %5469
      %v5471 = vsel %vm5464, %v5458, 0.0
      %5472 = vadd.xlane.f32.xlu0 %v5471
      %v5473 = vpop.xlane.xlu0 %5472
      %v5474 = vsel %vm5464, %v5459, 0.0
      %5475 = vadd.xlane.f32.xlu0 %v5474
      %v5476 = vpop.xlane.xlu0 %5475
      %v5477 = vsel %vm5464, %v5460, 0.0
      %5478 = vadd.xlane.f32.xlu0 %v5477
      %v5479 = vpop.xlane.xlu0 %5478
      %v5480 = vsel %vm5464, %v5461, 0.0
      %5481 = vadd.xlane.f32.xlu0 %v5480
      %v5482 = vpop.xlane.xlu0 %5481
      %v5483 = vsel %vm5464, %v5462, 0.0
      %5484 = vadd.xlane.f32.xlu0 %v5483
      %v5485 = vpop.xlane.xlu0 %5484
      %v5486 = vsel %vm5464, %v5463, 0.0
      %5487 = vadd.xlane.f32.xlu0 %v5486
      %v5488 = vpop.xlane.xlu0 %5487
      %v5489 = vadd.f32 %v5467, %v5470
      %v5490 = vadd.f32 %v5489, %v5473
      %v5491 = vadd.f32 %v5490, %v5476
      %v5492 = vadd.f32 %v5491, %v5479
      %v5493 = vadd.f32 %v5492, %v5482
      %v5494 = vadd.f32 %v5493, %v5485
      %v5495 = vadd.f32 %v5494, %v5488
      %v5496 = vrot.slane %v5495, 4
      %v5497 = vadd.f32 %v5495, %v5496
      %v5498 = vrot.slane %v5497, 2
      %v5499 = vadd.f32 %v5497, %v5498
      %v5500 = vrot.slane %v5499, 1
      %v5501 = vadd.f32 %v5499, %v5500
      %v5502 = vld [vmem:[#allocation4] sm:$0x1]
      %v5503 = vadd.f32 %v5501, %v5502
      %vm5504 = vcmask 0
      %5505 = vst.msk [vmem:[%s384] sm:$0x1] %vm5504, %v5503
      %p5506 = scmp.lt.s32.totalorder %s24, 1
      %s5507 = scalar_select %p5506, %s24, 1
      %s5508 = scalar_lea.vmem %s11, %s5507
      // Predicated region
      $region65: #{discriminator_forward.3} parent=63 // pred_check
        %p5509 = pneg %p278
      $region66: #{discriminator_forward.3} parent=63 // pred_check_branch
        %5511 = sbr.rel (%p5509) target = $region68
      $region67: #{discriminator_forward.3} parent=63 // pred_region
        _
      $region68: #{discriminator_forward.3} parent=63 // pred_fallthru
        _
    $region64: #{discriminator_forward.3} parent=5 // pred_fallthru
      _
    %p5512 = scmp.le.s32.totalorder 2, %s19
    // Predicated region
    $region69: #{discriminator_forward.3} parent=5 // pred_check
      %p5513 = pneg %p5512
    $region70: #{discriminator_forward.3} parent=5 // pred_check_branch
      %5515 = sbr.rel (%p5513) target = $region72
    $region71: #{discriminator_forward.3} parent=5 // pred_region
      %s5516 = ssub.s32 %s19, 2
      // Predicated region
      $region73: #{discriminator_forward.3} parent=71 // pred_check
        %p5517 = pneg %p284
      $region74: #{discriminator_forward.3} parent=71 // pred_check_branch
        %5519 = sbr.rel (%p5517) target = $region76
      $region75: #{discriminator_forward.3} parent=71 // pred_region
        %p5520 = scmp.lt.s32.totalorder %s25, 1
        %s5521 = scalar_select %p5520, %s25, 1
        %s5522 = scalar_lea.vmem %s11, %s5521
      $region76: #{discriminator_forward.3} parent=71 // pred_fallthru
        _
    $region72: #{discriminator_forward.3} parent=5 // pred_fallthru
      _
  $region6: #{discriminator_forward.3} parent=0 // loop_footer
    %s23 = sadd.s32 1, %s19
  $region7: #{discriminator_forward.3} parent=0 // loop_footer_branch
    %18 = sbr.rel target = $region3
  $region8: #{discriminator_forward.3} parent=0 // loop_exit
    _

</llo_original>
